<compile_context>
chip_gen: v7x
topology: tpu7x:2x2x1
jax: 0.10.0
libtpu: 0.0.40
codegen_flags: <defaults>
</compile_context>

<pallas_src>
import random
from functools import partial

import jax
import jax.numpy as jnp
from jax import lax
from jax.experimental import pallas as pl
from jax.experimental.pallas import tpu as pltpu

# ----------------------- deterministic stand-in for CfgNode ------------------
CROP_WIDTH, CROP_HEIGHT, CROP_DEPTH = 16, 16, 8
FLIP_RATE = 1.0            # random.random() < 1.0  -> flips always applied
BRIGHTNESS_RATE = 1.0
BRIGHTNESS_RANGE = (-10.0, 10.0)
CONTRAST_RATE = 1.0
CONTRAST_RANGE = (0.75, 1.25)
NOISE_RATE = 1.0
NOISE_GAMMA = 0.1
AFFINE_RATE = 0.0          # random.random() < 0.0  -> branch never taken
ELASTIC_RATE = 0.0
DATASET_MEAN = 0           # falsy  -> normalize subtracts the global image mean
DATASET_STD = 1            # truthy -> divide by 1


# ------------------------------- Pallas kernel --------------------------------
def _photometric_kernel(params_ref, img_ref, noise_ref, out_ref):
    """Photometric pipeline for one sample tile per grid step (lane-dense).

    params_ref : SMEM f32[B, 2]   (brightness offset, contrast factor) per sample
    img_ref    : VMEM f32[1, Z, L] cropped + flipped image tile (L = C*X*Y)
    noise_ref  : VMEM f32[1, Z, L] U[0, NOISE_GAMMA) noise field
    out_ref    : VMEM f32[1, Z, L] (same buffer as the image operand)

    Reference op order: _invert -> _brightness -> _contrast -> _noise -> _normalize.
      * invert + brightness fused: clip(255 + b - x, 0, 255)
      * contrast: torchvision adjust_contrast over the (Z, C, X, Y) permutation.
        With C == 1 the grayscale conversion is identity, so the blend mean is
        the per-Z mean over (C, X, Y) == one lane reduce per row.  Kept in
        255-scale: clip(c*x + (1-c)*mean_z(x), 0, 255) ==
        255 * clip(c*(x/255) + (1-c)*mean_z(x/255), 0, 1).
      * normalize: subtract global mean (dataset_mean falsy), dataset_std == 1.
    """
    b = pl.program_id(0)
    bval = params_ref[b, 0]
    cval = params_ref[b, 1]

    img = img_ref[0]                                       # (Z, L) f32

    # _invert + _brightness  (image.sub_(255).mul_(-1); add(b); clamp(0, 255))
    img = jnp.clip((255.0 + bval) - img, 0.0, 255.0)

    # _contrast
    zmean = jnp.mean(img, axis=-1, keepdims=True)          # (Z, 1) lane reduce
    img = jnp.clip(cval * img + (1.0 - cval) * zmean, 0.0, 255.0)

    # _noise  (noise field generated host-side; see module comment)
    img = img + noise_ref[0]

    # _normalize
    out_ref[0] = img - jnp.mean(img)


def _photometric_batched(img_lane, noise_lane, params):
    """ONE pallas_call over a batch of lane-dense tiles.

    img_lane / noise_lane : f32[B, Z, L]  (L = C*X*Y = 256 here, multiple of 128)
    params                : f32[B, 2]     (brightness, contrast) per sample
    """
    B, Zd, L = img_lane.shape
    blk = pl.BlockSpec((1, Zd, L), lambda b: (b, 0, 0))
    return pl.pallas_call(
        _photometric_kernel,
        out_shape=jax.ShapeDtypeStruct((B, Zd, L), jnp.float32),
        grid=(B,),
        in_specs=[
            pl.BlockSpec(memory_space=pltpu.MemorySpace.SMEM),   # params table
            blk,                                                  # image tiles
            blk,                                                  # noise tiles
        ],
        out_specs=blk,
        # reuse the image operand's buffer as the output buffer
        input_output_aliases={1: 0},
        compiler_params=pltpu.CompilerParams(
            # batch axis is embarrassingly parallel -> shards grid steps across
            # v7x's 2 TensorCores; no-op on v5e/v6e.
            dimension_semantics=("parallel",),
        ),
        # Per-step footprint: 3 x 8 KiB x 2 (double-buffered) — far below the
        # scoped-VMEM defaults (16 MiB v5e, 32 MiB v6e/v7x).
        # TODO(synk): for very large batches, tile several samples per grid step
        # (2–8 MiB blocks, params moved to a per-block VMEM operand) to amortize
        # the ~0.35 us/step overhead toward the HBM roofline.
    )(params, img_lane, noise_lane)


# ------------------------------- jitted device glue ---------------------------
@partial(jax.jit, static_argnames=("flip_flags",))
def _device_transform_batch(images, masks, centers, params, noise_key,
                            skeleton_list, flip_flags):
    B, C, X, Y, Z = images.shape

    # ----- crop1 (+300 pad) and crop2 collapsed into one final window --------
    extra = 300
    w1 = CROP_WIDTH + extra if CROP_WIDTH + extra <= X else X
    h1 = CROP_HEIGHT + extra if CROP_HEIGHT + extra <= Y else Y
    d1 = CROP_DEPTH if CROP_DEPTH <= Z else Z
    w2 = CROP_WIDTH if CROP_WIDTH < w1 else w1
    h2 = CROP_HEIGHT if CROP_HEIGHT < h1 else h1
    d2 = CROP_DEPTH if CROP_DEPTH < d1 else d1

    # crop1 offsets (torch .long() truncates toward zero; the clamp at 0 makes
    # trunc-vs-floor irrelevant for negative values)
    x0 = jnp.clip((centers[:, 0] - (w1 // 2)).astype(jnp.int32), 0, X - w1)
    y0 = jnp.clip((centers[:, 1] - (h1 // 2)).astype(jnp.int32), 0, Y - h1)
    z0 = jnp.clip((centers[:, 2] - (d1 // 2)).astype(jnp.int32), 0, Z - d1)
    # crop2 offsets, relative to the (never materialized) crop1 window
    c2 = centers - jnp.stack([x0, y0, z0], axis=1).astype(jnp.float32)
    x1 = jnp.clip((c2[:, 0] - (w2 // 2)).astype(jnp.int32), 0, w1 - w2)
    y1 = jnp.clip((c2[:, 1] - (h2 // 2)).astype(jnp.int32), 0, h1 - h2)
    z1 = jnp.clip((c2[:, 2] - (d2 // 2)).astype(jnp.int32), 0, d1 - d2)
    X0, Y0, Z0 = x0 + x1, y0 + y1, z0 + z1                 # final offsets (B,)

    def _crop_one(img, msk, ox, oy, oz):
        zero = jnp.int32(0)
        return (lax.dynamic_slice(img, (zero, ox, oy, oz), (C, w2, h2, d2)),
                lax.dynamic_slice(msk, (zero, ox, oy, oz), (C, w2, h2, d2)))

    img_c, msk_c = jax.vmap(_crop_one)(images, masks, X0, Y0, Z0)

    # ----- flips (X, Y, Z) fused into the lane-dense layout copy -------------
    # TODO(synk): for realistic skoots volume sizes, store image/masks lane-dense
    # upstream (e.g. (C, Z, X*Y)) so the crop is a contiguous DMA without the
    # Z-minor 8->128 lane padding of the (C, X, Y, Z) input contract.
    img_lane = jnp.transpose(
        img_c.astype(jnp.float32)[:, :, ::-1, ::-1, ::-1], (0, 4, 1, 2, 3)
    ).reshape(B, d2, C * w2 * h2)
    msk_out = msk_c[:, :, ::-1, ::-1, ::-1]                # masks: crop + flip only

    # ----- noise field (host jax.random; pltpu.prng_* only lowers under Mosaic)
    noise = jax.random.uniform(noise_key, (B, d2, C * w2 * h2),
                               dtype=jnp.float32, minval=0.0, maxval=NOISE_GAMMA)

    # ----- photometric pipeline: ONE batched pallas_call ----------------------
    out_lane = _photometric_batched(img_lane, noise, params)
    # single relayout back to the module's (C, X, Y, Z) contract, only at the
    # consumer boundary
    img_out = jnp.transpose(out_lane.reshape(B, d2, C, w2, h2), (0, 2, 3, 4, 1))

    # ----- skeleton bookkeeping (crop shift + flips), inside the same jit -----
    offs = jnp.stack([X0, Y0, Z0], axis=1).astype(jnp.float32)       # (B, 3)
    size = jnp.asarray([w2, h2, d2], dtype=jnp.float32)
    new_skels = []
    for i, skel in enumerate(skeleton_list):
        if flip_flags[i]:
            # reference skoots code uses `size - coord` (not size - 1 - coord);
            # kept verbatim for fidelity to the original module.
            new_skels.append({k: (size + offs[i]) - v.astype(jnp.float32)
                              for k, v in skel.items()})
        else:
            new_skels.append({k: v.astype(jnp.float32) - offs[i]
                              for k, v in skel.items()})

    return img_out, msk_out, tuple(new_skels)


# ------------------------------- forward wrappers -----------------------------
def transform_forward_batch(data_dicts, seed=42):
    """Batched forward pass: one fused device program + ONE Pallas launch for B
    samples.  Python-level random draws (skeleton choice, brightness, contrast)
    use a seeded random.Random as the stand-in for the reference's `random`
    module; the noise field is drawn by jax.random inside the jit.
    """
    rng = random.Random(seed)
    images, masks_l, centers, params, skels, flips = [], [], [], [], [], []
    for d in data_dicts:
        image, masks, skeletons = d['image'], d['masks'], d['skeletons']
        choice_key = rng.choice(sorted(skeletons.keys()))   # stand-in for random.choice
        bval = rng.uniform(*BRIGHTNESS_RANGE)
        cval = rng.uniform(*CONTRAST_RANGE)
        images.append(image)
        masks_l.append(masks)
        centers.append(jnp.mean(skeletons[choice_key].astype(jnp.float32), axis=0))
        params.append((bval, cval))
        skels.append(skeletons)
        flips.append(-1 not in skeletons)

    images = jnp.stack(images)
    masks_s = jnp.stack(masks_l)
    centers = jnp.stack(centers)
    params = jnp.asarray(params, dtype=jnp.float32)
    noise_key = jax.random.PRNGKey(rng.randint(0, 2 ** 31 - 1))

    # TODO(synk): elastic_deform (F.grid_sample) and the 2-D affine warp have no
    # clean Pallas port here; ELASTIC_RATE = AFFINE_RATE = 0.0 gates them off.
    img_out, msk_out, new_skels = _device_transform_batch(
        images, masks_s, centers, params, noise_key, tuple(skels), tuple(flips))

    outs = []
    for i, d in enumerate(data_dicts):
        o = dict(d)
        o['image'] = img_out[i]
        o['masks'] = msk_out[i]
        o['skeletons'] = new_skels[i]
        # TODO(synk): bake_skeleton / skeleton_to_mask are external skoots
        # utilities (not provided in the reference); 'baked_skeleton' and
        # 'skele_masks' omitted.
        outs.append(o)
    return outs


def transform_forward(data_dict, seed=42):
    """Single-sample forward pass of TransformFromCfg (batch of 1)."""
    return transform_forward_batch([data_dict], seed=seed)[0]


# ---------------------------------- main ---------------------------------------
if __name__ == "__main__":
    root = jax.random.PRNGKey(0)

    C, X, Y, Z = 1, 32, 32, 8
    B = 2
    data_dicts = []
    for _ in range(B):
        k1, k2, k3, root = jax.random.split(root, 4)
        image = jax.random.uniform(k1, (C, X, Y, Z), dtype=jnp.float32) * 255.0
        masks = (jax.random.uniform(k2, (C, X, Y, Z)) > 0.5).astype(jnp.int8)
        skel = (jax.random.uniform(k3, (5, 3), dtype=jnp.float32)
                * jnp.asarray([X, Y, Z], dtype=jnp.float32))
        data_dicts.append({'image': image, 'masks': masks, 'skeletons': {1: skel}})

    outs = transform_forward_batch(data_dicts, seed=42)
    jax.block_until_ready([o['image'] for o in outs])
    jax.block_until_ready([o['masks'] for o in outs])

    for o in outs:
        assert o['image'].shape == (C, CROP_WIDTH, CROP_HEIGHT, CROP_DEPTH)
        assert o['image'].dtype == jnp.float32
        assert o['masks'].shape == (C, CROP_WIDTH, CROP_HEIGHT, CROP_DEPTH)
        assert o['masks'].dtype == jnp.int8
        assert bool(jnp.isfinite(o['image']).all())
        assert o['skeletons'][1].shape == (5, 3)
    print("KERNEL_OK")
</pallas_src>

<mosaic_0001>
module attributes {stable_mosaic.version = 11 : i64} {
  func.func @_photometric_kernel(%arg0: i32, %arg1: memref<2x2xf32, #tpu.memory_space<smem>>, %arg2: memref<1x8x256xf32, #tpu.memory_space<vmem>>, %arg3: memref<1x8x256xf32, #tpu.memory_space<vmem>>, %arg4: memref<1x8x256xf32, #tpu.memory_space<vmem>>) attributes {dimension_semantics = [#tpu.dimension_semantics<parallel>], iteration_bounds = array<i64: 2>, scalar_prefetch = 0 : i64, scratch_operands = 0 : i64, tpu.core_type = #tpu.core_type<tc>, window_params = [{transform_indices = @transform_0, window_bounds = array<i64: 2, 2>}, {transform_indices = @transform_1, window_bounds = array<i64: 1, 8, 256>}, {transform_indices = @transform_2, window_bounds = array<i64: 1, 8, 256>}, {transform_indices = @transform_3, window_bounds = array<i64: 1, 8, 256>}]} {
    %0 = arith.index_cast %arg0 : i32 to index
    %c0 = arith.constant 0 : index
    %1 = memref.load %arg1[%0, %c0] : memref<2x2xf32, #tpu.memory_space<smem>>
    %2 = arith.index_cast %arg0 : i32 to index
    %c1 = arith.constant 1 : index
    %3 = memref.load %arg1[%2, %c1] : memref<2x2xf32, #tpu.memory_space<smem>>
    %c0_0 = arith.constant 0 : index
    %c0_1 = arith.constant 0 : index
    %c0_2 = arith.constant 0 : index
    %4 = vector.load %arg2[%c0_0, %c0_1, %c0_2] : memref<1x8x256xf32, #tpu.memory_space<vmem>>, vector<1x8x256xf32>
    %5 = vector.shape_cast %4 : vector<1x8x256xf32> to vector<8x256xf32>
    %cst = arith.constant 2.550000e+02 : f32
    %6 = arith.addf %cst, %1 : f32
    %7 = vector.broadcast %6 : f32 to vector<8x256xf32>
    %8 = arith.subf %7, %5 : vector<8x256xf32>
    %cst_3 = arith.constant 0.000000e+00 : f32
    %cst_4 = arith.constant 2.550000e+02 : f32
    %9 = vector.broadcast %cst_3 : f32 to vector<8x256xf32>
    %10 = arith.maximumf %9, %8 : vector<8x256xf32>
    %11 = vector.broadcast %cst_4 : f32 to vector<8x256xf32>
    %12 = arith.minimumf %11, %10 : vector<8x256xf32>
    %cst_5 = arith.constant dense<0.000000e+00> : vector<8xf32>
    %13 = vector.multi_reduction <add>, %12, %cst_5 [1] : vector<8x256xf32> to vector<8xf32>
    %14 = vector.shape_cast %13 : vector<8xf32> to vector<8x1xf32>
    %cst_6 = arith.constant 2.560000e+02 : f32
    %15 = vector.broadcast %cst_6 : f32 to vector<8x1xf32>
    %16 = arith.divf %14, %15 : vector<8x1xf32>
    %17 = vector.broadcast %3 : f32 to vector<8x256xf32>
    %18 = arith.mulf %17, %12 : vector<8x256xf32>
    %cst_7 = arith.constant 1.000000e+00 : f32
    %19 = arith.subf %cst_7, %3 : f32
    %20 = vector.broadcast %19 : f32 to vector<8x1xf32>
    %21 = arith.mulf %20, %16 : vector<8x1xf32>
    %22 = vector.broadcast %21 : vector<8x1xf32> to vector<8x256xf32>
    %23 = arith.addf %18, %22 : vector<8x256xf32>
    %cst_8 = arith.constant 0.000000e+00 : f32
    %cst_9 = arith.constant 2.550000e+02 : f32
    %24 = vector.broadcast %cst_8 : f32 to vector<8x256xf32>
    %25 = arith.maximumf %24, %23 : vector<8x256xf32>
    %26 = vector.broadcast %cst_9 : f32 to vector<8x256xf32>
    %27 = arith.minimumf %26, %25 : vector<8x256xf32>
    %c0_10 = arith.constant 0 : index
    %c0_11 = arith.constant 0 : index
    %c0_12 = arith.constant 0 : index
    %28 = vector.load %arg3[%c0_10, %c0_11, %c0_12] : memref<1x8x256xf32, #tpu.memory_space<vmem>>, vector<1x8x256xf32>
    %29 = vector.shape_cast %28 : vector<1x8x256xf32> to vector<8x256xf32>
    %30 = arith.addf %27, %29 : vector<8x256xf32>
    %31 = vector.shape_cast %30 : vector<8x256xf32> to vector<1x8x256xf32>
    %cst_13 = arith.constant dense<0.000000e+00> : vector<1xf32>
    %32 = vector.multi_reduction <add>, %31, %cst_13 [1, 2] : vector<1x8x256xf32> to vector<1xf32>
    %33 = vector.shape_cast %32 : vector<1xf32> to vector<1x1x1xf32>
    %34 = vector.extract %33[0, 0, 0] : f32 from vector<1x1x1xf32>
    %cst_14 = arith.constant 2.048000e+03 : f32
    %35 = arith.divf %34, %cst_14 : f32
    %36 = vector.broadcast %35 : f32 to vector<8x256xf32>
    %37 = arith.subf %30, %36 : vector<8x256xf32>
    %c0_15 = arith.constant 0 : index
    %c0_16 = arith.constant 0 : index
    %c0_17 = arith.constant 0 : index
    %38 = vector.load %arg4[%c0_15, %c0_16, %c0_17] : memref<1x8x256xf32, #tpu.memory_space<vmem>>, vector<1x8x256xf32>
    %39 = vector.shape_cast %38 : vector<1x8x256xf32> to vector<8x256xf32>
    %40 = vector.shape_cast %37 : vector<8x256xf32> to vector<1x8x256xf32>
    tpu.vector_store %arg4[%c0_15, %c0_16, %c0_17], %40 {strides = array<i32>} : memref<1x8x256xf32, #tpu.memory_space<vmem>>, vector<1x8x256xf32>,
    return
  }
  func.func @transform_0(%arg0: i32) -> (i32, i32) {
    %c0_i32 = arith.constant 0 : i32
    %c0_i32_0 = arith.constant 0 : i32
    %c0_i32_1 = arith.constant 0 : i32
    return %c0_i32, %c0_i32_0 : i32, i32
  }
  func.func @transform_1(%arg0: i32) -> (i32, i32, i32) {
    %c0_i32 = arith.constant 0 : i32
    %c0_i32_0 = arith.constant 0 : i32
    %c0_i32_1 = arith.constant 0 : i32
    return %arg0, %c0_i32, %c0_i32_0 : i32, i32, i32
  }
  func.func @transform_2(%arg0: i32) -> (i32, i32, i32) {
    %c0_i32 = arith.constant 0 : i32
    %c0_i32_0 = arith.constant 0 : i32
    %c0_i32_1 = arith.constant 0 : i32
    return %arg0, %c0_i32, %c0_i32_0 : i32, i32, i32
  }
  func.func @transform_3(%arg0: i32) -> (i32, i32, i32) {
    %c0_i32 = arith.constant 0 : i32
    %c0_i32_0 = arith.constant 0 : i32
    %c0_i32_1 = arith.constant 0 : i32
    return %arg0, %c0_i32, %c0_i32_0 : i32, i32, i32
  }
}

</mosaic_0001>

<llo_original>
// kernel: reverse
$region0: #{reverse}
  %s0 = inlined_call_operand.vmem [shape: f32[2,16,16,8], index: 0, kind: input, shape index: {}]
  %s1 = inlined_call_operand.vmem [shape: f32[2,16,16,8], index: 1, kind: output, shape index: {}]
  %v2 = vlaneseq
  %v3 = vsub.s32 7, %v2
  %4 = vset.pattern.permute.xlu0 %v3
  $region1: #{reverse} parent=0
    #allocation0 [shape = 'u8[524288]{0}', space=vmem, size = 0x80000, scoped, tag = 'operand span for operand 0']
    #allocation1 [shape = 'u8[262144]{0}', space=vmem, size = 0x40000, scoped, tag = 'packed  for operand 0']
    #allocation2 [shape = 'u8[524288]{0}', space=vmem, size = 0x80000, scoped, tag = 'operand span for operand 1']
    #allocation3 [shape = 'u8[262144]{0}', space=vmem, size = 0x40000, scoped, tag = 'packed  for operand 1']
    loop: start=0, step=1, limit=4
    $region2: #{reverse} parent=1 // loop_pre_header
      _
    $region3: #{reverse} parent=1 // loop_header
      %s6 = sphi 0, %s10
      %p7 = scmp.ge.s32.totalorder %s6, 4
      %s13 = sphi 0, %s39
      %s14 = sphi 0, %s35
      %s15 = sphi 0, %s31
      %s16 = sphi 0, %s27
      %s17 = sphi 0, %s13
      %s18 = sphi 0, %s14
      %s19 = sphi 0, %s15
      %s20 = sphi 0, %s16
      %s21 = sphi 0, %s17
      %s22 = sphi 0, %s18
      %s23 = sphi 0, %s19
      %s24 = sphi 0, %s20
    $region4: #{reverse} parent=1 // loop_header_branch
      %9 = sbr.rel (%p7) target = $region8
    $region5: #{reverse} parent=1 // loop_body
      %s11 = ssub.s32 %s6, 1
      %s12 = ssub.s32 %s6, 2
      %s25 = sadd.s32 1, %s16
      %p26 = scmp.ge.s32.totalorder %s25, 1
      %s27 = scalar_select %p26, 0, %s25
      %s28 = sadd.s32 1, %s15
      %s29 = scalar_select %p26, %s28, %s15
      %p30 = scmp.ge.s32.totalorder %s29, 1
      %s31 = scalar_select %p30, 0, %s29
      %s32 = sadd.s32 1, %s14
      %s33 = scalar_select %p30, %s32, %s14
      %p34 = scmp.ge.s32.totalorder %s33, 2
      %s35 = scalar_select %p34, 0, %s33
      %s36 = sadd.s32 1, %s13
      %s37 = scalar_select %p34, %s36, %s13
      %p38 = scmp.ge.s32.totalorder %s37, 1
      %s39 = scalar_select %p38, 0, %s37
      %p40 = scmp.le.s32.totalorder 1, %s6
      %p41 = scmp.lt.s32.totalorder %s6, 3
      %p42 = pnand %p40, %p41
      %p43 = pneg %p42
      // Predicated region
      $region9: #{reverse} parent=5 // pred_check
        _
      $region10: #{reverse} parent=5 // pred_check_branch
        %45 = sbr.rel (%p42) target = $region12
      $region11: #{reverse} parent=5 // pred_region
        %s46 = ssub.s32 %s6, 1
      $region12: #{reverse} parent=5 // pred_fallthru
        _
      %p47 = scmp.lt.s32.totalorder %s6, 2
      // Predicated region
      $region13: #{reverse} parent=5 // pred_check
        %p48 = pneg %p47
      $region14: #{reverse} parent=5 // pred_check_branch
        %50 = sbr.rel (%p48) target = $region16
      $region15: #{reverse} parent=5 // pred_region
        %s51 = sand.u32 %s6, 1
        %s52 = sand.u32 %s6, 1
        %s53 = smul.addr %s52, 256
        %s54 = scalar_lea.vmem [#allocation1], %s53
        %s55 = ssub.s32 0, %s13
        %s56 = ssub.s32 1, %s14
        %s57 = ssub.s32 0, %s16
        %s58 = smul.u32 16, %s55
        %s59 = smul.u32 8, %s56
        %s60 = sadd.s32 %s57, %s15
        %s61 = sadd.s32 %s60, %s59
        %s62 = smul.addr %s58, 16
        %s63 = sadd.s32 %s61, %s62
        %s64 = smul.addr %s63, 2
        %s65 = scalar_lea.vmem %s0, %s64
        // Predicated region
        $region17: #{reverse} parent=15 // pred_check
          _
        $region18: #{reverse} parent=15 // pred_check_branch
          %67 = sbr.rel (0) target = $region20
        $region19: #{reverse} parent=15 // pred_region
          // Predicated region
          $region21: #{reverse} parent=19 // pred_check
            _
          $region22: #{reverse} parent=19 // pred_check_branch
            %69 = sbr.rel target = $region24
          $region23: #{reverse} parent=19 // pred_region
            // Predicated region
            $region36: #{reverse} parent=23 // pred_check
              _
            $region37: #{reverse} parent=23 // pred_check_branch
              %338 = sbr.rel (0) target = $region39
            $region38: #{reverse} parent=23 // pred_region
              loop: start=0, step=1, limit=1
              $region40: #{reverse} parent=38 // loop_pre_header
                _
              $region41: #{reverse} parent=38 // loop_header
                %s340 = sphi 0, %s344
                %p341 = scmp.ge.s32.totalorder %s340, 1
                %s345 = sphi %s65, %s65
                %s346 = sphi %s54, %s54
              $region42: #{reverse} parent=38 // loop_header_branch
                %343 = sbr.rel (%p341) target = $region46
              $region43: #{reverse} parent=38 // loop_body
                _
              $region44: #{reverse} parent=38 // loop_footer
                %s344 = sadd.s32 1, %s340
              $region45: #{reverse} parent=38 // loop_footer_branch
                %339 = sbr.rel target = $region41
              $region46: #{reverse} parent=38 // loop_exit
                _
              loop: start=0, step=1, limit=1
              $region47: #{reverse} parent=38 // loop_pre_header
                _
              $region48: #{reverse} parent=38 // loop_header
                %s349 = sphi 0, %s353
                %p350 = scmp.ge.s32.totalorder %s349, 1
                %s354 = sphi %s65, %s65
                %s355 = sphi %s54, %s54
              $region49: #{reverse} parent=38 // loop_header_branch
                %352 = sbr.rel (%p350) target = $region53
              $region50: #{reverse} parent=38 // loop_body
                %v356 = vld [vmem:[%s354] sm:$0x3]
                %357 = vst [vmem:[%s355] sm:$0x3] %v356
                %v358 = vld [vmem:[%s354 + $0x2] sm:$0x3]
                %359 = vst [vmem:[%s355 + $0x2] sm:$0x3] %v358
                %v360 = vld [vmem:[%s354 + $0x4] sm:$0x3]
                %361 = vst [vmem:[%s355 + $0x4] sm:$0x3] %v360
                %v362 = vld [vmem:[%s354 + $0x6] sm:$0x3]
                %363 = vst [vmem:[%s355 + $0x6] sm:$0x3] %v362
                %v364 = vld [vmem:[%s354 + $0x8] sm:$0x3]
                %365 = vst [vmem:[%s355 + $0x8] sm:$0x3] %v364
                %v366 = vld [vmem:[%s354 + $0xa] sm:$0x3]
                %367 = vst [vmem:[%s355 + $0xa] sm:$0x3] %v366
                %v368 = vld [vmem:[%s354 + $0xc] sm:$0x3]
                %369 = vst [vmem:[%s355 + $0xc] sm:$0x3] %v368
                %v370 = vld [vmem:[%s354 + $0xe] sm:$0x3]
                %371 = vst [vmem:[%s355 + $0xe] sm:$0x3] %v370
                %v372 = vld [vmem:[%s354 + $0x20] sm:$0x3]
                %373 = vst [vmem:[%s355 + $0x10] sm:$0x3] %v372
                %v374 = vld [vmem:[%s354 + $0x22] sm:$0x3]
                %375 = vst [vmem:[%s355 + $0x12] sm:$0x3] %v374
                %v376 = vld [vmem:[%s354 + $0x24] sm:$0x3]
                %377 = vst [vmem:[%s355 + $0x14] sm:$0x3] %v376
                %v378 = vld [vmem:[%s354 + $0x26] sm:$0x3]
                %379 = vst [vmem:[%s355 + $0x16] sm:$0x3] %v378
                %v380 = vld [vmem:[%s354 + $0x28] sm:$0x3]
                %381 = vst [vmem:[%s355 + $0x18] sm:$0x3] %v380
                %v382 = vld [vmem:[%s354 + $0x2a] sm:$0x3]
                %383 = vst [vmem:[%s355 + $0x1a] sm:$0x3] %v382
                %v384 = vld [vmem:[%s354 + $0x2c] sm:$0x3]
                %385 = vst [vmem:[%s355 + $0x1c] sm:$0x3] %v384
                %v386 = vld [vmem:[%s354 + $0x2e] sm:$0x3]
                %387 = vst [vmem:[%s355 + $0x1e] sm:$0x3] %v386
                %v388 = vld [vmem:[%s354 + $0x40] sm:$0x3]
                %389 = vst [vmem:[%s355 + $0x20] sm:$0x3] %v388
                %v390 = vld [vmem:[%s354 + $0x42] sm:$0x3]
                %391 = vst [vmem:[%s355 + $0x22] sm:$0x3] %v390
                %v392 = vld [vmem:[%s354 + $0x44] sm:$0x3]
                %393 = vst [vmem:[%s355 + $0x24] sm:$0x3] %v392
                %v394 = vld [vmem:[%s354 + $0x46] sm:$0x3]
                %395 = vst [vmem:[%s355 + $0x26] sm:$0x3] %v394
                %v396 = vld [vmem:[%s354 + $0x48] sm:$0x3]
                %397 = vst [vmem:[%s355 + $0x28] sm:$0x3] %v396
                %v398 = vld [vmem:[%s354 + $0x4a] sm:$0x3]
                %399 = vst [vmem:[%s355 + $0x2a] sm:$0x3] %v398
                %v400 = vld [vmem:[%s354 + $0x4c] sm:$0x3]
                %401 = vst [vmem:[%s355 + $0x2c] sm:$0x3] %v400
                %v402 = vld [vmem:[%s354 + $0x4e] sm:$0x3]
                %403 = vst [vmem:[%s355 + $0x2e] sm:$0x3] %v402
                %v404 = vld [vmem:[%s354 + $0x60] sm:$0x3]
                %405 = vst [vmem:[%s355 + $0x30] sm:$0x3] %v404
                %v406 = vld [vmem:[%s354 + $0x62] sm:$0x3]
                %407 = vst [vmem:[%s355 + $0x32] sm:$0x3] %v406
                %v408 = vld [vmem:[%s354 + $0x64] sm:$0x3]
                %409 = vst [vmem:[%s355 + $0x34] sm:$0x3] %v408
                %v410 = vld [vmem:[%s354 + $0x66] sm:$0x3]
                %411 = vst [vmem:[%s355 + $0x36] sm:$0x3] %v410
                %v412 = vld [vmem:[%s354 + $0x68] sm:$0x3]
                %413 = vst [vmem:[%s355 + $0x38] sm:$0x3] %v412
                %v414 = vld [vmem:[%s354 + $0x6a] sm:$0x3]
                %415 = vst [vmem:[%s355 + $0x3a] sm:$0x3] %v414
                %v416 = vld [vmem:[%s354 + $0x6c] sm:$0x3]
                %417 = vst [vmem:[%s355 + $0x3c] sm:$0x3] %v416
                %v418 = vld [vmem:[%s354 + $0x6e] sm:$0x3]
                %419 = vst [vmem:[%s355 + $0x3e] sm:$0x3] %v418
                %v420 = vld [vmem:[%s354 + $0x80] sm:$0x3]
                %421 = vst [vmem:[%s355 + $0x40] sm:$0x3] %v420
                %v422 = vld [vmem:[%s354 + $0x82] sm:$0x3]
                %423 = vst [vmem:[%s355 + $0x42] sm:$0x3] %v422
                %v424 = vld [vmem:[%s354 + $0x84] sm:$0x3]
                %425 = vst [vmem:[%s355 + $0x44] sm:$0x3] %v424
                %v426 = vld [vmem:[%s354 + $0x86] sm:$0x3]
                %427 = vst [vmem:[%s355 + $0x46] sm:$0x3] %v426
                %v428 = vld [vmem:[%s354 + $0x88] sm:$0x3]
                %429 = vst [vmem:[%s355 + $0x48] sm:$0x3] %v428
                %v430 = vld [vmem:[%s354 + $0x8a] sm:$0x3]
                %431 = vst [vmem:[%s355 + $0x4a] sm:$0x3] %v430
                %v432 = vld [vmem:[%s354 + $0x8c] sm:$0x3]
                %433 = vst [vmem:[%s355 + $0x4c] sm:$0x3] %v432
                %v434 = vld [vmem:[%s354 + $0x8e] sm:$0x3]
                %435 = vst [vmem:[%s355 + $0x4e] sm:$0x3] %v434
                %v436 = vld [vmem:[%s354 + $0xa0] sm:$0x3]
                %437 = vst [vmem:[%s355 + $0x50] sm:$0x3] %v436
                %v438 = vld [vmem:[%s354 + $0xa2] sm:$0x3]
                %439 = vst [vmem:[%s355 + $0x52] sm:$0x3] %v438
                %v440 = vld [vmem:[%s354 + $0xa4] sm:$0x3]
                %441 = vst [vmem:[%s355 + $0x54] sm:$0x3] %v440
                %v442 = vld [vmem:[%s354 + $0xa6] sm:$0x3]
                %443 = vst [vmem:[%s355 + $0x56] sm:$0x3] %v442
                %v444 = vld [vmem:[%s354 + $0xa8] sm:$0x3]
                %445 = vst [vmem:[%s355 + $0x58] sm:$0x3] %v444
                %v446 = vld [vmem:[%s354 + $0xaa] sm:$0x3]
                %447 = vst [vmem:[%s355 + $0x5a] sm:$0x3] %v446
                %v448 = vld [vmem:[%s354 + $0xac] sm:$0x3]
                %449 = vst [vmem:[%s355 + $0x5c] sm:$0x3] %v448
                %v450 = vld [vmem:[%s354 + $0xae] sm:$0x3]
                %451 = vst [vmem:[%s355 + $0x5e] sm:$0x3] %v450
                %v452 = vld [vmem:[%s354 + $0xc0] sm:$0x3]
                %453 = vst [vmem:[%s355 + $0x60] sm:$0x3] %v452
                %v454 = vld [vmem:[%s354 + $0xc2] sm:$0x3]
                %455 = vst [vmem:[%s355 + $0x62] sm:$0x3] %v454
                %v456 = vld [vmem:[%s354 + $0xc4] sm:$0x3]
                %457 = vst [vmem:[%s355 + $0x64] sm:$0x3] %v456
                %v458 = vld [vmem:[%s354 + $0xc6] sm:$0x3]
                %459 = vst [vmem:[%s355 + $0x66] sm:$0x3] %v458
                %v460 = vld [vmem:[%s354 + $0xc8] sm:$0x3]
                %461 = vst [vmem:[%s355 + $0x68] sm:$0x3] %v460
                %v462 = vld [vmem:[%s354 + $0xca] sm:$0x3]
                %463 = vst [vmem:[%s355 + $0x6a] sm:$0x3] %v462
                %v464 = vld [vmem:[%s354 + $0xcc] sm:$0x3]
                %465 = vst [vmem:[%s355 + $0x6c] sm:$0x3] %v464
                %v466 = vld [vmem:[%s354 + $0xce] sm:$0x3]
                %467 = vst [vmem:[%s355 + $0x6e] sm:$0x3] %v466
                %v468 = vld [vmem:[%s354 + $0xe0] sm:$0x3]
                %469 = vst [vmem:[%s355 + $0x70] sm:$0x3] %v468
                %v470 = vld [vmem:[%s354 + $0xe2] sm:$0x3]
                %471 = vst [vmem:[%s355 + $0x72] sm:$0x3] %v470
                %v472 = vld [vmem:[%s354 + $0xe4] sm:$0x3]
                %473 = vst [vmem:[%s355 + $0x74] sm:$0x3] %v472
                %v474 = vld [vmem:[%s354 + $0xe6] sm:$0x3]
                %475 = vst [vmem:[%s355 + $0x76] sm:$0x3] %v474
                %v476 = vld [vmem:[%s354 + $0xe8] sm:$0x3]
                %477 = vst [vmem:[%s355 + $0x78] sm:$0x3] %v476
                %v478 = vld [vmem:[%s354 + $0xea] sm:$0x3]
                %479 = vst [vmem:[%s355 + $0x7a] sm:$0x3] %v478
                %v480 = vld [vmem:[%s354 + $0xec] sm:$0x3]
                %481 = vst [vmem:[%s355 + $0x7c] sm:$0x3] %v480
                %v482 = vld [vmem:[%s354 + $0xee] sm:$0x3]
                %483 = vst [vmem:[%s355 + $0x7e] sm:$0x3] %v482
                %v484 = vld [vmem:[%s354 + $0x100] sm:$0x3]
                %485 = vst [vmem:[%s355 + $0x80] sm:$0x3] %v484
                %v486 = vld [vmem:[%s354 + $0x102] sm:$0x3]
                %487 = vst [vmem:[%s355 + $0x82] sm:$0x3] %v486
                %v488 = vld [vmem:[%s354 + $0x104] sm:$0x3]
                %489 = vst [vmem:[%s355 + $0x84] sm:$0x3] %v488
                %v490 = vld [vmem:[%s354 + $0x106] sm:$0x3]
                %491 = vst [vmem:[%s355 + $0x86] sm:$0x3] %v490
                %v492 = vld [vmem:[%s354 + $0x108] sm:$0x3]
                %493 = vst [vmem:[%s355 + $0x88] sm:$0x3] %v492
                %v494 = vld [vmem:[%s354 + $0x10a] sm:$0x3]
                %495 = vst [vmem:[%s355 + $0x8a] sm:$0x3] %v494
                %v496 = vld [vmem:[%s354 + $0x10c] sm:$0x3]
                %497 = vst [vmem:[%s355 + $0x8c] sm:$0x3] %v496
                %v498 = vld [vmem:[%s354 + $0x10e] sm:$0x3]
                %499 = vst [vmem:[%s355 + $0x8e] sm:$0x3] %v498
                %v500 = vld [vmem:[%s354 + $0x120] sm:$0x3]
                %501 = vst [vmem:[%s355 + $0x90] sm:$0x3] %v500
                %v502 = vld [vmem:[%s354 + $0x122] sm:$0x3]
                %503 = vst [vmem:[%s355 + $0x92] sm:$0x3] %v502
                %v504 = vld [vmem:[%s354 + $0x124] sm:$0x3]
                %505 = vst [vmem:[%s355 + $0x94] sm:$0x3] %v504
                %v506 = vld [vmem:[%s354 + $0x126] sm:$0x3]
                %507 = vst [vmem:[%s355 + $0x96] sm:$0x3] %v506
                %v508 = vld [vmem:[%s354 + $0x128] sm:$0x3]
                %509 = vst [vmem:[%s355 + $0x98] sm:$0x3] %v508
                %v510 = vld [vmem:[%s354 + $0x12a] sm:$0x3]
                %511 = vst [vmem:[%s355 + $0x9a] sm:$0x3] %v510
                %v512 = vld [vmem:[%s354 + $0x12c] sm:$0x3]
                %513 = vst [vmem:[%s355 + $0x9c] sm:$0x3] %v512
                %v514 = vld [vmem:[%s354 + $0x12e] sm:$0x3]
                %515 = vst [vmem:[%s355 + $0x9e] sm:$0x3] %v514
                %v516 = vld [vmem:[%s354 + $0x140] sm:$0x3]
                %517 = vst [vmem:[%s355 + $0xa0] sm:$0x3] %v516
                %v518 = vld [vmem:[%s354 + $0x142] sm:$0x3]
                %519 = vst [vmem:[%s355 + $0xa2] sm:$0x3] %v518
                %v520 = vld [vmem:[%s354 + $0x144] sm:$0x3]
                %521 = vst [vmem:[%s355 + $0xa4] sm:$0x3] %v520
                %v522 = vld [vmem:[%s354 + $0x146] sm:$0x3]
                %523 = vst [vmem:[%s355 + $0xa6] sm:$0x3] %v522
                %v524 = vld [vmem:[%s354 + $0x148] sm:$0x3]
                %525 = vst [vmem:[%s355 + $0xa8] sm:$0x3] %v524
                %v526 = vld [vmem:[%s354 + $0x14a] sm:$0x3]
                %527 = vst [vmem:[%s355 + $0xaa] sm:$0x3] %v526
                %v528 = vld [vmem:[%s354 + $0x14c] sm:$0x3]
                %529 = vst [vmem:[%s355 + $0xac] sm:$0x3] %v528
                %v530 = vld [vmem:[%s354 + $0x14e] sm:$0x3]
                %531 = vst [vmem:[%s355 + $0xae] sm:$0x3] %v530
                %v532 = vld [vmem:[%s354 + $0x160] sm:$0x3]
                %533 = vst [vmem:[%s355 + $0xb0] sm:$0x3] %v532
                %v534 = vld [vmem:[%s354 + $0x162] sm:$0x3]
                %535 = vst [vmem:[%s355 + $0xb2] sm:$0x3] %v534
                %v536 = vld [vmem:[%s354 + $0x164] sm:$0x3]
                %537 = vst [vmem:[%s355 + $0xb4] sm:$0x3] %v536
                %v538 = vld [vmem:[%s354 + $0x166] sm:$0x3]
                %539 = vst [vmem:[%s355 + $0xb6] sm:$0x3] %v538
                %v540 = vld [vmem:[%s354 + $0x168] sm:$0x3]
                %541 = vst [vmem:[%s355 + $0xb8] sm:$0x3] %v540
                %v542 = vld [vmem:[%s354 + $0x16a] sm:$0x3]
                %543 = vst [vmem:[%s355 + $0xba] sm:$0x3] %v542
                %v544 = vld [vmem:[%s354 + $0x16c] sm:$0x3]
                %545 = vst [vmem:[%s355 + $0xbc] sm:$0x3] %v544
                %v546 = vld [vmem:[%s354 + $0x16e] sm:$0x3]
                %547 = vst [vmem:[%s355 + $0xbe] sm:$0x3] %v546
                %v548 = vld [vmem:[%s354 + $0x180] sm:$0x3]
                %549 = vst [vmem:[%s355 + $0xc0] sm:$0x3] %v548
                %v550 = vld [vmem:[%s354 + $0x182] sm:$0x3]
                %551 = vst [vmem:[%s355 + $0xc2] sm:$0x3] %v550
                %v552 = vld [vmem:[%s354 + $0x184] sm:$0x3]
                %553 = vst [vmem:[%s355 + $0xc4] sm:$0x3] %v552
                %v554 = vld [vmem:[%s354 + $0x186] sm:$0x3]
                %555 = vst [vmem:[%s355 + $0xc6] sm:$0x3] %v554
                %v556 = vld [vmem:[%s354 + $0x188] sm:$0x3]
                %557 = vst [vmem:[%s355 + $0xc8] sm:$0x3] %v556
                %v558 = vld [vmem:[%s354 + $0x18a] sm:$0x3]
                %559 = vst [vmem:[%s355 + $0xca] sm:$0x3] %v558
                %v560 = vld [vmem:[%s354 + $0x18c] sm:$0x3]
                %561 = vst [vmem:[%s355 + $0xcc] sm:$0x3] %v560
                %v562 = vld [vmem:[%s354 + $0x18e] sm:$0x3]
                %563 = vst [vmem:[%s355 + $0xce] sm:$0x3] %v562
                %v564 = vld [vmem:[%s354 + $0x1a0] sm:$0x3]
                %565 = vst [vmem:[%s355 + $0xd0] sm:$0x3] %v564
                %v566 = vld [vmem:[%s354 + $0x1a2] sm:$0x3]
                %567 = vst [vmem:[%s355 + $0xd2] sm:$0x3] %v566
                %v568 = vld [vmem:[%s354 + $0x1a4] sm:$0x3]
                %569 = vst [vmem:[%s355 + $0xd4] sm:$0x3] %v568
                %v570 = vld [vmem:[%s354 + $0x1a6] sm:$0x3]
                %571 = vst [vmem:[%s355 + $0xd6] sm:$0x3] %v570
                %v572 = vld [vmem:[%s354 + $0x1a8] sm:$0x3]
                %573 = vst [vmem:[%s355 + $0xd8] sm:$0x3] %v572
                %v574 = vld [vmem:[%s354 + $0x1aa] sm:$0x3]
                %575 = vst [vmem:[%s355 + $0xda] sm:$0x3] %v574
                %v576 = vld [vmem:[%s354 + $0x1ac] sm:$0x3]
                %577 = vst [vmem:[%s355 + $0xdc] sm:$0x3] %v576
                %v578 = vld [vmem:[%s354 + $0x1ae] sm:$0x3]
                %579 = vst [vmem:[%s355 + $0xde] sm:$0x3] %v578
                %v580 = vld [vmem:[%s354 + $0x1c0] sm:$0x3]
                %581 = vst [vmem:[%s355 + $0xe0] sm:$0x3] %v580
                %v582 = vld [vmem:[%s354 + $0x1c2] sm:$0x3]
                %583 = vst [vmem:[%s355 + $0xe2] sm:$0x3] %v582
                %v584 = vld [vmem:[%s354 + $0x1c4] sm:$0x3]
                %585 = vst [vmem:[%s355 + $0xe4] sm:$0x3] %v584
                %v586 = vld [vmem:[%s354 + $0x1c6] sm:$0x3]
                %587 = vst [vmem:[%s355 + $0xe6] sm:$0x3] %v586
                %v588 = vld [vmem:[%s354 + $0x1c8] sm:$0x3]
                %589 = vst [vmem:[%s355 + $0xe8] sm:$0x3] %v588
                %v590 = vld [vmem:[%s354 + $0x1ca] sm:$0x3]
                %591 = vst [vmem:[%s355 + $0xea] sm:$0x3] %v590
                %v592 = vld [vmem:[%s354 + $0x1cc] sm:$0x3]
                %593 = vst [vmem:[%s355 + $0xec] sm:$0x3] %v592
                %v594 = vld [vmem:[%s354 + $0x1ce] sm:$0x3]
                %595 = vst [vmem:[%s355 + $0xee] sm:$0x3] %v594
                %v596 = vld [vmem:[%s354 + $0x1e0] sm:$0x3]
                %597 = vst [vmem:[%s355 + $0xf0] sm:$0x3] %v596
                %v598 = vld [vmem:[%s354 + $0x1e2] sm:$0x3]
                %599 = vst [vmem:[%s355 + $0xf2] sm:$0x3] %v598
                %v600 = vld [vmem:[%s354 + $0x1e4] sm:$0x3]
                %601 = vst [vmem:[%s355 + $0xf4] sm:$0x3] %v600
                %v602 = vld [vmem:[%s354 + $0x1e6] sm:$0x3]
                %603 = vst [vmem:[%s355 + $0xf6] sm:$0x3] %v602
                %v604 = vld [vmem:[%s354 + $0x1e8] sm:$0x3]
                %605 = vst [vmem:[%s355 + $0xf8] sm:$0x3] %v604
                %v606 = vld [vmem:[%s354 + $0x1ea] sm:$0x3]
                %607 = vst [vmem:[%s355 + $0xfa] sm:$0x3] %v606
                %v608 = vld [vmem:[%s354 + $0x1ec] sm:$0x3]
                %609 = vst [vmem:[%s355 + $0xfc] sm:$0x3] %v608
                %v610 = vld [vmem:[%s354 + $0x1ee] sm:$0x3]
                %611 = vst [vmem:[%s355 + $0xfe] sm:$0x3] %v610
              $region51: #{reverse} parent=38 // loop_footer
                %s353 = sadd.s32 1, %s349
              $region52: #{reverse} parent=38 // loop_footer_branch
                %348 = sbr.rel target = $region48
              $region53: #{reverse} parent=38 // loop_exit
                _
            $region39: #{reverse} parent=23 // pred_fallthru
              _
          $region24: #{reverse} parent=19 // pred_fallthru
            _
          // Predicated region
          $region25: #{reverse} parent=19 // pred_check
            _
          $region26: #{reverse} parent=19 // pred_check_branch
            %71 = sbr.rel (0) target = $region28
          $region27: #{reverse} parent=19 // pred_region
            loop: start=0, step=1, limit=1
            $region29: #{reverse} parent=27 // loop_pre_header
              _
            $region30: #{reverse} parent=27 // loop_header
              %s74 = sphi 0, %s78
              %p75 = scmp.ge.s32.totalorder %s74, 1
              %s79 = sphi %s65, %s65
              %s80 = sphi %s54, %s54
            $region31: #{reverse} parent=27 // loop_header_branch
              %77 = sbr.rel (%p75) target = $region35
            $region32: #{reverse} parent=27 // loop_body
              %v81 = vld [vmem:[%s79] sm:$0x3]
              %82 = vst [vmem:[%s80] sm:$0x3] %v81
              %v83 = vld [vmem:[%s79 + $0x2] sm:$0x3]
              %84 = vst [vmem:[%s80 + $0x2] sm:$0x3] %v83
              %v85 = vld [vmem:[%s79 + $0x4] sm:$0x3]
              %86 = vst [vmem:[%s80 + $0x4] sm:$0x3] %v85
              %v87 = vld [vmem:[%s79 + $0x6] sm:$0x3]
              %88 = vst [vmem:[%s80 + $0x6] sm:$0x3] %v87
              %v89 = vld [vmem:[%s79 + $0x8] sm:$0x3]
              %90 = vst [vmem:[%s80 + $0x8] sm:$0x3] %v89
              %v91 = vld [vmem:[%s79 + $0xa] sm:$0x3]
              %92 = vst [vmem:[%s80 + $0xa] sm:$0x3] %v91
              %v93 = vld [vmem:[%s79 + $0xc] sm:$0x3]
              %94 = vst [vmem:[%s80 + $0xc] sm:$0x3] %v93
              %v95 = vld [vmem:[%s79 + $0xe] sm:$0x3]
              %96 = vst [vmem:[%s80 + $0xe] sm:$0x3] %v95
              %v97 = vld [vmem:[%s79 + $0x20] sm:$0x3]
              %98 = vst [vmem:[%s80 + $0x10] sm:$0x3] %v97
              %v99 = vld [vmem:[%s79 + $0x22] sm:$0x3]
              %100 = vst [vmem:[%s80 + $0x12] sm:$0x3] %v99
              %v101 = vld [vmem:[%s79 + $0x24] sm:$0x3]
              %102 = vst [vmem:[%s80 + $0x14] sm:$0x3] %v101
              %v103 = vld [vmem:[%s79 + $0x26] sm:$0x3]
              %104 = vst [vmem:[%s80 + $0x16] sm:$0x3] %v103
              %v105 = vld [vmem:[%s79 + $0x28] sm:$0x3]
              %106 = vst [vmem:[%s80 + $0x18] sm:$0x3] %v105
              %v107 = vld [vmem:[%s79 + $0x2a] sm:$0x3]
              %108 = vst [vmem:[%s80 + $0x1a] sm:$0x3] %v107
              %v109 = vld [vmem:[%s79 + $0x2c] sm:$0x3]
              %110 = vst [vmem:[%s80 + $0x1c] sm:$0x3] %v109
              %v111 = vld [vmem:[%s79 + $0x2e] sm:$0x3]
              %112 = vst [vmem:[%s80 + $0x1e] sm:$0x3] %v111
              %v113 = vld [vmem:[%s79 + $0x40] sm:$0x3]
              %114 = vst [vmem:[%s80 + $0x20] sm:$0x3] %v113
              %v115 = vld [vmem:[%s79 + $0x42] sm:$0x3]
              %116 = vst [vmem:[%s80 + $0x22] sm:$0x3] %v115
              %v117 = vld [vmem:[%s79 + $0x44] sm:$0x3]
              %118 = vst [vmem:[%s80 + $0x24] sm:$0x3] %v117
              %v119 = vld [vmem:[%s79 + $0x46] sm:$0x3]
              %120 = vst [vmem:[%s80 + $0x26] sm:$0x3] %v119
              %v121 = vld [vmem:[%s79 + $0x48] sm:$0x3]
              %122 = vst [vmem:[%s80 + $0x28] sm:$0x3] %v121
              %v123 = vld [vmem:[%s79 + $0x4a] sm:$0x3]
              %124 = vst [vmem:[%s80 + $0x2a] sm:$0x3] %v123
              %v125 = vld [vmem:[%s79 + $0x4c] sm:$0x3]
              %126 = vst [vmem:[%s80 + $0x2c] sm:$0x3] %v125
              %v127 = vld [vmem:[%s79 + $0x4e] sm:$0x3]
              %128 = vst [vmem:[%s80 + $0x2e] sm:$0x3] %v127
              %v129 = vld [vmem:[%s79 + $0x60] sm:$0x3]
              %130 = vst [vmem:[%s80 + $0x30] sm:$0x3] %v129
              %v131 = vld [vmem:[%s79 + $0x62] sm:$0x3]
              %132 = vst [vmem:[%s80 + $0x32] sm:$0x3] %v131
              %v133 = vld [vmem:[%s79 + $0x64] sm:$0x3]
              %134 = vst [vmem:[%s80 + $0x34] sm:$0x3] %v133
              %v135 = vld [vmem:[%s79 + $0x66] sm:$0x3]
              %136 = vst [vmem:[%s80 + $0x36] sm:$0x3] %v135
              %v137 = vld [vmem:[%s79 + $0x68] sm:$0x3]
              %138 = vst [vmem:[%s80 + $0x38] sm:$0x3] %v137
              %v139 = vld [vmem:[%s79 + $0x6a] sm:$0x3]
              %140 = vst [vmem:[%s80 + $0x3a] sm:$0x3] %v139
              %v141 = vld [vmem:[%s79 + $0x6c] sm:$0x3]
              %142 = vst [vmem:[%s80 + $0x3c] sm:$0x3] %v141
              %v143 = vld [vmem:[%s79 + $0x6e] sm:$0x3]
              %144 = vst [vmem:[%s80 + $0x3e] sm:$0x3] %v143
              %v145 = vld [vmem:[%s79 + $0x80] sm:$0x3]
              %146 = vst [vmem:[%s80 + $0x40] sm:$0x3] %v145
              %v147 = vld [vmem:[%s79 + $0x82] sm:$0x3]
              %148 = vst [vmem:[%s80 + $0x42] sm:$0x3] %v147
              %v149 = vld [vmem:[%s79 + $0x84] sm:$0x3]
              %150 = vst [vmem:[%s80 + $0x44] sm:$0x3] %v149
              %v151 = vld [vmem:[%s79 + $0x86] sm:$0x3]
              %152 = vst [vmem:[%s80 + $0x46] sm:$0x3] %v151
              %v153 = vld [vmem:[%s79 + $0x88] sm:$0x3]
              %154 = vst [vmem:[%s80 + $0x48] sm:$0x3] %v153
              %v155 = vld [vmem:[%s79 + $0x8a] sm:$0x3]
              %156 = vst [vmem:[%s80 + $0x4a] sm:$0x3] %v155
              %v157 = vld [vmem:[%s79 + $0x8c] sm:$0x3]
              %158 = vst [vmem:[%s80 + $0x4c] sm:$0x3] %v157
              %v159 = vld [vmem:[%s79 + $0x8e] sm:$0x3]
              %160 = vst [vmem:[%s80 + $0x4e] sm:$0x3] %v159
              %v161 = vld [vmem:[%s79 + $0xa0] sm:$0x3]
              %162 = vst [vmem:[%s80 + $0x50] sm:$0x3] %v161
              %v163 = vld [vmem:[%s79 + $0xa2] sm:$0x3]
              %164 = vst [vmem:[%s80 + $0x52] sm:$0x3] %v163
              %v165 = vld [vmem:[%s79 + $0xa4] sm:$0x3]
              %166 = vst [vmem:[%s80 + $0x54] sm:$0x3] %v165
              %v167 = vld [vmem:[%s79 + $0xa6] sm:$0x3]
              %168 = vst [vmem:[%s80 + $0x56] sm:$0x3] %v167
              %v169 = vld [vmem:[%s79 + $0xa8] sm:$0x3]
              %170 = vst [vmem:[%s80 + $0x58] sm:$0x3] %v169
              %v171 = vld [vmem:[%s79 + $0xaa] sm:$0x3]
              %172 = vst [vmem:[%s80 + $0x5a] sm:$0x3] %v171
              %v173 = vld [vmem:[%s79 + $0xac] sm:$0x3]
              %174 = vst [vmem:[%s80 + $0x5c] sm:$0x3] %v173
              %v175 = vld [vmem:[%s79 + $0xae] sm:$0x3]
              %176 = vst [vmem:[%s80 + $0x5e] sm:$0x3] %v175
              %v177 = vld [vmem:[%s79 + $0xc0] sm:$0x3]
              %178 = vst [vmem:[%s80 + $0x60] sm:$0x3] %v177
              %v179 = vld [vmem:[%s79 + $0xc2] sm:$0x3]
              %180 = vst [vmem:[%s80 + $0x62] sm:$0x3] %v179
              %v181 = vld [vmem:[%s79 + $0xc4] sm:$0x3]
              %182 = vst [vmem:[%s80 + $0x64] sm:$0x3] %v181
              %v183 = vld [vmem:[%s79 + $0xc6] sm:$0x3]
              %184 = vst [vmem:[%s80 + $0x66] sm:$0x3] %v183
              %v185 = vld [vmem:[%s79 + $0xc8] sm:$0x3]
              %186 = vst [vmem:[%s80 + $0x68] sm:$0x3] %v185
              %v187 = vld [vmem:[%s79 + $0xca] sm:$0x3]
              %188 = vst [vmem:[%s80 + $0x6a] sm:$0x3] %v187
              %v189 = vld [vmem:[%s79 + $0xcc] sm:$0x3]
              %190 = vst [vmem:[%s80 + $0x6c] sm:$0x3] %v189
              %v191 = vld [vmem:[%s79 + $0xce] sm:$0x3]
              %192 = vst [vmem:[%s80 + $0x6e] sm:$0x3] %v191
              %v193 = vld [vmem:[%s79 + $0xe0] sm:$0x3]
              %194 = vst [vmem:[%s80 + $0x70] sm:$0x3] %v193
              %v195 = vld [vmem:[%s79 + $0xe2] sm:$0x3]
              %196 = vst [vmem:[%s80 + $0x72] sm:$0x3] %v195
              %v197 = vld [vmem:[%s79 + $0xe4] sm:$0x3]
              %198 = vst [vmem:[%s80 + $0x74] sm:$0x3] %v197
              %v199 = vld [vmem:[%s79 + $0xe6] sm:$0x3]
              %200 = vst [vmem:[%s80 + $0x76] sm:$0x3] %v199
              %v201 = vld [vmem:[%s79 + $0xe8] sm:$0x3]
              %202 = vst [vmem:[%s80 + $0x78] sm:$0x3] %v201
              %v203 = vld [vmem:[%s79 + $0xea] sm:$0x3]
              %204 = vst [vmem:[%s80 + $0x7a] sm:$0x3] %v203
              %v205 = vld [vmem:[%s79 + $0xec] sm:$0x3]
              %206 = vst [vmem:[%s80 + $0x7c] sm:$0x3] %v205
              %v207 = vld [vmem:[%s79 + $0xee] sm:$0x3]
              %208 = vst [vmem:[%s80 + $0x7e] sm:$0x3] %v207
              %v209 = vld [vmem:[%s79 + $0x100] sm:$0x3]
              %210 = vst [vmem:[%s80 + $0x80] sm:$0x3] %v209
              %v211 = vld [vmem:[%s79 + $0x102] sm:$0x3]
              %212 = vst [vmem:[%s80 + $0x82] sm:$0x3] %v211
              %v213 = vld [vmem:[%s79 + $0x104] sm:$0x3]
              %214 = vst [vmem:[%s80 + $0x84] sm:$0x3] %v213
              %v215 = vld [vmem:[%s79 + $0x106] sm:$0x3]
              %216 = vst [vmem:[%s80 + $0x86] sm:$0x3] %v215
              %v217 = vld [vmem:[%s79 + $0x108] sm:$0x3]
              %218 = vst [vmem:[%s80 + $0x88] sm:$0x3] %v217
              %v219 = vld [vmem:[%s79 + $0x10a] sm:$0x3]
              %220 = vst [vmem:[%s80 + $0x8a] sm:$0x3] %v219
              %v221 = vld [vmem:[%s79 + $0x10c] sm:$0x3]
              %222 = vst [vmem:[%s80 + $0x8c] sm:$0x3] %v221
              %v223 = vld [vmem:[%s79 + $0x10e] sm:$0x3]
              %224 = vst [vmem:[%s80 + $0x8e] sm:$0x3] %v223
              %v225 = vld [vmem:[%s79 + $0x120] sm:$0x3]
              %226 = vst [vmem:[%s80 + $0x90] sm:$0x3] %v225
              %v227 = vld [vmem:[%s79 + $0x122] sm:$0x3]
              %228 = vst [vmem:[%s80 + $0x92] sm:$0x3] %v227
              %v229 = vld [vmem:[%s79 + $0x124] sm:$0x3]
              %230 = vst [vmem:[%s80 + $0x94] sm:$0x3] %v229
              %v231 = vld [vmem:[%s79 + $0x126] sm:$0x3]
              %232 = vst [vmem:[%s80 + $0x96] sm:$0x3] %v231
              %v233 = vld [vmem:[%s79 + $0x128] sm:$0x3]
              %234 = vst [vmem:[%s80 + $0x98] sm:$0x3] %v233
              %v235 = vld [vmem:[%s79 + $0x12a] sm:$0x3]
              %236 = vst [vmem:[%s80 + $0x9a] sm:$0x3] %v235
              %v237 = vld [vmem:[%s79 + $0x12c] sm:$0x3]
              %238 = vst [vmem:[%s80 + $0x9c] sm:$0x3] %v237
              %v239 = vld [vmem:[%s79 + $0x12e] sm:$0x3]
              %240 = vst [vmem:[%s80 + $0x9e] sm:$0x3] %v239
              %v241 = vld [vmem:[%s79 + $0x140] sm:$0x3]
              %242 = vst [vmem:[%s80 + $0xa0] sm:$0x3] %v241
              %v243 = vld [vmem:[%s79 + $0x142] sm:$0x3]
              %244 = vst [vmem:[%s80 + $0xa2] sm:$0x3] %v243
              %v245 = vld [vmem:[%s79 + $0x144] sm:$0x3]
              %246 = vst [vmem:[%s80 + $0xa4] sm:$0x3] %v245
              %v247 = vld [vmem:[%s79 + $0x146] sm:$0x3]
              %248 = vst [vmem:[%s80 + $0xa6] sm:$0x3] %v247
              %v249 = vld [vmem:[%s79 + $0x148] sm:$0x3]
              %250 = vst [vmem:[%s80 + $0xa8] sm:$0x3] %v249
              %v251 = vld [vmem:[%s79 + $0x14a] sm:$0x3]
              %252 = vst [vmem:[%s80 + $0xaa] sm:$0x3] %v251
              %v253 = vld [vmem:[%s79 + $0x14c] sm:$0x3]
              %254 = vst [vmem:[%s80 + $0xac] sm:$0x3] %v253
              %v255 = vld [vmem:[%s79 + $0x14e] sm:$0x3]
              %256 = vst [vmem:[%s80 + $0xae] sm:$0x3] %v255
              %v257 = vld [vmem:[%s79 + $0x160] sm:$0x3]
              %258 = vst [vmem:[%s80 + $0xb0] sm:$0x3] %v257
              %v259 = vld [vmem:[%s79 + $0x162] sm:$0x3]
              %260 = vst [vmem:[%s80 + $0xb2] sm:$0x3] %v259
              %v261 = vld [vmem:[%s79 + $0x164] sm:$0x3]
              %262 = vst [vmem:[%s80 + $0xb4] sm:$0x3] %v261
              %v263 = vld [vmem:[%s79 + $0x166] sm:$0x3]
              %264 = vst [vmem:[%s80 + $0xb6] sm:$0x3] %v263
              %v265 = vld [vmem:[%s79 + $0x168] sm:$0x3]
              %266 = vst [vmem:[%s80 + $0xb8] sm:$0x3] %v265
              %v267 = vld [vmem:[%s79 + $0x16a] sm:$0x3]
              %268 = vst [vmem:[%s80 + $0xba] sm:$0x3] %v267
              %v269 = vld [vmem:[%s79 + $0x16c] sm:$0x3]
              %270 = vst [vmem:[%s80 + $0xbc] sm:$0x3] %v269
              %v271 = vld [vmem:[%s79 + $0x16e] sm:$0x3]
              %272 = vst [vmem:[%s80 + $0xbe] sm:$0x3] %v271
              %v273 = vld [vmem:[%s79 + $0x180] sm:$0x3]
              %274 = vst [vmem:[%s80 + $0xc0] sm:$0x3] %v273
              %v275 = vld [vmem:[%s79 + $0x182] sm:$0x3]
              %276 = vst [vmem:[%s80 + $0xc2] sm:$0x3] %v275
              %v277 = vld [vmem:[%s79 + $0x184] sm:$0x3]
              %278 = vst [vmem:[%s80 + $0xc4] sm:$0x3] %v277
              %v279 = vld [vmem:[%s79 + $0x186] sm:$0x3]
              %280 = vst [vmem:[%s80 + $0xc6] sm:$0x3] %v279
              %v281 = vld [vmem:[%s79 + $0x188] sm:$0x3]
              %282 = vst [vmem:[%s80 + $0xc8] sm:$0x3] %v281
              %v283 = vld [vmem:[%s79 + $0x18a] sm:$0x3]
              %284 = vst [vmem:[%s80 + $0xca] sm:$0x3] %v283
              %v285 = vld [vmem:[%s79 + $0x18c] sm:$0x3]
              %286 = vst [vmem:[%s80 + $0xcc] sm:$0x3] %v285
              %v287 = vld [vmem:[%s79 + $0x18e] sm:$0x3]
              %288 = vst [vmem:[%s80 + $0xce] sm:$0x3] %v287
              %v289 = vld [vmem:[%s79 + $0x1a0] sm:$0x3]
              %290 = vst [vmem:[%s80 + $0xd0] sm:$0x3] %v289
              %v291 = vld [vmem:[%s79 + $0x1a2] sm:$0x3]
              %292 = vst [vmem:[%s80 + $0xd2] sm:$0x3] %v291
              %v293 = vld [vmem:[%s79 + $0x1a4] sm:$0x3]
              %294 = vst [vmem:[%s80 + $0xd4] sm:$0x3] %v293
              %v295 = vld [vmem:[%s79 + $0x1a6] sm:$0x3]
              %296 = vst [vmem:[%s80 + $0xd6] sm:$0x3] %v295
              %v297 = vld [vmem:[%s79 + $0x1a8] sm:$0x3]
              %298 = vst [vmem:[%s80 + $0xd8] sm:$0x3] %v297
              %v299 = vld [vmem:[%s79 + $0x1aa] sm:$0x3]
              %300 = vst [vmem:[%s80 + $0xda] sm:$0x3] %v299
              %v301 = vld [vmem:[%s79 + $0x1ac] sm:$0x3]
              %302 = vst [vmem:[%s80 + $0xdc] sm:$0x3] %v301
              %v303 = vld [vmem:[%s79 + $0x1ae] sm:$0x3]
              %304 = vst [vmem:[%s80 + $0xde] sm:$0x3] %v303
              %v305 = vld [vmem:[%s79 + $0x1c0] sm:$0x3]
              %306 = vst [vmem:[%s80 + $0xe0] sm:$0x3] %v305
              %v307 = vld [vmem:[%s79 + $0x1c2] sm:$0x3]
              %308 = vst [vmem:[%s80 + $0xe2] sm:$0x3] %v307
              %v309 = vld [vmem:[%s79 + $0x1c4] sm:$0x3]
              %310 = vst [vmem:[%s80 + $0xe4] sm:$0x3] %v309
              %v311 = vld [vmem:[%s79 + $0x1c6] sm:$0x3]
              %312 = vst [vmem:[%s80 + $0xe6] sm:$0x3] %v311
              %v313 = vld [vmem:[%s79 + $0x1c8] sm:$0x3]
              %314 = vst [vmem:[%s80 + $0xe8] sm:$0x3] %v313
              %v315 = vld [vmem:[%s79 + $0x1ca] sm:$0x3]
              %316 = vst [vmem:[%s80 + $0xea] sm:$0x3] %v315
              %v317 = vld [vmem:[%s79 + $0x1cc] sm:$0x3]
              %318 = vst [vmem:[%s80 + $0xec] sm:$0x3] %v317
              %v319 = vld [vmem:[%s79 + $0x1ce] sm:$0x3]
              %320 = vst [vmem:[%s80 + $0xee] sm:$0x3] %v319
              %v321 = vld [vmem:[%s79 + $0x1e0] sm:$0x3]
              %322 = vst [vmem:[%s80 + $0xf0] sm:$0x3] %v321
              %v323 = vld [vmem:[%s79 + $0x1e2] sm:$0x3]
              %324 = vst [vmem:[%s80 + $0xf2] sm:$0x3] %v323
              %v325 = vld [vmem:[%s79 + $0x1e4] sm:$0x3]
              %326 = vst [vmem:[%s80 + $0xf4] sm:$0x3] %v325
              %v327 = vld [vmem:[%s79 + $0x1e6] sm:$0x3]
              %328 = vst [vmem:[%s80 + $0xf6] sm:$0x3] %v327
              %v329 = vld [vmem:[%s79 + $0x1e8] sm:$0x3]
              %330 = vst [vmem:[%s80 + $0xf8] sm:$0x3] %v329
              %v331 = vld [vmem:[%s79 + $0x1ea] sm:$0x3]
              %332 = vst [vmem:[%s80 + $0xfa] sm:$0x3] %v331
              %v333 = vld [vmem:[%s79 + $0x1ec] sm:$0x3]
              %334 = vst [vmem:[%s80 + $0xfc] sm:$0x3] %v333
              %v335 = vld [vmem:[%s79 + $0x1ee] sm:$0x3]
              %336 = vst [vmem:[%s80 + $0xfe] sm:$0x3] %v335
            $region33: #{reverse} parent=27 // loop_footer
              %s78 = sadd.s32 1, %s74
            $region34: #{reverse} parent=27 // loop_footer_branch
              %73 = sbr.rel target = $region30
            $region35: #{reverse} parent=27 // loop_exit
              _
          $region28: #{reverse} parent=19 // pred_fallthru
            _
        $region20: #{reverse} parent=15 // pred_fallthru
          _
        %612 = vnop
      $region16: #{reverse} parent=5 // pred_fallthru
        _
      %p613 = scmp.le.s32.totalorder 1, %s6
      %p614 = scmp.lt.s32.totalorder %s6, 3
      %p615 = pnand %p613, %p614
      %p616 = pneg %p615
      // Predicated region
      $region54: #{reverse} parent=5 // pred_check
        _
      $region55: #{reverse} parent=5 // pred_check_branch
        %618 = sbr.rel (%p615) target = $region57
      $region56: #{reverse} parent=5 // pred_region
        %s619 = ssub.s32 %s6, 1
        %s620 = sand.u32 %s11, 1
        %s621 = sand.u32 %s11, 1
        %s622 = smul.addr %s621, 256
        %s623 = scalar_lea.vmem [#allocation1], %s622
        %s624 = sand.u32 %s11, 1
        %s625 = sand.u32 %s11, 1
        %s626 = smul.addr %s625, 256
        %s627 = scalar_lea.vmem [#allocation1], %s626
        %s628 = sand.u32 %s11, 1
        %s629 = sand.u32 %s11, 1
        %s630 = smul.addr %s629, 256
        %s631 = scalar_lea.vmem [#allocation3], %s630
        %s633 = sshllo.u32 0, 2
        %s634 = smul.addr 2, 127
        %s635 = scalar_lea.vmem %s627, %s634 [#allocation1]
        %v636 = vld [vmem:[%s635] sm:%s633]
        %s637 = scalar_lea.vmem [#allocation0], 1016
        %638 = vst [vmem:[%s637] sm:%s633] %v636
        %s639 = smul.addr 2, 126
        %s640 = scalar_lea.vmem %s627, %s639 [#allocation1]
        %v641 = vld [vmem:[%s640] sm:%s633]
        %s642 = scalar_lea.vmem [#allocation0], 1008
        %643 = vst [vmem:[%s642] sm:%s633] %v641
        %s644 = smul.addr 2, 125
        %s645 = scalar_lea.vmem %s627, %s644 [#allocation1]
        %v646 = vld [vmem:[%s645] sm:%s633]
        %s647 = scalar_lea.vmem [#allocation0], 1000
        %648 = vst [vmem:[%s647] sm:%s633] %v646
        %s649 = smul.addr 2, 124
        %s650 = scalar_lea.vmem %s627, %s649 [#allocation1]
        %v651 = vld [vmem:[%s650] sm:%s633]
        %s652 = scalar_lea.vmem [#allocation0], 992
        %653 = vst [vmem:[%s652] sm:%s633] %v651
        %s654 = smul.addr 2, 123
        %s655 = scalar_lea.vmem %s627, %s654 [#allocation1]
        %v656 = vld [vmem:[%s655] sm:%s633]
        %s657 = scalar_lea.vmem [#allocation0], 984
        %658 = vst [vmem:[%s657] sm:%s633] %v656
        %s659 = smul.addr 2, 122
        %s660 = scalar_lea.vmem %s627, %s659 [#allocation1]
        %v661 = vld [vmem:[%s660] sm:%s633]
        %s662 = scalar_lea.vmem [#allocation0], 976
        %663 = vst [vmem:[%s662] sm:%s633] %v661
        %s664 = smul.addr 2, 121
        %s665 = scalar_lea.vmem %s627, %s664 [#allocation1]
        %v666 = vld [vmem:[%s665] sm:%s633]
        %s667 = scalar_lea.vmem [#allocation0], 968
        %668 = vst [vmem:[%s667] sm:%s633] %v666
        %s669 = smul.addr 2, 120
        %s670 = scalar_lea.vmem %s627, %s669 [#allocation1]
        %v671 = vld [vmem:[%s670] sm:%s633]
        %s672 = scalar_lea.vmem [#allocation0], 960
        %673 = vst [vmem:[%s672] sm:%s633] %v671
        %s674 = smul.addr 2, 119
        %s675 = scalar_lea.vmem %s627, %s674 [#allocation1]
        %v676 = vld [vmem:[%s675] sm:%s633]
        %s677 = scalar_lea.vmem [#allocation0], 952
        %678 = vst [vmem:[%s677] sm:%s633] %v676
        %s679 = smul.addr 2, 118
        %s680 = scalar_lea.vmem %s627, %s679 [#allocation1]
        %v681 = vld [vmem:[%s680] sm:%s633]
        %s682 = scalar_lea.vmem [#allocation0], 944
        %683 = vst [vmem:[%s682] sm:%s633] %v681
        %s684 = smul.addr 2, 117
        %s685 = scalar_lea.vmem %s627, %s684 [#allocation1]
        %v686 = vld [vmem:[%s685] sm:%s633]
        %s687 = scalar_lea.vmem [#allocation0], 936
        %688 = vst [vmem:[%s687] sm:%s633] %v686
        %s689 = smul.addr 2, 116
        %s690 = scalar_lea.vmem %s627, %s689 [#allocation1]
        %v691 = vld [vmem:[%s690] sm:%s633]
        %s692 = scalar_lea.vmem [#allocation0], 928
        %693 = vst [vmem:[%s692] sm:%s633] %v691
        %s694 = smul.addr 2, 115
        %s695 = scalar_lea.vmem %s627, %s694 [#allocation1]
        %v696 = vld [vmem:[%s695] sm:%s633]
        %s697 = scalar_lea.vmem [#allocation0], 920
        %698 = vst [vmem:[%s697] sm:%s633] %v696
        %s699 = smul.addr 2, 114
        %s700 = scalar_lea.vmem %s627, %s699 [#allocation1]
        %v701 = vld [vmem:[%s700] sm:%s633]
        %s702 = scalar_lea.vmem [#allocation0], 912
        %703 = vst [vmem:[%s702] sm:%s633] %v701
        %s704 = smul.addr 2, 113
        %s705 = scalar_lea.vmem %s627, %s704 [#allocation1]
        %v706 = vld [vmem:[%s705] sm:%s633]
        %s707 = scalar_lea.vmem [#allocation0], 904
        %708 = vst [vmem:[%s707] sm:%s633] %v706
        %s709 = smul.addr 2, 112
        %s710 = scalar_lea.vmem %s627, %s709 [#allocation1]
        %v711 = vld [vmem:[%s710] sm:%s633]
        %s712 = scalar_lea.vmem [#allocation0], 896
        %713 = vst [vmem:[%s712] sm:%s633] %v711
        %s714 = smul.addr 2, 111
        %s715 = scalar_lea.vmem %s627, %s714 [#allocation1]
        %v716 = vld [vmem:[%s715] sm:%s633]
        %s717 = scalar_lea.vmem [#allocation0], 888
        %718 = vst [vmem:[%s717] sm:%s633] %v716
        %s719 = smul.addr 2, 110
        %s720 = scalar_lea.vmem %s627, %s719 [#allocation1]
        %v721 = vld [vmem:[%s720] sm:%s633]
        %s722 = scalar_lea.vmem [#allocation0], 880
        %723 = vst [vmem:[%s722] sm:%s633] %v721
        %s724 = smul.addr 2, 109
        %s725 = scalar_lea.vmem %s627, %s724 [#allocation1]
        %v726 = vld [vmem:[%s725] sm:%s633]
        %s727 = scalar_lea.vmem [#allocation0], 872
        %728 = vst [vmem:[%s727] sm:%s633] %v726
        %s729 = smul.addr 2, 108
        %s730 = scalar_lea.vmem %s627, %s729 [#allocation1]
        %v731 = vld [vmem:[%s730] sm:%s633]
        %s732 = scalar_lea.vmem [#allocation0], 864
        %733 = vst [vmem:[%s732] sm:%s633] %v731
        %s734 = smul.addr 2, 107
        %s735 = scalar_lea.vmem %s627, %s734 [#allocation1]
        %v736 = vld [vmem:[%s735] sm:%s633]
        %s737 = scalar_lea.vmem [#allocation0], 856
        %738 = vst [vmem:[%s737] sm:%s633] %v736
        %s739 = smul.addr 2, 106
        %s740 = scalar_lea.vmem %s627, %s739 [#allocation1]
        %v741 = vld [vmem:[%s740] sm:%s633]
        %s742 = scalar_lea.vmem [#allocation0], 848
        %743 = vst [vmem:[%s742] sm:%s633] %v741
        %s744 = smul.addr 2, 105
        %s745 = scalar_lea.vmem %s627, %s744 [#allocation1]
        %v746 = vld [vmem:[%s745] sm:%s633]
        %s747 = scalar_lea.vmem [#allocation0], 840
        %748 = vst [vmem:[%s747] sm:%s633] %v746
        %s749 = smul.addr 2, 104
        %s750 = scalar_lea.vmem %s627, %s749 [#allocation1]
        %v751 = vld [vmem:[%s750] sm:%s633]
        %s752 = scalar_lea.vmem [#allocation0], 832
        %753 = vst [vmem:[%s752] sm:%s633] %v751
        %s754 = smul.addr 2, 103
        %s755 = scalar_lea.vmem %s627, %s754 [#allocation1]
        %v756 = vld [vmem:[%s755] sm:%s633]
        %s757 = scalar_lea.vmem [#allocation0], 824
        %758 = vst [vmem:[%s757] sm:%s633] %v756
        %s759 = smul.addr 2, 102
        %s760 = scalar_lea.vmem %s627, %s759 [#allocation1]
        %v761 = vld [vmem:[%s760] sm:%s633]
        %s762 = scalar_lea.vmem [#allocation0], 816
        %763 = vst [vmem:[%s762] sm:%s633] %v761
        %s764 = smul.addr 2, 101
        %s765 = scalar_lea.vmem %s627, %s764 [#allocation1]
        %v766 = vld [vmem:[%s765] sm:%s633]
        %s767 = scalar_lea.vmem [#allocation0], 808
        %768 = vst [vmem:[%s767] sm:%s633] %v766
        %s769 = smul.addr 2, 100
        %s770 = scalar_lea.vmem %s627, %s769 [#allocation1]
        %v771 = vld [vmem:[%s770] sm:%s633]
        %s772 = scalar_lea.vmem [#allocation0], 800
        %773 = vst [vmem:[%s772] sm:%s633] %v771
        %s774 = smul.addr 2, 99
        %s775 = scalar_lea.vmem %s627, %s774 [#allocation1]
        %v776 = vld [vmem:[%s775] sm:%s633]
        %s777 = scalar_lea.vmem [#allocation0], 792
        %778 = vst [vmem:[%s777] sm:%s633] %v776
        %s779 = smul.addr 2, 98
        %s780 = scalar_lea.vmem %s627, %s779 [#allocation1]
        %v781 = vld [vmem:[%s780] sm:%s633]
        %s782 = scalar_lea.vmem [#allocation0], 784
        %783 = vst [vmem:[%s782] sm:%s633] %v781
        %s784 = smul.addr 2, 97
        %s785 = scalar_lea.vmem %s627, %s784 [#allocation1]
        %v786 = vld [vmem:[%s785] sm:%s633]
        %s787 = scalar_lea.vmem [#allocation0], 776
        %788 = vst [vmem:[%s787] sm:%s633] %v786
        %s789 = smul.addr 2, 96
        %s790 = scalar_lea.vmem %s627, %s789 [#allocation1]
        %v791 = vld [vmem:[%s790] sm:%s633]
        %s792 = scalar_lea.vmem [#allocation0], 768
        %793 = vst [vmem:[%s792] sm:%s633] %v791
        %s794 = smul.addr 2, 95
        %s795 = scalar_lea.vmem %s627, %s794 [#allocation1]
        %v796 = vld [vmem:[%s795] sm:%s633]
        %s797 = scalar_lea.vmem [#allocation0], 760
        %798 = vst [vmem:[%s797] sm:%s633] %v796
        %s799 = smul.addr 2, 94
        %s800 = scalar_lea.vmem %s627, %s799 [#allocation1]
        %v801 = vld [vmem:[%s800] sm:%s633]
        %s802 = scalar_lea.vmem [#allocation0], 752
        %803 = vst [vmem:[%s802] sm:%s633] %v801
        %s804 = smul.addr 2, 93
        %s805 = scalar_lea.vmem %s627, %s804 [#allocation1]
        %v806 = vld [vmem:[%s805] sm:%s633]
        %s807 = scalar_lea.vmem [#allocation0], 744
        %808 = vst [vmem:[%s807] sm:%s633] %v806
        %s809 = smul.addr 2, 92
        %s810 = scalar_lea.vmem %s627, %s809 [#allocation1]
        %v811 = vld [vmem:[%s810] sm:%s633]
        %s812 = scalar_lea.vmem [#allocation0], 736
        %813 = vst [vmem:[%s812] sm:%s633] %v811
        %s814 = smul.addr 2, 91
        %s815 = scalar_lea.vmem %s627, %s814 [#allocation1]
        %v816 = vld [vmem:[%s815] sm:%s633]
        %s817 = scalar_lea.vmem [#allocation0], 728
        %818 = vst [vmem:[%s817] sm:%s633] %v816
        %s819 = smul.addr 2, 90
        %s820 = scalar_lea.vmem %s627, %s819 [#allocation1]
        %v821 = vld [vmem:[%s820] sm:%s633]
        %s822 = scalar_lea.vmem [#allocation0], 720
        %823 = vst [vmem:[%s822] sm:%s633] %v821
        %s824 = smul.addr 2, 89
        %s825 = scalar_lea.vmem %s627, %s824 [#allocation1]
        %v826 = vld [vmem:[%s825] sm:%s633]
        %s827 = scalar_lea.vmem [#allocation0], 712
        %828 = vst [vmem:[%s827] sm:%s633] %v826
        %s829 = smul.addr 2, 88
        %s830 = scalar_lea.vmem %s627, %s829 [#allocation1]
        %v831 = vld [vmem:[%s830] sm:%s633]
        %s832 = scalar_lea.vmem [#allocation0], 704
        %833 = vst [vmem:[%s832] sm:%s633] %v831
        %s834 = smul.addr 2, 87
        %s835 = scalar_lea.vmem %s627, %s834 [#allocation1]
        %v836 = vld [vmem:[%s835] sm:%s633]
        %s837 = scalar_lea.vmem [#allocation0], 696
        %838 = vst [vmem:[%s837] sm:%s633] %v836
        %s839 = smul.addr 2, 86
        %s840 = scalar_lea.vmem %s627, %s839 [#allocation1]
        %v841 = vld [vmem:[%s840] sm:%s633]
        %s842 = scalar_lea.vmem [#allocation0], 688
        %843 = vst [vmem:[%s842] sm:%s633] %v841
        %s844 = smul.addr 2, 85
        %s845 = scalar_lea.vmem %s627, %s844 [#allocation1]
        %v846 = vld [vmem:[%s845] sm:%s633]
        %s847 = scalar_lea.vmem [#allocation0], 680
        %848 = vst [vmem:[%s847] sm:%s633] %v846
        %s849 = smul.addr 2, 84
        %s850 = scalar_lea.vmem %s627, %s849 [#allocation1]
        %v851 = vld [vmem:[%s850] sm:%s633]
        %s852 = scalar_lea.vmem [#allocation0], 672
        %853 = vst [vmem:[%s852] sm:%s633] %v851
        %s854 = smul.addr 2, 83
        %s855 = scalar_lea.vmem %s627, %s854 [#allocation1]
        %v856 = vld [vmem:[%s855] sm:%s633]
        %s857 = scalar_lea.vmem [#allocation0], 664
        %858 = vst [vmem:[%s857] sm:%s633] %v856
        %s859 = smul.addr 2, 82
        %s860 = scalar_lea.vmem %s627, %s859 [#allocation1]
        %v861 = vld [vmem:[%s860] sm:%s633]
        %s862 = scalar_lea.vmem [#allocation0], 656
        %863 = vst [vmem:[%s862] sm:%s633] %v861
        %s864 = smul.addr 2, 81
        %s865 = scalar_lea.vmem %s627, %s864 [#allocation1]
        %v866 = vld [vmem:[%s865] sm:%s633]
        %s867 = scalar_lea.vmem [#allocation0], 648
        %868 = vst [vmem:[%s867] sm:%s633] %v866
        %s869 = smul.addr 2, 80
        %s870 = scalar_lea.vmem %s627, %s869 [#allocation1]
        %v871 = vld [vmem:[%s870] sm:%s633]
        %s872 = scalar_lea.vmem [#allocation0], 640
        %873 = vst [vmem:[%s872] sm:%s633] %v871
        %s874 = smul.addr 2, 79
        %s875 = scalar_lea.vmem %s627, %s874 [#allocation1]
        %v876 = vld [vmem:[%s875] sm:%s633]
        %s877 = scalar_lea.vmem [#allocation0], 632
        %878 = vst [vmem:[%s877] sm:%s633] %v876
        %s879 = smul.addr 2, 78
        %s880 = scalar_lea.vmem %s627, %s879 [#allocation1]
        %v881 = vld [vmem:[%s880] sm:%s633]
        %s882 = scalar_lea.vmem [#allocation0], 624
        %883 = vst [vmem:[%s882] sm:%s633] %v881
        %s884 = smul.addr 2, 77
        %s885 = scalar_lea.vmem %s627, %s884 [#allocation1]
        %v886 = vld [vmem:[%s885] sm:%s633]
        %s887 = scalar_lea.vmem [#allocation0], 616
        %888 = vst [vmem:[%s887] sm:%s633] %v886
        %s889 = smul.addr 2, 76
        %s890 = scalar_lea.vmem %s627, %s889 [#allocation1]
        %v891 = vld [vmem:[%s890] sm:%s633]
        %s892 = scalar_lea.vmem [#allocation0], 608
        %893 = vst [vmem:[%s892] sm:%s633] %v891
        %s894 = smul.addr 2, 75
        %s895 = scalar_lea.vmem %s627, %s894 [#allocation1]
        %v896 = vld [vmem:[%s895] sm:%s633]
        %s897 = scalar_lea.vmem [#allocation0], 600
        %898 = vst [vmem:[%s897] sm:%s633] %v896
        %s899 = smul.addr 2, 74
        %s900 = scalar_lea.vmem %s627, %s899 [#allocation1]
        %v901 = vld [vmem:[%s900] sm:%s633]
        %s902 = scalar_lea.vmem [#allocation0], 592
        %903 = vst [vmem:[%s902] sm:%s633] %v901
        %s904 = smul.addr 2, 73
        %s905 = scalar_lea.vmem %s627, %s904 [#allocation1]
        %v906 = vld [vmem:[%s905] sm:%s633]
        %s907 = scalar_lea.vmem [#allocation0], 584
        %908 = vst [vmem:[%s907] sm:%s633] %v906
        %s909 = smul.addr 2, 72
        %s910 = scalar_lea.vmem %s627, %s909 [#allocation1]
        %v911 = vld [vmem:[%s910] sm:%s633]
        %s912 = scalar_lea.vmem [#allocation0], 576
        %913 = vst [vmem:[%s912] sm:%s633] %v911
        %s914 = smul.addr 2, 71
        %s915 = scalar_lea.vmem %s627, %s914 [#allocation1]
        %v916 = vld [vmem:[%s915] sm:%s633]
        %s917 = scalar_lea.vmem [#allocation0], 568
        %918 = vst [vmem:[%s917] sm:%s633] %v916
        %s919 = smul.addr 2, 70
        %s920 = scalar_lea.vmem %s627, %s919 [#allocation1]
        %v921 = vld [vmem:[%s920] sm:%s633]
        %s922 = scalar_lea.vmem [#allocation0], 560
        %923 = vst [vmem:[%s922] sm:%s633] %v921
        %s924 = smul.addr 2, 69
        %s925 = scalar_lea.vmem %s627, %s924 [#allocation1]
        %v926 = vld [vmem:[%s925] sm:%s633]
        %s927 = scalar_lea.vmem [#allocation0], 552
        %928 = vst [vmem:[%s927] sm:%s633] %v926
        %s929 = smul.addr 2, 68
        %s930 = scalar_lea.vmem %s627, %s929 [#allocation1]
        %v931 = vld [vmem:[%s930] sm:%s633]
        %s932 = scalar_lea.vmem [#allocation0], 544
        %933 = vst [vmem:[%s932] sm:%s633] %v931
        %s934 = smul.addr 2, 67
        %s935 = scalar_lea.vmem %s627, %s934 [#allocation1]
        %v936 = vld [vmem:[%s935] sm:%s633]
        %s937 = scalar_lea.vmem [#allocation0], 536
        %938 = vst [vmem:[%s937] sm:%s633] %v936
        %s939 = smul.addr 2, 66
        %s940 = scalar_lea.vmem %s627, %s939 [#allocation1]
        %v941 = vld [vmem:[%s940] sm:%s633]
        %s942 = scalar_lea.vmem [#allocation0], 528
        %943 = vst [vmem:[%s942] sm:%s633] %v941
        %s944 = smul.addr 2, 65
        %s945 = scalar_lea.vmem %s627, %s944 [#allocation1]
        %v946 = vld [vmem:[%s945] sm:%s633]
        %s947 = scalar_lea.vmem [#allocation0], 520
        %948 = vst [vmem:[%s947] sm:%s633] %v946
        %s949 = smul.addr 2, 64
        %s950 = scalar_lea.vmem %s627, %s949 [#allocation1]
        %v951 = vld [vmem:[%s950] sm:%s633]
        %s952 = scalar_lea.vmem [#allocation0], 512
        %953 = vst [vmem:[%s952] sm:%s633] %v951
        %s954 = smul.addr 2, 63
        %s955 = scalar_lea.vmem %s627, %s954 [#allocation1]
        %v956 = vld [vmem:[%s955] sm:%s633]
        %s957 = scalar_lea.vmem [#allocation0], 504
        %958 = vst [vmem:[%s957] sm:%s633] %v956
        %s959 = smul.addr 2, 62
        %s960 = scalar_lea.vmem %s627, %s959 [#allocation1]
        %v961 = vld [vmem:[%s960] sm:%s633]
        %s962 = scalar_lea.vmem [#allocation0], 496
        %963 = vst [vmem:[%s962] sm:%s633] %v961
        %s964 = smul.addr 2, 61
        %s965 = scalar_lea.vmem %s627, %s964 [#allocation1]
        %v966 = vld [vmem:[%s965] sm:%s633]
        %s967 = scalar_lea.vmem [#allocation0], 488
        %968 = vst [vmem:[%s967] sm:%s633] %v966
        %s969 = smul.addr 2, 60
        %s970 = scalar_lea.vmem %s627, %s969 [#allocation1]
        %v971 = vld [vmem:[%s970] sm:%s633]
        %s972 = scalar_lea.vmem [#allocation0], 480
        %973 = vst [vmem:[%s972] sm:%s633] %v971
        %s974 = smul.addr 2, 59
        %s975 = scalar_lea.vmem %s627, %s974 [#allocation1]
        %v976 = vld [vmem:[%s975] sm:%s633]
        %s977 = scalar_lea.vmem [#allocation0], 472
        %978 = vst [vmem:[%s977] sm:%s633] %v976
        %s979 = smul.addr 2, 58
        %s980 = scalar_lea.vmem %s627, %s979 [#allocation1]
        %v981 = vld [vmem:[%s980] sm:%s633]
        %s982 = scalar_lea.vmem [#allocation0], 464
        %983 = vst [vmem:[%s982] sm:%s633] %v981
        %s984 = smul.addr 2, 57
        %s985 = scalar_lea.vmem %s627, %s984 [#allocation1]
        %v986 = vld [vmem:[%s985] sm:%s633]
        %s987 = scalar_lea.vmem [#allocation0], 456
        %988 = vst [vmem:[%s987] sm:%s633] %v986
        %s989 = smul.addr 2, 56
        %s990 = scalar_lea.vmem %s627, %s989 [#allocation1]
        %v991 = vld [vmem:[%s990] sm:%s633]
        %s992 = scalar_lea.vmem [#allocation0], 448
        %993 = vst [vmem:[%s992] sm:%s633] %v991
        %s994 = smul.addr 2, 55
        %s995 = scalar_lea.vmem %s627, %s994 [#allocation1]
        %v996 = vld [vmem:[%s995] sm:%s633]
        %s997 = scalar_lea.vmem [#allocation0], 440
        %998 = vst [vmem:[%s997] sm:%s633] %v996
        %s999 = smul.addr 2, 54
        %s1000 = scalar_lea.vmem %s627, %s999 [#allocation1]
        %v1001 = vld [vmem:[%s1000] sm:%s633]
        %s1002 = scalar_lea.vmem [#allocation0], 432
        %1003 = vst [vmem:[%s1002] sm:%s633] %v1001
        %s1004 = smul.addr 2, 53
        %s1005 = scalar_lea.vmem %s627, %s1004 [#allocation1]
        %v1006 = vld [vmem:[%s1005] sm:%s633]
        %s1007 = scalar_lea.vmem [#allocation0], 424
        %1008 = vst [vmem:[%s1007] sm:%s633] %v1006
        %s1009 = smul.addr 2, 52
        %s1010 = scalar_lea.vmem %s627, %s1009 [#allocation1]
        %v1011 = vld [vmem:[%s1010] sm:%s633]
        %s1012 = scalar_lea.vmem [#allocation0], 416
        %1013 = vst [vmem:[%s1012] sm:%s633] %v1011
        %s1014 = smul.addr 2, 51
        %s1015 = scalar_lea.vmem %s627, %s1014 [#allocation1]
        %v1016 = vld [vmem:[%s1015] sm:%s633]
        %s1017 = scalar_lea.vmem [#allocation0], 408
        %1018 = vst [vmem:[%s1017] sm:%s633] %v1016
        %s1019 = smul.addr 2, 50
        %s1020 = scalar_lea.vmem %s627, %s1019 [#allocation1]
        %v1021 = vld [vmem:[%s1020] sm:%s633]
        %s1022 = scalar_lea.vmem [#allocation0], 400
        %1023 = vst [vmem:[%s1022] sm:%s633] %v1021
        %s1024 = smul.addr 2, 49
        %s1025 = scalar_lea.vmem %s627, %s1024 [#allocation1]
        %v1026 = vld [vmem:[%s1025] sm:%s633]
        %s1027 = scalar_lea.vmem [#allocation0], 392
        %1028 = vst [vmem:[%s1027] sm:%s633] %v1026
        %s1029 = smul.addr 2, 48
        %s1030 = scalar_lea.vmem %s627, %s1029 [#allocation1]
        %v1031 = vld [vmem:[%s1030] sm:%s633]
        %s1032 = scalar_lea.vmem [#allocation0], 384
        %1033 = vst [vmem:[%s1032] sm:%s633] %v1031
        %s1034 = smul.addr 2, 47
        %s1035 = scalar_lea.vmem %s627, %s1034 [#allocation1]
        %v1036 = vld [vmem:[%s1035] sm:%s633]
        %s1037 = scalar_lea.vmem [#allocation0], 376
        %1038 = vst [vmem:[%s1037] sm:%s633] %v1036
        %s1039 = smul.addr 2, 46
        %s1040 = scalar_lea.vmem %s627, %s1039 [#allocation1]
        %v1041 = vld [vmem:[%s1040] sm:%s633]
        %s1042 = scalar_lea.vmem [#allocation0], 368
        %1043 = vst [vmem:[%s1042] sm:%s633] %v1041
        %s1044 = smul.addr 2, 45
        %s1045 = scalar_lea.vmem %s627, %s1044 [#allocation1]
        %v1046 = vld [vmem:[%s1045] sm:%s633]
        %s1047 = scalar_lea.vmem [#allocation0], 360
        %1048 = vst [vmem:[%s1047] sm:%s633] %v1046
        %s1049 = smul.addr 2, 44
        %s1050 = scalar_lea.vmem %s627, %s1049 [#allocation1]
        %v1051 = vld [vmem:[%s1050] sm:%s633]
        %s1052 = scalar_lea.vmem [#allocation0], 352
        %1053 = vst [vmem:[%s1052] sm:%s633] %v1051
        %s1054 = smul.addr 2, 43
        %s1055 = scalar_lea.vmem %s627, %s1054 [#allocation1]
        %v1056 = vld [vmem:[%s1055] sm:%s633]
        %s1057 = scalar_lea.vmem [#allocation0], 344
        %1058 = vst [vmem:[%s1057] sm:%s633] %v1056
        %s1059 = smul.addr 2, 42
        %s1060 = scalar_lea.vmem %s627, %s1059 [#allocation1]
        %v1061 = vld [vmem:[%s1060] sm:%s633]
        %s1062 = scalar_lea.vmem [#allocation0], 336
        %1063 = vst [vmem:[%s1062] sm:%s633] %v1061
        %s1064 = smul.addr 2, 41
        %s1065 = scalar_lea.vmem %s627, %s1064 [#allocation1]
        %v1066 = vld [vmem:[%s1065] sm:%s633]
        %s1067 = scalar_lea.vmem [#allocation0], 328
        %1068 = vst [vmem:[%s1067] sm:%s633] %v1066
        %s1069 = smul.addr 2, 40
        %s1070 = scalar_lea.vmem %s627, %s1069 [#allocation1]
        %v1071 = vld [vmem:[%s1070] sm:%s633]
        %s1072 = scalar_lea.vmem [#allocation0], 320
        %1073 = vst [vmem:[%s1072] sm:%s633] %v1071
        %s1074 = smul.addr 2, 39
        %s1075 = scalar_lea.vmem %s627, %s1074 [#allocation1]
        %v1076 = vld [vmem:[%s1075] sm:%s633]
        %s1077 = scalar_lea.vmem [#allocation0], 312
        %1078 = vst [vmem:[%s1077] sm:%s633] %v1076
        %s1079 = smul.addr 2, 38
        %s1080 = scalar_lea.vmem %s627, %s1079 [#allocation1]
        %v1081 = vld [vmem:[%s1080] sm:%s633]
        %s1082 = scalar_lea.vmem [#allocation0], 304
        %1083 = vst [vmem:[%s1082] sm:%s633] %v1081
        %s1084 = smul.addr 2, 37
        %s1085 = scalar_lea.vmem %s627, %s1084 [#allocation1]
        %v1086 = vld [vmem:[%s1085] sm:%s633]
        %s1087 = scalar_lea.vmem [#allocation0], 296
        %1088 = vst [vmem:[%s1087] sm:%s633] %v1086
        %s1089 = smul.addr 2, 36
        %s1090 = scalar_lea.vmem %s627, %s1089 [#allocation1]
        %v1091 = vld [vmem:[%s1090] sm:%s633]
        %s1092 = scalar_lea.vmem [#allocation0], 288
        %1093 = vst [vmem:[%s1092] sm:%s633] %v1091
        %s1094 = smul.addr 2, 35
        %s1095 = scalar_lea.vmem %s627, %s1094 [#allocation1]
        %v1096 = vld [vmem:[%s1095] sm:%s633]
        %s1097 = scalar_lea.vmem [#allocation0], 280
        %1098 = vst [vmem:[%s1097] sm:%s633] %v1096
        %s1099 = smul.addr 2, 34
        %s1100 = scalar_lea.vmem %s627, %s1099 [#allocation1]
        %v1101 = vld [vmem:[%s1100] sm:%s633]
        %s1102 = scalar_lea.vmem [#allocation0], 272
        %1103 = vst [vmem:[%s1102] sm:%s633] %v1101
        %s1104 = smul.addr 2, 33
        %s1105 = scalar_lea.vmem %s627, %s1104 [#allocation1]
        %v1106 = vld [vmem:[%s1105] sm:%s633]
        %s1107 = scalar_lea.vmem [#allocation0], 264
        %1108 = vst [vmem:[%s1107] sm:%s633] %v1106
        %s1109 = smul.addr 2, 32
        %s1110 = scalar_lea.vmem %s627, %s1109 [#allocation1]
        %v1111 = vld [vmem:[%s1110] sm:%s633]
        %s1112 = scalar_lea.vmem [#allocation0], 256
        %1113 = vst [vmem:[%s1112] sm:%s633] %v1111
        %s1114 = smul.addr 2, 31
        %s1115 = scalar_lea.vmem %s627, %s1114 [#allocation1]
        %v1116 = vld [vmem:[%s1115] sm:%s633]
        %s1117 = scalar_lea.vmem [#allocation0], 248
        %1118 = vst [vmem:[%s1117] sm:%s633] %v1116
        %s1119 = smul.addr 2, 30
        %s1120 = scalar_lea.vmem %s627, %s1119 [#allocation1]
        %v1121 = vld [vmem:[%s1120] sm:%s633]
        %s1122 = scalar_lea.vmem [#allocation0], 240
        %1123 = vst [vmem:[%s1122] sm:%s633] %v1121
        %s1124 = smul.addr 2, 29
        %s1125 = scalar_lea.vmem %s627, %s1124 [#allocation1]
        %v1126 = vld [vmem:[%s1125] sm:%s633]
        %s1127 = scalar_lea.vmem [#allocation0], 232
        %1128 = vst [vmem:[%s1127] sm:%s633] %v1126
        %s1129 = smul.addr 2, 28
        %s1130 = scalar_lea.vmem %s627, %s1129 [#allocation1]
        %v1131 = vld [vmem:[%s1130] sm:%s633]
        %s1132 = scalar_lea.vmem [#allocation0], 224
        %1133 = vst [vmem:[%s1132] sm:%s633] %v1131
        %s1134 = smul.addr 2, 27
        %s1135 = scalar_lea.vmem %s627, %s1134 [#allocation1]
        %v1136 = vld [vmem:[%s1135] sm:%s633]
        %s1137 = scalar_lea.vmem [#allocation0], 216
        %1138 = vst [vmem:[%s1137] sm:%s633] %v1136
        %s1139 = smul.addr 2, 26
        %s1140 = scalar_lea.vmem %s627, %s1139 [#allocation1]
        %v1141 = vld [vmem:[%s1140] sm:%s633]
        %s1142 = scalar_lea.vmem [#allocation0], 208
        %1143 = vst [vmem:[%s1142] sm:%s633] %v1141
        %s1144 = smul.addr 2, 25
        %s1145 = scalar_lea.vmem %s627, %s1144 [#allocation1]
        %v1146 = vld [vmem:[%s1145] sm:%s633]
        %s1147 = scalar_lea.vmem [#allocation0], 200
        %1148 = vst [vmem:[%s1147] sm:%s633] %v1146
        %s1149 = smul.addr 2, 24
        %s1150 = scalar_lea.vmem %s627, %s1149 [#allocation1]
        %v1151 = vld [vmem:[%s1150] sm:%s633]
        %s1152 = scalar_lea.vmem [#allocation0], 192
        %1153 = vst [vmem:[%s1152] sm:%s633] %v1151
        %s1154 = smul.addr 2, 23
        %s1155 = scalar_lea.vmem %s627, %s1154 [#allocation1]
        %v1156 = vld [vmem:[%s1155] sm:%s633]
        %s1157 = scalar_lea.vmem [#allocation0], 184
        %1158 = vst [vmem:[%s1157] sm:%s633] %v1156
        %s1159 = smul.addr 2, 22
        %s1160 = scalar_lea.vmem %s627, %s1159 [#allocation1]
        %v1161 = vld [vmem:[%s1160] sm:%s633]
        %s1162 = scalar_lea.vmem [#allocation0], 176
        %1163 = vst [vmem:[%s1162] sm:%s633] %v1161
        %s1164 = smul.addr 2, 21
        %s1165 = scalar_lea.vmem %s627, %s1164 [#allocation1]
        %v1166 = vld [vmem:[%s1165] sm:%s633]
        %s1167 = scalar_lea.vmem [#allocation0], 168
        %1168 = vst [vmem:[%s1167] sm:%s633] %v1166
        %s1169 = smul.addr 2, 20
        %s1170 = scalar_lea.vmem %s627, %s1169 [#allocation1]
        %v1171 = vld [vmem:[%s1170] sm:%s633]
        %s1172 = scalar_lea.vmem [#allocation0], 160
        %1173 = vst [vmem:[%s1172] sm:%s633] %v1171
        %s1174 = smul.addr 2, 19
        %s1175 = scalar_lea.vmem %s627, %s1174 [#allocation1]
        %v1176 = vld [vmem:[%s1175] sm:%s633]
        %s1177 = scalar_lea.vmem [#allocation0], 152
        %1178 = vst [vmem:[%s1177] sm:%s633] %v1176
        %s1179 = smul.addr 2, 18
        %s1180 = scalar_lea.vmem %s627, %s1179 [#allocation1]
        %v1181 = vld [vmem:[%s1180] sm:%s633]
        %s1182 = scalar_lea.vmem [#allocation0], 144
        %1183 = vst [vmem:[%s1182] sm:%s633] %v1181
        %s1184 = smul.addr 2, 17
        %s1185 = scalar_lea.vmem %s627, %s1184 [#allocation1]
        %v1186 = vld [vmem:[%s1185] sm:%s633]
        %s1187 = scalar_lea.vmem [#allocation0], 136
        %1188 = vst [vmem:[%s1187] sm:%s633] %v1186
        %s1189 = smul.addr 2, 16
        %s1190 = scalar_lea.vmem %s627, %s1189 [#allocation1]
        %v1191 = vld [vmem:[%s1190] sm:%s633]
        %s1192 = scalar_lea.vmem [#allocation0], 128
        %1193 = vst [vmem:[%s1192] sm:%s633] %v1191
        %s1194 = smul.addr 2, 15
        %s1195 = scalar_lea.vmem %s627, %s1194 [#allocation1]
        %v1196 = vld [vmem:[%s1195] sm:%s633]
        %s1197 = scalar_lea.vmem [#allocation0], 120
        %1198 = vst [vmem:[%s1197] sm:%s633] %v1196
        %s1199 = smul.addr 2, 14
        %s1200 = scalar_lea.vmem %s627, %s1199 [#allocation1]
        %v1201 = vld [vmem:[%s1200] sm:%s633]
        %s1202 = scalar_lea.vmem [#allocation0], 112
        %1203 = vst [vmem:[%s1202] sm:%s633] %v1201
        %s1204 = smul.addr 2, 13
        %s1205 = scalar_lea.vmem %s627, %s1204 [#allocation1]
        %v1206 = vld [vmem:[%s1205] sm:%s633]
        %s1207 = scalar_lea.vmem [#allocation0], 104
        %1208 = vst [vmem:[%s1207] sm:%s633] %v1206
        %s1209 = smul.addr 2, 12
        %s1210 = scalar_lea.vmem %s627, %s1209 [#allocation1]
        %v1211 = vld [vmem:[%s1210] sm:%s633]
        %s1212 = scalar_lea.vmem [#allocation0], 96
        %1213 = vst [vmem:[%s1212] sm:%s633] %v1211
        %s1214 = smul.addr 2, 11
        %s1215 = scalar_lea.vmem %s627, %s1214 [#allocation1]
        %v1216 = vld [vmem:[%s1215] sm:%s633]
        %s1217 = scalar_lea.vmem [#allocation0], 88
        %1218 = vst [vmem:[%s1217] sm:%s633] %v1216
        %s1219 = smul.addr 2, 10
        %s1220 = scalar_lea.vmem %s627, %s1219 [#allocation1]
        %v1221 = vld [vmem:[%s1220] sm:%s633]
        %s1222 = scalar_lea.vmem [#allocation0], 80
        %1223 = vst [vmem:[%s1222] sm:%s633] %v1221
        %s1224 = smul.addr 2, 9
        %s1225 = scalar_lea.vmem %s627, %s1224 [#allocation1]
        %v1226 = vld [vmem:[%s1225] sm:%s633]
        %s1227 = scalar_lea.vmem [#allocation0], 72
        %1228 = vst [vmem:[%s1227] sm:%s633] %v1226
        %s1229 = smul.addr 2, 8
        %s1230 = scalar_lea.vmem %s627, %s1229 [#allocation1]
        %v1231 = vld [vmem:[%s1230] sm:%s633]
        %s1232 = scalar_lea.vmem [#allocation0], 64
        %1233 = vst [vmem:[%s1232] sm:%s633] %v1231
        %s1234 = smul.addr 2, 7
        %s1235 = scalar_lea.vmem %s627, %s1234 [#allocation1]
        %v1236 = vld [vmem:[%s1235] sm:%s633]
        %s1237 = scalar_lea.vmem [#allocation0], 56
        %1238 = vst [vmem:[%s1237] sm:%s633] %v1236
        %s1239 = smul.addr 2, 6
        %s1240 = scalar_lea.vmem %s627, %s1239 [#allocation1]
        %v1241 = vld [vmem:[%s1240] sm:%s633]
        %s1242 = scalar_lea.vmem [#allocation0], 48
        %1243 = vst [vmem:[%s1242] sm:%s633] %v1241
        %s1244 = smul.addr 2, 5
        %s1245 = scalar_lea.vmem %s627, %s1244 [#allocation1]
        %v1246 = vld [vmem:[%s1245] sm:%s633]
        %s1247 = scalar_lea.vmem [#allocation0], 40
        %1248 = vst [vmem:[%s1247] sm:%s633] %v1246
        %s1249 = smul.addr 2, 4
        %s1250 = scalar_lea.vmem %s627, %s1249 [#allocation1]
        %v1251 = vld [vmem:[%s1250] sm:%s633]
        %s1252 = scalar_lea.vmem [#allocation0], 32
        %1253 = vst [vmem:[%s1252] sm:%s633] %v1251
        %s1254 = smul.addr 2, 3
        %s1255 = scalar_lea.vmem %s627, %s1254 [#allocation1]
        %v1256 = vld [vmem:[%s1255] sm:%s633]
        %s1257 = scalar_lea.vmem [#allocation0], 24
        %1258 = vst [vmem:[%s1257] sm:%s633] %v1256
        %s1259 = smul.addr 2, 2
        %s1260 = scalar_lea.vmem %s627, %s1259 [#allocation1]
        %v1261 = vld [vmem:[%s1260] sm:%s633]
        %s1262 = scalar_lea.vmem [#allocation0], 16
        %1263 = vst [vmem:[%s1262] sm:%s633] %v1261
        %s1264 = scalar_lea.vmem %s627, 2 [#allocation1]
        %v1265 = vld [vmem:[%s1264] sm:%s633]
        %s1266 = scalar_lea.vmem [#allocation0], 8
        %1267 = vst [vmem:[%s1266] sm:%s633] %v1265
        %v1268 = vld [vmem:[%s627] sm:%s633]
        %1269 = vst [vmem:[#allocation0] sm:%s633] %v1268
        %s1270 = ssub.s32 0, %s17
        %s1271 = ssub.s32 1, %s18
        %s1272 = ssub.s32 0, %s20
        %s1273 = smul.u32 16, %s1270
        %s1274 = smul.u32 8, %s1271
        %s1275 = smul.u32 16, %s17
        %s1276 = smul.u32 8, %s18
        %s1277 = scalar_lea.vmem [#allocation0], 1016
        %v1278 = vld [vmem:[%s1277] sm:$0xff]
        %1279 = vperm.xlu0 %4, %v1278
        %v1280 = vpop.permute.xlu0 %1279
        %1281 = vst [vmem:[#allocation2] sm:$0xff] %v1280
        %s1282 = scalar_lea.vmem [#allocation2], 8
        %s1283 = scalar_lea.vmem [#allocation0], 1008
        %v1284 = vld [vmem:[%s1283] sm:$0xff]
        %1285 = vperm.xlu0 %4, %v1284
        %v1286 = vpop.permute.xlu0 %1285
        %1287 = vst [vmem:[%s1282] sm:$0xff] %v1286
        %s1288 = scalar_lea.vmem [#allocation2], 16
        %s1289 = scalar_lea.vmem [#allocation0], 1000
        %v1290 = vld [vmem:[%s1289] sm:$0xff]
        %1291 = vperm.xlu0 %4, %v1290
        %v1292 = vpop.permute.xlu0 %1291
        %1293 = vst [vmem:[%s1288] sm:$0xff] %v1292
        %s1294 = scalar_lea.vmem [#allocation2], 24
        %s1295 = scalar_lea.vmem [#allocation0], 992
        %v1296 = vld [vmem:[%s1295] sm:$0xff]
        %1297 = vperm.xlu0 %4, %v1296
        %v1298 = vpop.permute.xlu0 %1297
        %1299 = vst [vmem:[%s1294] sm:$0xff] %v1298
        %s1300 = scalar_lea.vmem [#allocation2], 32
        %s1301 = scalar_lea.vmem [#allocation0], 984
        %v1302 = vld [vmem:[%s1301] sm:$0xff]
        %1303 = vperm.xlu0 %4, %v1302
        %v1304 = vpop.permute.xlu0 %1303
        %1305 = vst [vmem:[%s1300] sm:$0xff] %v1304
        %s1306 = scalar_lea.vmem [#allocation2], 40
        %s1307 = scalar_lea.vmem [#allocation0], 976
        %v1308 = vld [vmem:[%s1307] sm:$0xff]
        %1309 = vperm.xlu0 %4, %v1308
        %v1310 = vpop.permute.xlu0 %1309
        %1311 = vst [vmem:[%s1306] sm:$0xff] %v1310
        %s1312 = scalar_lea.vmem [#allocation2], 48
        %s1313 = scalar_lea.vmem [#allocation0], 968
        %v1314 = vld [vmem:[%s1313] sm:$0xff]
        %1315 = vperm.xlu0 %4, %v1314
        %v1316 = vpop.permute.xlu0 %1315
        %1317 = vst [vmem:[%s1312] sm:$0xff] %v1316
        %s1318 = scalar_lea.vmem [#allocation2], 56
        %s1319 = scalar_lea.vmem [#allocation0], 960
        %v1320 = vld [vmem:[%s1319] sm:$0xff]
        %1321 = vperm.xlu0 %4, %v1320
        %v1322 = vpop.permute.xlu0 %1321
        %1323 = vst [vmem:[%s1318] sm:$0xff] %v1322
        %s1324 = scalar_lea.vmem [#allocation2], 64
        %s1325 = scalar_lea.vmem [#allocation0], 952
        %v1326 = vld [vmem:[%s1325] sm:$0xff]
        %1327 = vperm.xlu0 %4, %v1326
        %v1328 = vpop.permute.xlu0 %1327
        %1329 = vst [vmem:[%s1324] sm:$0xff] %v1328
        %s1330 = scalar_lea.vmem [#allocation2], 72
        %s1331 = scalar_lea.vmem [#allocation0], 944
        %v1332 = vld [vmem:[%s1331] sm:$0xff]
        %1333 = vperm.xlu0 %4, %v1332
        %v1334 = vpop.permute.xlu0 %1333
        %1335 = vst [vmem:[%s1330] sm:$0xff] %v1334
        %s1336 = scalar_lea.vmem [#allocation2], 80
        %s1337 = scalar_lea.vmem [#allocation0], 936
        %v1338 = vld [vmem:[%s1337] sm:$0xff]
        %1339 = vperm.xlu0 %4, %v1338
        %v1340 = vpop.permute.xlu0 %1339
        %1341 = vst [vmem:[%s1336] sm:$0xff] %v1340
        %s1342 = scalar_lea.vmem [#allocation2], 88
        %s1343 = scalar_lea.vmem [#allocation0], 928
        %v1344 = vld [vmem:[%s1343] sm:$0xff]
        %1345 = vperm.xlu0 %4, %v1344
        %v1346 = vpop.permute.xlu0 %1345
        %1347 = vst [vmem:[%s1342] sm:$0xff] %v1346
        %s1348 = scalar_lea.vmem [#allocation2], 96
        %s1349 = scalar_lea.vmem [#allocation0], 920
        %v1350 = vld [vmem:[%s1349] sm:$0xff]
        %1351 = vperm.xlu0 %4, %v1350
        %v1352 = vpop.permute.xlu0 %1351
        %1353 = vst [vmem:[%s1348] sm:$0xff] %v1352
        %s1354 = scalar_lea.vmem [#allocation2], 104
        %s1355 = scalar_lea.vmem [#allocation0], 912
        %v1356 = vld [vmem:[%s1355] sm:$0xff]
        %1357 = vperm.xlu0 %4, %v1356
        %v1358 = vpop.permute.xlu0 %1357
        %1359 = vst [vmem:[%s1354] sm:$0xff] %v1358
        %s1360 = scalar_lea.vmem [#allocation2], 112
        %s1361 = scalar_lea.vmem [#allocation0], 904
        %v1362 = vld [vmem:[%s1361] sm:$0xff]
        %1363 = vperm.xlu0 %4, %v1362
        %v1364 = vpop.permute.xlu0 %1363
        %1365 = vst [vmem:[%s1360] sm:$0xff] %v1364
        %s1366 = scalar_lea.vmem [#allocation2], 120
        %s1367 = scalar_lea.vmem [#allocation0], 896
        %v1368 = vld [vmem:[%s1367] sm:$0xff]
        %1369 = vperm.xlu0 %4, %v1368
        %v1370 = vpop.permute.xlu0 %1369
        %1371 = vst [vmem:[%s1366] sm:$0xff] %v1370
        %s1372 = scalar_lea.vmem [#allocation2], 128
        %s1373 = scalar_lea.vmem [#allocation0], 888
        %v1374 = vld [vmem:[%s1373] sm:$0xff]
        %1375 = vperm.xlu0 %4, %v1374
        %v1376 = vpop.permute.xlu0 %1375
        %1377 = vst [vmem:[%s1372] sm:$0xff] %v1376
        %s1378 = scalar_lea.vmem [#allocation2], 136
        %s1379 = scalar_lea.vmem [#allocation0], 880
        %v1380 = vld [vmem:[%s1379] sm:$0xff]
        %1381 = vperm.xlu0 %4, %v1380
        %v1382 = vpop.permute.xlu0 %1381
        %1383 = vst [vmem:[%s1378] sm:$0xff] %v1382
        %s1384 = scalar_lea.vmem [#allocation2], 144
        %s1385 = scalar_lea.vmem [#allocation0], 872
        %v1386 = vld [vmem:[%s1385] sm:$0xff]
        %1387 = vperm.xlu0 %4, %v1386
        %v1388 = vpop.permute.xlu0 %1387
        %1389 = vst [vmem:[%s1384] sm:$0xff] %v1388
        %s1390 = scalar_lea.vmem [#allocation2], 152
        %s1391 = scalar_lea.vmem [#allocation0], 864
        %v1392 = vld [vmem:[%s1391] sm:$0xff]
        %1393 = vperm.xlu0 %4, %v1392
        %v1394 = vpop.permute.xlu0 %1393
        %1395 = vst [vmem:[%s1390] sm:$0xff] %v1394
        %s1396 = scalar_lea.vmem [#allocation2], 160
        %s1397 = scalar_lea.vmem [#allocation0], 856
        %v1398 = vld [vmem:[%s1397] sm:$0xff]
        %1399 = vperm.xlu0 %4, %v1398
        %v1400 = vpop.permute.xlu0 %1399
        %1401 = vst [vmem:[%s1396] sm:$0xff] %v1400
        %s1402 = scalar_lea.vmem [#allocation2], 168
        %s1403 = scalar_lea.vmem [#allocation0], 848
        %v1404 = vld [vmem:[%s1403] sm:$0xff]
        %1405 = vperm.xlu0 %4, %v1404
        %v1406 = vpop.permute.xlu0 %1405
        %1407 = vst [vmem:[%s1402] sm:$0xff] %v1406
        %s1408 = scalar_lea.vmem [#allocation2], 176
        %s1409 = scalar_lea.vmem [#allocation0], 840
        %v1410 = vld [vmem:[%s1409] sm:$0xff]
        %1411 = vperm.xlu0 %4, %v1410
        %v1412 = vpop.permute.xlu0 %1411
        %1413 = vst [vmem:[%s1408] sm:$0xff] %v1412
        %s1414 = scalar_lea.vmem [#allocation2], 184
        %s1415 = scalar_lea.vmem [#allocation0], 832
        %v1416 = vld [vmem:[%s1415] sm:$0xff]
        %1417 = vperm.xlu0 %4, %v1416
        %v1418 = vpop.permute.xlu0 %1417
        %1419 = vst [vmem:[%s1414] sm:$0xff] %v1418
        %s1420 = scalar_lea.vmem [#allocation2], 192
        %s1421 = scalar_lea.vmem [#allocation0], 824
        %v1422 = vld [vmem:[%s1421] sm:$0xff]
        %1423 = vperm.xlu0 %4, %v1422
        %v1424 = vpop.permute.xlu0 %1423
        %1425 = vst [vmem:[%s1420] sm:$0xff] %v1424
        %s1426 = scalar_lea.vmem [#allocation2], 200
        %s1427 = scalar_lea.vmem [#allocation0], 816
        %v1428 = vld [vmem:[%s1427] sm:$0xff]
        %1429 = vperm.xlu0 %4, %v1428
        %v1430 = vpop.permute.xlu0 %1429
        %1431 = vst [vmem:[%s1426] sm:$0xff] %v1430
        %s1432 = scalar_lea.vmem [#allocation2], 208
        %s1433 = scalar_lea.vmem [#allocation0], 808
        %v1434 = vld [vmem:[%s1433] sm:$0xff]
        %1435 = vperm.xlu0 %4, %v1434
        %v1436 = vpop.permute.xlu0 %1435
        %1437 = vst [vmem:[%s1432] sm:$0xff] %v1436
        %s1438 = scalar_lea.vmem [#allocation2], 216
        %s1439 = scalar_lea.vmem [#allocation0], 800
        %v1440 = vld [vmem:[%s1439] sm:$0xff]
        %1441 = vperm.xlu0 %4, %v1440
        %v1442 = vpop.permute.xlu0 %1441
        %1443 = vst [vmem:[%s1438] sm:$0xff] %v1442
        %s1444 = scalar_lea.vmem [#allocation2], 224
        %s1445 = scalar_lea.vmem [#allocation0], 792
        %v1446 = vld [vmem:[%s1445] sm:$0xff]
        %1447 = vperm.xlu0 %4, %v1446
        %v1448 = vpop.permute.xlu0 %1447
        %1449 = vst [vmem:[%s1444] sm:$0xff] %v1448
        %s1450 = scalar_lea.vmem [#allocation2], 232
        %s1451 = scalar_lea.vmem [#allocation0], 784
        %v1452 = vld [vmem:[%s1451] sm:$0xff]
        %1453 = vperm.xlu0 %4, %v1452
        %v1454 = vpop.permute.xlu0 %1453
        %1455 = vst [vmem:[%s1450] sm:$0xff] %v1454
        %s1456 = scalar_lea.vmem [#allocation2], 240
        %s1457 = scalar_lea.vmem [#allocation0], 776
        %v1458 = vld [vmem:[%s1457] sm:$0xff]
        %1459 = vperm.xlu0 %4, %v1458
        %v1460 = vpop.permute.xlu0 %1459
        %1461 = vst [vmem:[%s1456] sm:$0xff] %v1460
        %s1462 = scalar_lea.vmem [#allocation2], 248
        %s1463 = scalar_lea.vmem [#allocation0], 768
        %v1464 = vld [vmem:[%s1463] sm:$0xff]
        %1465 = vperm.xlu0 %4, %v1464
        %v1466 = vpop.permute.xlu0 %1465
        %1467 = vst [vmem:[%s1462] sm:$0xff] %v1466
        %s1468 = scalar_lea.vmem [#allocation2], 256
        %s1469 = scalar_lea.vmem [#allocation0], 760
        %v1470 = vld [vmem:[%s1469] sm:$0xff]
        %1471 = vperm.xlu0 %4, %v1470
        %v1472 = vpop.permute.xlu0 %1471
        %1473 = vst [vmem:[%s1468] sm:$0xff] %v1472
        %s1474 = scalar_lea.vmem [#allocation2], 264
        %s1475 = scalar_lea.vmem [#allocation0], 752
        %v1476 = vld [vmem:[%s1475] sm:$0xff]
        %1477 = vperm.xlu0 %4, %v1476
        %v1478 = vpop.permute.xlu0 %1477
        %1479 = vst [vmem:[%s1474] sm:$0xff] %v1478
        %s1480 = scalar_lea.vmem [#allocation2], 272
        %s1481 = scalar_lea.vmem [#allocation0], 744
        %v1482 = vld [vmem:[%s1481] sm:$0xff]
        %1483 = vperm.xlu0 %4, %v1482
        %v1484 = vpop.permute.xlu0 %1483
        %1485 = vst [vmem:[%s1480] sm:$0xff] %v1484
        %s1486 = scalar_lea.vmem [#allocation2], 280
        %s1487 = scalar_lea.vmem [#allocation0], 736
        %v1488 = vld [vmem:[%s1487] sm:$0xff]
        %1489 = vperm.xlu0 %4, %v1488
        %v1490 = vpop.permute.xlu0 %1489
        %1491 = vst [vmem:[%s1486] sm:$0xff] %v1490
        %s1492 = scalar_lea.vmem [#allocation2], 288
        %s1493 = scalar_lea.vmem [#allocation0], 728
        %v1494 = vld [vmem:[%s1493] sm:$0xff]
        %1495 = vperm.xlu0 %4, %v1494
        %v1496 = vpop.permute.xlu0 %1495
        %1497 = vst [vmem:[%s1492] sm:$0xff] %v1496
        %s1498 = scalar_lea.vmem [#allocation2], 296
        %s1499 = scalar_lea.vmem [#allocation0], 720
        %v1500 = vld [vmem:[%s1499] sm:$0xff]
        %1501 = vperm.xlu0 %4, %v1500
        %v1502 = vpop.permute.xlu0 %1501
        %1503 = vst [vmem:[%s1498] sm:$0xff] %v1502
        %s1504 = scalar_lea.vmem [#allocation2], 304
        %s1505 = scalar_lea.vmem [#allocation0], 712
        %v1506 = vld [vmem:[%s1505] sm:$0xff]
        %1507 = vperm.xlu0 %4, %v1506
        %v1508 = vpop.permute.xlu0 %1507
        %1509 = vst [vmem:[%s1504] sm:$0xff] %v1508
        %s1510 = scalar_lea.vmem [#allocation2], 312
        %s1511 = scalar_lea.vmem [#allocation0], 704
        %v1512 = vld [vmem:[%s1511] sm:$0xff]
        %1513 = vperm.xlu0 %4, %v1512
        %v1514 = vpop.permute.xlu0 %1513
        %1515 = vst [vmem:[%s1510] sm:$0xff] %v1514
        %s1516 = scalar_lea.vmem [#allocation2], 320
        %s1517 = scalar_lea.vmem [#allocation0], 696
        %v1518 = vld [vmem:[%s1517] sm:$0xff]
        %1519 = vperm.xlu0 %4, %v1518
        %v1520 = vpop.permute.xlu0 %1519
        %1521 = vst [vmem:[%s1516] sm:$0xff] %v1520
        %s1522 = scalar_lea.vmem [#allocation2], 328
        %s1523 = scalar_lea.vmem [#allocation0], 688
        %v1524 = vld [vmem:[%s1523] sm:$0xff]
        %1525 = vperm.xlu0 %4, %v1524
        %v1526 = vpop.permute.xlu0 %1525
        %1527 = vst [vmem:[%s1522] sm:$0xff] %v1526
        %s1528 = scalar_lea.vmem [#allocation2], 336
        %s1529 = scalar_lea.vmem [#allocation0], 680
        %v1530 = vld [vmem:[%s1529] sm:$0xff]
        %1531 = vperm.xlu0 %4, %v1530
        %v1532 = vpop.permute.xlu0 %1531
        %1533 = vst [vmem:[%s1528] sm:$0xff] %v1532
        %s1534 = scalar_lea.vmem [#allocation2], 344
        %s1535 = scalar_lea.vmem [#allocation0], 672
        %v1536 = vld [vmem:[%s1535] sm:$0xff]
        %1537 = vperm.xlu0 %4, %v1536
        %v1538 = vpop.permute.xlu0 %1537
        %1539 = vst [vmem:[%s1534] sm:$0xff] %v1538
        %s1540 = scalar_lea.vmem [#allocation2], 352
        %s1541 = scalar_lea.vmem [#allocation0], 664
        %v1542 = vld [vmem:[%s1541] sm:$0xff]
        %1543 = vperm.xlu0 %4, %v1542
        %v1544 = vpop.permute.xlu0 %1543
        %1545 = vst [vmem:[%s1540] sm:$0xff] %v1544
        %s1546 = scalar_lea.vmem [#allocation2], 360
        %s1547 = scalar_lea.vmem [#allocation0], 656
        %v1548 = vld [vmem:[%s1547] sm:$0xff]
        %1549 = vperm.xlu0 %4, %v1548
        %v1550 = vpop.permute.xlu0 %1549
        %1551 = vst [vmem:[%s1546] sm:$0xff] %v1550
        %s1552 = scalar_lea.vmem [#allocation2], 368
        %s1553 = scalar_lea.vmem [#allocation0], 648
        %v1554 = vld [vmem:[%s1553] sm:$0xff]
        %1555 = vperm.xlu0 %4, %v1554
        %v1556 = vpop.permute.xlu0 %1555
        %1557 = vst [vmem:[%s1552] sm:$0xff] %v1556
        %s1558 = scalar_lea.vmem [#allocation2], 376
        %s1559 = scalar_lea.vmem [#allocation0], 640
        %v1560 = vld [vmem:[%s1559] sm:$0xff]
        %1561 = vperm.xlu0 %4, %v1560
        %v1562 = vpop.permute.xlu0 %1561
        %1563 = vst [vmem:[%s1558] sm:$0xff] %v1562
        %s1564 = scalar_lea.vmem [#allocation2], 384
        %s1565 = scalar_lea.vmem [#allocation0], 632
        %v1566 = vld [vmem:[%s1565] sm:$0xff]
        %1567 = vperm.xlu0 %4, %v1566
        %v1568 = vpop.permute.xlu0 %1567
        %1569 = vst [vmem:[%s1564] sm:$0xff] %v1568
        %s1570 = scalar_lea.vmem [#allocation2], 392
        %s1571 = scalar_lea.vmem [#allocation0], 624
        %v1572 = vld [vmem:[%s1571] sm:$0xff]
        %1573 = vperm.xlu0 %4, %v1572
        %v1574 = vpop.permute.xlu0 %1573
        %1575 = vst [vmem:[%s1570] sm:$0xff] %v1574
        %s1576 = scalar_lea.vmem [#allocation2], 400
        %s1577 = scalar_lea.vmem [#allocation0], 616
        %v1578 = vld [vmem:[%s1577] sm:$0xff]
        %1579 = vperm.xlu0 %4, %v1578
        %v1580 = vpop.permute.xlu0 %1579
        %1581 = vst [vmem:[%s1576] sm:$0xff] %v1580
        %s1582 = scalar_lea.vmem [#allocation2], 408
        %s1583 = scalar_lea.vmem [#allocation0], 608
        %v1584 = vld [vmem:[%s1583] sm:$0xff]
        %1585 = vperm.xlu0 %4, %v1584
        %v1586 = vpop.permute.xlu0 %1585
        %1587 = vst [vmem:[%s1582] sm:$0xff] %v1586
        %s1588 = scalar_lea.vmem [#allocation2], 416
        %s1589 = scalar_lea.vmem [#allocation0], 600
        %v1590 = vld [vmem:[%s1589] sm:$0xff]
        %1591 = vperm.xlu0 %4, %v1590
        %v1592 = vpop.permute.xlu0 %1591
        %1593 = vst [vmem:[%s1588] sm:$0xff] %v1592
        %s1594 = scalar_lea.vmem [#allocation2], 424
        %s1595 = scalar_lea.vmem [#allocation0], 592
        %v1596 = vld [vmem:[%s1595] sm:$0xff]
        %1597 = vperm.xlu0 %4, %v1596
        %v1598 = vpop.permute.xlu0 %1597
        %1599 = vst [vmem:[%s1594] sm:$0xff] %v1598
        %s1600 = scalar_lea.vmem [#allocation2], 432
        %s1601 = scalar_lea.vmem [#allocation0], 584
        %v1602 = vld [vmem:[%s1601] sm:$0xff]
        %1603 = vperm.xlu0 %4, %v1602
        %v1604 = vpop.permute.xlu0 %1603
        %1605 = vst [vmem:[%s1600] sm:$0xff] %v1604
        %s1606 = scalar_lea.vmem [#allocation2], 440
        %s1607 = scalar_lea.vmem [#allocation0], 576
        %v1608 = vld [vmem:[%s1607] sm:$0xff]
        %1609 = vperm.xlu0 %4, %v1608
        %v1610 = vpop.permute.xlu0 %1609
        %1611 = vst [vmem:[%s1606] sm:$0xff] %v1610
        %s1612 = scalar_lea.vmem [#allocation2], 448
        %s1613 = scalar_lea.vmem [#allocation0], 568
        %v1614 = vld [vmem:[%s1613] sm:$0xff]
        %1615 = vperm.xlu0 %4, %v1614
        %v1616 = vpop.permute.xlu0 %1615
        %1617 = vst [vmem:[%s1612] sm:$0xff] %v1616
        %s1618 = scalar_lea.vmem [#allocation2], 456
        %s1619 = scalar_lea.vmem [#allocation0], 560
        %v1620 = vld [vmem:[%s1619] sm:$0xff]
        %1621 = vperm.xlu0 %4, %v1620
        %v1622 = vpop.permute.xlu0 %1621
        %1623 = vst [vmem:[%s1618] sm:$0xff] %v1622
        %s1624 = scalar_lea.vmem [#allocation2], 464
        %s1625 = scalar_lea.vmem [#allocation0], 552
        %v1626 = vld [vmem:[%s1625] sm:$0xff]
        %1627 = vperm.xlu0 %4, %v1626
        %v1628 = vpop.permute.xlu0 %1627
        %1629 = vst [vmem:[%s1624] sm:$0xff] %v1628
        %s1630 = scalar_lea.vmem [#allocation2], 472
        %s1631 = scalar_lea.vmem [#allocation0], 544
        %v1632 = vld [vmem:[%s1631] sm:$0xff]
        %1633 = vperm.xlu0 %4, %v1632
        %v1634 = vpop.permute.xlu0 %1633
        %1635 = vst [vmem:[%s1630] sm:$0xff] %v1634
        %s1636 = scalar_lea.vmem [#allocation2], 480
        %s1637 = scalar_lea.vmem [#allocation0], 536
        %v1638 = vld [vmem:[%s1637] sm:$0xff]
        %1639 = vperm.xlu0 %4, %v1638
        %v1640 = vpop.permute.xlu0 %1639
        %1641 = vst [vmem:[%s1636] sm:$0xff] %v1640
        %s1642 = scalar_lea.vmem [#allocation2], 488
        %s1643 = scalar_lea.vmem [#allocation0], 528
        %v1644 = vld [vmem:[%s1643] sm:$0xff]
        %1645 = vperm.xlu0 %4, %v1644
        %v1646 = vpop.permute.xlu0 %1645
        %1647 = vst [vmem:[%s1642] sm:$0xff] %v1646
        %s1648 = scalar_lea.vmem [#allocation2], 496
        %s1649 = scalar_lea.vmem [#allocation0], 520
        %v1650 = vld [vmem:[%s1649] sm:$0xff]
        %1651 = vperm.xlu0 %4, %v1650
        %v1652 = vpop.permute.xlu0 %1651
        %1653 = vst [vmem:[%s1648] sm:$0xff] %v1652
        %s1654 = scalar_lea.vmem [#allocation2], 504
        %s1655 = scalar_lea.vmem [#allocation0], 512
        %v1656 = vld [vmem:[%s1655] sm:$0xff]
        %1657 = vperm.xlu0 %4, %v1656
        %v1658 = vpop.permute.xlu0 %1657
        %1659 = vst [vmem:[%s1654] sm:$0xff] %v1658
        %s1660 = scalar_lea.vmem [#allocation2], 512
        %s1661 = scalar_lea.vmem [#allocation0], 504
        %v1662 = vld [vmem:[%s1661] sm:$0xff]
        %1663 = vperm.xlu0 %4, %v1662
        %v1664 = vpop.permute.xlu0 %1663
        %1665 = vst [vmem:[%s1660] sm:$0xff] %v1664
        %s1666 = scalar_lea.vmem [#allocation2], 520
        %s1667 = scalar_lea.vmem [#allocation0], 496
        %v1668 = vld [vmem:[%s1667] sm:$0xff]
        %1669 = vperm.xlu0 %4, %v1668
        %v1670 = vpop.permute.xlu0 %1669
        %1671 = vst [vmem:[%s1666] sm:$0xff] %v1670
        %s1672 = scalar_lea.vmem [#allocation2], 528
        %s1673 = scalar_lea.vmem [#allocation0], 488
        %v1674 = vld [vmem:[%s1673] sm:$0xff]
        %1675 = vperm.xlu0 %4, %v1674
        %v1676 = vpop.permute.xlu0 %1675
        %1677 = vst [vmem:[%s1672] sm:$0xff] %v1676
        %s1678 = scalar_lea.vmem [#allocation2], 536
        %s1679 = scalar_lea.vmem [#allocation0], 480
        %v1680 = vld [vmem:[%s1679] sm:$0xff]
        %1681 = vperm.xlu0 %4, %v1680
        %v1682 = vpop.permute.xlu0 %1681
        %1683 = vst [vmem:[%s1678] sm:$0xff] %v1682
        %s1684 = scalar_lea.vmem [#allocation2], 544
        %s1685 = scalar_lea.vmem [#allocation0], 472
        %v1686 = vld [vmem:[%s1685] sm:$0xff]
        %1687 = vperm.xlu0 %4, %v1686
        %v1688 = vpop.permute.xlu0 %1687
        %1689 = vst [vmem:[%s1684] sm:$0xff] %v1688
        %s1690 = scalar_lea.vmem [#allocation2], 552
        %s1691 = scalar_lea.vmem [#allocation0], 464
        %v1692 = vld [vmem:[%s1691] sm:$0xff]
        %1693 = vperm.xlu0 %4, %v1692
        %v1694 = vpop.permute.xlu0 %1693
        %1695 = vst [vmem:[%s1690] sm:$0xff] %v1694
        %s1696 = scalar_lea.vmem [#allocation2], 560
        %s1697 = scalar_lea.vmem [#allocation0], 456
        %v1698 = vld [vmem:[%s1697] sm:$0xff]
        %1699 = vperm.xlu0 %4, %v1698
        %v1700 = vpop.permute.xlu0 %1699
        %1701 = vst [vmem:[%s1696] sm:$0xff] %v1700
        %s1702 = scalar_lea.vmem [#allocation2], 568
        %s1703 = scalar_lea.vmem [#allocation0], 448
        %v1704 = vld [vmem:[%s1703] sm:$0xff]
        %1705 = vperm.xlu0 %4, %v1704
        %v1706 = vpop.permute.xlu0 %1705
        %1707 = vst [vmem:[%s1702] sm:$0xff] %v1706
        %s1708 = scalar_lea.vmem [#allocation2], 576
        %s1709 = scalar_lea.vmem [#allocation0], 440
        %v1710 = vld [vmem:[%s1709] sm:$0xff]
        %1711 = vperm.xlu0 %4, %v1710
        %v1712 = vpop.permute.xlu0 %1711
        %1713 = vst [vmem:[%s1708] sm:$0xff] %v1712
        %s1714 = scalar_lea.vmem [#allocation2], 584
        %s1715 = scalar_lea.vmem [#allocation0], 432
        %v1716 = vld [vmem:[%s1715] sm:$0xff]
        %1717 = vperm.xlu0 %4, %v1716
        %v1718 = vpop.permute.xlu0 %1717
        %1719 = vst [vmem:[%s1714] sm:$0xff] %v1718
        %s1720 = scalar_lea.vmem [#allocation2], 592
        %s1721 = scalar_lea.vmem [#allocation0], 424
        %v1722 = vld [vmem:[%s1721] sm:$0xff]
        %1723 = vperm.xlu0 %4, %v1722
        %v1724 = vpop.permute.xlu0 %1723
        %1725 = vst [vmem:[%s1720] sm:$0xff] %v1724
        %s1726 = scalar_lea.vmem [#allocation2], 600
        %s1727 = scalar_lea.vmem [#allocation0], 416
        %v1728 = vld [vmem:[%s1727] sm:$0xff]
        %1729 = vperm.xlu0 %4, %v1728
        %v1730 = vpop.permute.xlu0 %1729
        %1731 = vst [vmem:[%s1726] sm:$0xff] %v1730
        %s1732 = scalar_lea.vmem [#allocation2], 608
        %s1733 = scalar_lea.vmem [#allocation0], 408
        %v1734 = vld [vmem:[%s1733] sm:$0xff]
        %1735 = vperm.xlu0 %4, %v1734
        %v1736 = vpop.permute.xlu0 %1735
        %1737 = vst [vmem:[%s1732] sm:$0xff] %v1736
        %s1738 = scalar_lea.vmem [#allocation2], 616
        %s1739 = scalar_lea.vmem [#allocation0], 400
        %v1740 = vld [vmem:[%s1739] sm:$0xff]
        %1741 = vperm.xlu0 %4, %v1740
        %v1742 = vpop.permute.xlu0 %1741
        %1743 = vst [vmem:[%s1738] sm:$0xff] %v1742
        %s1744 = scalar_lea.vmem [#allocation2], 624
        %s1745 = scalar_lea.vmem [#allocation0], 392
        %v1746 = vld [vmem:[%s1745] sm:$0xff]
        %1747 = vperm.xlu0 %4, %v1746
        %v1748 = vpop.permute.xlu0 %1747
        %1749 = vst [vmem:[%s1744] sm:$0xff] %v1748
        %s1750 = scalar_lea.vmem [#allocation2], 632
        %s1751 = scalar_lea.vmem [#allocation0], 384
        %v1752 = vld [vmem:[%s1751] sm:$0xff]
        %1753 = vperm.xlu0 %4, %v1752
        %v1754 = vpop.permute.xlu0 %1753
        %1755 = vst [vmem:[%s1750] sm:$0xff] %v1754
        %s1756 = scalar_lea.vmem [#allocation2], 640
        %s1757 = scalar_lea.vmem [#allocation0], 376
        %v1758 = vld [vmem:[%s1757] sm:$0xff]
        %1759 = vperm.xlu0 %4, %v1758
        %v1760 = vpop.permute.xlu0 %1759
        %1761 = vst [vmem:[%s1756] sm:$0xff] %v1760
        %s1762 = scalar_lea.vmem [#allocation2], 648
        %s1763 = scalar_lea.vmem [#allocation0], 368
        %v1764 = vld [vmem:[%s1763] sm:$0xff]
        %1765 = vperm.xlu0 %4, %v1764
        %v1766 = vpop.permute.xlu0 %1765
        %1767 = vst [vmem:[%s1762] sm:$0xff] %v1766
        %s1768 = scalar_lea.vmem [#allocation2], 656
        %s1769 = scalar_lea.vmem [#allocation0], 360
        %v1770 = vld [vmem:[%s1769] sm:$0xff]
        %1771 = vperm.xlu0 %4, %v1770
        %v1772 = vpop.permute.xlu0 %1771
        %1773 = vst [vmem:[%s1768] sm:$0xff] %v1772
        %s1774 = scalar_lea.vmem [#allocation2], 664
        %s1775 = scalar_lea.vmem [#allocation0], 352
        %v1776 = vld [vmem:[%s1775] sm:$0xff]
        %1777 = vperm.xlu0 %4, %v1776
        %v1778 = vpop.permute.xlu0 %1777
        %1779 = vst [vmem:[%s1774] sm:$0xff] %v1778
        %s1780 = scalar_lea.vmem [#allocation2], 672
        %s1781 = scalar_lea.vmem [#allocation0], 344
        %v1782 = vld [vmem:[%s1781] sm:$0xff]
        %1783 = vperm.xlu0 %4, %v1782
        %v1784 = vpop.permute.xlu0 %1783
        %1785 = vst [vmem:[%s1780] sm:$0xff] %v1784
        %s1786 = scalar_lea.vmem [#allocation2], 680
        %s1787 = scalar_lea.vmem [#allocation0], 336
        %v1788 = vld [vmem:[%s1787] sm:$0xff]
        %1789 = vperm.xlu0 %4, %v1788
        %v1790 = vpop.permute.xlu0 %1789
        %1791 = vst [vmem:[%s1786] sm:$0xff] %v1790
        %s1792 = scalar_lea.vmem [#allocation2], 688
        %s1793 = scalar_lea.vmem [#allocation0], 328
        %v1794 = vld [vmem:[%s1793] sm:$0xff]
        %1795 = vperm.xlu0 %4, %v1794
        %v1796 = vpop.permute.xlu0 %1795
        %1797 = vst [vmem:[%s1792] sm:$0xff] %v1796
        %s1798 = scalar_lea.vmem [#allocation2], 696
        %s1799 = scalar_lea.vmem [#allocation0], 320
        %v1800 = vld [vmem:[%s1799] sm:$0xff]
        %1801 = vperm.xlu0 %4, %v1800
        %v1802 = vpop.permute.xlu0 %1801
        %1803 = vst [vmem:[%s1798] sm:$0xff] %v1802
        %s1804 = scalar_lea.vmem [#allocation2], 704
        %s1805 = scalar_lea.vmem [#allocation0], 312
        %v1806 = vld [vmem:[%s1805] sm:$0xff]
        %1807 = vperm.xlu0 %4, %v1806
        %v1808 = vpop.permute.xlu0 %1807
        %1809 = vst [vmem:[%s1804] sm:$0xff] %v1808
        %s1810 = scalar_lea.vmem [#allocation2], 712
        %s1811 = scalar_lea.vmem [#allocation0], 304
        %v1812 = vld [vmem:[%s1811] sm:$0xff]
        %1813 = vperm.xlu0 %4, %v1812
        %v1814 = vpop.permute.xlu0 %1813
        %1815 = vst [vmem:[%s1810] sm:$0xff] %v1814
        %s1816 = scalar_lea.vmem [#allocation2], 720
        %s1817 = scalar_lea.vmem [#allocation0], 296
        %v1818 = vld [vmem:[%s1817] sm:$0xff]
        %1819 = vperm.xlu0 %4, %v1818
        %v1820 = vpop.permute.xlu0 %1819
        %1821 = vst [vmem:[%s1816] sm:$0xff] %v1820
        %s1822 = scalar_lea.vmem [#allocation2], 728
        %s1823 = scalar_lea.vmem [#allocation0], 288
        %v1824 = vld [vmem:[%s1823] sm:$0xff]
        %1825 = vperm.xlu0 %4, %v1824
        %v1826 = vpop.permute.xlu0 %1825
        %1827 = vst [vmem:[%s1822] sm:$0xff] %v1826
        %s1828 = scalar_lea.vmem [#allocation2], 736
        %s1829 = scalar_lea.vmem [#allocation0], 280
        %v1830 = vld [vmem:[%s1829] sm:$0xff]
        %1831 = vperm.xlu0 %4, %v1830
        %v1832 = vpop.permute.xlu0 %1831
        %1833 = vst [vmem:[%s1828] sm:$0xff] %v1832
        %s1834 = scalar_lea.vmem [#allocation2], 744
        %s1835 = scalar_lea.vmem [#allocation0], 272
        %v1836 = vld [vmem:[%s1835] sm:$0xff]
        %1837 = vperm.xlu0 %4, %v1836
        %v1838 = vpop.permute.xlu0 %1837
        %1839 = vst [vmem:[%s1834] sm:$0xff] %v1838
        %s1840 = scalar_lea.vmem [#allocation2], 752
        %s1841 = scalar_lea.vmem [#allocation0], 264
        %v1842 = vld [vmem:[%s1841] sm:$0xff]
        %1843 = vperm.xlu0 %4, %v1842
        %v1844 = vpop.permute.xlu0 %1843
        %1845 = vst [vmem:[%s1840] sm:$0xff] %v1844
        %s1846 = scalar_lea.vmem [#allocation2], 760
        %s1847 = scalar_lea.vmem [#allocation0], 256
        %v1848 = vld [vmem:[%s1847] sm:$0xff]
        %1849 = vperm.xlu0 %4, %v1848
        %v1850 = vpop.permute.xlu0 %1849
        %1851 = vst [vmem:[%s1846] sm:$0xff] %v1850
        %s1852 = scalar_lea.vmem [#allocation2], 768
        %s1853 = scalar_lea.vmem [#allocation0], 248
        %v1854 = vld [vmem:[%s1853] sm:$0xff]
        %1855 = vperm.xlu0 %4, %v1854
        %v1856 = vpop.permute.xlu0 %1855
        %1857 = vst [vmem:[%s1852] sm:$0xff] %v1856
        %s1858 = scalar_lea.vmem [#allocation2], 776
        %s1859 = scalar_lea.vmem [#allocation0], 240
        %v1860 = vld [vmem:[%s1859] sm:$0xff]
        %1861 = vperm.xlu0 %4, %v1860
        %v1862 = vpop.permute.xlu0 %1861
        %1863 = vst [vmem:[%s1858] sm:$0xff] %v1862
        %s1864 = scalar_lea.vmem [#allocation2], 784
        %s1865 = scalar_lea.vmem [#allocation0], 232
        %v1866 = vld [vmem:[%s1865] sm:$0xff]
        %1867 = vperm.xlu0 %4, %v1866
        %v1868 = vpop.permute.xlu0 %1867
        %1869 = vst [vmem:[%s1864] sm:$0xff] %v1868
        %s1870 = scalar_lea.vmem [#allocation2], 792
        %s1871 = scalar_lea.vmem [#allocation0], 224
        %v1872 = vld [vmem:[%s1871] sm:$0xff]
        %1873 = vperm.xlu0 %4, %v1872
        %v1874 = vpop.permute.xlu0 %1873
        %1875 = vst [vmem:[%s1870] sm:$0xff] %v1874
        %s1876 = scalar_lea.vmem [#allocation2], 800
        %s1877 = scalar_lea.vmem [#allocation0], 216
        %v1878 = vld [vmem:[%s1877] sm:$0xff]
        %1879 = vperm.xlu0 %4, %v1878
        %v1880 = vpop.permute.xlu0 %1879
        %1881 = vst [vmem:[%s1876] sm:$0xff] %v1880
        %s1882 = scalar_lea.vmem [#allocation2], 808
        %s1883 = scalar_lea.vmem [#allocation0], 208
        %v1884 = vld [vmem:[%s1883] sm:$0xff]
        %1885 = vperm.xlu0 %4, %v1884
        %v1886 = vpop.permute.xlu0 %1885
        %1887 = vst [vmem:[%s1882] sm:$0xff] %v1886
        %s1888 = scalar_lea.vmem [#allocation2], 816
        %s1889 = scalar_lea.vmem [#allocation0], 200
        %v1890 = vld [vmem:[%s1889] sm:$0xff]
        %1891 = vperm.xlu0 %4, %v1890
        %v1892 = vpop.permute.xlu0 %1891
        %1893 = vst [vmem:[%s1888] sm:$0xff] %v1892
        %s1894 = scalar_lea.vmem [#allocation2], 824
        %s1895 = scalar_lea.vmem [#allocation0], 192
        %v1896 = vld [vmem:[%s1895] sm:$0xff]
        %1897 = vperm.xlu0 %4, %v1896
        %v1898 = vpop.permute.xlu0 %1897
        %1899 = vst [vmem:[%s1894] sm:$0xff] %v1898
        %s1900 = scalar_lea.vmem [#allocation2], 832
        %s1901 = scalar_lea.vmem [#allocation0], 184
        %v1902 = vld [vmem:[%s1901] sm:$0xff]
        %1903 = vperm.xlu0 %4, %v1902
        %v1904 = vpop.permute.xlu0 %1903
        %1905 = vst [vmem:[%s1900] sm:$0xff] %v1904
        %s1906 = scalar_lea.vmem [#allocation2], 840
        %s1907 = scalar_lea.vmem [#allocation0], 176
        %v1908 = vld [vmem:[%s1907] sm:$0xff]
        %1909 = vperm.xlu0 %4, %v1908
        %v1910 = vpop.permute.xlu0 %1909
        %1911 = vst [vmem:[%s1906] sm:$0xff] %v1910
        %s1912 = scalar_lea.vmem [#allocation2], 848
        %s1913 = scalar_lea.vmem [#allocation0], 168
        %v1914 = vld [vmem:[%s1913] sm:$0xff]
        %1915 = vperm.xlu0 %4, %v1914
        %v1916 = vpop.permute.xlu0 %1915
        %1917 = vst [vmem:[%s1912] sm:$0xff] %v1916
        %s1918 = scalar_lea.vmem [#allocation2], 856
        %s1919 = scalar_lea.vmem [#allocation0], 160
        %v1920 = vld [vmem:[%s1919] sm:$0xff]
        %1921 = vperm.xlu0 %4, %v1920
        %v1922 = vpop.permute.xlu0 %1921
        %1923 = vst [vmem:[%s1918] sm:$0xff] %v1922
        %s1924 = scalar_lea.vmem [#allocation2], 864
        %s1925 = scalar_lea.vmem [#allocation0], 152
        %v1926 = vld [vmem:[%s1925] sm:$0xff]
        %1927 = vperm.xlu0 %4, %v1926
        %v1928 = vpop.permute.xlu0 %1927
        %1929 = vst [vmem:[%s1924] sm:$0xff] %v1928
        %s1930 = scalar_lea.vmem [#allocation2], 872
        %s1931 = scalar_lea.vmem [#allocation0], 144
        %v1932 = vld [vmem:[%s1931] sm:$0xff]
        %1933 = vperm.xlu0 %4, %v1932
        %v1934 = vpop.permute.xlu0 %1933
        %1935 = vst [vmem:[%s1930] sm:$0xff] %v1934
        %s1936 = scalar_lea.vmem [#allocation2], 880
        %s1937 = scalar_lea.vmem [#allocation0], 136
        %v1938 = vld [vmem:[%s1937] sm:$0xff]
        %1939 = vperm.xlu0 %4, %v1938
        %v1940 = vpop.permute.xlu0 %1939
        %1941 = vst [vmem:[%s1936] sm:$0xff] %v1940
        %s1942 = scalar_lea.vmem [#allocation2], 888
        %s1943 = scalar_lea.vmem [#allocation0], 128
        %v1944 = vld [vmem:[%s1943] sm:$0xff]
        %1945 = vperm.xlu0 %4, %v1944
        %v1946 = vpop.permute.xlu0 %1945
        %1947 = vst [vmem:[%s1942] sm:$0xff] %v1946
        %s1948 = scalar_lea.vmem [#allocation2], 896
        %s1949 = scalar_lea.vmem [#allocation0], 120
        %v1950 = vld [vmem:[%s1949] sm:$0xff]
        %1951 = vperm.xlu0 %4, %v1950
        %v1952 = vpop.permute.xlu0 %1951
        %1953 = vst [vmem:[%s1948] sm:$0xff] %v1952
        %s1954 = scalar_lea.vmem [#allocation2], 904
        %s1955 = scalar_lea.vmem [#allocation0], 112
        %v1956 = vld [vmem:[%s1955] sm:$0xff]
        %1957 = vperm.xlu0 %4, %v1956
        %v1958 = vpop.permute.xlu0 %1957
        %1959 = vst [vmem:[%s1954] sm:$0xff] %v1958
        %s1960 = scalar_lea.vmem [#allocation2], 912
        %s1961 = scalar_lea.vmem [#allocation0], 104
        %v1962 = vld [vmem:[%s1961] sm:$0xff]
        %1963 = vperm.xlu0 %4, %v1962
        %v1964 = vpop.permute.xlu0 %1963
        %1965 = vst [vmem:[%s1960] sm:$0xff] %v1964
        %s1966 = scalar_lea.vmem [#allocation2], 920
        %s1967 = scalar_lea.vmem [#allocation0], 96
        %v1968 = vld [vmem:[%s1967] sm:$0xff]
        %1969 = vperm.xlu0 %4, %v1968
        %v1970 = vpop.permute.xlu0 %1969
        %1971 = vst [vmem:[%s1966] sm:$0xff] %v1970
        %s1972 = scalar_lea.vmem [#allocation2], 928
        %s1973 = scalar_lea.vmem [#allocation0], 88
        %v1974 = vld [vmem:[%s1973] sm:$0xff]
        %1975 = vperm.xlu0 %4, %v1974
        %v1976 = vpop.permute.xlu0 %1975
        %1977 = vst [vmem:[%s1972] sm:$0xff] %v1976
        %s1978 = scalar_lea.vmem [#allocation2], 936
        %s1979 = scalar_lea.vmem [#allocation0], 80
        %v1980 = vld [vmem:[%s1979] sm:$0xff]
        %1981 = vperm.xlu0 %4, %v1980
        %v1982 = vpop.permute.xlu0 %1981
        %1983 = vst [vmem:[%s1978] sm:$0xff] %v1982
        %s1984 = scalar_lea.vmem [#allocation2], 944
        %s1985 = scalar_lea.vmem [#allocation0], 72
        %v1986 = vld [vmem:[%s1985] sm:$0xff]
        %1987 = vperm.xlu0 %4, %v1986
        %v1988 = vpop.permute.xlu0 %1987
        %1989 = vst [vmem:[%s1984] sm:$0xff] %v1988
        %s1990 = scalar_lea.vmem [#allocation2], 952
        %s1991 = scalar_lea.vmem [#allocation0], 64
        %v1992 = vld [vmem:[%s1991] sm:$0xff]
        %1993 = vperm.xlu0 %4, %v1992
        %v1994 = vpop.permute.xlu0 %1993
        %1995 = vst [vmem:[%s1990] sm:$0xff] %v1994
        %s1996 = scalar_lea.vmem [#allocation2], 960
        %s1997 = scalar_lea.vmem [#allocation0], 56
        %v1998 = vld [vmem:[%s1997] sm:$0xff]
        %1999 = vperm.xlu0 %4, %v1998
        %v2000 = vpop.permute.xlu0 %1999
        %2001 = vst [vmem:[%s1996] sm:$0xff] %v2000
        %s2002 = scalar_lea.vmem [#allocation2], 968
        %s2003 = scalar_lea.vmem [#allocation0], 48
        %v2004 = vld [vmem:[%s2003] sm:$0xff]
        %2005 = vperm.xlu0 %4, %v2004
        %v2006 = vpop.permute.xlu0 %2005
        %2007 = vst [vmem:[%s2002] sm:$0xff] %v2006
        %s2008 = scalar_lea.vmem [#allocation2], 976
        %s2009 = scalar_lea.vmem [#allocation0], 40
        %v2010 = vld [vmem:[%s2009] sm:$0xff]
        %2011 = vperm.xlu0 %4, %v2010
        %v2012 = vpop.permute.xlu0 %2011
        %2013 = vst [vmem:[%s2008] sm:$0xff] %v2012
        %s2014 = scalar_lea.vmem [#allocation2], 984
        %s2015 = scalar_lea.vmem [#allocation0], 32
        %v2016 = vld [vmem:[%s2015] sm:$0xff]
        %2017 = vperm.xlu0 %4, %v2016
        %v2018 = vpop.permute.xlu0 %2017
        %2019 = vst [vmem:[%s2014] sm:$0xff] %v2018
        %s2020 = scalar_lea.vmem [#allocation2], 992
        %s2021 = scalar_lea.vmem [#allocation0], 24
        %v2022 = vld [vmem:[%s2021] sm:$0xff]
        %2023 = vperm.xlu0 %4, %v2022
        %v2024 = vpop.permute.xlu0 %2023
        %2025 = vst [vmem:[%s2020] sm:$0xff] %v2024
        %s2026 = scalar_lea.vmem [#allocation2], 1000
        %s2027 = scalar_lea.vmem [#allocation0], 16
        %v2028 = vld [vmem:[%s2027] sm:$0xff]
        %2029 = vperm.xlu0 %4, %v2028
        %v2030 = vpop.permute.xlu0 %2029
        %2031 = vst [vmem:[%s2026] sm:$0xff] %v2030
        %s2032 = scalar_lea.vmem [#allocation2], 1008
        %s2033 = scalar_lea.vmem [#allocation0], 8
        %v2034 = vld [vmem:[%s2033] sm:$0xff]
        %2035 = vperm.xlu0 %4, %v2034
        %v2036 = vpop.permute.xlu0 %2035
        %2037 = vst [vmem:[%s2032] sm:$0xff] %v2036
        %s2038 = scalar_lea.vmem [#allocation2], 1016
        %v2039 = vld [vmem:[#allocation0] sm:$0xff]
        %2040 = vperm.xlu0 %4, %v2039
        %v2041 = vpop.permute.xlu0 %2040
        %2042 = vst [vmem:[%s2038] sm:$0xff] %v2041
        %s2044 = sshllo.u32 0, 2
        %v2046 = vld [vmem:[#allocation2] sm:%s2044]
        %s2047 = sshllo.u32 0, 2
        %2048 = vst [vmem:[%s631] sm:%s2047] %v2046
        %s2049 = scalar_lea.vmem [#allocation2], 8
        %v2050 = vld [vmem:[%s2049] sm:%s2044]
        %s2051 = sshllo.u32 0, 2
        %s2052 = scalar_lea.vmem %s631, 2 [#allocation3]
        %2053 = vst [vmem:[%s2052] sm:%s2051] %v2050
        %s2054 = scalar_lea.vmem [#allocation2], 16
        %v2055 = vld [vmem:[%s2054] sm:%s2044]
        %s2056 = sshllo.u32 0, 2
        %s2057 = smul.addr 2, 2
        %s2058 = scalar_lea.vmem %s631, %s2057 [#allocation3]
        %2059 = vst [vmem:[%s2058] sm:%s2056] %v2055
        %s2060 = scalar_lea.vmem [#allocation2], 24
        %v2061 = vld [vmem:[%s2060] sm:%s2044]
        %s2062 = sshllo.u32 0, 2
        %s2063 = smul.addr 2, 3
        %s2064 = scalar_lea.vmem %s631, %s2063 [#allocation3]
        %2065 = vst [vmem:[%s2064] sm:%s2062] %v2061
        %s2066 = scalar_lea.vmem [#allocation2], 32
        %v2067 = vld [vmem:[%s2066] sm:%s2044]
        %s2068 = sshllo.u32 0, 2
        %s2069 = smul.addr 2, 4
        %s2070 = scalar_lea.vmem %s631, %s2069 [#allocation3]
        %2071 = vst [vmem:[%s2070] sm:%s2068] %v2067
        %s2072 = scalar_lea.vmem [#allocation2], 40
        %v2073 = vld [vmem:[%s2072] sm:%s2044]
        %s2074 = sshllo.u32 0, 2
        %s2075 = smul.addr 2, 5
        %s2076 = scalar_lea.vmem %s631, %s2075 [#allocation3]
        %2077 = vst [vmem:[%s2076] sm:%s2074] %v2073
        %s2078 = scalar_lea.vmem [#allocation2], 48
        %v2079 = vld [vmem:[%s2078] sm:%s2044]
        %s2080 = sshllo.u32 0, 2
        %s2081 = smul.addr 2, 6
        %s2082 = scalar_lea.vmem %s631, %s2081 [#allocation3]
        %2083 = vst [vmem:[%s2082] sm:%s2080] %v2079
        %s2084 = scalar_lea.vmem [#allocation2], 56
        %v2085 = vld [vmem:[%s2084] sm:%s2044]
        %s2086 = sshllo.u32 0, 2
        %s2087 = smul.addr 2, 7
        %s2088 = scalar_lea.vmem %s631, %s2087 [#allocation3]
        %2089 = vst [vmem:[%s2088] sm:%s2086] %v2085
        %s2090 = scalar_lea.vmem [#allocation2], 64
        %v2091 = vld [vmem:[%s2090] sm:%s2044]
        %s2092 = sshllo.u32 0, 2
        %s2093 = smul.addr 2, 8
        %s2094 = scalar_lea.vmem %s631, %s2093 [#allocation3]
        %2095 = vst [vmem:[%s2094] sm:%s2092] %v2091
        %s2096 = scalar_lea.vmem [#allocation2], 72
        %v2097 = vld [vmem:[%s2096] sm:%s2044]
        %s2098 = sshllo.u32 0, 2
        %s2099 = smul.addr 2, 9
        %s2100 = scalar_lea.vmem %s631, %s2099 [#allocation3]
        %2101 = vst [vmem:[%s2100] sm:%s2098] %v2097
        %s2102 = scalar_lea.vmem [#allocation2], 80
        %v2103 = vld [vmem:[%s2102] sm:%s2044]
        %s2104 = sshllo.u32 0, 2
        %s2105 = smul.addr 2, 10
        %s2106 = scalar_lea.vmem %s631, %s2105 [#allocation3]
        %2107 = vst [vmem:[%s2106] sm:%s2104] %v2103
        %s2108 = scalar_lea.vmem [#allocation2], 88
        %v2109 = vld [vmem:[%s2108] sm:%s2044]
        %s2110 = sshllo.u32 0, 2
        %s2111 = smul.addr 2, 11
        %s2112 = scalar_lea.vmem %s631, %s2111 [#allocation3]
        %2113 = vst [vmem:[%s2112] sm:%s2110] %v2109
        %s2114 = scalar_lea.vmem [#allocation2], 96
        %v2115 = vld [vmem:[%s2114] sm:%s2044]
        %s2116 = sshllo.u32 0, 2
        %s2117 = smul.addr 2, 12
        %s2118 = scalar_lea.vmem %s631, %s2117 [#allocation3]
        %2119 = vst [vmem:[%s2118] sm:%s2116] %v2115
        %s2120 = scalar_lea.vmem [#allocation2], 104
        %v2121 = vld [vmem:[%s2120] sm:%s2044]
        %s2122 = sshllo.u32 0, 2
        %s2123 = smul.addr 2, 13
        %s2124 = scalar_lea.vmem %s631, %s2123 [#allocation3]
        %2125 = vst [vmem:[%s2124] sm:%s2122] %v2121
        %s2126 = scalar_lea.vmem [#allocation2], 112
        %v2127 = vld [vmem:[%s2126] sm:%s2044]
        %s2128 = sshllo.u32 0, 2
        %s2129 = smul.addr 2, 14
        %s2130 = scalar_lea.vmem %s631, %s2129 [#allocation3]
        %2131 = vst [vmem:[%s2130] sm:%s2128] %v2127
        %s2132 = scalar_lea.vmem [#allocation2], 120
        %v2133 = vld [vmem:[%s2132] sm:%s2044]
        %s2134 = sshllo.u32 0, 2
        %s2135 = smul.addr 2, 15
        %s2136 = scalar_lea.vmem %s631, %s2135 [#allocation3]
        %2137 = vst [vmem:[%s2136] sm:%s2134] %v2133
        %s2138 = scalar_lea.vmem [#allocation2], 128
        %v2139 = vld [vmem:[%s2138] sm:%s2044]
        %s2140 = sshllo.u32 0, 2
        %s2141 = smul.addr 2, 16
        %s2142 = scalar_lea.vmem %s631, %s2141 [#allocation3]
        %2143 = vst [vmem:[%s2142] sm:%s2140] %v2139
        %s2144 = scalar_lea.vmem [#allocation2], 136
        %v2145 = vld [vmem:[%s2144] sm:%s2044]
        %s2146 = sshllo.u32 0, 2
        %s2147 = smul.addr 2, 17
        %s2148 = scalar_lea.vmem %s631, %s2147 [#allocation3]
        %2149 = vst [vmem:[%s2148] sm:%s2146] %v2145
        %s2150 = scalar_lea.vmem [#allocation2], 144
        %v2151 = vld [vmem:[%s2150] sm:%s2044]
        %s2152 = sshllo.u32 0, 2
        %s2153 = smul.addr 2, 18
        %s2154 = scalar_lea.vmem %s631, %s2153 [#allocation3]
        %2155 = vst [vmem:[%s2154] sm:%s2152] %v2151
        %s2156 = scalar_lea.vmem [#allocation2], 152
        %v2157 = vld [vmem:[%s2156] sm:%s2044]
        %s2158 = sshllo.u32 0, 2
        %s2159 = smul.addr 2, 19
        %s2160 = scalar_lea.vmem %s631, %s2159 [#allocation3]
        %2161 = vst [vmem:[%s2160] sm:%s2158] %v2157
        %s2162 = scalar_lea.vmem [#allocation2], 160
        %v2163 = vld [vmem:[%s2162] sm:%s2044]
        %s2164 = sshllo.u32 0, 2
        %s2165 = smul.addr 2, 20
        %s2166 = scalar_lea.vmem %s631, %s2165 [#allocation3]
        %2167 = vst [vmem:[%s2166] sm:%s2164] %v2163
        %s2168 = scalar_lea.vmem [#allocation2], 168
        %v2169 = vld [vmem:[%s2168] sm:%s2044]
        %s2170 = sshllo.u32 0, 2
        %s2171 = smul.addr 2, 21
        %s2172 = scalar_lea.vmem %s631, %s2171 [#allocation3]
        %2173 = vst [vmem:[%s2172] sm:%s2170] %v2169
        %s2174 = scalar_lea.vmem [#allocation2], 176
        %v2175 = vld [vmem:[%s2174] sm:%s2044]
        %s2176 = sshllo.u32 0, 2
        %s2177 = smul.addr 2, 22
        %s2178 = scalar_lea.vmem %s631, %s2177 [#allocation3]
        %2179 = vst [vmem:[%s2178] sm:%s2176] %v2175
        %s2180 = scalar_lea.vmem [#allocation2], 184
        %v2181 = vld [vmem:[%s2180] sm:%s2044]
        %s2182 = sshllo.u32 0, 2
        %s2183 = smul.addr 2, 23
        %s2184 = scalar_lea.vmem %s631, %s2183 [#allocation3]
        %2185 = vst [vmem:[%s2184] sm:%s2182] %v2181
        %s2186 = scalar_lea.vmem [#allocation2], 192
        %v2187 = vld [vmem:[%s2186] sm:%s2044]
        %s2188 = sshllo.u32 0, 2
        %s2189 = smul.addr 2, 24
        %s2190 = scalar_lea.vmem %s631, %s2189 [#allocation3]
        %2191 = vst [vmem:[%s2190] sm:%s2188] %v2187
        %s2192 = scalar_lea.vmem [#allocation2], 200
        %v2193 = vld [vmem:[%s2192] sm:%s2044]
        %s2194 = sshllo.u32 0, 2
        %s2195 = smul.addr 2, 25
        %s2196 = scalar_lea.vmem %s631, %s2195 [#allocation3]
        %2197 = vst [vmem:[%s2196] sm:%s2194] %v2193
        %s2198 = scalar_lea.vmem [#allocation2], 208
        %v2199 = vld [vmem:[%s2198] sm:%s2044]
        %s2200 = sshllo.u32 0, 2
        %s2201 = smul.addr 2, 26
        %s2202 = scalar_lea.vmem %s631, %s2201 [#allocation3]
        %2203 = vst [vmem:[%s2202] sm:%s2200] %v2199
        %s2204 = scalar_lea.vmem [#allocation2], 216
        %v2205 = vld [vmem:[%s2204] sm:%s2044]
        %s2206 = sshllo.u32 0, 2
        %s2207 = smul.addr 2, 27
        %s2208 = scalar_lea.vmem %s631, %s2207 [#allocation3]
        %2209 = vst [vmem:[%s2208] sm:%s2206] %v2205
        %s2210 = scalar_lea.vmem [#allocation2], 224
        %v2211 = vld [vmem:[%s2210] sm:%s2044]
        %s2212 = sshllo.u32 0, 2
        %s2213 = smul.addr 2, 28
        %s2214 = scalar_lea.vmem %s631, %s2213 [#allocation3]
        %2215 = vst [vmem:[%s2214] sm:%s2212] %v2211
        %s2216 = scalar_lea.vmem [#allocation2], 232
        %v2217 = vld [vmem:[%s2216] sm:%s2044]
        %s2218 = sshllo.u32 0, 2
        %s2219 = smul.addr 2, 29
        %s2220 = scalar_lea.vmem %s631, %s2219 [#allocation3]
        %2221 = vst [vmem:[%s2220] sm:%s2218] %v2217
        %s2222 = scalar_lea.vmem [#allocation2], 240
        %v2223 = vld [vmem:[%s2222] sm:%s2044]
        %s2224 = sshllo.u32 0, 2
        %s2225 = smul.addr 2, 30
        %s2226 = scalar_lea.vmem %s631, %s2225 [#allocation3]
        %2227 = vst [vmem:[%s2226] sm:%s2224] %v2223
        %s2228 = scalar_lea.vmem [#allocation2], 248
        %v2229 = vld [vmem:[%s2228] sm:%s2044]
        %s2230 = sshllo.u32 0, 2
        %s2231 = smul.addr 2, 31
        %s2232 = scalar_lea.vmem %s631, %s2231 [#allocation3]
        %2233 = vst [vmem:[%s2232] sm:%s2230] %v2229
        %s2234 = scalar_lea.vmem [#allocation2], 256
        %v2235 = vld [vmem:[%s2234] sm:%s2044]
        %s2236 = sshllo.u32 0, 2
        %s2237 = smul.addr 2, 32
        %s2238 = scalar_lea.vmem %s631, %s2237 [#allocation3]
        %2239 = vst [vmem:[%s2238] sm:%s2236] %v2235
        %s2240 = scalar_lea.vmem [#allocation2], 264
        %v2241 = vld [vmem:[%s2240] sm:%s2044]
        %s2242 = sshllo.u32 0, 2
        %s2243 = smul.addr 2, 33
        %s2244 = scalar_lea.vmem %s631, %s2243 [#allocation3]
        %2245 = vst [vmem:[%s2244] sm:%s2242] %v2241
        %s2246 = scalar_lea.vmem [#allocation2], 272
        %v2247 = vld [vmem:[%s2246] sm:%s2044]
        %s2248 = sshllo.u32 0, 2
        %s2249 = smul.addr 2, 34
        %s2250 = scalar_lea.vmem %s631, %s2249 [#allocation3]
        %2251 = vst [vmem:[%s2250] sm:%s2248] %v2247
        %s2252 = scalar_lea.vmem [#allocation2], 280
        %v2253 = vld [vmem:[%s2252] sm:%s2044]
        %s2254 = sshllo.u32 0, 2
        %s2255 = smul.addr 2, 35
        %s2256 = scalar_lea.vmem %s631, %s2255 [#allocation3]
        %2257 = vst [vmem:[%s2256] sm:%s2254] %v2253
        %s2258 = scalar_lea.vmem [#allocation2], 288
        %v2259 = vld [vmem:[%s2258] sm:%s2044]
        %s2260 = sshllo.u32 0, 2
        %s2261 = smul.addr 2, 36
        %s2262 = scalar_lea.vmem %s631, %s2261 [#allocation3]
        %2263 = vst [vmem:[%s2262] sm:%s2260] %v2259
        %s2264 = scalar_lea.vmem [#allocation2], 296
        %v2265 = vld [vmem:[%s2264] sm:%s2044]
        %s2266 = sshllo.u32 0, 2
        %s2267 = smul.addr 2, 37
        %s2268 = scalar_lea.vmem %s631, %s2267 [#allocation3]
        %2269 = vst [vmem:[%s2268] sm:%s2266] %v2265
        %s2270 = scalar_lea.vmem [#allocation2], 304
        %v2271 = vld [vmem:[%s2270] sm:%s2044]
        %s2272 = sshllo.u32 0, 2
        %s2273 = smul.addr 2, 38
        %s2274 = scalar_lea.vmem %s631, %s2273 [#allocation3]
        %2275 = vst [vmem:[%s2274] sm:%s2272] %v2271
        %s2276 = scalar_lea.vmem [#allocation2], 312
        %v2277 = vld [vmem:[%s2276] sm:%s2044]
        %s2278 = sshllo.u32 0, 2
        %s2279 = smul.addr 2, 39
        %s2280 = scalar_lea.vmem %s631, %s2279 [#allocation3]
        %2281 = vst [vmem:[%s2280] sm:%s2278] %v2277
        %s2282 = scalar_lea.vmem [#allocation2], 320
        %v2283 = vld [vmem:[%s2282] sm:%s2044]
        %s2284 = sshllo.u32 0, 2
        %s2285 = smul.addr 2, 40
        %s2286 = scalar_lea.vmem %s631, %s2285 [#allocation3]
        %2287 = vst [vmem:[%s2286] sm:%s2284] %v2283
        %s2288 = scalar_lea.vmem [#allocation2], 328
        %v2289 = vld [vmem:[%s2288] sm:%s2044]
        %s2290 = sshllo.u32 0, 2
        %s2291 = smul.addr 2, 41
        %s2292 = scalar_lea.vmem %s631, %s2291 [#allocation3]
        %2293 = vst [vmem:[%s2292] sm:%s2290] %v2289
        %s2294 = scalar_lea.vmem [#allocation2], 336
        %v2295 = vld [vmem:[%s2294] sm:%s2044]
        %s2296 = sshllo.u32 0, 2
        %s2297 = smul.addr 2, 42
        %s2298 = scalar_lea.vmem %s631, %s2297 [#allocation3]
        %2299 = vst [vmem:[%s2298] sm:%s2296] %v2295
        %s2300 = scalar_lea.vmem [#allocation2], 344
        %v2301 = vld [vmem:[%s2300] sm:%s2044]
        %s2302 = sshllo.u32 0, 2
        %s2303 = smul.addr 2, 43
        %s2304 = scalar_lea.vmem %s631, %s2303 [#allocation3]
        %2305 = vst [vmem:[%s2304] sm:%s2302] %v2301
        %s2306 = scalar_lea.vmem [#allocation2], 352
        %v2307 = vld [vmem:[%s2306] sm:%s2044]
        %s2308 = sshllo.u32 0, 2
        %s2309 = smul.addr 2, 44
        %s2310 = scalar_lea.vmem %s631, %s2309 [#allocation3]
        %2311 = vst [vmem:[%s2310] sm:%s2308] %v2307
        %s2312 = scalar_lea.vmem [#allocation2], 360
        %v2313 = vld [vmem:[%s2312] sm:%s2044]
        %s2314 = sshllo.u32 0, 2
        %s2315 = smul.addr 2, 45
        %s2316 = scalar_lea.vmem %s631, %s2315 [#allocation3]
        %2317 = vst [vmem:[%s2316] sm:%s2314] %v2313
        %s2318 = scalar_lea.vmem [#allocation2], 368
        %v2319 = vld [vmem:[%s2318] sm:%s2044]
        %s2320 = sshllo.u32 0, 2
        %s2321 = smul.addr 2, 46
        %s2322 = scalar_lea.vmem %s631, %s2321 [#allocation3]
        %2323 = vst [vmem:[%s2322] sm:%s2320] %v2319
        %s2324 = scalar_lea.vmem [#allocation2], 376
        %v2325 = vld [vmem:[%s2324] sm:%s2044]
        %s2326 = sshllo.u32 0, 2
        %s2327 = smul.addr 2, 47
        %s2328 = scalar_lea.vmem %s631, %s2327 [#allocation3]
        %2329 = vst [vmem:[%s2328] sm:%s2326] %v2325
        %s2330 = scalar_lea.vmem [#allocation2], 384
        %v2331 = vld [vmem:[%s2330] sm:%s2044]
        %s2332 = sshllo.u32 0, 2
        %s2333 = smul.addr 2, 48
        %s2334 = scalar_lea.vmem %s631, %s2333 [#allocation3]
        %2335 = vst [vmem:[%s2334] sm:%s2332] %v2331
        %s2336 = scalar_lea.vmem [#allocation2], 392
        %v2337 = vld [vmem:[%s2336] sm:%s2044]
        %s2338 = sshllo.u32 0, 2
        %s2339 = smul.addr 2, 49
        %s2340 = scalar_lea.vmem %s631, %s2339 [#allocation3]
        %2341 = vst [vmem:[%s2340] sm:%s2338] %v2337
        %s2342 = scalar_lea.vmem [#allocation2], 400
        %v2343 = vld [vmem:[%s2342] sm:%s2044]
        %s2344 = sshllo.u32 0, 2
        %s2345 = smul.addr 2, 50
        %s2346 = scalar_lea.vmem %s631, %s2345 [#allocation3]
        %2347 = vst [vmem:[%s2346] sm:%s2344] %v2343
        %s2348 = scalar_lea.vmem [#allocation2], 408
        %v2349 = vld [vmem:[%s2348] sm:%s2044]
        %s2350 = sshllo.u32 0, 2
        %s2351 = smul.addr 2, 51
        %s2352 = scalar_lea.vmem %s631, %s2351 [#allocation3]
        %2353 = vst [vmem:[%s2352] sm:%s2350] %v2349
        %s2354 = scalar_lea.vmem [#allocation2], 416
        %v2355 = vld [vmem:[%s2354] sm:%s2044]
        %s2356 = sshllo.u32 0, 2
        %s2357 = smul.addr 2, 52
        %s2358 = scalar_lea.vmem %s631, %s2357 [#allocation3]
        %2359 = vst [vmem:[%s2358] sm:%s2356] %v2355
        %s2360 = scalar_lea.vmem [#allocation2], 424
        %v2361 = vld [vmem:[%s2360] sm:%s2044]
        %s2362 = sshllo.u32 0, 2
        %s2363 = smul.addr 2, 53
        %s2364 = scalar_lea.vmem %s631, %s2363 [#allocation3]
        %2365 = vst [vmem:[%s2364] sm:%s2362] %v2361
        %s2366 = scalar_lea.vmem [#allocation2], 432
        %v2367 = vld [vmem:[%s2366] sm:%s2044]
        %s2368 = sshllo.u32 0, 2
        %s2369 = smul.addr 2, 54
        %s2370 = scalar_lea.vmem %s631, %s2369 [#allocation3]
        %2371 = vst [vmem:[%s2370] sm:%s2368] %v2367
        %s2372 = scalar_lea.vmem [#allocation2], 440
        %v2373 = vld [vmem:[%s2372] sm:%s2044]
        %s2374 = sshllo.u32 0, 2
        %s2375 = smul.addr 2, 55
        %s2376 = scalar_lea.vmem %s631, %s2375 [#allocation3]
        %2377 = vst [vmem:[%s2376] sm:%s2374] %v2373
        %s2378 = scalar_lea.vmem [#allocation2], 448
        %v2379 = vld [vmem:[%s2378] sm:%s2044]
        %s2380 = sshllo.u32 0, 2
        %s2381 = smul.addr 2, 56
        %s2382 = scalar_lea.vmem %s631, %s2381 [#allocation3]
        %2383 = vst [vmem:[%s2382] sm:%s2380] %v2379
        %s2384 = scalar_lea.vmem [#allocation2], 456
        %v2385 = vld [vmem:[%s2384] sm:%s2044]
        %s2386 = sshllo.u32 0, 2
        %s2387 = smul.addr 2, 57
        %s2388 = scalar_lea.vmem %s631, %s2387 [#allocation3]
        %2389 = vst [vmem:[%s2388] sm:%s2386] %v2385
        %s2390 = scalar_lea.vmem [#allocation2], 464
        %v2391 = vld [vmem:[%s2390] sm:%s2044]
        %s2392 = sshllo.u32 0, 2
        %s2393 = smul.addr 2, 58
        %s2394 = scalar_lea.vmem %s631, %s2393 [#allocation3]
        %2395 = vst [vmem:[%s2394] sm:%s2392] %v2391
        %s2396 = scalar_lea.vmem [#allocation2], 472
        %v2397 = vld [vmem:[%s2396] sm:%s2044]
        %s2398 = sshllo.u32 0, 2
        %s2399 = smul.addr 2, 59
        %s2400 = scalar_lea.vmem %s631, %s2399 [#allocation3]
        %2401 = vst [vmem:[%s2400] sm:%s2398] %v2397
        %s2402 = scalar_lea.vmem [#allocation2], 480
        %v2403 = vld [vmem:[%s2402] sm:%s2044]
        %s2404 = sshllo.u32 0, 2
        %s2405 = smul.addr 2, 60
        %s2406 = scalar_lea.vmem %s631, %s2405 [#allocation3]
        %2407 = vst [vmem:[%s2406] sm:%s2404] %v2403
        %s2408 = scalar_lea.vmem [#allocation2], 488
        %v2409 = vld [vmem:[%s2408] sm:%s2044]
        %s2410 = sshllo.u32 0, 2
        %s2411 = smul.addr 2, 61
        %s2412 = scalar_lea.vmem %s631, %s2411 [#allocation3]
        %2413 = vst [vmem:[%s2412] sm:%s2410] %v2409
        %s2414 = scalar_lea.vmem [#allocation2], 496
        %v2415 = vld [vmem:[%s2414] sm:%s2044]
        %s2416 = sshllo.u32 0, 2
        %s2417 = smul.addr 2, 62
        %s2418 = scalar_lea.vmem %s631, %s2417 [#allocation3]
        %2419 = vst [vmem:[%s2418] sm:%s2416] %v2415
        %s2420 = scalar_lea.vmem [#allocation2], 504
        %v2421 = vld [vmem:[%s2420] sm:%s2044]
        %s2422 = sshllo.u32 0, 2
        %s2423 = smul.addr 2, 63
        %s2424 = scalar_lea.vmem %s631, %s2423 [#allocation3]
        %2425 = vst [vmem:[%s2424] sm:%s2422] %v2421
        %s2426 = scalar_lea.vmem [#allocation2], 512
        %v2427 = vld [vmem:[%s2426] sm:%s2044]
        %s2428 = sshllo.u32 0, 2
        %s2429 = smul.addr 2, 64
        %s2430 = scalar_lea.vmem %s631, %s2429 [#allocation3]
        %2431 = vst [vmem:[%s2430] sm:%s2428] %v2427
        %s2432 = scalar_lea.vmem [#allocation2], 520
        %v2433 = vld [vmem:[%s2432] sm:%s2044]
        %s2434 = sshllo.u32 0, 2
        %s2435 = smul.addr 2, 65
        %s2436 = scalar_lea.vmem %s631, %s2435 [#allocation3]
        %2437 = vst [vmem:[%s2436] sm:%s2434] %v2433
        %s2438 = scalar_lea.vmem [#allocation2], 528
        %v2439 = vld [vmem:[%s2438] sm:%s2044]
        %s2440 = sshllo.u32 0, 2
        %s2441 = smul.addr 2, 66
        %s2442 = scalar_lea.vmem %s631, %s2441 [#allocation3]
        %2443 = vst [vmem:[%s2442] sm:%s2440] %v2439
        %s2444 = scalar_lea.vmem [#allocation2], 536
        %v2445 = vld [vmem:[%s2444] sm:%s2044]
        %s2446 = sshllo.u32 0, 2
        %s2447 = smul.addr 2, 67
        %s2448 = scalar_lea.vmem %s631, %s2447 [#allocation3]
        %2449 = vst [vmem:[%s2448] sm:%s2446] %v2445
        %s2450 = scalar_lea.vmem [#allocation2], 544
        %v2451 = vld [vmem:[%s2450] sm:%s2044]
        %s2452 = sshllo.u32 0, 2
        %s2453 = smul.addr 2, 68
        %s2454 = scalar_lea.vmem %s631, %s2453 [#allocation3]
        %2455 = vst [vmem:[%s2454] sm:%s2452] %v2451
        %s2456 = scalar_lea.vmem [#allocation2], 552
        %v2457 = vld [vmem:[%s2456] sm:%s2044]
        %s2458 = sshllo.u32 0, 2
        %s2459 = smul.addr 2, 69
        %s2460 = scalar_lea.vmem %s631, %s2459 [#allocation3]
        %2461 = vst [vmem:[%s2460] sm:%s2458] %v2457
        %s2462 = scalar_lea.vmem [#allocation2], 560
        %v2463 = vld [vmem:[%s2462] sm:%s2044]
        %s2464 = sshllo.u32 0, 2
        %s2465 = smul.addr 2, 70
        %s2466 = scalar_lea.vmem %s631, %s2465 [#allocation3]
        %2467 = vst [vmem:[%s2466] sm:%s2464] %v2463
        %s2468 = scalar_lea.vmem [#allocation2], 568
        %v2469 = vld [vmem:[%s2468] sm:%s2044]
        %s2470 = sshllo.u32 0, 2
        %s2471 = smul.addr 2, 71
        %s2472 = scalar_lea.vmem %s631, %s2471 [#allocation3]
        %2473 = vst [vmem:[%s2472] sm:%s2470] %v2469
        %s2474 = scalar_lea.vmem [#allocation2], 576
        %v2475 = vld [vmem:[%s2474] sm:%s2044]
        %s2476 = sshllo.u32 0, 2
        %s2477 = smul.addr 2, 72
        %s2478 = scalar_lea.vmem %s631, %s2477 [#allocation3]
        %2479 = vst [vmem:[%s2478] sm:%s2476] %v2475
        %s2480 = scalar_lea.vmem [#allocation2], 584
        %v2481 = vld [vmem:[%s2480] sm:%s2044]
        %s2482 = sshllo.u32 0, 2
        %s2483 = smul.addr 2, 73
        %s2484 = scalar_lea.vmem %s631, %s2483 [#allocation3]
        %2485 = vst [vmem:[%s2484] sm:%s2482] %v2481
        %s2486 = scalar_lea.vmem [#allocation2], 592
        %v2487 = vld [vmem:[%s2486] sm:%s2044]
        %s2488 = sshllo.u32 0, 2
        %s2489 = smul.addr 2, 74
        %s2490 = scalar_lea.vmem %s631, %s2489 [#allocation3]
        %2491 = vst [vmem:[%s2490] sm:%s2488] %v2487
        %s2492 = scalar_lea.vmem [#allocation2], 600
        %v2493 = vld [vmem:[%s2492] sm:%s2044]
        %s2494 = sshllo.u32 0, 2
        %s2495 = smul.addr 2, 75
        %s2496 = scalar_lea.vmem %s631, %s2495 [#allocation3]
        %2497 = vst [vmem:[%s2496] sm:%s2494] %v2493
        %s2498 = scalar_lea.vmem [#allocation2], 608
        %v2499 = vld [vmem:[%s2498] sm:%s2044]
        %s2500 = sshllo.u32 0, 2
        %s2501 = smul.addr 2, 76
        %s2502 = scalar_lea.vmem %s631, %s2501 [#allocation3]
        %2503 = vst [vmem:[%s2502] sm:%s2500] %v2499
        %s2504 = scalar_lea.vmem [#allocation2], 616
        %v2505 = vld [vmem:[%s2504] sm:%s2044]
        %s2506 = sshllo.u32 0, 2
        %s2507 = smul.addr 2, 77
        %s2508 = scalar_lea.vmem %s631, %s2507 [#allocation3]
        %2509 = vst [vmem:[%s2508] sm:%s2506] %v2505
        %s2510 = scalar_lea.vmem [#allocation2], 624
        %v2511 = vld [vmem:[%s2510] sm:%s2044]
        %s2512 = sshllo.u32 0, 2
        %s2513 = smul.addr 2, 78
        %s2514 = scalar_lea.vmem %s631, %s2513 [#allocation3]
        %2515 = vst [vmem:[%s2514] sm:%s2512] %v2511
        %s2516 = scalar_lea.vmem [#allocation2], 632
        %v2517 = vld [vmem:[%s2516] sm:%s2044]
        %s2518 = sshllo.u32 0, 2
        %s2519 = smul.addr 2, 79
        %s2520 = scalar_lea.vmem %s631, %s2519 [#allocation3]
        %2521 = vst [vmem:[%s2520] sm:%s2518] %v2517
        %s2522 = scalar_lea.vmem [#allocation2], 640
        %v2523 = vld [vmem:[%s2522] sm:%s2044]
        %s2524 = sshllo.u32 0, 2
        %s2525 = smul.addr 2, 80
        %s2526 = scalar_lea.vmem %s631, %s2525 [#allocation3]
        %2527 = vst [vmem:[%s2526] sm:%s2524] %v2523
        %s2528 = scalar_lea.vmem [#allocation2], 648
        %v2529 = vld [vmem:[%s2528] sm:%s2044]
        %s2530 = sshllo.u32 0, 2
        %s2531 = smul.addr 2, 81
        %s2532 = scalar_lea.vmem %s631, %s2531 [#allocation3]
        %2533 = vst [vmem:[%s2532] sm:%s2530] %v2529
        %s2534 = scalar_lea.vmem [#allocation2], 656
        %v2535 = vld [vmem:[%s2534] sm:%s2044]
        %s2536 = sshllo.u32 0, 2
        %s2537 = smul.addr 2, 82
        %s2538 = scalar_lea.vmem %s631, %s2537 [#allocation3]
        %2539 = vst [vmem:[%s2538] sm:%s2536] %v2535
        %s2540 = scalar_lea.vmem [#allocation2], 664
        %v2541 = vld [vmem:[%s2540] sm:%s2044]
        %s2542 = sshllo.u32 0, 2
        %s2543 = smul.addr 2, 83
        %s2544 = scalar_lea.vmem %s631, %s2543 [#allocation3]
        %2545 = vst [vmem:[%s2544] sm:%s2542] %v2541
        %s2546 = scalar_lea.vmem [#allocation2], 672
        %v2547 = vld [vmem:[%s2546] sm:%s2044]
        %s2548 = sshllo.u32 0, 2
        %s2549 = smul.addr 2, 84
        %s2550 = scalar_lea.vmem %s631, %s2549 [#allocation3]
        %2551 = vst [vmem:[%s2550] sm:%s2548] %v2547
        %s2552 = scalar_lea.vmem [#allocation2], 680
        %v2553 = vld [vmem:[%s2552] sm:%s2044]
        %s2554 = sshllo.u32 0, 2
        %s2555 = smul.addr 2, 85
        %s2556 = scalar_lea.vmem %s631, %s2555 [#allocation3]
        %2557 = vst [vmem:[%s2556] sm:%s2554] %v2553
        %s2558 = scalar_lea.vmem [#allocation2], 688
        %v2559 = vld [vmem:[%s2558] sm:%s2044]
        %s2560 = sshllo.u32 0, 2
        %s2561 = smul.addr 2, 86
        %s2562 = scalar_lea.vmem %s631, %s2561 [#allocation3]
        %2563 = vst [vmem:[%s2562] sm:%s2560] %v2559
        %s2564 = scalar_lea.vmem [#allocation2], 696
        %v2565 = vld [vmem:[%s2564] sm:%s2044]
        %s2566 = sshllo.u32 0, 2
        %s2567 = smul.addr 2, 87
        %s2568 = scalar_lea.vmem %s631, %s2567 [#allocation3]
        %2569 = vst [vmem:[%s2568] sm:%s2566] %v2565
        %s2570 = scalar_lea.vmem [#allocation2], 704
        %v2571 = vld [vmem:[%s2570] sm:%s2044]
        %s2572 = sshllo.u32 0, 2
        %s2573 = smul.addr 2, 88
        %s2574 = scalar_lea.vmem %s631, %s2573 [#allocation3]
        %2575 = vst [vmem:[%s2574] sm:%s2572] %v2571
        %s2576 = scalar_lea.vmem [#allocation2], 712
        %v2577 = vld [vmem:[%s2576] sm:%s2044]
        %s2578 = sshllo.u32 0, 2
        %s2579 = smul.addr 2, 89
        %s2580 = scalar_lea.vmem %s631, %s2579 [#allocation3]
        %2581 = vst [vmem:[%s2580] sm:%s2578] %v2577
        %s2582 = scalar_lea.vmem [#allocation2], 720
        %v2583 = vld [vmem:[%s2582] sm:%s2044]
        %s2584 = sshllo.u32 0, 2
        %s2585 = smul.addr 2, 90
        %s2586 = scalar_lea.vmem %s631, %s2585 [#allocation3]
        %2587 = vst [vmem:[%s2586] sm:%s2584] %v2583
        %s2588 = scalar_lea.vmem [#allocation2], 728
        %v2589 = vld [vmem:[%s2588] sm:%s2044]
        %s2590 = sshllo.u32 0, 2
        %s2591 = smul.addr 2, 91
        %s2592 = scalar_lea.vmem %s631, %s2591 [#allocation3]
        %2593 = vst [vmem:[%s2592] sm:%s2590] %v2589
        %s2594 = scalar_lea.vmem [#allocation2], 736
        %v2595 = vld [vmem:[%s2594] sm:%s2044]
        %s2596 = sshllo.u32 0, 2
        %s2597 = smul.addr 2, 92
        %s2598 = scalar_lea.vmem %s631, %s2597 [#allocation3]
        %2599 = vst [vmem:[%s2598] sm:%s2596] %v2595
        %s2600 = scalar_lea.vmem [#allocation2], 744
        %v2601 = vld [vmem:[%s2600] sm:%s2044]
        %s2602 = sshllo.u32 0, 2
        %s2603 = smul.addr 2, 93
        %s2604 = scalar_lea.vmem %s631, %s2603 [#allocation3]
        %2605 = vst [vmem:[%s2604] sm:%s2602] %v2601
        %s2606 = scalar_lea.vmem [#allocation2], 752
        %v2607 = vld [vmem:[%s2606] sm:%s2044]
        %s2608 = sshllo.u32 0, 2
        %s2609 = smul.addr 2, 94
        %s2610 = scalar_lea.vmem %s631, %s2609 [#allocation3]
        %2611 = vst [vmem:[%s2610] sm:%s2608] %v2607
        %s2612 = scalar_lea.vmem [#allocation2], 760
        %v2613 = vld [vmem:[%s2612] sm:%s2044]
        %s2614 = sshllo.u32 0, 2
        %s2615 = smul.addr 2, 95
        %s2616 = scalar_lea.vmem %s631, %s2615 [#allocation3]
        %2617 = vst [vmem:[%s2616] sm:%s2614] %v2613
        %s2618 = scalar_lea.vmem [#allocation2], 768
        %v2619 = vld [vmem:[%s2618] sm:%s2044]
        %s2620 = sshllo.u32 0, 2
        %s2621 = smul.addr 2, 96
        %s2622 = scalar_lea.vmem %s631, %s2621 [#allocation3]
        %2623 = vst [vmem:[%s2622] sm:%s2620] %v2619
        %s2624 = scalar_lea.vmem [#allocation2], 776
        %v2625 = vld [vmem:[%s2624] sm:%s2044]
        %s2626 = sshllo.u32 0, 2
        %s2627 = smul.addr 2, 97
        %s2628 = scalar_lea.vmem %s631, %s2627 [#allocation3]
        %2629 = vst [vmem:[%s2628] sm:%s2626] %v2625
        %s2630 = scalar_lea.vmem [#allocation2], 784
        %v2631 = vld [vmem:[%s2630] sm:%s2044]
        %s2632 = sshllo.u32 0, 2
        %s2633 = smul.addr 2, 98
        %s2634 = scalar_lea.vmem %s631, %s2633 [#allocation3]
        %2635 = vst [vmem:[%s2634] sm:%s2632] %v2631
        %s2636 = scalar_lea.vmem [#allocation2], 792
        %v2637 = vld [vmem:[%s2636] sm:%s2044]
        %s2638 = sshllo.u32 0, 2
        %s2639 = smul.addr 2, 99
        %s2640 = scalar_lea.vmem %s631, %s2639 [#allocation3]
        %2641 = vst [vmem:[%s2640] sm:%s2638] %v2637
        %s2642 = scalar_lea.vmem [#allocation2], 800
        %v2643 = vld [vmem:[%s2642] sm:%s2044]
        %s2644 = sshllo.u32 0, 2
        %s2645 = smul.addr 2, 100
        %s2646 = scalar_lea.vmem %s631, %s2645 [#allocation3]
        %2647 = vst [vmem:[%s2646] sm:%s2644] %v2643
        %s2648 = scalar_lea.vmem [#allocation2], 808
        %v2649 = vld [vmem:[%s2648] sm:%s2044]
        %s2650 = sshllo.u32 0, 2
        %s2651 = smul.addr 2, 101
        %s2652 = scalar_lea.vmem %s631, %s2651 [#allocation3]
        %2653 = vst [vmem:[%s2652] sm:%s2650] %v2649
        %s2654 = scalar_lea.vmem [#allocation2], 816
        %v2655 = vld [vmem:[%s2654] sm:%s2044]
        %s2656 = sshllo.u32 0, 2
        %s2657 = smul.addr 2, 102
        %s2658 = scalar_lea.vmem %s631, %s2657 [#allocation3]
        %2659 = vst [vmem:[%s2658] sm:%s2656] %v2655
        %s2660 = scalar_lea.vmem [#allocation2], 824
        %v2661 = vld [vmem:[%s2660] sm:%s2044]
        %s2662 = sshllo.u32 0, 2
        %s2663 = smul.addr 2, 103
        %s2664 = scalar_lea.vmem %s631, %s2663 [#allocation3]
        %2665 = vst [vmem:[%s2664] sm:%s2662] %v2661
        %s2666 = scalar_lea.vmem [#allocation2], 832
        %v2667 = vld [vmem:[%s2666] sm:%s2044]
        %s2668 = sshllo.u32 0, 2
        %s2669 = smul.addr 2, 104
        %s2670 = scalar_lea.vmem %s631, %s2669 [#allocation3]
        %2671 = vst [vmem:[%s2670] sm:%s2668] %v2667
        %s2672 = scalar_lea.vmem [#allocation2], 840
        %v2673 = vld [vmem:[%s2672] sm:%s2044]
        %s2674 = sshllo.u32 0, 2
        %s2675 = smul.addr 2, 105
        %s2676 = scalar_lea.vmem %s631, %s2675 [#allocation3]
        %2677 = vst [vmem:[%s2676] sm:%s2674] %v2673
        %s2678 = scalar_lea.vmem [#allocation2], 848
        %v2679 = vld [vmem:[%s2678] sm:%s2044]
        %s2680 = sshllo.u32 0, 2
        %s2681 = smul.addr 2, 106
        %s2682 = scalar_lea.vmem %s631, %s2681 [#allocation3]
        %2683 = vst [vmem:[%s2682] sm:%s2680] %v2679
        %s2684 = scalar_lea.vmem [#allocation2], 856
        %v2685 = vld [vmem:[%s2684] sm:%s2044]
        %s2686 = sshllo.u32 0, 2
        %s2687 = smul.addr 2, 107
        %s2688 = scalar_lea.vmem %s631, %s2687 [#allocation3]
        %2689 = vst [vmem:[%s2688] sm:%s2686] %v2685
        %s2690 = scalar_lea.vmem [#allocation2], 864
        %v2691 = vld [vmem:[%s2690] sm:%s2044]
        %s2692 = sshllo.u32 0, 2
        %s2693 = smul.addr 2, 108
        %s2694 = scalar_lea.vmem %s631, %s2693 [#allocation3]
        %2695 = vst [vmem:[%s2694] sm:%s2692] %v2691
        %s2696 = scalar_lea.vmem [#allocation2], 872
        %v2697 = vld [vmem:[%s2696] sm:%s2044]
        %s2698 = sshllo.u32 0, 2
        %s2699 = smul.addr 2, 109
        %s2700 = scalar_lea.vmem %s631, %s2699 [#allocation3]
        %2701 = vst [vmem:[%s2700] sm:%s2698] %v2697
        %s2702 = scalar_lea.vmem [#allocation2], 880
        %v2703 = vld [vmem:[%s2702] sm:%s2044]
        %s2704 = sshllo.u32 0, 2
        %s2705 = smul.addr 2, 110
        %s2706 = scalar_lea.vmem %s631, %s2705 [#allocation3]
        %2707 = vst [vmem:[%s2706] sm:%s2704] %v2703
        %s2708 = scalar_lea.vmem [#allocation2], 888
        %v2709 = vld [vmem:[%s2708] sm:%s2044]
        %s2710 = sshllo.u32 0, 2
        %s2711 = smul.addr 2, 111
        %s2712 = scalar_lea.vmem %s631, %s2711 [#allocation3]
        %2713 = vst [vmem:[%s2712] sm:%s2710] %v2709
        %s2714 = scalar_lea.vmem [#allocation2], 896
        %v2715 = vld [vmem:[%s2714] sm:%s2044]
        %s2716 = sshllo.u32 0, 2
        %s2717 = smul.addr 2, 112
        %s2718 = scalar_lea.vmem %s631, %s2717 [#allocation3]
        %2719 = vst [vmem:[%s2718] sm:%s2716] %v2715
        %s2720 = scalar_lea.vmem [#allocation2], 904
        %v2721 = vld [vmem:[%s2720] sm:%s2044]
        %s2722 = sshllo.u32 0, 2
        %s2723 = smul.addr 2, 113
        %s2724 = scalar_lea.vmem %s631, %s2723 [#allocation3]
        %2725 = vst [vmem:[%s2724] sm:%s2722] %v2721
        %s2726 = scalar_lea.vmem [#allocation2], 912
        %v2727 = vld [vmem:[%s2726] sm:%s2044]
        %s2728 = sshllo.u32 0, 2
        %s2729 = smul.addr 2, 114
        %s2730 = scalar_lea.vmem %s631, %s2729 [#allocation3]
        %2731 = vst [vmem:[%s2730] sm:%s2728] %v2727
        %s2732 = scalar_lea.vmem [#allocation2], 920
        %v2733 = vld [vmem:[%s2732] sm:%s2044]
        %s2734 = sshllo.u32 0, 2
        %s2735 = smul.addr 2, 115
        %s2736 = scalar_lea.vmem %s631, %s2735 [#allocation3]
        %2737 = vst [vmem:[%s2736] sm:%s2734] %v2733
        %s2738 = scalar_lea.vmem [#allocation2], 928
        %v2739 = vld [vmem:[%s2738] sm:%s2044]
        %s2740 = sshllo.u32 0, 2
        %s2741 = smul.addr 2, 116
        %s2742 = scalar_lea.vmem %s631, %s2741 [#allocation3]
        %2743 = vst [vmem:[%s2742] sm:%s2740] %v2739
        %s2744 = scalar_lea.vmem [#allocation2], 936
        %v2745 = vld [vmem:[%s2744] sm:%s2044]
        %s2746 = sshllo.u32 0, 2
        %s2747 = smul.addr 2, 117
        %s2748 = scalar_lea.vmem %s631, %s2747 [#allocation3]
        %2749 = vst [vmem:[%s2748] sm:%s2746] %v2745
        %s2750 = scalar_lea.vmem [#allocation2], 944
        %v2751 = vld [vmem:[%s2750] sm:%s2044]
        %s2752 = sshllo.u32 0, 2
        %s2753 = smul.addr 2, 118
        %s2754 = scalar_lea.vmem %s631, %s2753 [#allocation3]
        %2755 = vst [vmem:[%s2754] sm:%s2752] %v2751
        %s2756 = scalar_lea.vmem [#allocation2], 952
        %v2757 = vld [vmem:[%s2756] sm:%s2044]
        %s2758 = sshllo.u32 0, 2
        %s2759 = smul.addr 2, 119
        %s2760 = scalar_lea.vmem %s631, %s2759 [#allocation3]
        %2761 = vst [vmem:[%s2760] sm:%s2758] %v2757
        %s2762 = scalar_lea.vmem [#allocation2], 960
        %v2763 = vld [vmem:[%s2762] sm:%s2044]
        %s2764 = sshllo.u32 0, 2
        %s2765 = smul.addr 2, 120
        %s2766 = scalar_lea.vmem %s631, %s2765 [#allocation3]
        %2767 = vst [vmem:[%s2766] sm:%s2764] %v2763
        %s2768 = scalar_lea.vmem [#allocation2], 968
        %v2769 = vld [vmem:[%s2768] sm:%s2044]
        %s2770 = sshllo.u32 0, 2
        %s2771 = smul.addr 2, 121
        %s2772 = scalar_lea.vmem %s631, %s2771 [#allocation3]
        %2773 = vst [vmem:[%s2772] sm:%s2770] %v2769
        %s2774 = scalar_lea.vmem [#allocation2], 976
        %v2775 = vld [vmem:[%s2774] sm:%s2044]
        %s2776 = sshllo.u32 0, 2
        %s2777 = smul.addr 2, 122
        %s2778 = scalar_lea.vmem %s631, %s2777 [#allocation3]
        %2779 = vst [vmem:[%s2778] sm:%s2776] %v2775
        %s2780 = scalar_lea.vmem [#allocation2], 984
        %v2781 = vld [vmem:[%s2780] sm:%s2044]
        %s2782 = sshllo.u32 0, 2
        %s2783 = smul.addr 2, 123
        %s2784 = scalar_lea.vmem %s631, %s2783 [#allocation3]
        %2785 = vst [vmem:[%s2784] sm:%s2782] %v2781
        %s2786 = scalar_lea.vmem [#allocation2], 992
        %v2787 = vld [vmem:[%s2786] sm:%s2044]
        %s2788 = sshllo.u32 0, 2
        %s2789 = smul.addr 2, 124
        %s2790 = scalar_lea.vmem %s631, %s2789 [#allocation3]
        %2791 = vst [vmem:[%s2790] sm:%s2788] %v2787
        %s2792 = scalar_lea.vmem [#allocation2], 1000
        %v2793 = vld [vmem:[%s2792] sm:%s2044]
        %s2794 = sshllo.u32 0, 2
        %s2795 = smul.addr 2, 125
        %s2796 = scalar_lea.vmem %s631, %s2795 [#allocation3]
        %2797 = vst [vmem:[%s2796] sm:%s2794] %v2793
        %s2798 = scalar_lea.vmem [#allocation2], 1008
        %v2799 = vld [vmem:[%s2798] sm:%s2044]
        %s2800 = sshllo.u32 0, 2
        %s2801 = smul.addr 2, 126
        %s2802 = scalar_lea.vmem %s631, %s2801 [#allocation3]
        %2803 = vst [vmem:[%s2802] sm:%s2800] %v2799
        %s2804 = scalar_lea.vmem [#allocation2], 1016
        %v2805 = vld [vmem:[%s2804] sm:%s2044]
        %s2806 = sshllo.u32 0, 2
        %s2807 = smul.addr 2, 127
        %s2808 = scalar_lea.vmem %s631, %s2807 [#allocation3]
        %2809 = vst [vmem:[%s2808] sm:%s2806] %v2805
        %s2810 = sand.u32 %s11, 1
        %s2811 = sand.u32 %s11, 1
        %s2812 = smul.addr %s2811, 256
        %s2813 = scalar_lea.vmem [#allocation3], %s2812
        %s2814 = smul.u32 16, %s17
        %s2815 = smul.u32 8, %s18
        %s2816 = sadd.s32 %s20, %s19
        %s2817 = sadd.s32 %s2816, %s2815
        %s2818 = smul.addr %s2814, 16
        %s2819 = sadd.s32 %s2817, %s2818
        %s2820 = smul.addr %s2819, 2
        %s2821 = scalar_lea.vmem %s1, %s2820
        // Predicated region
        $region58: #{reverse} parent=56 // pred_check
          _
        $region59: #{reverse} parent=56 // pred_check_branch
          %2823 = sbr.rel (0) target = $region61
        $region60: #{reverse} parent=56 // pred_region
          // Predicated region
          $region62: #{reverse} parent=60 // pred_check
            _
          $region63: #{reverse} parent=60 // pred_check_branch
            %2825 = sbr.rel target = $region65
          $region64: #{reverse} parent=60 // pred_region
            // Predicated region
            $region77: #{reverse} parent=64 // pred_check
              _
            $region78: #{reverse} parent=64 // pred_check_branch
              %3094 = sbr.rel (0) target = $region80
            $region79: #{reverse} parent=64 // pred_region
              loop: start=0, step=1, limit=1
              $region81: #{reverse} parent=79 // loop_pre_header
                _
              $region82: #{reverse} parent=79 // loop_header
                %s3096 = sphi 0, %s3100
                %p3097 = scmp.ge.s32.totalorder %s3096, 1
                %s3101 = sphi %s2813, %s2813
                %s3102 = sphi %s2821, %s2821
              $region83: #{reverse} parent=79 // loop_header_branch
                %3099 = sbr.rel (%p3097) target = $region87
              $region84: #{reverse} parent=79 // loop_body
                _
              $region85: #{reverse} parent=79 // loop_footer
                %s3100 = sadd.s32 1, %s3096
              $region86: #{reverse} parent=79 // loop_footer_branch
                %3095 = sbr.rel target = $region82
              $region87: #{reverse} parent=79 // loop_exit
                _
              loop: start=0, step=1, limit=1
              $region88: #{reverse} parent=79 // loop_pre_header
                _
              $region89: #{reverse} parent=79 // loop_header
                %s3105 = sphi 0, %s3109
                %p3106 = scmp.ge.s32.totalorder %s3105, 1
                %s3110 = sphi %s2813, %s2813
                %s3111 = sphi %s2821, %s2821
              $region90: #{reverse} parent=79 // loop_header_branch
                %3108 = sbr.rel (%p3106) target = $region94
              $region91: #{reverse} parent=79 // loop_body
                %v3112 = vld [vmem:[%s3110] sm:$0x3]
                %3113 = vst [vmem:[%s3111] sm:$0x3] %v3112
                %v3114 = vld [vmem:[%s3110 + $0x2] sm:$0x3]
                %3115 = vst [vmem:[%s3111 + $0x2] sm:$0x3] %v3114
                %v3116 = vld [vmem:[%s3110 + $0x4] sm:$0x3]
                %3117 = vst [vmem:[%s3111 + $0x4] sm:$0x3] %v3116
                %v3118 = vld [vmem:[%s3110 + $0x6] sm:$0x3]
                %3119 = vst [vmem:[%s3111 + $0x6] sm:$0x3] %v3118
                %v3120 = vld [vmem:[%s3110 + $0x8] sm:$0x3]
                %3121 = vst [vmem:[%s3111 + $0x8] sm:$0x3] %v3120
                %v3122 = vld [vmem:[%s3110 + $0xa] sm:$0x3]
                %3123 = vst [vmem:[%s3111 + $0xa] sm:$0x3] %v3122
                %v3124 = vld [vmem:[%s3110 + $0xc] sm:$0x3]
                %3125 = vst [vmem:[%s3111 + $0xc] sm:$0x3] %v3124
                %v3126 = vld [vmem:[%s3110 + $0xe] sm:$0x3]
                %3127 = vst [vmem:[%s3111 + $0xe] sm:$0x3] %v3126
                %v3128 = vld [vmem:[%s3110 + $0x10] sm:$0x3]
                %3129 = vst [vmem:[%s3111 + $0x20] sm:$0x3] %v3128
                %v3130 = vld [vmem:[%s3110 + $0x12] sm:$0x3]
                %3131 = vst [vmem:[%s3111 + $0x22] sm:$0x3] %v3130
                %v3132 = vld [vmem:[%s3110 + $0x14] sm:$0x3]
                %3133 = vst [vmem:[%s3111 + $0x24] sm:$0x3] %v3132
                %v3134 = vld [vmem:[%s3110 + $0x16] sm:$0x3]
                %3135 = vst [vmem:[%s3111 + $0x26] sm:$0x3] %v3134
                %v3136 = vld [vmem:[%s3110 + $0x18] sm:$0x3]
                %3137 = vst [vmem:[%s3111 + $0x28] sm:$0x3] %v3136
                %v3138 = vld [vmem:[%s3110 + $0x1a] sm:$0x3]
                %3139 = vst [vmem:[%s3111 + $0x2a] sm:$0x3] %v3138
                %v3140 = vld [vmem:[%s3110 + $0x1c] sm:$0x3]
                %3141 = vst [vmem:[%s3111 + $0x2c] sm:$0x3] %v3140
                %v3142 = vld [vmem:[%s3110 + $0x1e] sm:$0x3]
                %3143 = vst [vmem:[%s3111 + $0x2e] sm:$0x3] %v3142
                %v3144 = vld [vmem:[%s3110 + $0x20] sm:$0x3]
                %3145 = vst [vmem:[%s3111 + $0x40] sm:$0x3] %v3144
                %v3146 = vld [vmem:[%s3110 + $0x22] sm:$0x3]
                %3147 = vst [vmem:[%s3111 + $0x42] sm:$0x3] %v3146
                %v3148 = vld [vmem:[%s3110 + $0x24] sm:$0x3]
                %3149 = vst [vmem:[%s3111 + $0x44] sm:$0x3] %v3148
                %v3150 = vld [vmem:[%s3110 + $0x26] sm:$0x3]
                %3151 = vst [vmem:[%s3111 + $0x46] sm:$0x3] %v3150
                %v3152 = vld [vmem:[%s3110 + $0x28] sm:$0x3]
                %3153 = vst [vmem:[%s3111 + $0x48] sm:$0x3] %v3152
                %v3154 = vld [vmem:[%s3110 + $0x2a] sm:$0x3]
                %3155 = vst [vmem:[%s3111 + $0x4a] sm:$0x3] %v3154
                %v3156 = vld [vmem:[%s3110 + $0x2c] sm:$0x3]
                %3157 = vst [vmem:[%s3111 + $0x4c] sm:$0x3] %v3156
                %v3158 = vld [vmem:[%s3110 + $0x2e] sm:$0x3]
                %3159 = vst [vmem:[%s3111 + $0x4e] sm:$0x3] %v3158
                %v3160 = vld [vmem:[%s3110 + $0x30] sm:$0x3]
                %3161 = vst [vmem:[%s3111 + $0x60] sm:$0x3] %v3160
                %v3162 = vld [vmem:[%s3110 + $0x32] sm:$0x3]
                %3163 = vst [vmem:[%s3111 + $0x62] sm:$0x3] %v3162
                %v3164 = vld [vmem:[%s3110 + $0x34] sm:$0x3]
                %3165 = vst [vmem:[%s3111 + $0x64] sm:$0x3] %v3164
                %v3166 = vld [vmem:[%s3110 + $0x36] sm:$0x3]
                %3167 = vst [vmem:[%s3111 + $0x66] sm:$0x3] %v3166
                %v3168 = vld [vmem:[%s3110 + $0x38] sm:$0x3]
                %3169 = vst [vmem:[%s3111 + $0x68] sm:$0x3] %v3168
                %v3170 = vld [vmem:[%s3110 + $0x3a] sm:$0x3]
                %3171 = vst [vmem:[%s3111 + $0x6a] sm:$0x3] %v3170
                %v3172 = vld [vmem:[%s3110 + $0x3c] sm:$0x3]
                %3173 = vst [vmem:[%s3111 + $0x6c] sm:$0x3] %v3172
                %v3174 = vld [vmem:[%s3110 + $0x3e] sm:$0x3]
                %3175 = vst [vmem:[%s3111 + $0x6e] sm:$0x3] %v3174
                %v3176 = vld [vmem:[%s3110 + $0x40] sm:$0x3]
                %3177 = vst [vmem:[%s3111 + $0x80] sm:$0x3] %v3176
                %v3178 = vld [vmem:[%s3110 + $0x42] sm:$0x3]
                %3179 = vst [vmem:[%s3111 + $0x82] sm:$0x3] %v3178
                %v3180 = vld [vmem:[%s3110 + $0x44] sm:$0x3]
                %3181 = vst [vmem:[%s3111 + $0x84] sm:$0x3] %v3180
                %v3182 = vld [vmem:[%s3110 + $0x46] sm:$0x3]
                %3183 = vst [vmem:[%s3111 + $0x86] sm:$0x3] %v3182
                %v3184 = vld [vmem:[%s3110 + $0x48] sm:$0x3]
                %3185 = vst [vmem:[%s3111 + $0x88] sm:$0x3] %v3184
                %v3186 = vld [vmem:[%s3110 + $0x4a] sm:$0x3]
                %3187 = vst [vmem:[%s3111 + $0x8a] sm:$0x3] %v3186
                %v3188 = vld [vmem:[%s3110 + $0x4c] sm:$0x3]
                %3189 = vst [vmem:[%s3111 + $0x8c] sm:$0x3] %v3188
                %v3190 = vld [vmem:[%s3110 + $0x4e] sm:$0x3]
                %3191 = vst [vmem:[%s3111 + $0x8e] sm:$0x3] %v3190
                %v3192 = vld [vmem:[%s3110 + $0x50] sm:$0x3]
                %3193 = vst [vmem:[%s3111 + $0xa0] sm:$0x3] %v3192
                %v3194 = vld [vmem:[%s3110 + $0x52] sm:$0x3]
                %3195 = vst [vmem:[%s3111 + $0xa2] sm:$0x3] %v3194
                %v3196 = vld [vmem:[%s3110 + $0x54] sm:$0x3]
                %3197 = vst [vmem:[%s3111 + $0xa4] sm:$0x3] %v3196
                %v3198 = vld [vmem:[%s3110 + $0x56] sm:$0x3]
                %3199 = vst [vmem:[%s3111 + $0xa6] sm:$0x3] %v3198
                %v3200 = vld [vmem:[%s3110 + $0x58] sm:$0x3]
                %3201 = vst [vmem:[%s3111 + $0xa8] sm:$0x3] %v3200
                %v3202 = vld [vmem:[%s3110 + $0x5a] sm:$0x3]
                %3203 = vst [vmem:[%s3111 + $0xaa] sm:$0x3] %v3202
                %v3204 = vld [vmem:[%s3110 + $0x5c] sm:$0x3]
                %3205 = vst [vmem:[%s3111 + $0xac] sm:$0x3] %v3204
                %v3206 = vld [vmem:[%s3110 + $0x5e] sm:$0x3]
                %3207 = vst [vmem:[%s3111 + $0xae] sm:$0x3] %v3206
                %v3208 = vld [vmem:[%s3110 + $0x60] sm:$0x3]
                %3209 = vst [vmem:[%s3111 + $0xc0] sm:$0x3] %v3208
                %v3210 = vld [vmem:[%s3110 + $0x62] sm:$0x3]
                %3211 = vst [vmem:[%s3111 + $0xc2] sm:$0x3] %v3210
                %v3212 = vld [vmem:[%s3110 + $0x64] sm:$0x3]
                %3213 = vst [vmem:[%s3111 + $0xc4] sm:$0x3] %v3212
                %v3214 = vld [vmem:[%s3110 + $0x66] sm:$0x3]
                %3215 = vst [vmem:[%s3111 + $0xc6] sm:$0x3] %v3214
                %v3216 = vld [vmem:[%s3110 + $0x68] sm:$0x3]
                %3217 = vst [vmem:[%s3111 + $0xc8] sm:$0x3] %v3216
                %v3218 = vld [vmem:[%s3110 + $0x6a] sm:$0x3]
                %3219 = vst [vmem:[%s3111 + $0xca] sm:$0x3] %v3218
                %v3220 = vld [vmem:[%s3110 + $0x6c] sm:$0x3]
                %3221 = vst [vmem:[%s3111 + $0xcc] sm:$0x3] %v3220
                %v3222 = vld [vmem:[%s3110 + $0x6e] sm:$0x3]
                %3223 = vst [vmem:[%s3111 + $0xce] sm:$0x3] %v3222
                %v3224 = vld [vmem:[%s3110 + $0x70] sm:$0x3]
                %3225 = vst [vmem:[%s3111 + $0xe0] sm:$0x3] %v3224
                %v3226 = vld [vmem:[%s3110 + $0x72] sm:$0x3]
                %3227 = vst [vmem:[%s3111 + $0xe2] sm:$0x3] %v3226
                %v3228 = vld [vmem:[%s3110 + $0x74] sm:$0x3]
                %3229 = vst [vmem:[%s3111 + $0xe4] sm:$0x3] %v3228
                %v3230 = vld [vmem:[%s3110 + $0x76] sm:$0x3]
                %3231 = vst [vmem:[%s3111 + $0xe6] sm:$0x3] %v3230
                %v3232 = vld [vmem:[%s3110 + $0x78] sm:$0x3]
                %3233 = vst [vmem:[%s3111 + $0xe8] sm:$0x3] %v3232
                %v3234 = vld [vmem:[%s3110 + $0x7a] sm:$0x3]
                %3235 = vst [vmem:[%s3111 + $0xea] sm:$0x3] %v3234
                %v3236 = vld [vmem:[%s3110 + $0x7c] sm:$0x3]
                %3237 = vst [vmem:[%s3111 + $0xec] sm:$0x3] %v3236
                %v3238 = vld [vmem:[%s3110 + $0x7e] sm:$0x3]
                %3239 = vst [vmem:[%s3111 + $0xee] sm:$0x3] %v3238
                %v3240 = vld [vmem:[%s3110 + $0x80] sm:$0x3]
                %3241 = vst [vmem:[%s3111 + $0x100] sm:$0x3] %v3240
                %v3242 = vld [vmem:[%s3110 + $0x82] sm:$0x3]
                %3243 = vst [vmem:[%s3111 + $0x102] sm:$0x3] %v3242
                %v3244 = vld [vmem:[%s3110 + $0x84] sm:$0x3]
                %3245 = vst [vmem:[%s3111 + $0x104] sm:$0x3] %v3244
                %v3246 = vld [vmem:[%s3110 + $0x86] sm:$0x3]
                %3247 = vst [vmem:[%s3111 + $0x106] sm:$0x3] %v3246
                %v3248 = vld [vmem:[%s3110 + $0x88] sm:$0x3]
                %3249 = vst [vmem:[%s3111 + $0x108] sm:$0x3] %v3248
                %v3250 = vld [vmem:[%s3110 + $0x8a] sm:$0x3]
                %3251 = vst [vmem:[%s3111 + $0x10a] sm:$0x3] %v3250
                %v3252 = vld [vmem:[%s3110 + $0x8c] sm:$0x3]
                %3253 = vst [vmem:[%s3111 + $0x10c] sm:$0x3] %v3252
                %v3254 = vld [vmem:[%s3110 + $0x8e] sm:$0x3]
                %3255 = vst [vmem:[%s3111 + $0x10e] sm:$0x3] %v3254
                %v3256 = vld [vmem:[%s3110 + $0x90] sm:$0x3]
                %3257 = vst [vmem:[%s3111 + $0x120] sm:$0x3] %v3256
                %v3258 = vld [vmem:[%s3110 + $0x92] sm:$0x3]
                %3259 = vst [vmem:[%s3111 + $0x122] sm:$0x3] %v3258
                %v3260 = vld [vmem:[%s3110 + $0x94] sm:$0x3]
                %3261 = vst [vmem:[%s3111 + $0x124] sm:$0x3] %v3260
                %v3262 = vld [vmem:[%s3110 + $0x96] sm:$0x3]
                %3263 = vst [vmem:[%s3111 + $0x126] sm:$0x3] %v3262
                %v3264 = vld [vmem:[%s3110 + $0x98] sm:$0x3]
                %3265 = vst [vmem:[%s3111 + $0x128] sm:$0x3] %v3264
                %v3266 = vld [vmem:[%s3110 + $0x9a] sm:$0x3]
                %3267 = vst [vmem:[%s3111 + $0x12a] sm:$0x3] %v3266
                %v3268 = vld [vmem:[%s3110 + $0x9c] sm:$0x3]
                %3269 = vst [vmem:[%s3111 + $0x12c] sm:$0x3] %v3268
                %v3270 = vld [vmem:[%s3110 + $0x9e] sm:$0x3]
                %3271 = vst [vmem:[%s3111 + $0x12e] sm:$0x3] %v3270
                %v3272 = vld [vmem:[%s3110 + $0xa0] sm:$0x3]
                %3273 = vst [vmem:[%s3111 + $0x140] sm:$0x3] %v3272
                %v3274 = vld [vmem:[%s3110 + $0xa2] sm:$0x3]
                %3275 = vst [vmem:[%s3111 + $0x142] sm:$0x3] %v3274
                %v3276 = vld [vmem:[%s3110 + $0xa4] sm:$0x3]
                %3277 = vst [vmem:[%s3111 + $0x144] sm:$0x3] %v3276
                %v3278 = vld [vmem:[%s3110 + $0xa6] sm:$0x3]
                %3279 = vst [vmem:[%s3111 + $0x146] sm:$0x3] %v3278
                %v3280 = vld [vmem:[%s3110 + $0xa8] sm:$0x3]
                %3281 = vst [vmem:[%s3111 + $0x148] sm:$0x3] %v3280
                %v3282 = vld [vmem:[%s3110 + $0xaa] sm:$0x3]
                %3283 = vst [vmem:[%s3111 + $0x14a] sm:$0x3] %v3282
                %v3284 = vld [vmem:[%s3110 + $0xac] sm:$0x3]
                %3285 = vst [vmem:[%s3111 + $0x14c] sm:$0x3] %v3284
                %v3286 = vld [vmem:[%s3110 + $0xae] sm:$0x3]
                %3287 = vst [vmem:[%s3111 + $0x14e] sm:$0x3] %v3286
                %v3288 = vld [vmem:[%s3110 + $0xb0] sm:$0x3]
                %3289 = vst [vmem:[%s3111 + $0x160] sm:$0x3] %v3288
                %v3290 = vld [vmem:[%s3110 + $0xb2] sm:$0x3]
                %3291 = vst [vmem:[%s3111 + $0x162] sm:$0x3] %v3290
                %v3292 = vld [vmem:[%s3110 + $0xb4] sm:$0x3]
                %3293 = vst [vmem:[%s3111 + $0x164] sm:$0x3] %v3292
                %v3294 = vld [vmem:[%s3110 + $0xb6] sm:$0x3]
                %3295 = vst [vmem:[%s3111 + $0x166] sm:$0x3] %v3294
                %v3296 = vld [vmem:[%s3110 + $0xb8] sm:$0x3]
                %3297 = vst [vmem:[%s3111 + $0x168] sm:$0x3] %v3296
                %v3298 = vld [vmem:[%s3110 + $0xba] sm:$0x3]
                %3299 = vst [vmem:[%s3111 + $0x16a] sm:$0x3] %v3298
                %v3300 = vld [vmem:[%s3110 + $0xbc] sm:$0x3]
                %3301 = vst [vmem:[%s3111 + $0x16c] sm:$0x3] %v3300
                %v3302 = vld [vmem:[%s3110 + $0xbe] sm:$0x3]
                %3303 = vst [vmem:[%s3111 + $0x16e] sm:$0x3] %v3302
                %v3304 = vld [vmem:[%s3110 + $0xc0] sm:$0x3]
                %3305 = vst [vmem:[%s3111 + $0x180] sm:$0x3] %v3304
                %v3306 = vld [vmem:[%s3110 + $0xc2] sm:$0x3]
                %3307 = vst [vmem:[%s3111 + $0x182] sm:$0x3] %v3306
                %v3308 = vld [vmem:[%s3110 + $0xc4] sm:$0x3]
                %3309 = vst [vmem:[%s3111 + $0x184] sm:$0x3] %v3308
                %v3310 = vld [vmem:[%s3110 + $0xc6] sm:$0x3]
                %3311 = vst [vmem:[%s3111 + $0x186] sm:$0x3] %v3310
                %v3312 = vld [vmem:[%s3110 + $0xc8] sm:$0x3]
                %3313 = vst [vmem:[%s3111 + $0x188] sm:$0x3] %v3312
                %v3314 = vld [vmem:[%s3110 + $0xca] sm:$0x3]
                %3315 = vst [vmem:[%s3111 + $0x18a] sm:$0x3] %v3314
                %v3316 = vld [vmem:[%s3110 + $0xcc] sm:$0x3]
                %3317 = vst [vmem:[%s3111 + $0x18c] sm:$0x3] %v3316
                %v3318 = vld [vmem:[%s3110 + $0xce] sm:$0x3]
                %3319 = vst [vmem:[%s3111 + $0x18e] sm:$0x3] %v3318
                %v3320 = vld [vmem:[%s3110 + $0xd0] sm:$0x3]
                %3321 = vst [vmem:[%s3111 + $0x1a0] sm:$0x3] %v3320
                %v3322 = vld [vmem:[%s3110 + $0xd2] sm:$0x3]
                %3323 = vst [vmem:[%s3111 + $0x1a2] sm:$0x3] %v3322
                %v3324 = vld [vmem:[%s3110 + $0xd4] sm:$0x3]
                %3325 = vst [vmem:[%s3111 + $0x1a4] sm:$0x3] %v3324
                %v3326 = vld [vmem:[%s3110 + $0xd6] sm:$0x3]
                %3327 = vst [vmem:[%s3111 + $0x1a6] sm:$0x3] %v3326
                %v3328 = vld [vmem:[%s3110 + $0xd8] sm:$0x3]
                %3329 = vst [vmem:[%s3111 + $0x1a8] sm:$0x3] %v3328
                %v3330 = vld [vmem:[%s3110 + $0xda] sm:$0x3]
                %3331 = vst [vmem:[%s3111 + $0x1aa] sm:$0x3] %v3330
                %v3332 = vld [vmem:[%s3110 + $0xdc] sm:$0x3]
                %3333 = vst [vmem:[%s3111 + $0x1ac] sm:$0x3] %v3332
                %v3334 = vld [vmem:[%s3110 + $0xde] sm:$0x3]
                %3335 = vst [vmem:[%s3111 + $0x1ae] sm:$0x3] %v3334
                %v3336 = vld [vmem:[%s3110 + $0xe0] sm:$0x3]
                %3337 = vst [vmem:[%s3111 + $0x1c0] sm:$0x3] %v3336
                %v3338 = vld [vmem:[%s3110 + $0xe2] sm:$0x3]
                %3339 = vst [vmem:[%s3111 + $0x1c2] sm:$0x3] %v3338
                %v3340 = vld [vmem:[%s3110 + $0xe4] sm:$0x3]
                %3341 = vst [vmem:[%s3111 + $0x1c4] sm:$0x3] %v3340
                %v3342 = vld [vmem:[%s3110 + $0xe6] sm:$0x3]
                %3343 = vst [vmem:[%s3111 + $0x1c6] sm:$0x3] %v3342
                %v3344 = vld [vmem:[%s3110 + $0xe8] sm:$0x3]
                %3345 = vst [vmem:[%s3111 + $0x1c8] sm:$0x3] %v3344
                %v3346 = vld [vmem:[%s3110 + $0xea] sm:$0x3]
                %3347 = vst [vmem:[%s3111 + $0x1ca] sm:$0x3] %v3346
                %v3348 = vld [vmem:[%s3110 + $0xec] sm:$0x3]
                %3349 = vst [vmem:[%s3111 + $0x1cc] sm:$0x3] %v3348
                %v3350 = vld [vmem:[%s3110 + $0xee] sm:$0x3]
                %3351 = vst [vmem:[%s3111 + $0x1ce] sm:$0x3] %v3350
                %v3352 = vld [vmem:[%s3110 + $0xf0] sm:$0x3]
                %3353 = vst [vmem:[%s3111 + $0x1e0] sm:$0x3] %v3352
                %v3354 = vld [vmem:[%s3110 + $0xf2] sm:$0x3]
                %3355 = vst [vmem:[%s3111 + $0x1e2] sm:$0x3] %v3354
                %v3356 = vld [vmem:[%s3110 + $0xf4] sm:$0x3]
                %3357 = vst [vmem:[%s3111 + $0x1e4] sm:$0x3] %v3356
                %v3358 = vld [vmem:[%s3110 + $0xf6] sm:$0x3]
                %3359 = vst [vmem:[%s3111 + $0x1e6] sm:$0x3] %v3358
                %v3360 = vld [vmem:[%s3110 + $0xf8] sm:$0x3]
                %3361 = vst [vmem:[%s3111 + $0x1e8] sm:$0x3] %v3360
                %v3362 = vld [vmem:[%s3110 + $0xfa] sm:$0x3]
                %3363 = vst [vmem:[%s3111 + $0x1ea] sm:$0x3] %v3362
                %v3364 = vld [vmem:[%s3110 + $0xfc] sm:$0x3]
                %3365 = vst [vmem:[%s3111 + $0x1ec] sm:$0x3] %v3364
                %v3366 = vld [vmem:[%s3110 + $0xfe] sm:$0x3]
                %3367 = vst [vmem:[%s3111 + $0x1ee] sm:$0x3] %v3366
              $region92: #{reverse} parent=79 // loop_footer
                %s3109 = sadd.s32 1, %s3105
              $region93: #{reverse} parent=79 // loop_footer_branch
                %3104 = sbr.rel target = $region89
              $region94: #{reverse} parent=79 // loop_exit
                _
            $region80: #{reverse} parent=64 // pred_fallthru
              _
          $region65: #{reverse} parent=60 // pred_fallthru
            _
          // Predicated region
          $region66: #{reverse} parent=60 // pred_check
            _
          $region67: #{reverse} parent=60 // pred_check_branch
            %2827 = sbr.rel (0) target = $region69
          $region68: #{reverse} parent=60 // pred_region
            loop: start=0, step=1, limit=1
            $region70: #{reverse} parent=68 // loop_pre_header
              _
            $region71: #{reverse} parent=68 // loop_header
              %s2830 = sphi 0, %s2834
              %p2831 = scmp.ge.s32.totalorder %s2830, 1
              %s2835 = sphi %s2813, %s2813
              %s2836 = sphi %s2821, %s2821
            $region72: #{reverse} parent=68 // loop_header_branch
              %2833 = sbr.rel (%p2831) target = $region76
            $region73: #{reverse} parent=68 // loop_body
              %v2837 = vld [vmem:[%s2835] sm:$0x3]
              %2838 = vst [vmem:[%s2836] sm:$0x3] %v2837
              %v2839 = vld [vmem:[%s2835 + $0x2] sm:$0x3]
              %2840 = vst [vmem:[%s2836 + $0x2] sm:$0x3] %v2839
              %v2841 = vld [vmem:[%s2835 + $0x4] sm:$0x3]
              %2842 = vst [vmem:[%s2836 + $0x4] sm:$0x3] %v2841
              %v2843 = vld [vmem:[%s2835 + $0x6] sm:$0x3]
              %2844 = vst [vmem:[%s2836 + $0x6] sm:$0x3] %v2843
              %v2845 = vld [vmem:[%s2835 + $0x8] sm:$0x3]
              %2846 = vst [vmem:[%s2836 + $0x8] sm:$0x3] %v2845
              %v2847 = vld [vmem:[%s2835 + $0xa] sm:$0x3]
              %2848 = vst [vmem:[%s2836 + $0xa] sm:$0x3] %v2847
              %v2849 = vld [vmem:[%s2835 + $0xc] sm:$0x3]
              %2850 = vst [vmem:[%s2836 + $0xc] sm:$0x3] %v2849
              %v2851 = vld [vmem:[%s2835 + $0xe] sm:$0x3]
              %2852 = vst [vmem:[%s2836 + $0xe] sm:$0x3] %v2851
              %v2853 = vld [vmem:[%s2835 + $0x10] sm:$0x3]
              %2854 = vst [vmem:[%s2836 + $0x20] sm:$0x3] %v2853
              %v2855 = vld [vmem:[%s2835 + $0x12] sm:$0x3]
              %2856 = vst [vmem:[%s2836 + $0x22] sm:$0x3] %v2855
              %v2857 = vld [vmem:[%s2835 + $0x14] sm:$0x3]
              %2858 = vst [vmem:[%s2836 + $0x24] sm:$0x3] %v2857
              %v2859 = vld [vmem:[%s2835 + $0x16] sm:$0x3]
              %2860 = vst [vmem:[%s2836 + $0x26] sm:$0x3] %v2859
              %v2861 = vld [vmem:[%s2835 + $0x18] sm:$0x3]
              %2862 = vst [vmem:[%s2836 + $0x28] sm:$0x3] %v2861
              %v2863 = vld [vmem:[%s2835 + $0x1a] sm:$0x3]
              %2864 = vst [vmem:[%s2836 + $0x2a] sm:$0x3] %v2863
              %v2865 = vld [vmem:[%s2835 + $0x1c] sm:$0x3]
              %2866 = vst [vmem:[%s2836 + $0x2c] sm:$0x3] %v2865
              %v2867 = vld [vmem:[%s2835 + $0x1e] sm:$0x3]
              %2868 = vst [vmem:[%s2836 + $0x2e] sm:$0x3] %v2867
              %v2869 = vld [vmem:[%s2835 + $0x20] sm:$0x3]
              %2870 = vst [vmem:[%s2836 + $0x40] sm:$0x3] %v2869
              %v2871 = vld [vmem:[%s2835 + $0x22] sm:$0x3]
              %2872 = vst [vmem:[%s2836 + $0x42] sm:$0x3] %v2871
              %v2873 = vld [vmem:[%s2835 + $0x24] sm:$0x3]
              %2874 = vst [vmem:[%s2836 + $0x44] sm:$0x3] %v2873
              %v2875 = vld [vmem:[%s2835 + $0x26] sm:$0x3]
              %2876 = vst [vmem:[%s2836 + $0x46] sm:$0x3] %v2875
              %v2877 = vld [vmem:[%s2835 + $0x28] sm:$0x3]
              %2878 = vst [vmem:[%s2836 + $0x48] sm:$0x3] %v2877
              %v2879 = vld [vmem:[%s2835 + $0x2a] sm:$0x3]
              %2880 = vst [vmem:[%s2836 + $0x4a] sm:$0x3] %v2879
              %v2881 = vld [vmem:[%s2835 + $0x2c] sm:$0x3]
              %2882 = vst [vmem:[%s2836 + $0x4c] sm:$0x3] %v2881
              %v2883 = vld [vmem:[%s2835 + $0x2e] sm:$0x3]
              %2884 = vst [vmem:[%s2836 + $0x4e] sm:$0x3] %v2883
              %v2885 = vld [vmem:[%s2835 + $0x30] sm:$0x3]
              %2886 = vst [vmem:[%s2836 + $0x60] sm:$0x3] %v2885
              %v2887 = vld [vmem:[%s2835 + $0x32] sm:$0x3]
              %2888 = vst [vmem:[%s2836 + $0x62] sm:$0x3] %v2887
              %v2889 = vld [vmem:[%s2835 + $0x34] sm:$0x3]
              %2890 = vst [vmem:[%s2836 + $0x64] sm:$0x3] %v2889
              %v2891 = vld [vmem:[%s2835 + $0x36] sm:$0x3]
              %2892 = vst [vmem:[%s2836 + $0x66] sm:$0x3] %v2891
              %v2893 = vld [vmem:[%s2835 + $0x38] sm:$0x3]
              %2894 = vst [vmem:[%s2836 + $0x68] sm:$0x3] %v2893
              %v2895 = vld [vmem:[%s2835 + $0x3a] sm:$0x3]
              %2896 = vst [vmem:[%s2836 + $0x6a] sm:$0x3] %v2895
              %v2897 = vld [vmem:[%s2835 + $0x3c] sm:$0x3]
              %2898 = vst [vmem:[%s2836 + $0x6c] sm:$0x3] %v2897
              %v2899 = vld [vmem:[%s2835 + $0x3e] sm:$0x3]
              %2900 = vst [vmem:[%s2836 + $0x6e] sm:$0x3] %v2899
              %v2901 = vld [vmem:[%s2835 + $0x40] sm:$0x3]
              %2902 = vst [vmem:[%s2836 + $0x80] sm:$0x3] %v2901
              %v2903 = vld [vmem:[%s2835 + $0x42] sm:$0x3]
              %2904 = vst [vmem:[%s2836 + $0x82] sm:$0x3] %v2903
              %v2905 = vld [vmem:[%s2835 + $0x44] sm:$0x3]
              %2906 = vst [vmem:[%s2836 + $0x84] sm:$0x3] %v2905
              %v2907 = vld [vmem:[%s2835 + $0x46] sm:$0x3]
              %2908 = vst [vmem:[%s2836 + $0x86] sm:$0x3] %v2907
              %v2909 = vld [vmem:[%s2835 + $0x48] sm:$0x3]
              %2910 = vst [vmem:[%s2836 + $0x88] sm:$0x3] %v2909
              %v2911 = vld [vmem:[%s2835 + $0x4a] sm:$0x3]
              %2912 = vst [vmem:[%s2836 + $0x8a] sm:$0x3] %v2911
              %v2913 = vld [vmem:[%s2835 + $0x4c] sm:$0x3]
              %2914 = vst [vmem:[%s2836 + $0x8c] sm:$0x3] %v2913
              %v2915 = vld [vmem:[%s2835 + $0x4e] sm:$0x3]
              %2916 = vst [vmem:[%s2836 + $0x8e] sm:$0x3] %v2915
              %v2917 = vld [vmem:[%s2835 + $0x50] sm:$0x3]
              %2918 = vst [vmem:[%s2836 + $0xa0] sm:$0x3] %v2917
              %v2919 = vld [vmem:[%s2835 + $0x52] sm:$0x3]
              %2920 = vst [vmem:[%s2836 + $0xa2] sm:$0x3] %v2919
              %v2921 = vld [vmem:[%s2835 + $0x54] sm:$0x3]
              %2922 = vst [vmem:[%s2836 + $0xa4] sm:$0x3] %v2921
              %v2923 = vld [vmem:[%s2835 + $0x56] sm:$0x3]
              %2924 = vst [vmem:[%s2836 + $0xa6] sm:$0x3] %v2923
              %v2925 = vld [vmem:[%s2835 + $0x58] sm:$0x3]
              %2926 = vst [vmem:[%s2836 + $0xa8] sm:$0x3] %v2925
              %v2927 = vld [vmem:[%s2835 + $0x5a] sm:$0x3]
              %2928 = vst [vmem:[%s2836 + $0xaa] sm:$0x3] %v2927
              %v2929 = vld [vmem:[%s2835 + $0x5c] sm:$0x3]
              %2930 = vst [vmem:[%s2836 + $0xac] sm:$0x3] %v2929
              %v2931 = vld [vmem:[%s2835 + $0x5e] sm:$0x3]
              %2932 = vst [vmem:[%s2836 + $0xae] sm:$0x3] %v2931
              %v2933 = vld [vmem:[%s2835 + $0x60] sm:$0x3]
              %2934 = vst [vmem:[%s2836 + $0xc0] sm:$0x3] %v2933
              %v2935 = vld [vmem:[%s2835 + $0x62] sm:$0x3]
              %2936 = vst [vmem:[%s2836 + $0xc2] sm:$0x3] %v2935
              %v2937 = vld [vmem:[%s2835 + $0x64] sm:$0x3]
              %2938 = vst [vmem:[%s2836 + $0xc4] sm:$0x3] %v2937
              %v2939 = vld [vmem:[%s2835 + $0x66] sm:$0x3]
              %2940 = vst [vmem:[%s2836 + $0xc6] sm:$0x3] %v2939
              %v2941 = vld [vmem:[%s2835 + $0x68] sm:$0x3]
              %2942 = vst [vmem:[%s2836 + $0xc8] sm:$0x3] %v2941
              %v2943 = vld [vmem:[%s2835 + $0x6a] sm:$0x3]
              %2944 = vst [vmem:[%s2836 + $0xca] sm:$0x3] %v2943
              %v2945 = vld [vmem:[%s2835 + $0x6c] sm:$0x3]
              %2946 = vst [vmem:[%s2836 + $0xcc] sm:$0x3] %v2945
              %v2947 = vld [vmem:[%s2835 + $0x6e] sm:$0x3]
              %2948 = vst [vmem:[%s2836 + $0xce] sm:$0x3] %v2947
              %v2949 = vld [vmem:[%s2835 + $0x70] sm:$0x3]
              %2950 = vst [vmem:[%s2836 + $0xe0] sm:$0x3] %v2949
              %v2951 = vld [vmem:[%s2835 + $0x72] sm:$0x3]
              %2952 = vst [vmem:[%s2836 + $0xe2] sm:$0x3] %v2951
              %v2953 = vld [vmem:[%s2835 + $0x74] sm:$0x3]
              %2954 = vst [vmem:[%s2836 + $0xe4] sm:$0x3] %v2953
              %v2955 = vld [vmem:[%s2835 + $0x76] sm:$0x3]
              %2956 = vst [vmem:[%s2836 + $0xe6] sm:$0x3] %v2955
              %v2957 = vld [vmem:[%s2835 + $0x78] sm:$0x3]
              %2958 = vst [vmem:[%s2836 + $0xe8] sm:$0x3] %v2957
              %v2959 = vld [vmem:[%s2835 + $0x7a] sm:$0x3]
              %2960 = vst [vmem:[%s2836 + $0xea] sm:$0x3] %v2959
              %v2961 = vld [vmem:[%s2835 + $0x7c] sm:$0x3]
              %2962 = vst [vmem:[%s2836 + $0xec] sm:$0x3] %v2961
              %v2963 = vld [vmem:[%s2835 + $0x7e] sm:$0x3]
              %2964 = vst [vmem:[%s2836 + $0xee] sm:$0x3] %v2963
              %v2965 = vld [vmem:[%s2835 + $0x80] sm:$0x3]
              %2966 = vst [vmem:[%s2836 + $0x100] sm:$0x3] %v2965
              %v2967 = vld [vmem:[%s2835 + $0x82] sm:$0x3]
              %2968 = vst [vmem:[%s2836 + $0x102] sm:$0x3] %v2967
              %v2969 = vld [vmem:[%s2835 + $0x84] sm:$0x3]
              %2970 = vst [vmem:[%s2836 + $0x104] sm:$0x3] %v2969
              %v2971 = vld [vmem:[%s2835 + $0x86] sm:$0x3]
              %2972 = vst [vmem:[%s2836 + $0x106] sm:$0x3] %v2971
              %v2973 = vld [vmem:[%s2835 + $0x88] sm:$0x3]
              %2974 = vst [vmem:[%s2836 + $0x108] sm:$0x3] %v2973
              %v2975 = vld [vmem:[%s2835 + $0x8a] sm:$0x3]
              %2976 = vst [vmem:[%s2836 + $0x10a] sm:$0x3] %v2975
              %v2977 = vld [vmem:[%s2835 + $0x8c] sm:$0x3]
              %2978 = vst [vmem:[%s2836 + $0x10c] sm:$0x3] %v2977
              %v2979 = vld [vmem:[%s2835 + $0x8e] sm:$0x3]
              %2980 = vst [vmem:[%s2836 + $0x10e] sm:$0x3] %v2979
              %v2981 = vld [vmem:[%s2835 + $0x90] sm:$0x3]
              %2982 = vst [vmem:[%s2836 + $0x120] sm:$0x3] %v2981
              %v2983 = vld [vmem:[%s2835 + $0x92] sm:$0x3]
              %2984 = vst [vmem:[%s2836 + $0x122] sm:$0x3] %v2983
              %v2985 = vld [vmem:[%s2835 + $0x94] sm:$0x3]
              %2986 = vst [vmem:[%s2836 + $0x124] sm:$0x3] %v2985
              %v2987 = vld [vmem:[%s2835 + $0x96] sm:$0x3]
              %2988 = vst [vmem:[%s2836 + $0x126] sm:$0x3] %v2987
              %v2989 = vld [vmem:[%s2835 + $0x98] sm:$0x3]
              %2990 = vst [vmem:[%s2836 + $0x128] sm:$0x3] %v2989
              %v2991 = vld [vmem:[%s2835 + $0x9a] sm:$0x3]
              %2992 = vst [vmem:[%s2836 + $0x12a] sm:$0x3] %v2991
              %v2993 = vld [vmem:[%s2835 + $0x9c] sm:$0x3]
              %2994 = vst [vmem:[%s2836 + $0x12c] sm:$0x3] %v2993
              %v2995 = vld [vmem:[%s2835 + $0x9e] sm:$0x3]
              %2996 = vst [vmem:[%s2836 + $0x12e] sm:$0x3] %v2995
              %v2997 = vld [vmem:[%s2835 + $0xa0] sm:$0x3]
              %2998 = vst [vmem:[%s2836 + $0x140] sm:$0x3] %v2997
              %v2999 = vld [vmem:[%s2835 + $0xa2] sm:$0x3]
              %3000 = vst [vmem:[%s2836 + $0x142] sm:$0x3] %v2999
              %v3001 = vld [vmem:[%s2835 + $0xa4] sm:$0x3]
              %3002 = vst [vmem:[%s2836 + $0x144] sm:$0x3] %v3001
              %v3003 = vld [vmem:[%s2835 + $0xa6] sm:$0x3]
              %3004 = vst [vmem:[%s2836 + $0x146] sm:$0x3] %v3003
              %v3005 = vld [vmem:[%s2835 + $0xa8] sm:$0x3]
              %3006 = vst [vmem:[%s2836 + $0x148] sm:$0x3] %v3005
              %v3007 = vld [vmem:[%s2835 + $0xaa] sm:$0x3]
              %3008 = vst [vmem:[%s2836 + $0x14a] sm:$0x3] %v3007
              %v3009 = vld [vmem:[%s2835 + $0xac] sm:$0x3]
              %3010 = vst [vmem:[%s2836 + $0x14c] sm:$0x3] %v3009
              %v3011 = vld [vmem:[%s2835 + $0xae] sm:$0x3]
              %3012 = vst [vmem:[%s2836 + $0x14e] sm:$0x3] %v3011
              %v3013 = vld [vmem:[%s2835 + $0xb0] sm:$0x3]
              %3014 = vst [vmem:[%s2836 + $0x160] sm:$0x3] %v3013
              %v3015 = vld [vmem:[%s2835 + $0xb2] sm:$0x3]
              %3016 = vst [vmem:[%s2836 + $0x162] sm:$0x3] %v3015
              %v3017 = vld [vmem:[%s2835 + $0xb4] sm:$0x3]
              %3018 = vst [vmem:[%s2836 + $0x164] sm:$0x3] %v3017
              %v3019 = vld [vmem:[%s2835 + $0xb6] sm:$0x3]
              %3020 = vst [vmem:[%s2836 + $0x166] sm:$0x3] %v3019
              %v3021 = vld [vmem:[%s2835 + $0xb8] sm:$0x3]
              %3022 = vst [vmem:[%s2836 + $0x168] sm:$0x3] %v3021
              %v3023 = vld [vmem:[%s2835 + $0xba] sm:$0x3]
              %3024 = vst [vmem:[%s2836 + $0x16a] sm:$0x3] %v3023
              %v3025 = vld [vmem:[%s2835 + $0xbc] sm:$0x3]
              %3026 = vst [vmem:[%s2836 + $0x16c] sm:$0x3] %v3025
              %v3027 = vld [vmem:[%s2835 + $0xbe] sm:$0x3]
              %3028 = vst [vmem:[%s2836 + $0x16e] sm:$0x3] %v3027
              %v3029 = vld [vmem:[%s2835 + $0xc0] sm:$0x3]
              %3030 = vst [vmem:[%s2836 + $0x180] sm:$0x3] %v3029
              %v3031 = vld [vmem:[%s2835 + $0xc2] sm:$0x3]
              %3032 = vst [vmem:[%s2836 + $0x182] sm:$0x3] %v3031
              %v3033 = vld [vmem:[%s2835 + $0xc4] sm:$0x3]
              %3034 = vst [vmem:[%s2836 + $0x184] sm:$0x3] %v3033
              %v3035 = vld [vmem:[%s2835 + $0xc6] sm:$0x3]
              %3036 = vst [vmem:[%s2836 + $0x186] sm:$0x3] %v3035
              %v3037 = vld [vmem:[%s2835 + $0xc8] sm:$0x3]
              %3038 = vst [vmem:[%s2836 + $0x188] sm:$0x3] %v3037
              %v3039 = vld [vmem:[%s2835 + $0xca] sm:$0x3]
              %3040 = vst [vmem:[%s2836 + $0x18a] sm:$0x3] %v3039
              %v3041 = vld [vmem:[%s2835 + $0xcc] sm:$0x3]
              %3042 = vst [vmem:[%s2836 + $0x18c] sm:$0x3] %v3041
              %v3043 = vld [vmem:[%s2835 + $0xce] sm:$0x3]
              %3044 = vst [vmem:[%s2836 + $0x18e] sm:$0x3] %v3043
              %v3045 = vld [vmem:[%s2835 + $0xd0] sm:$0x3]
              %3046 = vst [vmem:[%s2836 + $0x1a0] sm:$0x3] %v3045
              %v3047 = vld [vmem:[%s2835 + $0xd2] sm:$0x3]
              %3048 = vst [vmem:[%s2836 + $0x1a2] sm:$0x3] %v3047
              %v3049 = vld [vmem:[%s2835 + $0xd4] sm:$0x3]
              %3050 = vst [vmem:[%s2836 + $0x1a4] sm:$0x3] %v3049
              %v3051 = vld [vmem:[%s2835 + $0xd6] sm:$0x3]
              %3052 = vst [vmem:[%s2836 + $0x1a6] sm:$0x3] %v3051
              %v3053 = vld [vmem:[%s2835 + $0xd8] sm:$0x3]
              %3054 = vst [vmem:[%s2836 + $0x1a8] sm:$0x3] %v3053
              %v3055 = vld [vmem:[%s2835 + $0xda] sm:$0x3]
              %3056 = vst [vmem:[%s2836 + $0x1aa] sm:$0x3] %v3055
              %v3057 = vld [vmem:[%s2835 + $0xdc] sm:$0x3]
              %3058 = vst [vmem:[%s2836 + $0x1ac] sm:$0x3] %v3057
              %v3059 = vld [vmem:[%s2835 + $0xde] sm:$0x3]
              %3060 = vst [vmem:[%s2836 + $0x1ae] sm:$0x3] %v3059
              %v3061 = vld [vmem:[%s2835 + $0xe0] sm:$0x3]
              %3062 = vst [vmem:[%s2836 + $0x1c0] sm:$0x3] %v3061
              %v3063 = vld [vmem:[%s2835 + $0xe2] sm:$0x3]
              %3064 = vst [vmem:[%s2836 + $0x1c2] sm:$0x3] %v3063
              %v3065 = vld [vmem:[%s2835 + $0xe4] sm:$0x3]
              %3066 = vst [vmem:[%s2836 + $0x1c4] sm:$0x3] %v3065
              %v3067 = vld [vmem:[%s2835 + $0xe6] sm:$0x3]
              %3068 = vst [vmem:[%s2836 + $0x1c6] sm:$0x3] %v3067
              %v3069 = vld [vmem:[%s2835 + $0xe8] sm:$0x3]
              %3070 = vst [vmem:[%s2836 + $0x1c8] sm:$0x3] %v3069
              %v3071 = vld [vmem:[%s2835 + $0xea] sm:$0x3]
              %3072 = vst [vmem:[%s2836 + $0x1ca] sm:$0x3] %v3071
              %v3073 = vld [vmem:[%s2835 + $0xec] sm:$0x3]
              %3074 = vst [vmem:[%s2836 + $0x1cc] sm:$0x3] %v3073
              %v3075 = vld [vmem:[%s2835 + $0xee] sm:$0x3]
              %3076 = vst [vmem:[%s2836 + $0x1ce] sm:$0x3] %v3075
              %v3077 = vld [vmem:[%s2835 + $0xf0] sm:$0x3]
              %3078 = vst [vmem:[%s2836 + $0x1e0] sm:$0x3] %v3077
              %v3079 = vld [vmem:[%s2835 + $0xf2] sm:$0x3]
              %3080 = vst [vmem:[%s2836 + $0x1e2] sm:$0x3] %v3079
              %v3081 = vld [vmem:[%s2835 + $0xf4] sm:$0x3]
              %3082 = vst [vmem:[%s2836 + $0x1e4] sm:$0x3] %v3081
              %v3083 = vld [vmem:[%s2835 + $0xf6] sm:$0x3]
              %3084 = vst [vmem:[%s2836 + $0x1e6] sm:$0x3] %v3083
              %v3085 = vld [vmem:[%s2835 + $0xf8] sm:$0x3]
              %3086 = vst [vmem:[%s2836 + $0x1e8] sm:$0x3] %v3085
              %v3087 = vld [vmem:[%s2835 + $0xfa] sm:$0x3]
              %3088 = vst [vmem:[%s2836 + $0x1ea] sm:$0x3] %v3087
              %v3089 = vld [vmem:[%s2835 + $0xfc] sm:$0x3]
              %3090 = vst [vmem:[%s2836 + $0x1ec] sm:$0x3] %v3089
              %v3091 = vld [vmem:[%s2835 + $0xfe] sm:$0x3]
              %3092 = vst [vmem:[%s2836 + $0x1ee] sm:$0x3] %v3091
            $region74: #{reverse} parent=68 // loop_footer
              %s2834 = sadd.s32 1, %s2830
            $region75: #{reverse} parent=68 // loop_footer_branch
              %2829 = sbr.rel target = $region71
            $region76: #{reverse} parent=68 // loop_exit
              _
          $region69: #{reverse} parent=60 // pred_fallthru
            _
        $region61: #{reverse} parent=56 // pred_fallthru
          _
        %3368 = vnop
      $region57: #{reverse} parent=5 // pred_fallthru
        _
      %p3369 = scmp.le.s32.totalorder 2, %s6
      // Predicated region
      $region95: #{reverse} parent=5 // pred_check
        %p3370 = pneg %p3369
      $region96: #{reverse} parent=5 // pred_check_branch
        %3372 = sbr.rel (%p3370) target = $region98
      $region97: #{reverse} parent=5 // pred_region
        %s3373 = ssub.s32 %s6, 2
        %s3374 = sand.u32 %s12, 1
        %s3375 = sand.u32 %s12, 1
        %s3376 = smul.addr %s3375, 256
        %s3377 = scalar_lea.vmem [#allocation3], %s3376
      $region98: #{reverse} parent=5 // pred_fallthru
        _
    $region6: #{reverse} parent=1 // loop_footer
      %s10 = sadd.s32 1, %s6
    $region7: #{reverse} parent=1 // loop_footer_branch
      %5 = sbr.rel target = $region3
    $region8: #{reverse} parent=1 // loop_exit
      _

// kernel: _device_transform_batch.1
$region0: #{_device_transform_batch.1}
  #allocation0 [shape = 'u32[]', space=smem, size = 0x4, offset = 0x4, fixed_abs, tag = 'smem constant byte address 0x4 - core index']
  #allocation1 [shape = 'u32[144,128]{1,0:T(1,128)}', space=vmem, size = 0x12000, scoped, tag = 'internal scratch']
  %s0 = inlined_call_operand.vmem [shape: f32[2,2], index: 0, kind: input, shape index: {}]
  %s1 = inlined_call_operand.vmem [shape: f32[2,8,256], index: 1, kind: input, shape index: {}, may-alias: {1,3}]
  %s2 = inlined_call_operand.vmem [shape: f32[2,8,256], index: 2, kind: input, shape index: {}]
  %s3 = inlined_call_operand.vmem [shape: f32[2,8,256], index: 3, kind: output, shape index: {}, may-alias: {1,3}]
  %s4 = sld [smem:[#allocation0]]
  $region49: #{_device_transform_batch.1} parent=0
    _
  %s6 = ssub.s32 1, %s4
  %s7 = scalar_select 0, %s6, %s4
  $region1: #{_device_transform_batch.1} parent=0
    #allocation2 [shape = 'u8[1024]{0}', space=smem, size = 0x400, scoped, tag = 'input window, operand 0, single buffered']
    #allocation3 [shape = 's32[2]{0}', space=sflag, size = 0x8, scoped, tag = 'scoped memory for _device_transform_batch.1']
    %8 = vsyncpa [#allocation3], 0
    loop: start=0, step=1, limit=4
    $region2: #{_device_transform_batch.1} parent=1 // loop_pre_header
      _
    $region3: #{_device_transform_batch.1} parent=1 // loop_header
      %s10 = sphi 0, %s14
      %p11 = scmp.ge.s32.totalorder %s10, 4
      %s18 = sphi 0, %s18
      %s20 = sphi 0, %s18
      %s21 = sphi 0, %s20
      %s35 = sphi 0, %s21
      %s41 = sphi 0, %s43
      %s44 = sphi 0, %s41
      %s45 = sphi 0, %s44
      %s61 = sphi 0, %s45
      %s67 = sphi 0, %s69
      %s70 = sphi 0, %s67
      %s71 = sphi 0, %s70
      %s87 = sphi 0, %s71
      %s93 = sphi 0, %s95
      %s96 = sphi 0, %s93
      %s97 = sphi 0, %s96
      %s113 = sphi 0, %s97
    $region4: #{_device_transform_batch.1} parent=1 // loop_header_branch
      %13 = sbr.rel (%p11) target = $region8
    $region5: #{_device_transform_batch.1} parent=1 // loop_body
      %s15 = ssub.s32 %s10, 1
      %s16 = ssub.s32 %s10, 2
      %s17 = sadd.s32 %s10, 1
      %s19 = sadd.s32 %s18, 1
      %p22 = scmp.eq.s32.totalorder %s10, 1
      %p23 = scmp.ne.s32.totalorder %s18, %s20
      %p24 = scmp.eq.s32.totalorder %s10, 0
      %p25 = por %p23, %p24
      %p26 = scmp.ne.s32.totalorder %s18, %s20
      %p27 = scmp.eq.s32.totalorder %s15, 1
      %p28 = por %p26, %p27
      %p29 = scmp.ne.s32.totalorder %s20, %s21
      %p30 = scmp.eq.s32.totalorder %s15, 0
      %p31 = por %p29, %p30
      %p32 = scmp.ne.s32.totalorder %s20, %s21
      %p33 = scmp.eq.s32.totalorder %s16, 1
      %p34 = por %p32, %p33
      %p36 = scmp.ne.s32.totalorder %s21, %s35
      %p37 = scmp.eq.s32.totalorder %s16, 0
      %p38 = por %p36, %p37
      %s39 = ssub.s32 %s10, %s17
      %p40 = scmp.eq.s32.totalorder %s39, 0
      %s42 = sadd.s32 %s41, 1
      %s43 = scalar_select %p40, %s41, %s42
      %p46 = pneg %p40
      %p47 = scmp.eq.s32.totalorder %s10, 1
      %p48 = por %p46, %p47
      %p49 = scmp.ne.s32.totalorder %s41, %s44
      %p50 = scmp.eq.s32.totalorder %s10, 0
      %p51 = por %p49, %p50
      %p52 = scmp.ne.s32.totalorder %s41, %s44
      %p53 = scmp.eq.s32.totalorder %s15, 1
      %p54 = por %p52, %p53
      %p55 = scmp.ne.s32.totalorder %s44, %s45
      %p56 = scmp.eq.s32.totalorder %s15, 0
      %p57 = por %p55, %p56
      %p58 = scmp.ne.s32.totalorder %s44, %s45
      %p59 = scmp.eq.s32.totalorder %s16, 1
      %p60 = por %p58, %p59
      %p62 = scmp.ne.s32.totalorder %s45, %s61
      %p63 = scmp.eq.s32.totalorder %s16, 0
      %p64 = por %p62, %p63
      %s65 = ssub.s32 %s10, %s17
      %p66 = scmp.eq.s32.totalorder %s65, 0
      %s68 = sadd.s32 %s67, 1
      %s69 = scalar_select %p66, %s67, %s68
      %p72 = pneg %p66
      %p73 = scmp.eq.s32.totalorder %s10, 1
      %p74 = por %p72, %p73
      %p75 = scmp.ne.s32.totalorder %s67, %s70
      %p76 = scmp.eq.s32.totalorder %s10, 0
      %p77 = por %p75, %p76
      %p78 = scmp.ne.s32.totalorder %s67, %s70
      %p79 = scmp.eq.s32.totalorder %s15, 1
      %p80 = por %p78, %p79
      %p81 = scmp.ne.s32.totalorder %s70, %s71
      %p82 = scmp.eq.s32.totalorder %s15, 0
      %p83 = por %p81, %p82
      %p84 = scmp.ne.s32.totalorder %s70, %s71
      %p85 = scmp.eq.s32.totalorder %s16, 1
      %p86 = por %p84, %p85
      %p88 = scmp.ne.s32.totalorder %s71, %s87
      %p89 = scmp.eq.s32.totalorder %s16, 0
      %p90 = por %p88, %p89
      %s91 = ssub.s32 %s10, %s17
      %p92 = scmp.eq.s32.totalorder %s91, 0
      %s94 = sadd.s32 %s93, 1
      %s95 = scalar_select %p92, %s93, %s94
      %p98 = pneg %p92
      %p99 = scmp.eq.s32.totalorder %s10, 1
      %p100 = por %p98, %p99
      %p101 = scmp.ne.s32.totalorder %s93, %s96
      %p102 = scmp.eq.s32.totalorder %s10, 0
      %p103 = por %p101, %p102
      %p104 = scmp.ne.s32.totalorder %s93, %s96
      %p105 = scmp.eq.s32.totalorder %s15, 1
      %p106 = por %p104, %p105
      %p107 = scmp.ne.s32.totalorder %s96, %s97
      %p108 = scmp.eq.s32.totalorder %s15, 0
      %p109 = por %p107, %p108
      %p110 = scmp.ne.s32.totalorder %s96, %s97
      %p111 = scmp.eq.s32.totalorder %s16, 1
      %p112 = por %p110, %p111
      %p114 = scmp.ne.s32.totalorder %s97, %s113
      %p115 = scmp.eq.s32.totalorder %s16, 0
      %p116 = por %p114, %p115
      %p117 = scmp.le.s32.totalorder 1, %s10
      %p118 = scmp.lt.s32.totalorder %s10, 3
      %p119 = pnand %p117, %p118
      %p120 = pneg %p119
      // Predicated region
      $region9: #{_device_transform_batch.1} parent=5 // pred_check
        _
      $region10: #{_device_transform_batch.1} parent=5 // pred_check_branch
        %122 = sbr.rel (%p119) target = $region12
      $region11: #{_device_transform_batch.1} parent=5 // pred_region
        %s123 = ssub.s32 %s10, 1
        // Predicated region
        $region13: #{_device_transform_batch.1} parent=11 // pred_check
          %p124 = pneg %p31
        $region14: #{_device_transform_batch.1} parent=11 // pred_check_branch
          %126 = sbr.rel (%p124) target = $region16
        $region15: #{_device_transform_batch.1} parent=11 // pred_region
          %s128 = ssub.s32 32, 32
          %129 = vsyncadd [#allocation3], %s128
          %s131 = sshll.u32 %s0, 4
          %s132 = int_to_ptr.vmem [resolvable:$true] %s131
          %134 = dma.vmem_to_smem %s132, 32, [#allocation2], [#allocation3]
        $region16: #{_device_transform_batch.1} parent=11 // pred_fallthru
          _
      $region12: #{_device_transform_batch.1} parent=5 // pred_fallthru
        _
      %p135 = scmp.lt.s32.totalorder %s10, 2
      // Predicated region
      $region17: #{_device_transform_batch.1} parent=5 // pred_check
        %p136 = pneg %p135
      $region18: #{_device_transform_batch.1} parent=5 // pred_check_branch
        %138 = sbr.rel (%p136) target = $region20
      $region19: #{_device_transform_batch.1} parent=5 // pred_region
        // Predicated region
        $region21: #{_device_transform_batch.1} parent=19 // pred_check
          %p139 = pneg %p51
        $region22: #{_device_transform_batch.1} parent=19 // pred_check_branch
          %141 = sbr.rel (%p139) target = $region24
        $region23: #{_device_transform_batch.1} parent=19 // pred_region
          %p142 = scmp.lt.s32.totalorder %s10, 1
          %s143 = scalar_select %p142, %s10, 1
          %s144 = smul.addr %s143, 2
          %s145 = smul.addr %s144, 8
          %s146 = scalar_lea.vmem %s1, %s145
        $region24: #{_device_transform_batch.1} parent=19 // pred_fallthru
          _
        // Predicated region
        $region25: #{_device_transform_batch.1} parent=19 // pred_check
          %p147 = pneg %p77
        $region26: #{_device_transform_batch.1} parent=19 // pred_check_branch
          %149 = sbr.rel (%p147) target = $region28
        $region27: #{_device_transform_batch.1} parent=19 // pred_region
          %p150 = scmp.lt.s32.totalorder %s10, 1
          %s151 = scalar_select %p150, %s10, 1
          %s152 = smul.addr %s151, 2
          %s153 = smul.addr %s152, 8
          %s154 = scalar_lea.vmem %s2, %s153
        $region28: #{_device_transform_batch.1} parent=19 // pred_fallthru
          _
      $region20: #{_device_transform_batch.1} parent=5 // pred_fallthru
        _
      %p155 = scmp.le.s32.totalorder 1, %s10
      %p156 = scmp.lt.s32.totalorder %s10, 3
      %p157 = pnand %p155, %p156
      %p158 = pneg %p157
      // Predicated region
      $region29: #{_device_transform_batch.1} parent=5 // pred_check
        _
      $region30: #{_device_transform_batch.1} parent=5 // pred_check_branch
        %160 = sbr.rel (%p157) target = $region32
      $region31: #{_device_transform_batch.1} parent=5 // pred_region
        %s161 = ssub.s32 %s10, 1
        // Predicated region
        $region33: #{_device_transform_batch.1} parent=31 // pred_check
          %p162 = pneg %p31
        $region34: #{_device_transform_batch.1} parent=31 // pred_check_branch
          %164 = sbr.rel (%p162) target = $region36
        $region35: #{_device_transform_batch.1} parent=31 // pred_region
          %165 = dma.done [#allocation3], 32
        $region36: #{_device_transform_batch.1} parent=31 // pred_fallthru
          _
        %166 = sfence
        %p167 = pneg %p31
        %p168 = pneg %p28
        %p169 = scmp.lt.s32.totalorder %s15, 1
        %s170 = scalar_select %p169, %s15, 1
        %s171 = smul.addr %s170, 2
        %s172 = smul.addr %s171, 8
        %s173 = scalar_lea.vmem %s1, %s172
        %p174 = pneg %p57
        %p175 = pneg %p54
        %p176 = scmp.lt.s32.totalorder %s15, 1
        %s177 = scalar_select %p176, %s15, 1
        %s178 = smul.addr %s177, 2
        %s179 = smul.addr %s178, 8
        %s180 = scalar_lea.vmem %s2, %s179
        %p181 = pneg %p83
        %p182 = pneg %p80
        %p183 = pneg %p109
        %p184 = pneg %p106
        %p185 = scmp.lt.s32.totalorder %s15, 1
        %s186 = scalar_select %p185, %s15, 1
        %s187 = smul.addr %s186, 2
        %s188 = smul.addr %s187, 8
        %s189 = scalar_lea.vmem %s3, %s188
        %p190 = scmp.lt.s32.totalorder %s15, 1
        %s191 = scalar_select %p190, %s15, 1
        %s192 = smul.addr %s191, 2
        %s193 = smul.addr %s192, 8
        %s194 = scalar_lea.vmem %s1, %s193
        %p195 = scmp.lt.s32.totalorder %s15, 1
        %s196 = scalar_select %p195, %s15, 1
        %s197 = smul.addr %s196, 2
        %s198 = smul.addr %s197, 8
        %s199 = scalar_lea.vmem %s2, %s198
        %p200 = scmp.lt.s32.totalorder %s15, 1
        %s201 = scalar_select %p200, %s15, 1
        %s202 = smul.addr %s201, 2
        %s203 = smul.addr %s202, 8
        %s204 = scalar_lea.vmem %s3, %s203
        %s205 = smul.u32 %s15, 128
        %s206 = sld [smem:[#allocation2 + %s205]]
        %s207 = sadd.s32 %s205, 1
        %s208 = sld [smem:[#allocation2 + %s207]]
        %v209 = vld [vmem:[%s194] sm:$0xff]
        %v210 = vld [vmem:[%s194 + $0x8] sm:$0xff]
        %s211 = sadd.f32 %s206, 255.0
        %v212 = vstv %s211
        %v213 = vsub.f32 %v212, %v209
        %v214 = vsub.f32 %v212, %v210
        %v215 = vmax.f32 %v213, 0.0
        %v216 = vmax.f32 %v214, 0.0
        %v217 = vmin.f32 %v215, 255.0
        %v218 = vmin.f32 %v216, 255.0
        %v219 = vadd.f32 %v217, %v218
        %220 = vadd.xlane.f32.xlu0 %v219
        %v221 = vpop.xlane.xlu0 %220
        %v222 = vrcp.pop 256.0
        %v223 = vmul.f32 %v221, %v222
        %v224 = vstv %s208
        %v225 = vmul.f32 %v224, %v217
        %v226 = vmul.f32 %v224, %v218
        %s227 = ssub.f32 1.0, %s208
        %v228 = vstv %s227
        %v229 = vmul.f32 %v228, %v223
        %v230 = vadd.f32 %v225, %v229
        %v231 = vadd.f32 %v226, %v229
        %v232 = vmax.f32 %v230, 0.0
        %v233 = vmax.f32 %v231, 0.0
        %v234 = vmin.f32 %v232, 255.0
        %v235 = vmin.f32 %v233, 255.0
        %v236 = vld [vmem:[%s199] sm:$0xff]
        %v237 = vld [vmem:[%s199 + $0x8] sm:$0xff]
        %v238 = vadd.f32 %v234, %v236
        %v239 = vadd.f32 %v235, %v237
        %v240 = vadd.f32 %v238, %v239
        %241 = vadd.xlane.f32.xlu0 %v240
        %v242 = vpop.xlane.xlu0 %241
        %v243 = vrot.slane %v242, 4
        %v244 = vadd.f32 %v242, %v243
        %v245 = vrot.slane %v244, 2
        %v246 = vadd.f32 %v244, %v245
        %v247 = vrot.slane %v246, 1
        %v248 = vadd.f32 %v246, %v247
        %s249 = vtos %v248
        %v250 = vrcp.pop 2048.0
        %s251 = vtos %v250
        %s252 = smul.f32 %s249, %s251
        %v253 = vstv %s252
        %v254 = vsub.f32 %v238, %v253
        %v255 = vsub.f32 %v239, %v253
        %256 = vst [vmem:[%s204] sm:$0xff] %v254
        %257 = vst [vmem:[%s204 + $0x8] sm:$0xff] %v255
        %p258 = scmp.lt.s32.totalorder %s15, 1
        %s259 = scalar_select %p258, %s15, 1
        %s260 = smul.addr %s259, 2
        %s261 = smul.addr %s260, 8
        %s262 = scalar_lea.vmem %s3, %s261
        // Predicated region
        $region37: #{_device_transform_batch.1} parent=31 // pred_check
          %p263 = pneg %p106
        $region38: #{_device_transform_batch.1} parent=31 // pred_check_branch
          %265 = sbr.rel (%p263) target = $region40
        $region39: #{_device_transform_batch.1} parent=31 // pred_region
          _
        $region40: #{_device_transform_batch.1} parent=31 // pred_fallthru
          _
      $region32: #{_device_transform_batch.1} parent=5 // pred_fallthru
        _
      %p266 = scmp.le.s32.totalorder 2, %s10
      // Predicated region
      $region41: #{_device_transform_batch.1} parent=5 // pred_check
        %p267 = pneg %p266
      $region42: #{_device_transform_batch.1} parent=5 // pred_check_branch
        %269 = sbr.rel (%p267) target = $region44
      $region43: #{_device_transform_batch.1} parent=5 // pred_region
        %s270 = ssub.s32 %s10, 2
        // Predicated region
        $region45: #{_device_transform_batch.1} parent=43 // pred_check
          %p271 = pneg %p112
        $region46: #{_device_transform_batch.1} parent=43 // pred_check_branch
          %273 = sbr.rel (%p271) target = $region48
        $region47: #{_device_transform_batch.1} parent=43 // pred_region
          %p274 = scmp.lt.s32.totalorder %s16, 1
          %s275 = scalar_select %p274, %s16, 1
          %s276 = smul.addr %s275, 2
          %s277 = smul.addr %s276, 8
          %s278 = scalar_lea.vmem %s3, %s277
        $region48: #{_device_transform_batch.1} parent=43 // pred_fallthru
          _
      $region44: #{_device_transform_batch.1} parent=5 // pred_fallthru
        _
    $region6: #{_device_transform_batch.1} parent=1 // loop_footer
      %s14 = sadd.s32 1, %s10
    $region7: #{_device_transform_batch.1} parent=1 // loop_footer_branch
      %9 = sbr.rel target = $region3
    $region8: #{_device_transform_batch.1} parent=1 // loop_exit
      _
    %279 = vsyncpa [#allocation3], 1
    %s280 = scalar_lea.sflag [#allocation3], 1
    %281 = vsyncpa %s280, 1

// kernel: reverse.1
$region0: #{reverse.1}
  %s0 = inlined_call_operand.vmem [shape: s8[2,16,16,8], index: 0, kind: input, shape index: {}]
  %s1 = inlined_call_operand.vmem [shape: s8[2,16,16,8], index: 1, kind: output, shape index: {}]
  %v2 = vlaneseq
  %v3 = vsub.s32 7, %v2
  %4 = vset.pattern.permute.xlu0 %v3
  $region1: #{reverse.1} parent=0
    #allocation0 [shape = 'u8[524288]{0}', space=vmem, size = 0x80000, scoped, tag = 'operand span for operand 0']
    #allocation1 [shape = 'u8[131072]{0}', space=vmem, size = 0x20000, scoped, tag = 'packed  for operand 0']
    #allocation2 [shape = 'u8[524288]{0}', space=vmem, size = 0x80000, scoped, tag = 'operand span for operand 1']
    #allocation3 [shape = 'u8[131072]{0}', space=vmem, size = 0x20000, scoped, tag = 'packed  for operand 1']
    loop: start=0, step=1, limit=4
    $region2: #{reverse.1} parent=1 // loop_pre_header
      _
    $region3: #{reverse.1} parent=1 // loop_header
      %s6 = sphi 0, %s10
      %p7 = scmp.ge.s32.totalorder %s6, 4
      %s13 = sphi 0, %s39
      %s14 = sphi 0, %s35
      %s15 = sphi 0, %s31
      %s16 = sphi 0, %s27
      %s17 = sphi 0, %s13
      %s18 = sphi 0, %s14
      %s19 = sphi 0, %s15
      %s20 = sphi 0, %s16
      %s21 = sphi 0, %s17
      %s22 = sphi 0, %s18
      %s23 = sphi 0, %s19
      %s24 = sphi 0, %s20
    $region4: #{reverse.1} parent=1 // loop_header_branch
      %9 = sbr.rel (%p7) target = $region8
    $region5: #{reverse.1} parent=1 // loop_body
      %s11 = ssub.s32 %s6, 1
      %s12 = ssub.s32 %s6, 2
      %s25 = sadd.s32 1, %s16
      %p26 = scmp.ge.s32.totalorder %s25, 1
      %s27 = scalar_select %p26, 0, %s25
      %s28 = sadd.s32 1, %s15
      %s29 = scalar_select %p26, %s28, %s15
      %p30 = scmp.ge.s32.totalorder %s29, 1
      %s31 = scalar_select %p30, 0, %s29
      %s32 = sadd.s32 1, %s14
      %s33 = scalar_select %p30, %s32, %s14
      %p34 = scmp.ge.s32.totalorder %s33, 2
      %s35 = scalar_select %p34, 0, %s33
      %s36 = sadd.s32 1, %s13
      %s37 = scalar_select %p34, %s36, %s13
      %p38 = scmp.ge.s32.totalorder %s37, 1
      %s39 = scalar_select %p38, 0, %s37
      %p40 = scmp.le.s32.totalorder 1, %s6
      %p41 = scmp.lt.s32.totalorder %s6, 3
      %p42 = pnand %p40, %p41
      %p43 = pneg %p42
      // Predicated region
      $region9: #{reverse.1} parent=5 // pred_check
        _
      $region10: #{reverse.1} parent=5 // pred_check_branch
        %45 = sbr.rel (%p42) target = $region12
      $region11: #{reverse.1} parent=5 // pred_region
        %s46 = ssub.s32 %s6, 1
      $region12: #{reverse.1} parent=5 // pred_fallthru
        _
      %p47 = scmp.lt.s32.totalorder %s6, 2
      // Predicated region
      $region13: #{reverse.1} parent=5 // pred_check
        %p48 = pneg %p47
      $region14: #{reverse.1} parent=5 // pred_check_branch
        %50 = sbr.rel (%p48) target = $region16
      $region15: #{reverse.1} parent=5 // pred_region
        %s51 = sand.u32 %s6, 1
        %s52 = sand.u32 %s6, 1
        %s53 = smul.addr %s52, 128
        %s54 = scalar_lea.vmem [#allocation1], %s53
        %s55 = ssub.s32 0, %s13
        %s56 = ssub.s32 1, %s14
        %s57 = ssub.s32 0, %s16
        %s58 = smul.u32 16, %s55
        %s59 = smul.u32 8, %s56
        %s60 = sadd.s32 %s57, %s15
        %s61 = sadd.s32 %s60, %s59
        %s62 = smul.addr %s58, 16
        %s63 = sadd.s32 %s61, %s62
        %s64 = scalar_lea.vmem %s0, %s63
        // Predicated region
        $region17: #{reverse.1} parent=15 // pred_check
          _
        $region18: #{reverse.1} parent=15 // pred_check_branch
          %66 = sbr.rel (0) target = $region20
        $region19: #{reverse.1} parent=15 // pred_region
          // Predicated region
          $region21: #{reverse.1} parent=19 // pred_check
            _
          $region22: #{reverse.1} parent=19 // pred_check_branch
            %68 = sbr.rel (0) target = $region24
          $region23: #{reverse.1} parent=19 // pred_region
            // Predicated region
            $region36: #{reverse.1} parent=23 // pred_check
              _
            $region37: #{reverse.1} parent=23 // pred_check_branch
              %113 = sbr.rel (0) target = $region39
            $region38: #{reverse.1} parent=23 // pred_region
              loop: start=0, step=1, limit=1
              $region40: #{reverse.1} parent=38 // loop_pre_header
                _
              $region41: #{reverse.1} parent=38 // loop_header
                %s115 = sphi 0, %s119
                %p116 = scmp.ge.s32.totalorder %s115, 1
                %s120 = sphi %s64, %s64
                %s121 = sphi %s54, %s54
              $region42: #{reverse.1} parent=38 // loop_header_branch
                %118 = sbr.rel (%p116) target = $region46
              $region43: #{reverse.1} parent=38 // loop_body
                %v122 = vld [vmem:[%s120] sm:$0xff]
                %123 = vst [vmem:[%s121] sm:$0xff] %v122
                %v124 = vld [vmem:[%s120 + $0x10] sm:$0xff]
                %125 = vst [vmem:[%s121 + $0x8] sm:$0xff] %v124
                %v126 = vld [vmem:[%s120 + $0x20] sm:$0xff]
                %127 = vst [vmem:[%s121 + $0x10] sm:$0xff] %v126
                %v128 = vld [vmem:[%s120 + $0x30] sm:$0xff]
                %129 = vst [vmem:[%s121 + $0x18] sm:$0xff] %v128
                %v130 = vld [vmem:[%s120 + $0x40] sm:$0xff]
                %131 = vst [vmem:[%s121 + $0x20] sm:$0xff] %v130
                %v132 = vld [vmem:[%s120 + $0x50] sm:$0xff]
                %133 = vst [vmem:[%s121 + $0x28] sm:$0xff] %v132
                %v134 = vld [vmem:[%s120 + $0x60] sm:$0xff]
                %135 = vst [vmem:[%s121 + $0x30] sm:$0xff] %v134
                %v136 = vld [vmem:[%s120 + $0x70] sm:$0xff]
                %137 = vst [vmem:[%s121 + $0x38] sm:$0xff] %v136
                %v138 = vld [vmem:[%s120 + $0x80] sm:$0xff]
                %139 = vst [vmem:[%s121 + $0x40] sm:$0xff] %v138
                %v140 = vld [vmem:[%s120 + $0x90] sm:$0xff]
                %141 = vst [vmem:[%s121 + $0x48] sm:$0xff] %v140
                %v142 = vld [vmem:[%s120 + $0xa0] sm:$0xff]
                %143 = vst [vmem:[%s121 + $0x50] sm:$0xff] %v142
                %v144 = vld [vmem:[%s120 + $0xb0] sm:$0xff]
                %145 = vst [vmem:[%s121 + $0x58] sm:$0xff] %v144
                %v146 = vld [vmem:[%s120 + $0xc0] sm:$0xff]
                %147 = vst [vmem:[%s121 + $0x60] sm:$0xff] %v146
                %v148 = vld [vmem:[%s120 + $0xd0] sm:$0xff]
                %149 = vst [vmem:[%s121 + $0x68] sm:$0xff] %v148
                %v150 = vld [vmem:[%s120 + $0xe0] sm:$0xff]
                %151 = vst [vmem:[%s121 + $0x70] sm:$0xff] %v150
                %v152 = vld [vmem:[%s120 + $0xf0] sm:$0xff]
                %153 = vst [vmem:[%s121 + $0x78] sm:$0xff] %v152
              $region44: #{reverse.1} parent=38 // loop_footer
                %s119 = sadd.s32 1, %s115
              $region45: #{reverse.1} parent=38 // loop_footer_branch
                %114 = sbr.rel target = $region41
              $region46: #{reverse.1} parent=38 // loop_exit
                _
            $region39: #{reverse.1} parent=23 // pred_fallthru
              _
            // Predicated region
            $region47: #{reverse.1} parent=23 // pred_check
              _
            $region48: #{reverse.1} parent=23 // pred_check_branch
              %155 = sbr.rel target = $region50
            $region49: #{reverse.1} parent=23 // pred_region
              _
            $region50: #{reverse.1} parent=23 // pred_fallthru
              _
          $region24: #{reverse.1} parent=19 // pred_fallthru
            _
          // Predicated region
          $region25: #{reverse.1} parent=19 // pred_check
            _
          $region26: #{reverse.1} parent=19 // pred_check_branch
            %70 = sbr.rel target = $region28
          $region27: #{reverse.1} parent=19 // pred_region
            loop: start=0, step=1, limit=1
            $region29: #{reverse.1} parent=27 // loop_pre_header
              _
            $region30: #{reverse.1} parent=27 // loop_header
              %s73 = sphi 0, %s77
              %p74 = scmp.ge.s32.totalorder %s73, 1
              %s78 = sphi %s64, %s64
              %s79 = sphi %s54, %s54
            $region31: #{reverse.1} parent=27 // loop_header_branch
              %76 = sbr.rel (%p74) target = $region35
            $region32: #{reverse.1} parent=27 // loop_body
              %v80 = vld [vmem:[%s78] sm:$0xff]
              %81 = vst [vmem:[%s79] sm:$0xff] %v80
              %v82 = vld [vmem:[%s78 + $0x10] sm:$0xff]
              %83 = vst [vmem:[%s79 + $0x8] sm:$0xff] %v82
              %v84 = vld [vmem:[%s78 + $0x20] sm:$0xff]
              %85 = vst [vmem:[%s79 + $0x10] sm:$0xff] %v84
              %v86 = vld [vmem:[%s78 + $0x30] sm:$0xff]
              %87 = vst [vmem:[%s79 + $0x18] sm:$0xff] %v86
              %v88 = vld [vmem:[%s78 + $0x40] sm:$0xff]
              %89 = vst [vmem:[%s79 + $0x20] sm:$0xff] %v88
              %v90 = vld [vmem:[%s78 + $0x50] sm:$0xff]
              %91 = vst [vmem:[%s79 + $0x28] sm:$0xff] %v90
              %v92 = vld [vmem:[%s78 + $0x60] sm:$0xff]
              %93 = vst [vmem:[%s79 + $0x30] sm:$0xff] %v92
              %v94 = vld [vmem:[%s78 + $0x70] sm:$0xff]
              %95 = vst [vmem:[%s79 + $0x38] sm:$0xff] %v94
              %v96 = vld [vmem:[%s78 + $0x80] sm:$0xff]
              %97 = vst [vmem:[%s79 + $0x40] sm:$0xff] %v96
              %v98 = vld [vmem:[%s78 + $0x90] sm:$0xff]
              %99 = vst [vmem:[%s79 + $0x48] sm:$0xff] %v98
              %v100 = vld [vmem:[%s78 + $0xa0] sm:$0xff]
              %101 = vst [vmem:[%s79 + $0x50] sm:$0xff] %v100
              %v102 = vld [vmem:[%s78 + $0xb0] sm:$0xff]
              %103 = vst [vmem:[%s79 + $0x58] sm:$0xff] %v102
              %v104 = vld [vmem:[%s78 + $0xc0] sm:$0xff]
              %105 = vst [vmem:[%s79 + $0x60] sm:$0xff] %v104
              %v106 = vld [vmem:[%s78 + $0xd0] sm:$0xff]
              %107 = vst [vmem:[%s79 + $0x68] sm:$0xff] %v106
              %v108 = vld [vmem:[%s78 + $0xe0] sm:$0xff]
              %109 = vst [vmem:[%s79 + $0x70] sm:$0xff] %v108
              %v110 = vld [vmem:[%s78 + $0xf0] sm:$0xff]
              %111 = vst [vmem:[%s79 + $0x78] sm:$0xff] %v110
            $region33: #{reverse.1} parent=27 // loop_footer
              %s77 = sadd.s32 1, %s73
            $region34: #{reverse.1} parent=27 // loop_footer_branch
              %72 = sbr.rel target = $region30
            $region35: #{reverse.1} parent=27 // loop_exit
              _
          $region28: #{reverse.1} parent=19 // pred_fallthru
            _
        $region20: #{reverse.1} parent=15 // pred_fallthru
          _
        %156 = vnop
      $region16: #{reverse.1} parent=5 // pred_fallthru
        _
      %p157 = scmp.le.s32.totalorder 1, %s6
      %p158 = scmp.lt.s32.totalorder %s6, 3
      %p159 = pnand %p157, %p158
      %p160 = pneg %p159
      // Predicated region
      $region51: #{reverse.1} parent=5 // pred_check
        _
      $region52: #{reverse.1} parent=5 // pred_check_branch
        %162 = sbr.rel (%p159) target = $region54
      $region53: #{reverse.1} parent=5 // pred_region
        %s163 = ssub.s32 %s6, 1
        %s164 = sand.u32 %s11, 1
        %s165 = sand.u32 %s11, 1
        %s166 = smul.addr %s165, 128
        %s167 = scalar_lea.vmem [#allocation1], %s166
        %s168 = sand.u32 %s11, 1
        %s169 = sand.u32 %s11, 1
        %s170 = smul.addr %s169, 128
        %s171 = scalar_lea.vmem [#allocation1], %s170
        %s172 = sand.u32 %s11, 1
        %s173 = sand.u32 %s11, 1
        %s174 = smul.addr %s173, 128
        %s175 = scalar_lea.vmem [#allocation3], %s174
        %s177 = smul.u32 1, 4
        %s178 = sshllo.u32 0, %s177
        %s179 = sand.u32 %s178, 15
        %p180 = scmp.ne.s32.totalorder %s179, 0
        %s181 = scalar_select %p180, 1, 0
        %s182 = sand.u32 %s178, 240
        %p183 = scmp.ne.s32.totalorder %s182, 0
        %s184 = scalar_select %p183, 2, 0
        %s185 = sor.u32 %s181, %s184
        %s186 = smul.addr 1, 127
        %s187 = scalar_lea.vmem %s171, %s186 [#allocation1]
        %v188 = vld [vmem:[%s187] sm:%s185]
        %v189 = vunpack.c.0.s8 %v188
        %v190 = vunpack.c.1.s8 %v188
        %v191 = vunpack.c.2.s8 %v188
        %v192 = vunpack.c.3.s8 %v188
        %s193 = scalar_lea.vmem [#allocation0], 1016
        %194 = vst [vmem:[%s193] sm:%s178] %v189
        %s195 = sand.u32 %s178, 15
        %p196 = scmp.ne.s32.totalorder %s195, 0
        %s197 = scalar_select %p196, 1, 0
        %s198 = sand.u32 %s178, 240
        %p199 = scmp.ne.s32.totalorder %s198, 0
        %s200 = scalar_select %p199, 2, 0
        %s201 = sor.u32 %s197, %s200
        %s202 = smul.addr 1, 126
        %s203 = scalar_lea.vmem %s171, %s202 [#allocation1]
        %v204 = vld [vmem:[%s203] sm:%s201]
        %v205 = vunpack.c.0.s8 %v204
        %v206 = vunpack.c.1.s8 %v204
        %v207 = vunpack.c.2.s8 %v204
        %v208 = vunpack.c.3.s8 %v204
        %s209 = scalar_lea.vmem [#allocation0], 1008
        %210 = vst [vmem:[%s209] sm:%s178] %v205
        %s211 = sand.u32 %s178, 15
        %p212 = scmp.ne.s32.totalorder %s211, 0
        %s213 = scalar_select %p212, 1, 0
        %s214 = sand.u32 %s178, 240
        %p215 = scmp.ne.s32.totalorder %s214, 0
        %s216 = scalar_select %p215, 2, 0
        %s217 = sor.u32 %s213, %s216
        %s218 = smul.addr 1, 125
        %s219 = scalar_lea.vmem %s171, %s218 [#allocation1]
        %v220 = vld [vmem:[%s219] sm:%s217]
        %v221 = vunpack.c.0.s8 %v220
        %v222 = vunpack.c.1.s8 %v220
        %v223 = vunpack.c.2.s8 %v220
        %v224 = vunpack.c.3.s8 %v220
        %s225 = scalar_lea.vmem [#allocation0], 1000
        %226 = vst [vmem:[%s225] sm:%s178] %v221
        %s227 = sand.u32 %s178, 15
        %p228 = scmp.ne.s32.totalorder %s227, 0
        %s229 = scalar_select %p228, 1, 0
        %s230 = sand.u32 %s178, 240
        %p231 = scmp.ne.s32.totalorder %s230, 0
        %s232 = scalar_select %p231, 2, 0
        %s233 = sor.u32 %s229, %s232
        %s234 = smul.addr 1, 124
        %s235 = scalar_lea.vmem %s171, %s234 [#allocation1]
        %v236 = vld [vmem:[%s235] sm:%s233]
        %v237 = vunpack.c.0.s8 %v236
        %v238 = vunpack.c.1.s8 %v236
        %v239 = vunpack.c.2.s8 %v236
        %v240 = vunpack.c.3.s8 %v236
        %s241 = scalar_lea.vmem [#allocation0], 992
        %242 = vst [vmem:[%s241] sm:%s178] %v237
        %s243 = sand.u32 %s178, 15
        %p244 = scmp.ne.s32.totalorder %s243, 0
        %s245 = scalar_select %p244, 1, 0
        %s246 = sand.u32 %s178, 240
        %p247 = scmp.ne.s32.totalorder %s246, 0
        %s248 = scalar_select %p247, 2, 0
        %s249 = sor.u32 %s245, %s248
        %s250 = smul.addr 1, 123
        %s251 = scalar_lea.vmem %s171, %s250 [#allocation1]
        %v252 = vld [vmem:[%s251] sm:%s249]
        %v253 = vunpack.c.0.s8 %v252
        %v254 = vunpack.c.1.s8 %v252
        %v255 = vunpack.c.2.s8 %v252
        %v256 = vunpack.c.3.s8 %v252
        %s257 = scalar_lea.vmem [#allocation0], 984
        %258 = vst [vmem:[%s257] sm:%s178] %v253
        %s259 = sand.u32 %s178, 15
        %p260 = scmp.ne.s32.totalorder %s259, 0
        %s261 = scalar_select %p260, 1, 0
        %s262 = sand.u32 %s178, 240
        %p263 = scmp.ne.s32.totalorder %s262, 0
        %s264 = scalar_select %p263, 2, 0
        %s265 = sor.u32 %s261, %s264
        %s266 = smul.addr 1, 122
        %s267 = scalar_lea.vmem %s171, %s266 [#allocation1]
        %v268 = vld [vmem:[%s267] sm:%s265]
        %v269 = vunpack.c.0.s8 %v268
        %v270 = vunpack.c.1.s8 %v268
        %v271 = vunpack.c.2.s8 %v268
        %v272 = vunpack.c.3.s8 %v268
        %s273 = scalar_lea.vmem [#allocation0], 976
        %274 = vst [vmem:[%s273] sm:%s178] %v269
        %s275 = sand.u32 %s178, 15
        %p276 = scmp.ne.s32.totalorder %s275, 0
        %s277 = scalar_select %p276, 1, 0
        %s278 = sand.u32 %s178, 240
        %p279 = scmp.ne.s32.totalorder %s278, 0
        %s280 = scalar_select %p279, 2, 0
        %s281 = sor.u32 %s277, %s280
        %s282 = smul.addr 1, 121
        %s283 = scalar_lea.vmem %s171, %s282 [#allocation1]
        %v284 = vld [vmem:[%s283] sm:%s281]
        %v285 = vunpack.c.0.s8 %v284
        %v286 = vunpack.c.1.s8 %v284
        %v287 = vunpack.c.2.s8 %v284
        %v288 = vunpack.c.3.s8 %v284
        %s289 = scalar_lea.vmem [#allocation0], 968
        %290 = vst [vmem:[%s289] sm:%s178] %v285
        %s291 = sand.u32 %s178, 15
        %p292 = scmp.ne.s32.totalorder %s291, 0
        %s293 = scalar_select %p292, 1, 0
        %s294 = sand.u32 %s178, 240
        %p295 = scmp.ne.s32.totalorder %s294, 0
        %s296 = scalar_select %p295, 2, 0
        %s297 = sor.u32 %s293, %s296
        %s298 = smul.addr 1, 120
        %s299 = scalar_lea.vmem %s171, %s298 [#allocation1]
        %v300 = vld [vmem:[%s299] sm:%s297]
        %v301 = vunpack.c.0.s8 %v300
        %v302 = vunpack.c.1.s8 %v300
        %v303 = vunpack.c.2.s8 %v300
        %v304 = vunpack.c.3.s8 %v300
        %s305 = scalar_lea.vmem [#allocation0], 960
        %306 = vst [vmem:[%s305] sm:%s178] %v301
        %s307 = sand.u32 %s178, 15
        %p308 = scmp.ne.s32.totalorder %s307, 0
        %s309 = scalar_select %p308, 1, 0
        %s310 = sand.u32 %s178, 240
        %p311 = scmp.ne.s32.totalorder %s310, 0
        %s312 = scalar_select %p311, 2, 0
        %s313 = sor.u32 %s309, %s312
        %s314 = smul.addr 1, 119
        %s315 = scalar_lea.vmem %s171, %s314 [#allocation1]
        %v316 = vld [vmem:[%s315] sm:%s313]
        %v317 = vunpack.c.0.s8 %v316
        %v318 = vunpack.c.1.s8 %v316
        %v319 = vunpack.c.2.s8 %v316
        %v320 = vunpack.c.3.s8 %v316
        %s321 = scalar_lea.vmem [#allocation0], 952
        %322 = vst [vmem:[%s321] sm:%s178] %v317
        %s323 = sand.u32 %s178, 15
        %p324 = scmp.ne.s32.totalorder %s323, 0
        %s325 = scalar_select %p324, 1, 0
        %s326 = sand.u32 %s178, 240
        %p327 = scmp.ne.s32.totalorder %s326, 0
        %s328 = scalar_select %p327, 2, 0
        %s329 = sor.u32 %s325, %s328
        %s330 = smul.addr 1, 118
        %s331 = scalar_lea.vmem %s171, %s330 [#allocation1]
        %v332 = vld [vmem:[%s331] sm:%s329]
        %v333 = vunpack.c.0.s8 %v332
        %v334 = vunpack.c.1.s8 %v332
        %v335 = vunpack.c.2.s8 %v332
        %v336 = vunpack.c.3.s8 %v332
        %s337 = scalar_lea.vmem [#allocation0], 944
        %338 = vst [vmem:[%s337] sm:%s178] %v333
        %s339 = sand.u32 %s178, 15
        %p340 = scmp.ne.s32.totalorder %s339, 0
        %s341 = scalar_select %p340, 1, 0
        %s342 = sand.u32 %s178, 240
        %p343 = scmp.ne.s32.totalorder %s342, 0
        %s344 = scalar_select %p343, 2, 0
        %s345 = sor.u32 %s341, %s344
        %s346 = smul.addr 1, 117
        %s347 = scalar_lea.vmem %s171, %s346 [#allocation1]
        %v348 = vld [vmem:[%s347] sm:%s345]
        %v349 = vunpack.c.0.s8 %v348
        %v350 = vunpack.c.1.s8 %v348
        %v351 = vunpack.c.2.s8 %v348
        %v352 = vunpack.c.3.s8 %v348
        %s353 = scalar_lea.vmem [#allocation0], 936
        %354 = vst [vmem:[%s353] sm:%s178] %v349
        %s355 = sand.u32 %s178, 15
        %p356 = scmp.ne.s32.totalorder %s355, 0
        %s357 = scalar_select %p356, 1, 0
        %s358 = sand.u32 %s178, 240
        %p359 = scmp.ne.s32.totalorder %s358, 0
        %s360 = scalar_select %p359, 2, 0
        %s361 = sor.u32 %s357, %s360
        %s362 = smul.addr 1, 116
        %s363 = scalar_lea.vmem %s171, %s362 [#allocation1]
        %v364 = vld [vmem:[%s363] sm:%s361]
        %v365 = vunpack.c.0.s8 %v364
        %v366 = vunpack.c.1.s8 %v364
        %v367 = vunpack.c.2.s8 %v364
        %v368 = vunpack.c.3.s8 %v364
        %s369 = scalar_lea.vmem [#allocation0], 928
        %370 = vst [vmem:[%s369] sm:%s178] %v365
        %s371 = sand.u32 %s178, 15
        %p372 = scmp.ne.s32.totalorder %s371, 0
        %s373 = scalar_select %p372, 1, 0
        %s374 = sand.u32 %s178, 240
        %p375 = scmp.ne.s32.totalorder %s374, 0
        %s376 = scalar_select %p375, 2, 0
        %s377 = sor.u32 %s373, %s376
        %s378 = smul.addr 1, 115
        %s379 = scalar_lea.vmem %s171, %s378 [#allocation1]
        %v380 = vld [vmem:[%s379] sm:%s377]
        %v381 = vunpack.c.0.s8 %v380
        %v382 = vunpack.c.1.s8 %v380
        %v383 = vunpack.c.2.s8 %v380
        %v384 = vunpack.c.3.s8 %v380
        %s385 = scalar_lea.vmem [#allocation0], 920
        %386 = vst [vmem:[%s385] sm:%s178] %v381
        %s387 = sand.u32 %s178, 15
        %p388 = scmp.ne.s32.totalorder %s387, 0
        %s389 = scalar_select %p388, 1, 0
        %s390 = sand.u32 %s178, 240
        %p391 = scmp.ne.s32.totalorder %s390, 0
        %s392 = scalar_select %p391, 2, 0
        %s393 = sor.u32 %s389, %s392
        %s394 = smul.addr 1, 114
        %s395 = scalar_lea.vmem %s171, %s394 [#allocation1]
        %v396 = vld [vmem:[%s395] sm:%s393]
        %v397 = vunpack.c.0.s8 %v396
        %v398 = vunpack.c.1.s8 %v396
        %v399 = vunpack.c.2.s8 %v396
        %v400 = vunpack.c.3.s8 %v396
        %s401 = scalar_lea.vmem [#allocation0], 912
        %402 = vst [vmem:[%s401] sm:%s178] %v397
        %s403 = sand.u32 %s178, 15
        %p404 = scmp.ne.s32.totalorder %s403, 0
        %s405 = scalar_select %p404, 1, 0
        %s406 = sand.u32 %s178, 240
        %p407 = scmp.ne.s32.totalorder %s406, 0
        %s408 = scalar_select %p407, 2, 0
        %s409 = sor.u32 %s405, %s408
        %s410 = smul.addr 1, 113
        %s411 = scalar_lea.vmem %s171, %s410 [#allocation1]
        %v412 = vld [vmem:[%s411] sm:%s409]
        %v413 = vunpack.c.0.s8 %v412
        %v414 = vunpack.c.1.s8 %v412
        %v415 = vunpack.c.2.s8 %v412
        %v416 = vunpack.c.3.s8 %v412
        %s417 = scalar_lea.vmem [#allocation0], 904
        %418 = vst [vmem:[%s417] sm:%s178] %v413
        %s419 = sand.u32 %s178, 15
        %p420 = scmp.ne.s32.totalorder %s419, 0
        %s421 = scalar_select %p420, 1, 0
        %s422 = sand.u32 %s178, 240
        %p423 = scmp.ne.s32.totalorder %s422, 0
        %s424 = scalar_select %p423, 2, 0
        %s425 = sor.u32 %s421, %s424
        %s426 = smul.addr 1, 112
        %s427 = scalar_lea.vmem %s171, %s426 [#allocation1]
        %v428 = vld [vmem:[%s427] sm:%s425]
        %v429 = vunpack.c.0.s8 %v428
        %v430 = vunpack.c.1.s8 %v428
        %v431 = vunpack.c.2.s8 %v428
        %v432 = vunpack.c.3.s8 %v428
        %s433 = scalar_lea.vmem [#allocation0], 896
        %434 = vst [vmem:[%s433] sm:%s178] %v429
        %s435 = sand.u32 %s178, 15
        %p436 = scmp.ne.s32.totalorder %s435, 0
        %s437 = scalar_select %p436, 1, 0
        %s438 = sand.u32 %s178, 240
        %p439 = scmp.ne.s32.totalorder %s438, 0
        %s440 = scalar_select %p439, 2, 0
        %s441 = sor.u32 %s437, %s440
        %s442 = smul.addr 1, 111
        %s443 = scalar_lea.vmem %s171, %s442 [#allocation1]
        %v444 = vld [vmem:[%s443] sm:%s441]
        %v445 = vunpack.c.0.s8 %v444
        %v446 = vunpack.c.1.s8 %v444
        %v447 = vunpack.c.2.s8 %v444
        %v448 = vunpack.c.3.s8 %v444
        %s449 = scalar_lea.vmem [#allocation0], 888
        %450 = vst [vmem:[%s449] sm:%s178] %v445
        %s451 = sand.u32 %s178, 15
        %p452 = scmp.ne.s32.totalorder %s451, 0
        %s453 = scalar_select %p452, 1, 0
        %s454 = sand.u32 %s178, 240
        %p455 = scmp.ne.s32.totalorder %s454, 0
        %s456 = scalar_select %p455, 2, 0
        %s457 = sor.u32 %s453, %s456
        %s458 = smul.addr 1, 110
        %s459 = scalar_lea.vmem %s171, %s458 [#allocation1]
        %v460 = vld [vmem:[%s459] sm:%s457]
        %v461 = vunpack.c.0.s8 %v460
        %v462 = vunpack.c.1.s8 %v460
        %v463 = vunpack.c.2.s8 %v460
        %v464 = vunpack.c.3.s8 %v460
        %s465 = scalar_lea.vmem [#allocation0], 880
        %466 = vst [vmem:[%s465] sm:%s178] %v461
        %s467 = sand.u32 %s178, 15
        %p468 = scmp.ne.s32.totalorder %s467, 0
        %s469 = scalar_select %p468, 1, 0
        %s470 = sand.u32 %s178, 240
        %p471 = scmp.ne.s32.totalorder %s470, 0
        %s472 = scalar_select %p471, 2, 0
        %s473 = sor.u32 %s469, %s472
        %s474 = smul.addr 1, 109
        %s475 = scalar_lea.vmem %s171, %s474 [#allocation1]
        %v476 = vld [vmem:[%s475] sm:%s473]
        %v477 = vunpack.c.0.s8 %v476
        %v478 = vunpack.c.1.s8 %v476
        %v479 = vunpack.c.2.s8 %v476
        %v480 = vunpack.c.3.s8 %v476
        %s481 = scalar_lea.vmem [#allocation0], 872
        %482 = vst [vmem:[%s481] sm:%s178] %v477
        %s483 = sand.u32 %s178, 15
        %p484 = scmp.ne.s32.totalorder %s483, 0
        %s485 = scalar_select %p484, 1, 0
        %s486 = sand.u32 %s178, 240
        %p487 = scmp.ne.s32.totalorder %s486, 0
        %s488 = scalar_select %p487, 2, 0
        %s489 = sor.u32 %s485, %s488
        %s490 = smul.addr 1, 108
        %s491 = scalar_lea.vmem %s171, %s490 [#allocation1]
        %v492 = vld [vmem:[%s491] sm:%s489]
        %v493 = vunpack.c.0.s8 %v492
        %v494 = vunpack.c.1.s8 %v492
        %v495 = vunpack.c.2.s8 %v492
        %v496 = vunpack.c.3.s8 %v492
        %s497 = scalar_lea.vmem [#allocation0], 864
        %498 = vst [vmem:[%s497] sm:%s178] %v493
        %s499 = sand.u32 %s178, 15
        %p500 = scmp.ne.s32.totalorder %s499, 0
        %s501 = scalar_select %p500, 1, 0
        %s502 = sand.u32 %s178, 240
        %p503 = scmp.ne.s32.totalorder %s502, 0
        %s504 = scalar_select %p503, 2, 0
        %s505 = sor.u32 %s501, %s504
        %s506 = smul.addr 1, 107
        %s507 = scalar_lea.vmem %s171, %s506 [#allocation1]
        %v508 = vld [vmem:[%s507] sm:%s505]
        %v509 = vunpack.c.0.s8 %v508
        %v510 = vunpack.c.1.s8 %v508
        %v511 = vunpack.c.2.s8 %v508
        %v512 = vunpack.c.3.s8 %v508
        %s513 = scalar_lea.vmem [#allocation0], 856
        %514 = vst [vmem:[%s513] sm:%s178] %v509
        %s515 = sand.u32 %s178, 15
        %p516 = scmp.ne.s32.totalorder %s515, 0
        %s517 = scalar_select %p516, 1, 0
        %s518 = sand.u32 %s178, 240
        %p519 = scmp.ne.s32.totalorder %s518, 0
        %s520 = scalar_select %p519, 2, 0
        %s521 = sor.u32 %s517, %s520
        %s522 = smul.addr 1, 106
        %s523 = scalar_lea.vmem %s171, %s522 [#allocation1]
        %v524 = vld [vmem:[%s523] sm:%s521]
        %v525 = vunpack.c.0.s8 %v524
        %v526 = vunpack.c.1.s8 %v524
        %v527 = vunpack.c.2.s8 %v524
        %v528 = vunpack.c.3.s8 %v524
        %s529 = scalar_lea.vmem [#allocation0], 848
        %530 = vst [vmem:[%s529] sm:%s178] %v525
        %s531 = sand.u32 %s178, 15
        %p532 = scmp.ne.s32.totalorder %s531, 0
        %s533 = scalar_select %p532, 1, 0
        %s534 = sand.u32 %s178, 240
        %p535 = scmp.ne.s32.totalorder %s534, 0
        %s536 = scalar_select %p535, 2, 0
        %s537 = sor.u32 %s533, %s536
        %s538 = smul.addr 1, 105
        %s539 = scalar_lea.vmem %s171, %s538 [#allocation1]
        %v540 = vld [vmem:[%s539] sm:%s537]
        %v541 = vunpack.c.0.s8 %v540
        %v542 = vunpack.c.1.s8 %v540
        %v543 = vunpack.c.2.s8 %v540
        %v544 = vunpack.c.3.s8 %v540
        %s545 = scalar_lea.vmem [#allocation0], 840
        %546 = vst [vmem:[%s545] sm:%s178] %v541
        %s547 = sand.u32 %s178, 15
        %p548 = scmp.ne.s32.totalorder %s547, 0
        %s549 = scalar_select %p548, 1, 0
        %s550 = sand.u32 %s178, 240
        %p551 = scmp.ne.s32.totalorder %s550, 0
        %s552 = scalar_select %p551, 2, 0
        %s553 = sor.u32 %s549, %s552
        %s554 = smul.addr 1, 104
        %s555 = scalar_lea.vmem %s171, %s554 [#allocation1]
        %v556 = vld [vmem:[%s555] sm:%s553]
        %v557 = vunpack.c.0.s8 %v556
        %v558 = vunpack.c.1.s8 %v556
        %v559 = vunpack.c.2.s8 %v556
        %v560 = vunpack.c.3.s8 %v556
        %s561 = scalar_lea.vmem [#allocation0], 832
        %562 = vst [vmem:[%s561] sm:%s178] %v557
        %s563 = sand.u32 %s178, 15
        %p564 = scmp.ne.s32.totalorder %s563, 0
        %s565 = scalar_select %p564, 1, 0
        %s566 = sand.u32 %s178, 240
        %p567 = scmp.ne.s32.totalorder %s566, 0
        %s568 = scalar_select %p567, 2, 0
        %s569 = sor.u32 %s565, %s568
        %s570 = smul.addr 1, 103
        %s571 = scalar_lea.vmem %s171, %s570 [#allocation1]
        %v572 = vld [vmem:[%s571] sm:%s569]
        %v573 = vunpack.c.0.s8 %v572
        %v574 = vunpack.c.1.s8 %v572
        %v575 = vunpack.c.2.s8 %v572
        %v576 = vunpack.c.3.s8 %v572
        %s577 = scalar_lea.vmem [#allocation0], 824
        %578 = vst [vmem:[%s577] sm:%s178] %v573
        %s579 = sand.u32 %s178, 15
        %p580 = scmp.ne.s32.totalorder %s579, 0
        %s581 = scalar_select %p580, 1, 0
        %s582 = sand.u32 %s178, 240
        %p583 = scmp.ne.s32.totalorder %s582, 0
        %s584 = scalar_select %p583, 2, 0
        %s585 = sor.u32 %s581, %s584
        %s586 = smul.addr 1, 102
        %s587 = scalar_lea.vmem %s171, %s586 [#allocation1]
        %v588 = vld [vmem:[%s587] sm:%s585]
        %v589 = vunpack.c.0.s8 %v588
        %v590 = vunpack.c.1.s8 %v588
        %v591 = vunpack.c.2.s8 %v588
        %v592 = vunpack.c.3.s8 %v588
        %s593 = scalar_lea.vmem [#allocation0], 816
        %594 = vst [vmem:[%s593] sm:%s178] %v589
        %s595 = sand.u32 %s178, 15
        %p596 = scmp.ne.s32.totalorder %s595, 0
        %s597 = scalar_select %p596, 1, 0
        %s598 = sand.u32 %s178, 240
        %p599 = scmp.ne.s32.totalorder %s598, 0
        %s600 = scalar_select %p599, 2, 0
        %s601 = sor.u32 %s597, %s600
        %s602 = smul.addr 1, 101
        %s603 = scalar_lea.vmem %s171, %s602 [#allocation1]
        %v604 = vld [vmem:[%s603] sm:%s601]
        %v605 = vunpack.c.0.s8 %v604
        %v606 = vunpack.c.1.s8 %v604
        %v607 = vunpack.c.2.s8 %v604
        %v608 = vunpack.c.3.s8 %v604
        %s609 = scalar_lea.vmem [#allocation0], 808
        %610 = vst [vmem:[%s609] sm:%s178] %v605
        %s611 = sand.u32 %s178, 15
        %p612 = scmp.ne.s32.totalorder %s611, 0
        %s613 = scalar_select %p612, 1, 0
        %s614 = sand.u32 %s178, 240
        %p615 = scmp.ne.s32.totalorder %s614, 0
        %s616 = scalar_select %p615, 2, 0
        %s617 = sor.u32 %s613, %s616
        %s618 = smul.addr 1, 100
        %s619 = scalar_lea.vmem %s171, %s618 [#allocation1]
        %v620 = vld [vmem:[%s619] sm:%s617]
        %v621 = vunpack.c.0.s8 %v620
        %v622 = vunpack.c.1.s8 %v620
        %v623 = vunpack.c.2.s8 %v620
        %v624 = vunpack.c.3.s8 %v620
        %s625 = scalar_lea.vmem [#allocation0], 800
        %626 = vst [vmem:[%s625] sm:%s178] %v621
        %s627 = sand.u32 %s178, 15
        %p628 = scmp.ne.s32.totalorder %s627, 0
        %s629 = scalar_select %p628, 1, 0
        %s630 = sand.u32 %s178, 240
        %p631 = scmp.ne.s32.totalorder %s630, 0
        %s632 = scalar_select %p631, 2, 0
        %s633 = sor.u32 %s629, %s632
        %s634 = smul.addr 1, 99
        %s635 = scalar_lea.vmem %s171, %s634 [#allocation1]
        %v636 = vld [vmem:[%s635] sm:%s633]
        %v637 = vunpack.c.0.s8 %v636
        %v638 = vunpack.c.1.s8 %v636
        %v639 = vunpack.c.2.s8 %v636
        %v640 = vunpack.c.3.s8 %v636
        %s641 = scalar_lea.vmem [#allocation0], 792
        %642 = vst [vmem:[%s641] sm:%s178] %v637
        %s643 = sand.u32 %s178, 15
        %p644 = scmp.ne.s32.totalorder %s643, 0
        %s645 = scalar_select %p644, 1, 0
        %s646 = sand.u32 %s178, 240
        %p647 = scmp.ne.s32.totalorder %s646, 0
        %s648 = scalar_select %p647, 2, 0
        %s649 = sor.u32 %s645, %s648
        %s650 = smul.addr 1, 98
        %s651 = scalar_lea.vmem %s171, %s650 [#allocation1]
        %v652 = vld [vmem:[%s651] sm:%s649]
        %v653 = vunpack.c.0.s8 %v652
        %v654 = vunpack.c.1.s8 %v652
        %v655 = vunpack.c.2.s8 %v652
        %v656 = vunpack.c.3.s8 %v652
        %s657 = scalar_lea.vmem [#allocation0], 784
        %658 = vst [vmem:[%s657] sm:%s178] %v653
        %s659 = sand.u32 %s178, 15
        %p660 = scmp.ne.s32.totalorder %s659, 0
        %s661 = scalar_select %p660, 1, 0
        %s662 = sand.u32 %s178, 240
        %p663 = scmp.ne.s32.totalorder %s662, 0
        %s664 = scalar_select %p663, 2, 0
        %s665 = sor.u32 %s661, %s664
        %s666 = smul.addr 1, 97
        %s667 = scalar_lea.vmem %s171, %s666 [#allocation1]
        %v668 = vld [vmem:[%s667] sm:%s665]
        %v669 = vunpack.c.0.s8 %v668
        %v670 = vunpack.c.1.s8 %v668
        %v671 = vunpack.c.2.s8 %v668
        %v672 = vunpack.c.3.s8 %v668
        %s673 = scalar_lea.vmem [#allocation0], 776
        %674 = vst [vmem:[%s673] sm:%s178] %v669
        %s675 = sand.u32 %s178, 15
        %p676 = scmp.ne.s32.totalorder %s675, 0
        %s677 = scalar_select %p676, 1, 0
        %s678 = sand.u32 %s178, 240
        %p679 = scmp.ne.s32.totalorder %s678, 0
        %s680 = scalar_select %p679, 2, 0
        %s681 = sor.u32 %s677, %s680
        %s682 = smul.addr 1, 96
        %s683 = scalar_lea.vmem %s171, %s682 [#allocation1]
        %v684 = vld [vmem:[%s683] sm:%s681]
        %v685 = vunpack.c.0.s8 %v684
        %v686 = vunpack.c.1.s8 %v684
        %v687 = vunpack.c.2.s8 %v684
        %v688 = vunpack.c.3.s8 %v684
        %s689 = scalar_lea.vmem [#allocation0], 768
        %690 = vst [vmem:[%s689] sm:%s178] %v685
        %s691 = sand.u32 %s178, 15
        %p692 = scmp.ne.s32.totalorder %s691, 0
        %s693 = scalar_select %p692, 1, 0
        %s694 = sand.u32 %s178, 240
        %p695 = scmp.ne.s32.totalorder %s694, 0
        %s696 = scalar_select %p695, 2, 0
        %s697 = sor.u32 %s693, %s696
        %s698 = smul.addr 1, 95
        %s699 = scalar_lea.vmem %s171, %s698 [#allocation1]
        %v700 = vld [vmem:[%s699] sm:%s697]
        %v701 = vunpack.c.0.s8 %v700
        %v702 = vunpack.c.1.s8 %v700
        %v703 = vunpack.c.2.s8 %v700
        %v704 = vunpack.c.3.s8 %v700
        %s705 = scalar_lea.vmem [#allocation0], 760
        %706 = vst [vmem:[%s705] sm:%s178] %v701
        %s707 = sand.u32 %s178, 15
        %p708 = scmp.ne.s32.totalorder %s707, 0
        %s709 = scalar_select %p708, 1, 0
        %s710 = sand.u32 %s178, 240
        %p711 = scmp.ne.s32.totalorder %s710, 0
        %s712 = scalar_select %p711, 2, 0
        %s713 = sor.u32 %s709, %s712
        %s714 = smul.addr 1, 94
        %s715 = scalar_lea.vmem %s171, %s714 [#allocation1]
        %v716 = vld [vmem:[%s715] sm:%s713]
        %v717 = vunpack.c.0.s8 %v716
        %v718 = vunpack.c.1.s8 %v716
        %v719 = vunpack.c.2.s8 %v716
        %v720 = vunpack.c.3.s8 %v716
        %s721 = scalar_lea.vmem [#allocation0], 752
        %722 = vst [vmem:[%s721] sm:%s178] %v717
        %s723 = sand.u32 %s178, 15
        %p724 = scmp.ne.s32.totalorder %s723, 0
        %s725 = scalar_select %p724, 1, 0
        %s726 = sand.u32 %s178, 240
        %p727 = scmp.ne.s32.totalorder %s726, 0
        %s728 = scalar_select %p727, 2, 0
        %s729 = sor.u32 %s725, %s728
        %s730 = smul.addr 1, 93
        %s731 = scalar_lea.vmem %s171, %s730 [#allocation1]
        %v732 = vld [vmem:[%s731] sm:%s729]
        %v733 = vunpack.c.0.s8 %v732
        %v734 = vunpack.c.1.s8 %v732
        %v735 = vunpack.c.2.s8 %v732
        %v736 = vunpack.c.3.s8 %v732
        %s737 = scalar_lea.vmem [#allocation0], 744
        %738 = vst [vmem:[%s737] sm:%s178] %v733
        %s739 = sand.u32 %s178, 15
        %p740 = scmp.ne.s32.totalorder %s739, 0
        %s741 = scalar_select %p740, 1, 0
        %s742 = sand.u32 %s178, 240
        %p743 = scmp.ne.s32.totalorder %s742, 0
        %s744 = scalar_select %p743, 2, 0
        %s745 = sor.u32 %s741, %s744
        %s746 = smul.addr 1, 92
        %s747 = scalar_lea.vmem %s171, %s746 [#allocation1]
        %v748 = vld [vmem:[%s747] sm:%s745]
        %v749 = vunpack.c.0.s8 %v748
        %v750 = vunpack.c.1.s8 %v748
        %v751 = vunpack.c.2.s8 %v748
        %v752 = vunpack.c.3.s8 %v748
        %s753 = scalar_lea.vmem [#allocation0], 736
        %754 = vst [vmem:[%s753] sm:%s178] %v749
        %s755 = sand.u32 %s178, 15
        %p756 = scmp.ne.s32.totalorder %s755, 0
        %s757 = scalar_select %p756, 1, 0
        %s758 = sand.u32 %s178, 240
        %p759 = scmp.ne.s32.totalorder %s758, 0
        %s760 = scalar_select %p759, 2, 0
        %s761 = sor.u32 %s757, %s760
        %s762 = smul.addr 1, 91
        %s763 = scalar_lea.vmem %s171, %s762 [#allocation1]
        %v764 = vld [vmem:[%s763] sm:%s761]
        %v765 = vunpack.c.0.s8 %v764
        %v766 = vunpack.c.1.s8 %v764
        %v767 = vunpack.c.2.s8 %v764
        %v768 = vunpack.c.3.s8 %v764
        %s769 = scalar_lea.vmem [#allocation0], 728
        %770 = vst [vmem:[%s769] sm:%s178] %v765
        %s771 = sand.u32 %s178, 15
        %p772 = scmp.ne.s32.totalorder %s771, 0
        %s773 = scalar_select %p772, 1, 0
        %s774 = sand.u32 %s178, 240
        %p775 = scmp.ne.s32.totalorder %s774, 0
        %s776 = scalar_select %p775, 2, 0
        %s777 = sor.u32 %s773, %s776
        %s778 = smul.addr 1, 90
        %s779 = scalar_lea.vmem %s171, %s778 [#allocation1]
        %v780 = vld [vmem:[%s779] sm:%s777]
        %v781 = vunpack.c.0.s8 %v780
        %v782 = vunpack.c.1.s8 %v780
        %v783 = vunpack.c.2.s8 %v780
        %v784 = vunpack.c.3.s8 %v780
        %s785 = scalar_lea.vmem [#allocation0], 720
        %786 = vst [vmem:[%s785] sm:%s178] %v781
        %s787 = sand.u32 %s178, 15
        %p788 = scmp.ne.s32.totalorder %s787, 0
        %s789 = scalar_select %p788, 1, 0
        %s790 = sand.u32 %s178, 240
        %p791 = scmp.ne.s32.totalorder %s790, 0
        %s792 = scalar_select %p791, 2, 0
        %s793 = sor.u32 %s789, %s792
        %s794 = smul.addr 1, 89
        %s795 = scalar_lea.vmem %s171, %s794 [#allocation1]
        %v796 = vld [vmem:[%s795] sm:%s793]
        %v797 = vunpack.c.0.s8 %v796
        %v798 = vunpack.c.1.s8 %v796
        %v799 = vunpack.c.2.s8 %v796
        %v800 = vunpack.c.3.s8 %v796
        %s801 = scalar_lea.vmem [#allocation0], 712
        %802 = vst [vmem:[%s801] sm:%s178] %v797
        %s803 = sand.u32 %s178, 15
        %p804 = scmp.ne.s32.totalorder %s803, 0
        %s805 = scalar_select %p804, 1, 0
        %s806 = sand.u32 %s178, 240
        %p807 = scmp.ne.s32.totalorder %s806, 0
        %s808 = scalar_select %p807, 2, 0
        %s809 = sor.u32 %s805, %s808
        %s810 = smul.addr 1, 88
        %s811 = scalar_lea.vmem %s171, %s810 [#allocation1]
        %v812 = vld [vmem:[%s811] sm:%s809]
        %v813 = vunpack.c.0.s8 %v812
        %v814 = vunpack.c.1.s8 %v812
        %v815 = vunpack.c.2.s8 %v812
        %v816 = vunpack.c.3.s8 %v812
        %s817 = scalar_lea.vmem [#allocation0], 704
        %818 = vst [vmem:[%s817] sm:%s178] %v813
        %s819 = sand.u32 %s178, 15
        %p820 = scmp.ne.s32.totalorder %s819, 0
        %s821 = scalar_select %p820, 1, 0
        %s822 = sand.u32 %s178, 240
        %p823 = scmp.ne.s32.totalorder %s822, 0
        %s824 = scalar_select %p823, 2, 0
        %s825 = sor.u32 %s821, %s824
        %s826 = smul.addr 1, 87
        %s827 = scalar_lea.vmem %s171, %s826 [#allocation1]
        %v828 = vld [vmem:[%s827] sm:%s825]
        %v829 = vunpack.c.0.s8 %v828
        %v830 = vunpack.c.1.s8 %v828
        %v831 = vunpack.c.2.s8 %v828
        %v832 = vunpack.c.3.s8 %v828
        %s833 = scalar_lea.vmem [#allocation0], 696
        %834 = vst [vmem:[%s833] sm:%s178] %v829
        %s835 = sand.u32 %s178, 15
        %p836 = scmp.ne.s32.totalorder %s835, 0
        %s837 = scalar_select %p836, 1, 0
        %s838 = sand.u32 %s178, 240
        %p839 = scmp.ne.s32.totalorder %s838, 0
        %s840 = scalar_select %p839, 2, 0
        %s841 = sor.u32 %s837, %s840
        %s842 = smul.addr 1, 86
        %s843 = scalar_lea.vmem %s171, %s842 [#allocation1]
        %v844 = vld [vmem:[%s843] sm:%s841]
        %v845 = vunpack.c.0.s8 %v844
        %v846 = vunpack.c.1.s8 %v844
        %v847 = vunpack.c.2.s8 %v844
        %v848 = vunpack.c.3.s8 %v844
        %s849 = scalar_lea.vmem [#allocation0], 688
        %850 = vst [vmem:[%s849] sm:%s178] %v845
        %s851 = sand.u32 %s178, 15
        %p852 = scmp.ne.s32.totalorder %s851, 0
        %s853 = scalar_select %p852, 1, 0
        %s854 = sand.u32 %s178, 240
        %p855 = scmp.ne.s32.totalorder %s854, 0
        %s856 = scalar_select %p855, 2, 0
        %s857 = sor.u32 %s853, %s856
        %s858 = smul.addr 1, 85
        %s859 = scalar_lea.vmem %s171, %s858 [#allocation1]
        %v860 = vld [vmem:[%s859] sm:%s857]
        %v861 = vunpack.c.0.s8 %v860
        %v862 = vunpack.c.1.s8 %v860
        %v863 = vunpack.c.2.s8 %v860
        %v864 = vunpack.c.3.s8 %v860
        %s865 = scalar_lea.vmem [#allocation0], 680
        %866 = vst [vmem:[%s865] sm:%s178] %v861
        %s867 = sand.u32 %s178, 15
        %p868 = scmp.ne.s32.totalorder %s867, 0
        %s869 = scalar_select %p868, 1, 0
        %s870 = sand.u32 %s178, 240
        %p871 = scmp.ne.s32.totalorder %s870, 0
        %s872 = scalar_select %p871, 2, 0
        %s873 = sor.u32 %s869, %s872
        %s874 = smul.addr 1, 84
        %s875 = scalar_lea.vmem %s171, %s874 [#allocation1]
        %v876 = vld [vmem:[%s875] sm:%s873]
        %v877 = vunpack.c.0.s8 %v876
        %v878 = vunpack.c.1.s8 %v876
        %v879 = vunpack.c.2.s8 %v876
        %v880 = vunpack.c.3.s8 %v876
        %s881 = scalar_lea.vmem [#allocation0], 672
        %882 = vst [vmem:[%s881] sm:%s178] %v877
        %s883 = sand.u32 %s178, 15
        %p884 = scmp.ne.s32.totalorder %s883, 0
        %s885 = scalar_select %p884, 1, 0
        %s886 = sand.u32 %s178, 240
        %p887 = scmp.ne.s32.totalorder %s886, 0
        %s888 = scalar_select %p887, 2, 0
        %s889 = sor.u32 %s885, %s888
        %s890 = smul.addr 1, 83
        %s891 = scalar_lea.vmem %s171, %s890 [#allocation1]
        %v892 = vld [vmem:[%s891] sm:%s889]
        %v893 = vunpack.c.0.s8 %v892
        %v894 = vunpack.c.1.s8 %v892
        %v895 = vunpack.c.2.s8 %v892
        %v896 = vunpack.c.3.s8 %v892
        %s897 = scalar_lea.vmem [#allocation0], 664
        %898 = vst [vmem:[%s897] sm:%s178] %v893
        %s899 = sand.u32 %s178, 15
        %p900 = scmp.ne.s32.totalorder %s899, 0
        %s901 = scalar_select %p900, 1, 0
        %s902 = sand.u32 %s178, 240
        %p903 = scmp.ne.s32.totalorder %s902, 0
        %s904 = scalar_select %p903, 2, 0
        %s905 = sor.u32 %s901, %s904
        %s906 = smul.addr 1, 82
        %s907 = scalar_lea.vmem %s171, %s906 [#allocation1]
        %v908 = vld [vmem:[%s907] sm:%s905]
        %v909 = vunpack.c.0.s8 %v908
        %v910 = vunpack.c.1.s8 %v908
        %v911 = vunpack.c.2.s8 %v908
        %v912 = vunpack.c.3.s8 %v908
        %s913 = scalar_lea.vmem [#allocation0], 656
        %914 = vst [vmem:[%s913] sm:%s178] %v909
        %s915 = sand.u32 %s178, 15
        %p916 = scmp.ne.s32.totalorder %s915, 0
        %s917 = scalar_select %p916, 1, 0
        %s918 = sand.u32 %s178, 240
        %p919 = scmp.ne.s32.totalorder %s918, 0
        %s920 = scalar_select %p919, 2, 0
        %s921 = sor.u32 %s917, %s920
        %s922 = smul.addr 1, 81
        %s923 = scalar_lea.vmem %s171, %s922 [#allocation1]
        %v924 = vld [vmem:[%s923] sm:%s921]
        %v925 = vunpack.c.0.s8 %v924
        %v926 = vunpack.c.1.s8 %v924
        %v927 = vunpack.c.2.s8 %v924
        %v928 = vunpack.c.3.s8 %v924
        %s929 = scalar_lea.vmem [#allocation0], 648
        %930 = vst [vmem:[%s929] sm:%s178] %v925
        %s931 = sand.u32 %s178, 15
        %p932 = scmp.ne.s32.totalorder %s931, 0
        %s933 = scalar_select %p932, 1, 0
        %s934 = sand.u32 %s178, 240
        %p935 = scmp.ne.s32.totalorder %s934, 0
        %s936 = scalar_select %p935, 2, 0
        %s937 = sor.u32 %s933, %s936
        %s938 = smul.addr 1, 80
        %s939 = scalar_lea.vmem %s171, %s938 [#allocation1]
        %v940 = vld [vmem:[%s939] sm:%s937]
        %v941 = vunpack.c.0.s8 %v940
        %v942 = vunpack.c.1.s8 %v940
        %v943 = vunpack.c.2.s8 %v940
        %v944 = vunpack.c.3.s8 %v940
        %s945 = scalar_lea.vmem [#allocation0], 640
        %946 = vst [vmem:[%s945] sm:%s178] %v941
        %s947 = sand.u32 %s178, 15
        %p948 = scmp.ne.s32.totalorder %s947, 0
        %s949 = scalar_select %p948, 1, 0
        %s950 = sand.u32 %s178, 240
        %p951 = scmp.ne.s32.totalorder %s950, 0
        %s952 = scalar_select %p951, 2, 0
        %s953 = sor.u32 %s949, %s952
        %s954 = smul.addr 1, 79
        %s955 = scalar_lea.vmem %s171, %s954 [#allocation1]
        %v956 = vld [vmem:[%s955] sm:%s953]
        %v957 = vunpack.c.0.s8 %v956
        %v958 = vunpack.c.1.s8 %v956
        %v959 = vunpack.c.2.s8 %v956
        %v960 = vunpack.c.3.s8 %v956
        %s961 = scalar_lea.vmem [#allocation0], 632
        %962 = vst [vmem:[%s961] sm:%s178] %v957
        %s963 = sand.u32 %s178, 15
        %p964 = scmp.ne.s32.totalorder %s963, 0
        %s965 = scalar_select %p964, 1, 0
        %s966 = sand.u32 %s178, 240
        %p967 = scmp.ne.s32.totalorder %s966, 0
        %s968 = scalar_select %p967, 2, 0
        %s969 = sor.u32 %s965, %s968
        %s970 = smul.addr 1, 78
        %s971 = scalar_lea.vmem %s171, %s970 [#allocation1]
        %v972 = vld [vmem:[%s971] sm:%s969]
        %v973 = vunpack.c.0.s8 %v972
        %v974 = vunpack.c.1.s8 %v972
        %v975 = vunpack.c.2.s8 %v972
        %v976 = vunpack.c.3.s8 %v972
        %s977 = scalar_lea.vmem [#allocation0], 624
        %978 = vst [vmem:[%s977] sm:%s178] %v973
        %s979 = sand.u32 %s178, 15
        %p980 = scmp.ne.s32.totalorder %s979, 0
        %s981 = scalar_select %p980, 1, 0
        %s982 = sand.u32 %s178, 240
        %p983 = scmp.ne.s32.totalorder %s982, 0
        %s984 = scalar_select %p983, 2, 0
        %s985 = sor.u32 %s981, %s984
        %s986 = smul.addr 1, 77
        %s987 = scalar_lea.vmem %s171, %s986 [#allocation1]
        %v988 = vld [vmem:[%s987] sm:%s985]
        %v989 = vunpack.c.0.s8 %v988
        %v990 = vunpack.c.1.s8 %v988
        %v991 = vunpack.c.2.s8 %v988
        %v992 = vunpack.c.3.s8 %v988
        %s993 = scalar_lea.vmem [#allocation0], 616
        %994 = vst [vmem:[%s993] sm:%s178] %v989
        %s995 = sand.u32 %s178, 15
        %p996 = scmp.ne.s32.totalorder %s995, 0
        %s997 = scalar_select %p996, 1, 0
        %s998 = sand.u32 %s178, 240
        %p999 = scmp.ne.s32.totalorder %s998, 0
        %s1000 = scalar_select %p999, 2, 0
        %s1001 = sor.u32 %s997, %s1000
        %s1002 = smul.addr 1, 76
        %s1003 = scalar_lea.vmem %s171, %s1002 [#allocation1]
        %v1004 = vld [vmem:[%s1003] sm:%s1001]
        %v1005 = vunpack.c.0.s8 %v1004
        %v1006 = vunpack.c.1.s8 %v1004
        %v1007 = vunpack.c.2.s8 %v1004
        %v1008 = vunpack.c.3.s8 %v1004
        %s1009 = scalar_lea.vmem [#allocation0], 608
        %1010 = vst [vmem:[%s1009] sm:%s178] %v1005
        %s1011 = sand.u32 %s178, 15
        %p1012 = scmp.ne.s32.totalorder %s1011, 0
        %s1013 = scalar_select %p1012, 1, 0
        %s1014 = sand.u32 %s178, 240
        %p1015 = scmp.ne.s32.totalorder %s1014, 0
        %s1016 = scalar_select %p1015, 2, 0
        %s1017 = sor.u32 %s1013, %s1016
        %s1018 = smul.addr 1, 75
        %s1019 = scalar_lea.vmem %s171, %s1018 [#allocation1]
        %v1020 = vld [vmem:[%s1019] sm:%s1017]
        %v1021 = vunpack.c.0.s8 %v1020
        %v1022 = vunpack.c.1.s8 %v1020
        %v1023 = vunpack.c.2.s8 %v1020
        %v1024 = vunpack.c.3.s8 %v1020
        %s1025 = scalar_lea.vmem [#allocation0], 600
        %1026 = vst [vmem:[%s1025] sm:%s178] %v1021
        %s1027 = sand.u32 %s178, 15
        %p1028 = scmp.ne.s32.totalorder %s1027, 0
        %s1029 = scalar_select %p1028, 1, 0
        %s1030 = sand.u32 %s178, 240
        %p1031 = scmp.ne.s32.totalorder %s1030, 0
        %s1032 = scalar_select %p1031, 2, 0
        %s1033 = sor.u32 %s1029, %s1032
        %s1034 = smul.addr 1, 74
        %s1035 = scalar_lea.vmem %s171, %s1034 [#allocation1]
        %v1036 = vld [vmem:[%s1035] sm:%s1033]
        %v1037 = vunpack.c.0.s8 %v1036
        %v1038 = vunpack.c.1.s8 %v1036
        %v1039 = vunpack.c.2.s8 %v1036
        %v1040 = vunpack.c.3.s8 %v1036
        %s1041 = scalar_lea.vmem [#allocation0], 592
        %1042 = vst [vmem:[%s1041] sm:%s178] %v1037
        %s1043 = sand.u32 %s178, 15
        %p1044 = scmp.ne.s32.totalorder %s1043, 0
        %s1045 = scalar_select %p1044, 1, 0
        %s1046 = sand.u32 %s178, 240
        %p1047 = scmp.ne.s32.totalorder %s1046, 0
        %s1048 = scalar_select %p1047, 2, 0
        %s1049 = sor.u32 %s1045, %s1048
        %s1050 = smul.addr 1, 73
        %s1051 = scalar_lea.vmem %s171, %s1050 [#allocation1]
        %v1052 = vld [vmem:[%s1051] sm:%s1049]
        %v1053 = vunpack.c.0.s8 %v1052
        %v1054 = vunpack.c.1.s8 %v1052
        %v1055 = vunpack.c.2.s8 %v1052
        %v1056 = vunpack.c.3.s8 %v1052
        %s1057 = scalar_lea.vmem [#allocation0], 584
        %1058 = vst [vmem:[%s1057] sm:%s178] %v1053
        %s1059 = sand.u32 %s178, 15
        %p1060 = scmp.ne.s32.totalorder %s1059, 0
        %s1061 = scalar_select %p1060, 1, 0
        %s1062 = sand.u32 %s178, 240
        %p1063 = scmp.ne.s32.totalorder %s1062, 0
        %s1064 = scalar_select %p1063, 2, 0
        %s1065 = sor.u32 %s1061, %s1064
        %s1066 = smul.addr 1, 72
        %s1067 = scalar_lea.vmem %s171, %s1066 [#allocation1]
        %v1068 = vld [vmem:[%s1067] sm:%s1065]
        %v1069 = vunpack.c.0.s8 %v1068
        %v1070 = vunpack.c.1.s8 %v1068
        %v1071 = vunpack.c.2.s8 %v1068
        %v1072 = vunpack.c.3.s8 %v1068
        %s1073 = scalar_lea.vmem [#allocation0], 576
        %1074 = vst [vmem:[%s1073] sm:%s178] %v1069
        %s1075 = sand.u32 %s178, 15
        %p1076 = scmp.ne.s32.totalorder %s1075, 0
        %s1077 = scalar_select %p1076, 1, 0
        %s1078 = sand.u32 %s178, 240
        %p1079 = scmp.ne.s32.totalorder %s1078, 0
        %s1080 = scalar_select %p1079, 2, 0
        %s1081 = sor.u32 %s1077, %s1080
        %s1082 = smul.addr 1, 71
        %s1083 = scalar_lea.vmem %s171, %s1082 [#allocation1]
        %v1084 = vld [vmem:[%s1083] sm:%s1081]
        %v1085 = vunpack.c.0.s8 %v1084
        %v1086 = vunpack.c.1.s8 %v1084
        %v1087 = vunpack.c.2.s8 %v1084
        %v1088 = vunpack.c.3.s8 %v1084
        %s1089 = scalar_lea.vmem [#allocation0], 568
        %1090 = vst [vmem:[%s1089] sm:%s178] %v1085
        %s1091 = sand.u32 %s178, 15
        %p1092 = scmp.ne.s32.totalorder %s1091, 0
        %s1093 = scalar_select %p1092, 1, 0
        %s1094 = sand.u32 %s178, 240
        %p1095 = scmp.ne.s32.totalorder %s1094, 0
        %s1096 = scalar_select %p1095, 2, 0
        %s1097 = sor.u32 %s1093, %s1096
        %s1098 = smul.addr 1, 70
        %s1099 = scalar_lea.vmem %s171, %s1098 [#allocation1]
        %v1100 = vld [vmem:[%s1099] sm:%s1097]
        %v1101 = vunpack.c.0.s8 %v1100
        %v1102 = vunpack.c.1.s8 %v1100
        %v1103 = vunpack.c.2.s8 %v1100
        %v1104 = vunpack.c.3.s8 %v1100
        %s1105 = scalar_lea.vmem [#allocation0], 560
        %1106 = vst [vmem:[%s1105] sm:%s178] %v1101
        %s1107 = sand.u32 %s178, 15
        %p1108 = scmp.ne.s32.totalorder %s1107, 0
        %s1109 = scalar_select %p1108, 1, 0
        %s1110 = sand.u32 %s178, 240
        %p1111 = scmp.ne.s32.totalorder %s1110, 0
        %s1112 = scalar_select %p1111, 2, 0
        %s1113 = sor.u32 %s1109, %s1112
        %s1114 = smul.addr 1, 69
        %s1115 = scalar_lea.vmem %s171, %s1114 [#allocation1]
        %v1116 = vld [vmem:[%s1115] sm:%s1113]
        %v1117 = vunpack.c.0.s8 %v1116
        %v1118 = vunpack.c.1.s8 %v1116
        %v1119 = vunpack.c.2.s8 %v1116
        %v1120 = vunpack.c.3.s8 %v1116
        %s1121 = scalar_lea.vmem [#allocation0], 552
        %1122 = vst [vmem:[%s1121] sm:%s178] %v1117
        %s1123 = sand.u32 %s178, 15
        %p1124 = scmp.ne.s32.totalorder %s1123, 0
        %s1125 = scalar_select %p1124, 1, 0
        %s1126 = sand.u32 %s178, 240
        %p1127 = scmp.ne.s32.totalorder %s1126, 0
        %s1128 = scalar_select %p1127, 2, 0
        %s1129 = sor.u32 %s1125, %s1128
        %s1130 = smul.addr 1, 68
        %s1131 = scalar_lea.vmem %s171, %s1130 [#allocation1]
        %v1132 = vld [vmem:[%s1131] sm:%s1129]
        %v1133 = vunpack.c.0.s8 %v1132
        %v1134 = vunpack.c.1.s8 %v1132
        %v1135 = vunpack.c.2.s8 %v1132
        %v1136 = vunpack.c.3.s8 %v1132
        %s1137 = scalar_lea.vmem [#allocation0], 544
        %1138 = vst [vmem:[%s1137] sm:%s178] %v1133
        %s1139 = sand.u32 %s178, 15
        %p1140 = scmp.ne.s32.totalorder %s1139, 0
        %s1141 = scalar_select %p1140, 1, 0
        %s1142 = sand.u32 %s178, 240
        %p1143 = scmp.ne.s32.totalorder %s1142, 0
        %s1144 = scalar_select %p1143, 2, 0
        %s1145 = sor.u32 %s1141, %s1144
        %s1146 = smul.addr 1, 67
        %s1147 = scalar_lea.vmem %s171, %s1146 [#allocation1]
        %v1148 = vld [vmem:[%s1147] sm:%s1145]
        %v1149 = vunpack.c.0.s8 %v1148
        %v1150 = vunpack.c.1.s8 %v1148
        %v1151 = vunpack.c.2.s8 %v1148
        %v1152 = vunpack.c.3.s8 %v1148
        %s1153 = scalar_lea.vmem [#allocation0], 536
        %1154 = vst [vmem:[%s1153] sm:%s178] %v1149
        %s1155 = sand.u32 %s178, 15
        %p1156 = scmp.ne.s32.totalorder %s1155, 0
        %s1157 = scalar_select %p1156, 1, 0
        %s1158 = sand.u32 %s178, 240
        %p1159 = scmp.ne.s32.totalorder %s1158, 0
        %s1160 = scalar_select %p1159, 2, 0
        %s1161 = sor.u32 %s1157, %s1160
        %s1162 = smul.addr 1, 66
        %s1163 = scalar_lea.vmem %s171, %s1162 [#allocation1]
        %v1164 = vld [vmem:[%s1163] sm:%s1161]
        %v1165 = vunpack.c.0.s8 %v1164
        %v1166 = vunpack.c.1.s8 %v1164
        %v1167 = vunpack.c.2.s8 %v1164
        %v1168 = vunpack.c.3.s8 %v1164
        %s1169 = scalar_lea.vmem [#allocation0], 528
        %1170 = vst [vmem:[%s1169] sm:%s178] %v1165
        %s1171 = sand.u32 %s178, 15
        %p1172 = scmp.ne.s32.totalorder %s1171, 0
        %s1173 = scalar_select %p1172, 1, 0
        %s1174 = sand.u32 %s178, 240
        %p1175 = scmp.ne.s32.totalorder %s1174, 0
        %s1176 = scalar_select %p1175, 2, 0
        %s1177 = sor.u32 %s1173, %s1176
        %s1178 = smul.addr 1, 65
        %s1179 = scalar_lea.vmem %s171, %s1178 [#allocation1]
        %v1180 = vld [vmem:[%s1179] sm:%s1177]
        %v1181 = vunpack.c.0.s8 %v1180
        %v1182 = vunpack.c.1.s8 %v1180
        %v1183 = vunpack.c.2.s8 %v1180
        %v1184 = vunpack.c.3.s8 %v1180
        %s1185 = scalar_lea.vmem [#allocation0], 520
        %1186 = vst [vmem:[%s1185] sm:%s178] %v1181
        %s1187 = sand.u32 %s178, 15
        %p1188 = scmp.ne.s32.totalorder %s1187, 0
        %s1189 = scalar_select %p1188, 1, 0
        %s1190 = sand.u32 %s178, 240
        %p1191 = scmp.ne.s32.totalorder %s1190, 0
        %s1192 = scalar_select %p1191, 2, 0
        %s1193 = sor.u32 %s1189, %s1192
        %s1194 = smul.addr 1, 64
        %s1195 = scalar_lea.vmem %s171, %s1194 [#allocation1]
        %v1196 = vld [vmem:[%s1195] sm:%s1193]
        %v1197 = vunpack.c.0.s8 %v1196
        %v1198 = vunpack.c.1.s8 %v1196
        %v1199 = vunpack.c.2.s8 %v1196
        %v1200 = vunpack.c.3.s8 %v1196
        %s1201 = scalar_lea.vmem [#allocation0], 512
        %1202 = vst [vmem:[%s1201] sm:%s178] %v1197
        %s1203 = sand.u32 %s178, 15
        %p1204 = scmp.ne.s32.totalorder %s1203, 0
        %s1205 = scalar_select %p1204, 1, 0
        %s1206 = sand.u32 %s178, 240
        %p1207 = scmp.ne.s32.totalorder %s1206, 0
        %s1208 = scalar_select %p1207, 2, 0
        %s1209 = sor.u32 %s1205, %s1208
        %s1210 = smul.addr 1, 63
        %s1211 = scalar_lea.vmem %s171, %s1210 [#allocation1]
        %v1212 = vld [vmem:[%s1211] sm:%s1209]
        %v1213 = vunpack.c.0.s8 %v1212
        %v1214 = vunpack.c.1.s8 %v1212
        %v1215 = vunpack.c.2.s8 %v1212
        %v1216 = vunpack.c.3.s8 %v1212
        %s1217 = scalar_lea.vmem [#allocation0], 504
        %1218 = vst [vmem:[%s1217] sm:%s178] %v1213
        %s1219 = sand.u32 %s178, 15
        %p1220 = scmp.ne.s32.totalorder %s1219, 0
        %s1221 = scalar_select %p1220, 1, 0
        %s1222 = sand.u32 %s178, 240
        %p1223 = scmp.ne.s32.totalorder %s1222, 0
        %s1224 = scalar_select %p1223, 2, 0
        %s1225 = sor.u32 %s1221, %s1224
        %s1226 = smul.addr 1, 62
        %s1227 = scalar_lea.vmem %s171, %s1226 [#allocation1]
        %v1228 = vld [vmem:[%s1227] sm:%s1225]
        %v1229 = vunpack.c.0.s8 %v1228
        %v1230 = vunpack.c.1.s8 %v1228
        %v1231 = vunpack.c.2.s8 %v1228
        %v1232 = vunpack.c.3.s8 %v1228
        %s1233 = scalar_lea.vmem [#allocation0], 496
        %1234 = vst [vmem:[%s1233] sm:%s178] %v1229
        %s1235 = sand.u32 %s178, 15
        %p1236 = scmp.ne.s32.totalorder %s1235, 0
        %s1237 = scalar_select %p1236, 1, 0
        %s1238 = sand.u32 %s178, 240
        %p1239 = scmp.ne.s32.totalorder %s1238, 0
        %s1240 = scalar_select %p1239, 2, 0
        %s1241 = sor.u32 %s1237, %s1240
        %s1242 = smul.addr 1, 61
        %s1243 = scalar_lea.vmem %s171, %s1242 [#allocation1]
        %v1244 = vld [vmem:[%s1243] sm:%s1241]
        %v1245 = vunpack.c.0.s8 %v1244
        %v1246 = vunpack.c.1.s8 %v1244
        %v1247 = vunpack.c.2.s8 %v1244
        %v1248 = vunpack.c.3.s8 %v1244
        %s1249 = scalar_lea.vmem [#allocation0], 488
        %1250 = vst [vmem:[%s1249] sm:%s178] %v1245
        %s1251 = sand.u32 %s178, 15
        %p1252 = scmp.ne.s32.totalorder %s1251, 0
        %s1253 = scalar_select %p1252, 1, 0
        %s1254 = sand.u32 %s178, 240
        %p1255 = scmp.ne.s32.totalorder %s1254, 0
        %s1256 = scalar_select %p1255, 2, 0
        %s1257 = sor.u32 %s1253, %s1256
        %s1258 = smul.addr 1, 60
        %s1259 = scalar_lea.vmem %s171, %s1258 [#allocation1]
        %v1260 = vld [vmem:[%s1259] sm:%s1257]
        %v1261 = vunpack.c.0.s8 %v1260
        %v1262 = vunpack.c.1.s8 %v1260
        %v1263 = vunpack.c.2.s8 %v1260
        %v1264 = vunpack.c.3.s8 %v1260
        %s1265 = scalar_lea.vmem [#allocation0], 480
        %1266 = vst [vmem:[%s1265] sm:%s178] %v1261
        %s1267 = sand.u32 %s178, 15
        %p1268 = scmp.ne.s32.totalorder %s1267, 0
        %s1269 = scalar_select %p1268, 1, 0
        %s1270 = sand.u32 %s178, 240
        %p1271 = scmp.ne.s32.totalorder %s1270, 0
        %s1272 = scalar_select %p1271, 2, 0
        %s1273 = sor.u32 %s1269, %s1272
        %s1274 = smul.addr 1, 59
        %s1275 = scalar_lea.vmem %s171, %s1274 [#allocation1]
        %v1276 = vld [vmem:[%s1275] sm:%s1273]
        %v1277 = vunpack.c.0.s8 %v1276
        %v1278 = vunpack.c.1.s8 %v1276
        %v1279 = vunpack.c.2.s8 %v1276
        %v1280 = vunpack.c.3.s8 %v1276
        %s1281 = scalar_lea.vmem [#allocation0], 472
        %1282 = vst [vmem:[%s1281] sm:%s178] %v1277
        %s1283 = sand.u32 %s178, 15
        %p1284 = scmp.ne.s32.totalorder %s1283, 0
        %s1285 = scalar_select %p1284, 1, 0
        %s1286 = sand.u32 %s178, 240
        %p1287 = scmp.ne.s32.totalorder %s1286, 0
        %s1288 = scalar_select %p1287, 2, 0
        %s1289 = sor.u32 %s1285, %s1288
        %s1290 = smul.addr 1, 58
        %s1291 = scalar_lea.vmem %s171, %s1290 [#allocation1]
        %v1292 = vld [vmem:[%s1291] sm:%s1289]
        %v1293 = vunpack.c.0.s8 %v1292
        %v1294 = vunpack.c.1.s8 %v1292
        %v1295 = vunpack.c.2.s8 %v1292
        %v1296 = vunpack.c.3.s8 %v1292
        %s1297 = scalar_lea.vmem [#allocation0], 464
        %1298 = vst [vmem:[%s1297] sm:%s178] %v1293
        %s1299 = sand.u32 %s178, 15
        %p1300 = scmp.ne.s32.totalorder %s1299, 0
        %s1301 = scalar_select %p1300, 1, 0
        %s1302 = sand.u32 %s178, 240
        %p1303 = scmp.ne.s32.totalorder %s1302, 0
        %s1304 = scalar_select %p1303, 2, 0
        %s1305 = sor.u32 %s1301, %s1304
        %s1306 = smul.addr 1, 57
        %s1307 = scalar_lea.vmem %s171, %s1306 [#allocation1]
        %v1308 = vld [vmem:[%s1307] sm:%s1305]
        %v1309 = vunpack.c.0.s8 %v1308
        %v1310 = vunpack.c.1.s8 %v1308
        %v1311 = vunpack.c.2.s8 %v1308
        %v1312 = vunpack.c.3.s8 %v1308
        %s1313 = scalar_lea.vmem [#allocation0], 456
        %1314 = vst [vmem:[%s1313] sm:%s178] %v1309
        %s1315 = sand.u32 %s178, 15
        %p1316 = scmp.ne.s32.totalorder %s1315, 0
        %s1317 = scalar_select %p1316, 1, 0
        %s1318 = sand.u32 %s178, 240
        %p1319 = scmp.ne.s32.totalorder %s1318, 0
        %s1320 = scalar_select %p1319, 2, 0
        %s1321 = sor.u32 %s1317, %s1320
        %s1322 = smul.addr 1, 56
        %s1323 = scalar_lea.vmem %s171, %s1322 [#allocation1]
        %v1324 = vld [vmem:[%s1323] sm:%s1321]
        %v1325 = vunpack.c.0.s8 %v1324
        %v1326 = vunpack.c.1.s8 %v1324
        %v1327 = vunpack.c.2.s8 %v1324
        %v1328 = vunpack.c.3.s8 %v1324
        %s1329 = scalar_lea.vmem [#allocation0], 448
        %1330 = vst [vmem:[%s1329] sm:%s178] %v1325
        %s1331 = sand.u32 %s178, 15
        %p1332 = scmp.ne.s32.totalorder %s1331, 0
        %s1333 = scalar_select %p1332, 1, 0
        %s1334 = sand.u32 %s178, 240
        %p1335 = scmp.ne.s32.totalorder %s1334, 0
        %s1336 = scalar_select %p1335, 2, 0
        %s1337 = sor.u32 %s1333, %s1336
        %s1338 = smul.addr 1, 55
        %s1339 = scalar_lea.vmem %s171, %s1338 [#allocation1]
        %v1340 = vld [vmem:[%s1339] sm:%s1337]
        %v1341 = vunpack.c.0.s8 %v1340
        %v1342 = vunpack.c.1.s8 %v1340
        %v1343 = vunpack.c.2.s8 %v1340
        %v1344 = vunpack.c.3.s8 %v1340
        %s1345 = scalar_lea.vmem [#allocation0], 440
        %1346 = vst [vmem:[%s1345] sm:%s178] %v1341
        %s1347 = sand.u32 %s178, 15
        %p1348 = scmp.ne.s32.totalorder %s1347, 0
        %s1349 = scalar_select %p1348, 1, 0
        %s1350 = sand.u32 %s178, 240
        %p1351 = scmp.ne.s32.totalorder %s1350, 0
        %s1352 = scalar_select %p1351, 2, 0
        %s1353 = sor.u32 %s1349, %s1352
        %s1354 = smul.addr 1, 54
        %s1355 = scalar_lea.vmem %s171, %s1354 [#allocation1]
        %v1356 = vld [vmem:[%s1355] sm:%s1353]
        %v1357 = vunpack.c.0.s8 %v1356
        %v1358 = vunpack.c.1.s8 %v1356
        %v1359 = vunpack.c.2.s8 %v1356
        %v1360 = vunpack.c.3.s8 %v1356
        %s1361 = scalar_lea.vmem [#allocation0], 432
        %1362 = vst [vmem:[%s1361] sm:%s178] %v1357
        %s1363 = sand.u32 %s178, 15
        %p1364 = scmp.ne.s32.totalorder %s1363, 0
        %s1365 = scalar_select %p1364, 1, 0
        %s1366 = sand.u32 %s178, 240
        %p1367 = scmp.ne.s32.totalorder %s1366, 0
        %s1368 = scalar_select %p1367, 2, 0
        %s1369 = sor.u32 %s1365, %s1368
        %s1370 = smul.addr 1, 53
        %s1371 = scalar_lea.vmem %s171, %s1370 [#allocation1]
        %v1372 = vld [vmem:[%s1371] sm:%s1369]
        %v1373 = vunpack.c.0.s8 %v1372
        %v1374 = vunpack.c.1.s8 %v1372
        %v1375 = vunpack.c.2.s8 %v1372
        %v1376 = vunpack.c.3.s8 %v1372
        %s1377 = scalar_lea.vmem [#allocation0], 424
        %1378 = vst [vmem:[%s1377] sm:%s178] %v1373
        %s1379 = sand.u32 %s178, 15
        %p1380 = scmp.ne.s32.totalorder %s1379, 0
        %s1381 = scalar_select %p1380, 1, 0
        %s1382 = sand.u32 %s178, 240
        %p1383 = scmp.ne.s32.totalorder %s1382, 0
        %s1384 = scalar_select %p1383, 2, 0
        %s1385 = sor.u32 %s1381, %s1384
        %s1386 = smul.addr 1, 52
        %s1387 = scalar_lea.vmem %s171, %s1386 [#allocation1]
        %v1388 = vld [vmem:[%s1387] sm:%s1385]
        %v1389 = vunpack.c.0.s8 %v1388
        %v1390 = vunpack.c.1.s8 %v1388
        %v1391 = vunpack.c.2.s8 %v1388
        %v1392 = vunpack.c.3.s8 %v1388
        %s1393 = scalar_lea.vmem [#allocation0], 416
        %1394 = vst [vmem:[%s1393] sm:%s178] %v1389
        %s1395 = sand.u32 %s178, 15
        %p1396 = scmp.ne.s32.totalorder %s1395, 0
        %s1397 = scalar_select %p1396, 1, 0
        %s1398 = sand.u32 %s178, 240
        %p1399 = scmp.ne.s32.totalorder %s1398, 0
        %s1400 = scalar_select %p1399, 2, 0
        %s1401 = sor.u32 %s1397, %s1400
        %s1402 = smul.addr 1, 51
        %s1403 = scalar_lea.vmem %s171, %s1402 [#allocation1]
        %v1404 = vld [vmem:[%s1403] sm:%s1401]
        %v1405 = vunpack.c.0.s8 %v1404
        %v1406 = vunpack.c.1.s8 %v1404
        %v1407 = vunpack.c.2.s8 %v1404
        %v1408 = vunpack.c.3.s8 %v1404
        %s1409 = scalar_lea.vmem [#allocation0], 408
        %1410 = vst [vmem:[%s1409] sm:%s178] %v1405
        %s1411 = sand.u32 %s178, 15
        %p1412 = scmp.ne.s32.totalorder %s1411, 0
        %s1413 = scalar_select %p1412, 1, 0
        %s1414 = sand.u32 %s178, 240
        %p1415 = scmp.ne.s32.totalorder %s1414, 0
        %s1416 = scalar_select %p1415, 2, 0
        %s1417 = sor.u32 %s1413, %s1416
        %s1418 = smul.addr 1, 50
        %s1419 = scalar_lea.vmem %s171, %s1418 [#allocation1]
        %v1420 = vld [vmem:[%s1419] sm:%s1417]
        %v1421 = vunpack.c.0.s8 %v1420
        %v1422 = vunpack.c.1.s8 %v1420
        %v1423 = vunpack.c.2.s8 %v1420
        %v1424 = vunpack.c.3.s8 %v1420
        %s1425 = scalar_lea.vmem [#allocation0], 400
        %1426 = vst [vmem:[%s1425] sm:%s178] %v1421
        %s1427 = sand.u32 %s178, 15
        %p1428 = scmp.ne.s32.totalorder %s1427, 0
        %s1429 = scalar_select %p1428, 1, 0
        %s1430 = sand.u32 %s178, 240
        %p1431 = scmp.ne.s32.totalorder %s1430, 0
        %s1432 = scalar_select %p1431, 2, 0
        %s1433 = sor.u32 %s1429, %s1432
        %s1434 = smul.addr 1, 49
        %s1435 = scalar_lea.vmem %s171, %s1434 [#allocation1]
        %v1436 = vld [vmem:[%s1435] sm:%s1433]
        %v1437 = vunpack.c.0.s8 %v1436
        %v1438 = vunpack.c.1.s8 %v1436
        %v1439 = vunpack.c.2.s8 %v1436
        %v1440 = vunpack.c.3.s8 %v1436
        %s1441 = scalar_lea.vmem [#allocation0], 392
        %1442 = vst [vmem:[%s1441] sm:%s178] %v1437
        %s1443 = sand.u32 %s178, 15
        %p1444 = scmp.ne.s32.totalorder %s1443, 0
        %s1445 = scalar_select %p1444, 1, 0
        %s1446 = sand.u32 %s178, 240
        %p1447 = scmp.ne.s32.totalorder %s1446, 0
        %s1448 = scalar_select %p1447, 2, 0
        %s1449 = sor.u32 %s1445, %s1448
        %s1450 = smul.addr 1, 48
        %s1451 = scalar_lea.vmem %s171, %s1450 [#allocation1]
        %v1452 = vld [vmem:[%s1451] sm:%s1449]
        %v1453 = vunpack.c.0.s8 %v1452
        %v1454 = vunpack.c.1.s8 %v1452
        %v1455 = vunpack.c.2.s8 %v1452
        %v1456 = vunpack.c.3.s8 %v1452
        %s1457 = scalar_lea.vmem [#allocation0], 384
        %1458 = vst [vmem:[%s1457] sm:%s178] %v1453
        %s1459 = sand.u32 %s178, 15
        %p1460 = scmp.ne.s32.totalorder %s1459, 0
        %s1461 = scalar_select %p1460, 1, 0
        %s1462 = sand.u32 %s178, 240
        %p1463 = scmp.ne.s32.totalorder %s1462, 0
        %s1464 = scalar_select %p1463, 2, 0
        %s1465 = sor.u32 %s1461, %s1464
        %s1466 = smul.addr 1, 47
        %s1467 = scalar_lea.vmem %s171, %s1466 [#allocation1]
        %v1468 = vld [vmem:[%s1467] sm:%s1465]
        %v1469 = vunpack.c.0.s8 %v1468
        %v1470 = vunpack.c.1.s8 %v1468
        %v1471 = vunpack.c.2.s8 %v1468
        %v1472 = vunpack.c.3.s8 %v1468
        %s1473 = scalar_lea.vmem [#allocation0], 376
        %1474 = vst [vmem:[%s1473] sm:%s178] %v1469
        %s1475 = sand.u32 %s178, 15
        %p1476 = scmp.ne.s32.totalorder %s1475, 0
        %s1477 = scalar_select %p1476, 1, 0
        %s1478 = sand.u32 %s178, 240
        %p1479 = scmp.ne.s32.totalorder %s1478, 0
        %s1480 = scalar_select %p1479, 2, 0
        %s1481 = sor.u32 %s1477, %s1480
        %s1482 = smul.addr 1, 46
        %s1483 = scalar_lea.vmem %s171, %s1482 [#allocation1]
        %v1484 = vld [vmem:[%s1483] sm:%s1481]
        %v1485 = vunpack.c.0.s8 %v1484
        %v1486 = vunpack.c.1.s8 %v1484
        %v1487 = vunpack.c.2.s8 %v1484
        %v1488 = vunpack.c.3.s8 %v1484
        %s1489 = scalar_lea.vmem [#allocation0], 368
        %1490 = vst [vmem:[%s1489] sm:%s178] %v1485
        %s1491 = sand.u32 %s178, 15
        %p1492 = scmp.ne.s32.totalorder %s1491, 0
        %s1493 = scalar_select %p1492, 1, 0
        %s1494 = sand.u32 %s178, 240
        %p1495 = scmp.ne.s32.totalorder %s1494, 0
        %s1496 = scalar_select %p1495, 2, 0
        %s1497 = sor.u32 %s1493, %s1496
        %s1498 = smul.addr 1, 45
        %s1499 = scalar_lea.vmem %s171, %s1498 [#allocation1]
        %v1500 = vld [vmem:[%s1499] sm:%s1497]
        %v1501 = vunpack.c.0.s8 %v1500
        %v1502 = vunpack.c.1.s8 %v1500
        %v1503 = vunpack.c.2.s8 %v1500
        %v1504 = vunpack.c.3.s8 %v1500
        %s1505 = scalar_lea.vmem [#allocation0], 360
        %1506 = vst [vmem:[%s1505] sm:%s178] %v1501
        %s1507 = sand.u32 %s178, 15
        %p1508 = scmp.ne.s32.totalorder %s1507, 0
        %s1509 = scalar_select %p1508, 1, 0
        %s1510 = sand.u32 %s178, 240
        %p1511 = scmp.ne.s32.totalorder %s1510, 0
        %s1512 = scalar_select %p1511, 2, 0
        %s1513 = sor.u32 %s1509, %s1512
        %s1514 = smul.addr 1, 44
        %s1515 = scalar_lea.vmem %s171, %s1514 [#allocation1]
        %v1516 = vld [vmem:[%s1515] sm:%s1513]
        %v1517 = vunpack.c.0.s8 %v1516
        %v1518 = vunpack.c.1.s8 %v1516
        %v1519 = vunpack.c.2.s8 %v1516
        %v1520 = vunpack.c.3.s8 %v1516
        %s1521 = scalar_lea.vmem [#allocation0], 352
        %1522 = vst [vmem:[%s1521] sm:%s178] %v1517
        %s1523 = sand.u32 %s178, 15
        %p1524 = scmp.ne.s32.totalorder %s1523, 0
        %s1525 = scalar_select %p1524, 1, 0
        %s1526 = sand.u32 %s178, 240
        %p1527 = scmp.ne.s32.totalorder %s1526, 0
        %s1528 = scalar_select %p1527, 2, 0
        %s1529 = sor.u32 %s1525, %s1528
        %s1530 = smul.addr 1, 43
        %s1531 = scalar_lea.vmem %s171, %s1530 [#allocation1]
        %v1532 = vld [vmem:[%s1531] sm:%s1529]
        %v1533 = vunpack.c.0.s8 %v1532
        %v1534 = vunpack.c.1.s8 %v1532
        %v1535 = vunpack.c.2.s8 %v1532
        %v1536 = vunpack.c.3.s8 %v1532
        %s1537 = scalar_lea.vmem [#allocation0], 344
        %1538 = vst [vmem:[%s1537] sm:%s178] %v1533
        %s1539 = sand.u32 %s178, 15
        %p1540 = scmp.ne.s32.totalorder %s1539, 0
        %s1541 = scalar_select %p1540, 1, 0
        %s1542 = sand.u32 %s178, 240
        %p1543 = scmp.ne.s32.totalorder %s1542, 0
        %s1544 = scalar_select %p1543, 2, 0
        %s1545 = sor.u32 %s1541, %s1544
        %s1546 = smul.addr 1, 42
        %s1547 = scalar_lea.vmem %s171, %s1546 [#allocation1]
        %v1548 = vld [vmem:[%s1547] sm:%s1545]
        %v1549 = vunpack.c.0.s8 %v1548
        %v1550 = vunpack.c.1.s8 %v1548
        %v1551 = vunpack.c.2.s8 %v1548
        %v1552 = vunpack.c.3.s8 %v1548
        %s1553 = scalar_lea.vmem [#allocation0], 336
        %1554 = vst [vmem:[%s1553] sm:%s178] %v1549
        %s1555 = sand.u32 %s178, 15
        %p1556 = scmp.ne.s32.totalorder %s1555, 0
        %s1557 = scalar_select %p1556, 1, 0
        %s1558 = sand.u32 %s178, 240
        %p1559 = scmp.ne.s32.totalorder %s1558, 0
        %s1560 = scalar_select %p1559, 2, 0
        %s1561 = sor.u32 %s1557, %s1560
        %s1562 = smul.addr 1, 41
        %s1563 = scalar_lea.vmem %s171, %s1562 [#allocation1]
        %v1564 = vld [vmem:[%s1563] sm:%s1561]
        %v1565 = vunpack.c.0.s8 %v1564
        %v1566 = vunpack.c.1.s8 %v1564
        %v1567 = vunpack.c.2.s8 %v1564
        %v1568 = vunpack.c.3.s8 %v1564
        %s1569 = scalar_lea.vmem [#allocation0], 328
        %1570 = vst [vmem:[%s1569] sm:%s178] %v1565
        %s1571 = sand.u32 %s178, 15
        %p1572 = scmp.ne.s32.totalorder %s1571, 0
        %s1573 = scalar_select %p1572, 1, 0
        %s1574 = sand.u32 %s178, 240
        %p1575 = scmp.ne.s32.totalorder %s1574, 0
        %s1576 = scalar_select %p1575, 2, 0
        %s1577 = sor.u32 %s1573, %s1576
        %s1578 = smul.addr 1, 40
        %s1579 = scalar_lea.vmem %s171, %s1578 [#allocation1]
        %v1580 = vld [vmem:[%s1579] sm:%s1577]
        %v1581 = vunpack.c.0.s8 %v1580
        %v1582 = vunpack.c.1.s8 %v1580
        %v1583 = vunpack.c.2.s8 %v1580
        %v1584 = vunpack.c.3.s8 %v1580
        %s1585 = scalar_lea.vmem [#allocation0], 320
        %1586 = vst [vmem:[%s1585] sm:%s178] %v1581
        %s1587 = sand.u32 %s178, 15
        %p1588 = scmp.ne.s32.totalorder %s1587, 0
        %s1589 = scalar_select %p1588, 1, 0
        %s1590 = sand.u32 %s178, 240
        %p1591 = scmp.ne.s32.totalorder %s1590, 0
        %s1592 = scalar_select %p1591, 2, 0
        %s1593 = sor.u32 %s1589, %s1592
        %s1594 = smul.addr 1, 39
        %s1595 = scalar_lea.vmem %s171, %s1594 [#allocation1]
        %v1596 = vld [vmem:[%s1595] sm:%s1593]
        %v1597 = vunpack.c.0.s8 %v1596
        %v1598 = vunpack.c.1.s8 %v1596
        %v1599 = vunpack.c.2.s8 %v1596
        %v1600 = vunpack.c.3.s8 %v1596
        %s1601 = scalar_lea.vmem [#allocation0], 312
        %1602 = vst [vmem:[%s1601] sm:%s178] %v1597
        %s1603 = sand.u32 %s178, 15
        %p1604 = scmp.ne.s32.totalorder %s1603, 0
        %s1605 = scalar_select %p1604, 1, 0
        %s1606 = sand.u32 %s178, 240
        %p1607 = scmp.ne.s32.totalorder %s1606, 0
        %s1608 = scalar_select %p1607, 2, 0
        %s1609 = sor.u32 %s1605, %s1608
        %s1610 = smul.addr 1, 38
        %s1611 = scalar_lea.vmem %s171, %s1610 [#allocation1]
        %v1612 = vld [vmem:[%s1611] sm:%s1609]
        %v1613 = vunpack.c.0.s8 %v1612
        %v1614 = vunpack.c.1.s8 %v1612
        %v1615 = vunpack.c.2.s8 %v1612
        %v1616 = vunpack.c.3.s8 %v1612
        %s1617 = scalar_lea.vmem [#allocation0], 304
        %1618 = vst [vmem:[%s1617] sm:%s178] %v1613
        %s1619 = sand.u32 %s178, 15
        %p1620 = scmp.ne.s32.totalorder %s1619, 0
        %s1621 = scalar_select %p1620, 1, 0
        %s1622 = sand.u32 %s178, 240
        %p1623 = scmp.ne.s32.totalorder %s1622, 0
        %s1624 = scalar_select %p1623, 2, 0
        %s1625 = sor.u32 %s1621, %s1624
        %s1626 = smul.addr 1, 37
        %s1627 = scalar_lea.vmem %s171, %s1626 [#allocation1]
        %v1628 = vld [vmem:[%s1627] sm:%s1625]
        %v1629 = vunpack.c.0.s8 %v1628
        %v1630 = vunpack.c.1.s8 %v1628
        %v1631 = vunpack.c.2.s8 %v1628
        %v1632 = vunpack.c.3.s8 %v1628
        %s1633 = scalar_lea.vmem [#allocation0], 296
        %1634 = vst [vmem:[%s1633] sm:%s178] %v1629
        %s1635 = sand.u32 %s178, 15
        %p1636 = scmp.ne.s32.totalorder %s1635, 0
        %s1637 = scalar_select %p1636, 1, 0
        %s1638 = sand.u32 %s178, 240
        %p1639 = scmp.ne.s32.totalorder %s1638, 0
        %s1640 = scalar_select %p1639, 2, 0
        %s1641 = sor.u32 %s1637, %s1640
        %s1642 = smul.addr 1, 36
        %s1643 = scalar_lea.vmem %s171, %s1642 [#allocation1]
        %v1644 = vld [vmem:[%s1643] sm:%s1641]
        %v1645 = vunpack.c.0.s8 %v1644
        %v1646 = vunpack.c.1.s8 %v1644
        %v1647 = vunpack.c.2.s8 %v1644
        %v1648 = vunpack.c.3.s8 %v1644
        %s1649 = scalar_lea.vmem [#allocation0], 288
        %1650 = vst [vmem:[%s1649] sm:%s178] %v1645
        %s1651 = sand.u32 %s178, 15
        %p1652 = scmp.ne.s32.totalorder %s1651, 0
        %s1653 = scalar_select %p1652, 1, 0
        %s1654 = sand.u32 %s178, 240
        %p1655 = scmp.ne.s32.totalorder %s1654, 0
        %s1656 = scalar_select %p1655, 2, 0
        %s1657 = sor.u32 %s1653, %s1656
        %s1658 = smul.addr 1, 35
        %s1659 = scalar_lea.vmem %s171, %s1658 [#allocation1]
        %v1660 = vld [vmem:[%s1659] sm:%s1657]
        %v1661 = vunpack.c.0.s8 %v1660
        %v1662 = vunpack.c.1.s8 %v1660
        %v1663 = vunpack.c.2.s8 %v1660
        %v1664 = vunpack.c.3.s8 %v1660
        %s1665 = scalar_lea.vmem [#allocation0], 280
        %1666 = vst [vmem:[%s1665] sm:%s178] %v1661
        %s1667 = sand.u32 %s178, 15
        %p1668 = scmp.ne.s32.totalorder %s1667, 0
        %s1669 = scalar_select %p1668, 1, 0
        %s1670 = sand.u32 %s178, 240
        %p1671 = scmp.ne.s32.totalorder %s1670, 0
        %s1672 = scalar_select %p1671, 2, 0
        %s1673 = sor.u32 %s1669, %s1672
        %s1674 = smul.addr 1, 34
        %s1675 = scalar_lea.vmem %s171, %s1674 [#allocation1]
        %v1676 = vld [vmem:[%s1675] sm:%s1673]
        %v1677 = vunpack.c.0.s8 %v1676
        %v1678 = vunpack.c.1.s8 %v1676
        %v1679 = vunpack.c.2.s8 %v1676
        %v1680 = vunpack.c.3.s8 %v1676
        %s1681 = scalar_lea.vmem [#allocation0], 272
        %1682 = vst [vmem:[%s1681] sm:%s178] %v1677
        %s1683 = sand.u32 %s178, 15
        %p1684 = scmp.ne.s32.totalorder %s1683, 0
        %s1685 = scalar_select %p1684, 1, 0
        %s1686 = sand.u32 %s178, 240
        %p1687 = scmp.ne.s32.totalorder %s1686, 0
        %s1688 = scalar_select %p1687, 2, 0
        %s1689 = sor.u32 %s1685, %s1688
        %s1690 = smul.addr 1, 33
        %s1691 = scalar_lea.vmem %s171, %s1690 [#allocation1]
        %v1692 = vld [vmem:[%s1691] sm:%s1689]
        %v1693 = vunpack.c.0.s8 %v1692
        %v1694 = vunpack.c.1.s8 %v1692
        %v1695 = vunpack.c.2.s8 %v1692
        %v1696 = vunpack.c.3.s8 %v1692
        %s1697 = scalar_lea.vmem [#allocation0], 264
        %1698 = vst [vmem:[%s1697] sm:%s178] %v1693
        %s1699 = sand.u32 %s178, 15
        %p1700 = scmp.ne.s32.totalorder %s1699, 0
        %s1701 = scalar_select %p1700, 1, 0
        %s1702 = sand.u32 %s178, 240
        %p1703 = scmp.ne.s32.totalorder %s1702, 0
        %s1704 = scalar_select %p1703, 2, 0
        %s1705 = sor.u32 %s1701, %s1704
        %s1706 = smul.addr 1, 32
        %s1707 = scalar_lea.vmem %s171, %s1706 [#allocation1]
        %v1708 = vld [vmem:[%s1707] sm:%s1705]
        %v1709 = vunpack.c.0.s8 %v1708
        %v1710 = vunpack.c.1.s8 %v1708
        %v1711 = vunpack.c.2.s8 %v1708
        %v1712 = vunpack.c.3.s8 %v1708
        %s1713 = scalar_lea.vmem [#allocation0], 256
        %1714 = vst [vmem:[%s1713] sm:%s178] %v1709
        %s1715 = sand.u32 %s178, 15
        %p1716 = scmp.ne.s32.totalorder %s1715, 0
        %s1717 = scalar_select %p1716, 1, 0
        %s1718 = sand.u32 %s178, 240
        %p1719 = scmp.ne.s32.totalorder %s1718, 0
        %s1720 = scalar_select %p1719, 2, 0
        %s1721 = sor.u32 %s1717, %s1720
        %s1722 = smul.addr 1, 31
        %s1723 = scalar_lea.vmem %s171, %s1722 [#allocation1]
        %v1724 = vld [vmem:[%s1723] sm:%s1721]
        %v1725 = vunpack.c.0.s8 %v1724
        %v1726 = vunpack.c.1.s8 %v1724
        %v1727 = vunpack.c.2.s8 %v1724
        %v1728 = vunpack.c.3.s8 %v1724
        %s1729 = scalar_lea.vmem [#allocation0], 248
        %1730 = vst [vmem:[%s1729] sm:%s178] %v1725
        %s1731 = sand.u32 %s178, 15
        %p1732 = scmp.ne.s32.totalorder %s1731, 0
        %s1733 = scalar_select %p1732, 1, 0
        %s1734 = sand.u32 %s178, 240
        %p1735 = scmp.ne.s32.totalorder %s1734, 0
        %s1736 = scalar_select %p1735, 2, 0
        %s1737 = sor.u32 %s1733, %s1736
        %s1738 = smul.addr 1, 30
        %s1739 = scalar_lea.vmem %s171, %s1738 [#allocation1]
        %v1740 = vld [vmem:[%s1739] sm:%s1737]
        %v1741 = vunpack.c.0.s8 %v1740
        %v1742 = vunpack.c.1.s8 %v1740
        %v1743 = vunpack.c.2.s8 %v1740
        %v1744 = vunpack.c.3.s8 %v1740
        %s1745 = scalar_lea.vmem [#allocation0], 240
        %1746 = vst [vmem:[%s1745] sm:%s178] %v1741
        %s1747 = sand.u32 %s178, 15
        %p1748 = scmp.ne.s32.totalorder %s1747, 0
        %s1749 = scalar_select %p1748, 1, 0
        %s1750 = sand.u32 %s178, 240
        %p1751 = scmp.ne.s32.totalorder %s1750, 0
        %s1752 = scalar_select %p1751, 2, 0
        %s1753 = sor.u32 %s1749, %s1752
        %s1754 = smul.addr 1, 29
        %s1755 = scalar_lea.vmem %s171, %s1754 [#allocation1]
        %v1756 = vld [vmem:[%s1755] sm:%s1753]
        %v1757 = vunpack.c.0.s8 %v1756
        %v1758 = vunpack.c.1.s8 %v1756
        %v1759 = vunpack.c.2.s8 %v1756
        %v1760 = vunpack.c.3.s8 %v1756
        %s1761 = scalar_lea.vmem [#allocation0], 232
        %1762 = vst [vmem:[%s1761] sm:%s178] %v1757
        %s1763 = sand.u32 %s178, 15
        %p1764 = scmp.ne.s32.totalorder %s1763, 0
        %s1765 = scalar_select %p1764, 1, 0
        %s1766 = sand.u32 %s178, 240
        %p1767 = scmp.ne.s32.totalorder %s1766, 0
        %s1768 = scalar_select %p1767, 2, 0
        %s1769 = sor.u32 %s1765, %s1768
        %s1770 = smul.addr 1, 28
        %s1771 = scalar_lea.vmem %s171, %s1770 [#allocation1]
        %v1772 = vld [vmem:[%s1771] sm:%s1769]
        %v1773 = vunpack.c.0.s8 %v1772
        %v1774 = vunpack.c.1.s8 %v1772
        %v1775 = vunpack.c.2.s8 %v1772
        %v1776 = vunpack.c.3.s8 %v1772
        %s1777 = scalar_lea.vmem [#allocation0], 224
        %1778 = vst [vmem:[%s1777] sm:%s178] %v1773
        %s1779 = sand.u32 %s178, 15
        %p1780 = scmp.ne.s32.totalorder %s1779, 0
        %s1781 = scalar_select %p1780, 1, 0
        %s1782 = sand.u32 %s178, 240
        %p1783 = scmp.ne.s32.totalorder %s1782, 0
        %s1784 = scalar_select %p1783, 2, 0
        %s1785 = sor.u32 %s1781, %s1784
        %s1786 = smul.addr 1, 27
        %s1787 = scalar_lea.vmem %s171, %s1786 [#allocation1]
        %v1788 = vld [vmem:[%s1787] sm:%s1785]
        %v1789 = vunpack.c.0.s8 %v1788
        %v1790 = vunpack.c.1.s8 %v1788
        %v1791 = vunpack.c.2.s8 %v1788
        %v1792 = vunpack.c.3.s8 %v1788
        %s1793 = scalar_lea.vmem [#allocation0], 216
        %1794 = vst [vmem:[%s1793] sm:%s178] %v1789
        %s1795 = sand.u32 %s178, 15
        %p1796 = scmp.ne.s32.totalorder %s1795, 0
        %s1797 = scalar_select %p1796, 1, 0
        %s1798 = sand.u32 %s178, 240
        %p1799 = scmp.ne.s32.totalorder %s1798, 0
        %s1800 = scalar_select %p1799, 2, 0
        %s1801 = sor.u32 %s1797, %s1800
        %s1802 = smul.addr 1, 26
        %s1803 = scalar_lea.vmem %s171, %s1802 [#allocation1]
        %v1804 = vld [vmem:[%s1803] sm:%s1801]
        %v1805 = vunpack.c.0.s8 %v1804
        %v1806 = vunpack.c.1.s8 %v1804
        %v1807 = vunpack.c.2.s8 %v1804
        %v1808 = vunpack.c.3.s8 %v1804
        %s1809 = scalar_lea.vmem [#allocation0], 208
        %1810 = vst [vmem:[%s1809] sm:%s178] %v1805
        %s1811 = sand.u32 %s178, 15
        %p1812 = scmp.ne.s32.totalorder %s1811, 0
        %s1813 = scalar_select %p1812, 1, 0
        %s1814 = sand.u32 %s178, 240
        %p1815 = scmp.ne.s32.totalorder %s1814, 0
        %s1816 = scalar_select %p1815, 2, 0
        %s1817 = sor.u32 %s1813, %s1816
        %s1818 = smul.addr 1, 25
        %s1819 = scalar_lea.vmem %s171, %s1818 [#allocation1]
        %v1820 = vld [vmem:[%s1819] sm:%s1817]
        %v1821 = vunpack.c.0.s8 %v1820
        %v1822 = vunpack.c.1.s8 %v1820
        %v1823 = vunpack.c.2.s8 %v1820
        %v1824 = vunpack.c.3.s8 %v1820
        %s1825 = scalar_lea.vmem [#allocation0], 200
        %1826 = vst [vmem:[%s1825] sm:%s178] %v1821
        %s1827 = sand.u32 %s178, 15
        %p1828 = scmp.ne.s32.totalorder %s1827, 0
        %s1829 = scalar_select %p1828, 1, 0
        %s1830 = sand.u32 %s178, 240
        %p1831 = scmp.ne.s32.totalorder %s1830, 0
        %s1832 = scalar_select %p1831, 2, 0
        %s1833 = sor.u32 %s1829, %s1832
        %s1834 = smul.addr 1, 24
        %s1835 = scalar_lea.vmem %s171, %s1834 [#allocation1]
        %v1836 = vld [vmem:[%s1835] sm:%s1833]
        %v1837 = vunpack.c.0.s8 %v1836
        %v1838 = vunpack.c.1.s8 %v1836
        %v1839 = vunpack.c.2.s8 %v1836
        %v1840 = vunpack.c.3.s8 %v1836
        %s1841 = scalar_lea.vmem [#allocation0], 192
        %1842 = vst [vmem:[%s1841] sm:%s178] %v1837
        %s1843 = sand.u32 %s178, 15
        %p1844 = scmp.ne.s32.totalorder %s1843, 0
        %s1845 = scalar_select %p1844, 1, 0
        %s1846 = sand.u32 %s178, 240
        %p1847 = scmp.ne.s32.totalorder %s1846, 0
        %s1848 = scalar_select %p1847, 2, 0
        %s1849 = sor.u32 %s1845, %s1848
        %s1850 = smul.addr 1, 23
        %s1851 = scalar_lea.vmem %s171, %s1850 [#allocation1]
        %v1852 = vld [vmem:[%s1851] sm:%s1849]
        %v1853 = vunpack.c.0.s8 %v1852
        %v1854 = vunpack.c.1.s8 %v1852
        %v1855 = vunpack.c.2.s8 %v1852
        %v1856 = vunpack.c.3.s8 %v1852
        %s1857 = scalar_lea.vmem [#allocation0], 184
        %1858 = vst [vmem:[%s1857] sm:%s178] %v1853
        %s1859 = sand.u32 %s178, 15
        %p1860 = scmp.ne.s32.totalorder %s1859, 0
        %s1861 = scalar_select %p1860, 1, 0
        %s1862 = sand.u32 %s178, 240
        %p1863 = scmp.ne.s32.totalorder %s1862, 0
        %s1864 = scalar_select %p1863, 2, 0
        %s1865 = sor.u32 %s1861, %s1864
        %s1866 = smul.addr 1, 22
        %s1867 = scalar_lea.vmem %s171, %s1866 [#allocation1]
        %v1868 = vld [vmem:[%s1867] sm:%s1865]
        %v1869 = vunpack.c.0.s8 %v1868
        %v1870 = vunpack.c.1.s8 %v1868
        %v1871 = vunpack.c.2.s8 %v1868
        %v1872 = vunpack.c.3.s8 %v1868
        %s1873 = scalar_lea.vmem [#allocation0], 176
        %1874 = vst [vmem:[%s1873] sm:%s178] %v1869
        %s1875 = sand.u32 %s178, 15
        %p1876 = scmp.ne.s32.totalorder %s1875, 0
        %s1877 = scalar_select %p1876, 1, 0
        %s1878 = sand.u32 %s178, 240
        %p1879 = scmp.ne.s32.totalorder %s1878, 0
        %s1880 = scalar_select %p1879, 2, 0
        %s1881 = sor.u32 %s1877, %s1880
        %s1882 = smul.addr 1, 21
        %s1883 = scalar_lea.vmem %s171, %s1882 [#allocation1]
        %v1884 = vld [vmem:[%s1883] sm:%s1881]
        %v1885 = vunpack.c.0.s8 %v1884
        %v1886 = vunpack.c.1.s8 %v1884
        %v1887 = vunpack.c.2.s8 %v1884
        %v1888 = vunpack.c.3.s8 %v1884
        %s1889 = scalar_lea.vmem [#allocation0], 168
        %1890 = vst [vmem:[%s1889] sm:%s178] %v1885
        %s1891 = sand.u32 %s178, 15
        %p1892 = scmp.ne.s32.totalorder %s1891, 0
        %s1893 = scalar_select %p1892, 1, 0
        %s1894 = sand.u32 %s178, 240
        %p1895 = scmp.ne.s32.totalorder %s1894, 0
        %s1896 = scalar_select %p1895, 2, 0
        %s1897 = sor.u32 %s1893, %s1896
        %s1898 = smul.addr 1, 20
        %s1899 = scalar_lea.vmem %s171, %s1898 [#allocation1]
        %v1900 = vld [vmem:[%s1899] sm:%s1897]
        %v1901 = vunpack.c.0.s8 %v1900
        %v1902 = vunpack.c.1.s8 %v1900
        %v1903 = vunpack.c.2.s8 %v1900
        %v1904 = vunpack.c.3.s8 %v1900
        %s1905 = scalar_lea.vmem [#allocation0], 160
        %1906 = vst [vmem:[%s1905] sm:%s178] %v1901
        %s1907 = sand.u32 %s178, 15
        %p1908 = scmp.ne.s32.totalorder %s1907, 0
        %s1909 = scalar_select %p1908, 1, 0
        %s1910 = sand.u32 %s178, 240
        %p1911 = scmp.ne.s32.totalorder %s1910, 0
        %s1912 = scalar_select %p1911, 2, 0
        %s1913 = sor.u32 %s1909, %s1912
        %s1914 = smul.addr 1, 19
        %s1915 = scalar_lea.vmem %s171, %s1914 [#allocation1]
        %v1916 = vld [vmem:[%s1915] sm:%s1913]
        %v1917 = vunpack.c.0.s8 %v1916
        %v1918 = vunpack.c.1.s8 %v1916
        %v1919 = vunpack.c.2.s8 %v1916
        %v1920 = vunpack.c.3.s8 %v1916
        %s1921 = scalar_lea.vmem [#allocation0], 152
        %1922 = vst [vmem:[%s1921] sm:%s178] %v1917
        %s1923 = sand.u32 %s178, 15
        %p1924 = scmp.ne.s32.totalorder %s1923, 0
        %s1925 = scalar_select %p1924, 1, 0
        %s1926 = sand.u32 %s178, 240
        %p1927 = scmp.ne.s32.totalorder %s1926, 0
        %s1928 = scalar_select %p1927, 2, 0
        %s1929 = sor.u32 %s1925, %s1928
        %s1930 = smul.addr 1, 18
        %s1931 = scalar_lea.vmem %s171, %s1930 [#allocation1]
        %v1932 = vld [vmem:[%s1931] sm:%s1929]
        %v1933 = vunpack.c.0.s8 %v1932
        %v1934 = vunpack.c.1.s8 %v1932
        %v1935 = vunpack.c.2.s8 %v1932
        %v1936 = vunpack.c.3.s8 %v1932
        %s1937 = scalar_lea.vmem [#allocation0], 144
        %1938 = vst [vmem:[%s1937] sm:%s178] %v1933
        %s1939 = sand.u32 %s178, 15
        %p1940 = scmp.ne.s32.totalorder %s1939, 0
        %s1941 = scalar_select %p1940, 1, 0
        %s1942 = sand.u32 %s178, 240
        %p1943 = scmp.ne.s32.totalorder %s1942, 0
        %s1944 = scalar_select %p1943, 2, 0
        %s1945 = sor.u32 %s1941, %s1944
        %s1946 = smul.addr 1, 17
        %s1947 = scalar_lea.vmem %s171, %s1946 [#allocation1]
        %v1948 = vld [vmem:[%s1947] sm:%s1945]
        %v1949 = vunpack.c.0.s8 %v1948
        %v1950 = vunpack.c.1.s8 %v1948
        %v1951 = vunpack.c.2.s8 %v1948
        %v1952 = vunpack.c.3.s8 %v1948
        %s1953 = scalar_lea.vmem [#allocation0], 136
        %1954 = vst [vmem:[%s1953] sm:%s178] %v1949
        %s1955 = sand.u32 %s178, 15
        %p1956 = scmp.ne.s32.totalorder %s1955, 0
        %s1957 = scalar_select %p1956, 1, 0
        %s1958 = sand.u32 %s178, 240
        %p1959 = scmp.ne.s32.totalorder %s1958, 0
        %s1960 = scalar_select %p1959, 2, 0
        %s1961 = sor.u32 %s1957, %s1960
        %s1962 = smul.addr 1, 16
        %s1963 = scalar_lea.vmem %s171, %s1962 [#allocation1]
        %v1964 = vld [vmem:[%s1963] sm:%s1961]
        %v1965 = vunpack.c.0.s8 %v1964
        %v1966 = vunpack.c.1.s8 %v1964
        %v1967 = vunpack.c.2.s8 %v1964
        %v1968 = vunpack.c.3.s8 %v1964
        %s1969 = scalar_lea.vmem [#allocation0], 128
        %1970 = vst [vmem:[%s1969] sm:%s178] %v1965
        %s1971 = sand.u32 %s178, 15
        %p1972 = scmp.ne.s32.totalorder %s1971, 0
        %s1973 = scalar_select %p1972, 1, 0
        %s1974 = sand.u32 %s178, 240
        %p1975 = scmp.ne.s32.totalorder %s1974, 0
        %s1976 = scalar_select %p1975, 2, 0
        %s1977 = sor.u32 %s1973, %s1976
        %s1978 = smul.addr 1, 15
        %s1979 = scalar_lea.vmem %s171, %s1978 [#allocation1]
        %v1980 = vld [vmem:[%s1979] sm:%s1977]
        %v1981 = vunpack.c.0.s8 %v1980
        %v1982 = vunpack.c.1.s8 %v1980
        %v1983 = vunpack.c.2.s8 %v1980
        %v1984 = vunpack.c.3.s8 %v1980
        %s1985 = scalar_lea.vmem [#allocation0], 120
        %1986 = vst [vmem:[%s1985] sm:%s178] %v1981
        %s1987 = sand.u32 %s178, 15
        %p1988 = scmp.ne.s32.totalorder %s1987, 0
        %s1989 = scalar_select %p1988, 1, 0
        %s1990 = sand.u32 %s178, 240
        %p1991 = scmp.ne.s32.totalorder %s1990, 0
        %s1992 = scalar_select %p1991, 2, 0
        %s1993 = sor.u32 %s1989, %s1992
        %s1994 = smul.addr 1, 14
        %s1995 = scalar_lea.vmem %s171, %s1994 [#allocation1]
        %v1996 = vld [vmem:[%s1995] sm:%s1993]
        %v1997 = vunpack.c.0.s8 %v1996
        %v1998 = vunpack.c.1.s8 %v1996
        %v1999 = vunpack.c.2.s8 %v1996
        %v2000 = vunpack.c.3.s8 %v1996
        %s2001 = scalar_lea.vmem [#allocation0], 112
        %2002 = vst [vmem:[%s2001] sm:%s178] %v1997
        %s2003 = sand.u32 %s178, 15
        %p2004 = scmp.ne.s32.totalorder %s2003, 0
        %s2005 = scalar_select %p2004, 1, 0
        %s2006 = sand.u32 %s178, 240
        %p2007 = scmp.ne.s32.totalorder %s2006, 0
        %s2008 = scalar_select %p2007, 2, 0
        %s2009 = sor.u32 %s2005, %s2008
        %s2010 = smul.addr 1, 13
        %s2011 = scalar_lea.vmem %s171, %s2010 [#allocation1]
        %v2012 = vld [vmem:[%s2011] sm:%s2009]
        %v2013 = vunpack.c.0.s8 %v2012
        %v2014 = vunpack.c.1.s8 %v2012
        %v2015 = vunpack.c.2.s8 %v2012
        %v2016 = vunpack.c.3.s8 %v2012
        %s2017 = scalar_lea.vmem [#allocation0], 104
        %2018 = vst [vmem:[%s2017] sm:%s178] %v2013
        %s2019 = sand.u32 %s178, 15
        %p2020 = scmp.ne.s32.totalorder %s2019, 0
        %s2021 = scalar_select %p2020, 1, 0
        %s2022 = sand.u32 %s178, 240
        %p2023 = scmp.ne.s32.totalorder %s2022, 0
        %s2024 = scalar_select %p2023, 2, 0
        %s2025 = sor.u32 %s2021, %s2024
        %s2026 = smul.addr 1, 12
        %s2027 = scalar_lea.vmem %s171, %s2026 [#allocation1]
        %v2028 = vld [vmem:[%s2027] sm:%s2025]
        %v2029 = vunpack.c.0.s8 %v2028
        %v2030 = vunpack.c.1.s8 %v2028
        %v2031 = vunpack.c.2.s8 %v2028
        %v2032 = vunpack.c.3.s8 %v2028
        %s2033 = scalar_lea.vmem [#allocation0], 96
        %2034 = vst [vmem:[%s2033] sm:%s178] %v2029
        %s2035 = sand.u32 %s178, 15
        %p2036 = scmp.ne.s32.totalorder %s2035, 0
        %s2037 = scalar_select %p2036, 1, 0
        %s2038 = sand.u32 %s178, 240
        %p2039 = scmp.ne.s32.totalorder %s2038, 0
        %s2040 = scalar_select %p2039, 2, 0
        %s2041 = sor.u32 %s2037, %s2040
        %s2042 = smul.addr 1, 11
        %s2043 = scalar_lea.vmem %s171, %s2042 [#allocation1]
        %v2044 = vld [vmem:[%s2043] sm:%s2041]
        %v2045 = vunpack.c.0.s8 %v2044
        %v2046 = vunpack.c.1.s8 %v2044
        %v2047 = vunpack.c.2.s8 %v2044
        %v2048 = vunpack.c.3.s8 %v2044
        %s2049 = scalar_lea.vmem [#allocation0], 88
        %2050 = vst [vmem:[%s2049] sm:%s178] %v2045
        %s2051 = sand.u32 %s178, 15
        %p2052 = scmp.ne.s32.totalorder %s2051, 0
        %s2053 = scalar_select %p2052, 1, 0
        %s2054 = sand.u32 %s178, 240
        %p2055 = scmp.ne.s32.totalorder %s2054, 0
        %s2056 = scalar_select %p2055, 2, 0
        %s2057 = sor.u32 %s2053, %s2056
        %s2058 = smul.addr 1, 10
        %s2059 = scalar_lea.vmem %s171, %s2058 [#allocation1]
        %v2060 = vld [vmem:[%s2059] sm:%s2057]
        %v2061 = vunpack.c.0.s8 %v2060
        %v2062 = vunpack.c.1.s8 %v2060
        %v2063 = vunpack.c.2.s8 %v2060
        %v2064 = vunpack.c.3.s8 %v2060
        %s2065 = scalar_lea.vmem [#allocation0], 80
        %2066 = vst [vmem:[%s2065] sm:%s178] %v2061
        %s2067 = sand.u32 %s178, 15
        %p2068 = scmp.ne.s32.totalorder %s2067, 0
        %s2069 = scalar_select %p2068, 1, 0
        %s2070 = sand.u32 %s178, 240
        %p2071 = scmp.ne.s32.totalorder %s2070, 0
        %s2072 = scalar_select %p2071, 2, 0
        %s2073 = sor.u32 %s2069, %s2072
        %s2074 = smul.addr 1, 9
        %s2075 = scalar_lea.vmem %s171, %s2074 [#allocation1]
        %v2076 = vld [vmem:[%s2075] sm:%s2073]
        %v2077 = vunpack.c.0.s8 %v2076
        %v2078 = vunpack.c.1.s8 %v2076
        %v2079 = vunpack.c.2.s8 %v2076
        %v2080 = vunpack.c.3.s8 %v2076
        %s2081 = scalar_lea.vmem [#allocation0], 72
        %2082 = vst [vmem:[%s2081] sm:%s178] %v2077
        %s2083 = sand.u32 %s178, 15
        %p2084 = scmp.ne.s32.totalorder %s2083, 0
        %s2085 = scalar_select %p2084, 1, 0
        %s2086 = sand.u32 %s178, 240
        %p2087 = scmp.ne.s32.totalorder %s2086, 0
        %s2088 = scalar_select %p2087, 2, 0
        %s2089 = sor.u32 %s2085, %s2088
        %s2090 = smul.addr 1, 8
        %s2091 = scalar_lea.vmem %s171, %s2090 [#allocation1]
        %v2092 = vld [vmem:[%s2091] sm:%s2089]
        %v2093 = vunpack.c.0.s8 %v2092
        %v2094 = vunpack.c.1.s8 %v2092
        %v2095 = vunpack.c.2.s8 %v2092
        %v2096 = vunpack.c.3.s8 %v2092
        %s2097 = scalar_lea.vmem [#allocation0], 64
        %2098 = vst [vmem:[%s2097] sm:%s178] %v2093
        %s2099 = sand.u32 %s178, 15
        %p2100 = scmp.ne.s32.totalorder %s2099, 0
        %s2101 = scalar_select %p2100, 1, 0
        %s2102 = sand.u32 %s178, 240
        %p2103 = scmp.ne.s32.totalorder %s2102, 0
        %s2104 = scalar_select %p2103, 2, 0
        %s2105 = sor.u32 %s2101, %s2104
        %s2106 = smul.addr 1, 7
        %s2107 = scalar_lea.vmem %s171, %s2106 [#allocation1]
        %v2108 = vld [vmem:[%s2107] sm:%s2105]
        %v2109 = vunpack.c.0.s8 %v2108
        %v2110 = vunpack.c.1.s8 %v2108
        %v2111 = vunpack.c.2.s8 %v2108
        %v2112 = vunpack.c.3.s8 %v2108
        %s2113 = scalar_lea.vmem [#allocation0], 56
        %2114 = vst [vmem:[%s2113] sm:%s178] %v2109
        %s2115 = sand.u32 %s178, 15
        %p2116 = scmp.ne.s32.totalorder %s2115, 0
        %s2117 = scalar_select %p2116, 1, 0
        %s2118 = sand.u32 %s178, 240
        %p2119 = scmp.ne.s32.totalorder %s2118, 0
        %s2120 = scalar_select %p2119, 2, 0
        %s2121 = sor.u32 %s2117, %s2120
        %s2122 = smul.addr 1, 6
        %s2123 = scalar_lea.vmem %s171, %s2122 [#allocation1]
        %v2124 = vld [vmem:[%s2123] sm:%s2121]
        %v2125 = vunpack.c.0.s8 %v2124
        %v2126 = vunpack.c.1.s8 %v2124
        %v2127 = vunpack.c.2.s8 %v2124
        %v2128 = vunpack.c.3.s8 %v2124
        %s2129 = scalar_lea.vmem [#allocation0], 48
        %2130 = vst [vmem:[%s2129] sm:%s178] %v2125
        %s2131 = sand.u32 %s178, 15
        %p2132 = scmp.ne.s32.totalorder %s2131, 0
        %s2133 = scalar_select %p2132, 1, 0
        %s2134 = sand.u32 %s178, 240
        %p2135 = scmp.ne.s32.totalorder %s2134, 0
        %s2136 = scalar_select %p2135, 2, 0
        %s2137 = sor.u32 %s2133, %s2136
        %s2138 = smul.addr 1, 5
        %s2139 = scalar_lea.vmem %s171, %s2138 [#allocation1]
        %v2140 = vld [vmem:[%s2139] sm:%s2137]
        %v2141 = vunpack.c.0.s8 %v2140
        %v2142 = vunpack.c.1.s8 %v2140
        %v2143 = vunpack.c.2.s8 %v2140
        %v2144 = vunpack.c.3.s8 %v2140
        %s2145 = scalar_lea.vmem [#allocation0], 40
        %2146 = vst [vmem:[%s2145] sm:%s178] %v2141
        %s2147 = sand.u32 %s178, 15
        %p2148 = scmp.ne.s32.totalorder %s2147, 0
        %s2149 = scalar_select %p2148, 1, 0
        %s2150 = sand.u32 %s178, 240
        %p2151 = scmp.ne.s32.totalorder %s2150, 0
        %s2152 = scalar_select %p2151, 2, 0
        %s2153 = sor.u32 %s2149, %s2152
        %s2154 = smul.addr 1, 4
        %s2155 = scalar_lea.vmem %s171, %s2154 [#allocation1]
        %v2156 = vld [vmem:[%s2155] sm:%s2153]
        %v2157 = vunpack.c.0.s8 %v2156
        %v2158 = vunpack.c.1.s8 %v2156
        %v2159 = vunpack.c.2.s8 %v2156
        %v2160 = vunpack.c.3.s8 %v2156
        %s2161 = scalar_lea.vmem [#allocation0], 32
        %2162 = vst [vmem:[%s2161] sm:%s178] %v2157
        %s2163 = sand.u32 %s178, 15
        %p2164 = scmp.ne.s32.totalorder %s2163, 0
        %s2165 = scalar_select %p2164, 1, 0
        %s2166 = sand.u32 %s178, 240
        %p2167 = scmp.ne.s32.totalorder %s2166, 0
        %s2168 = scalar_select %p2167, 2, 0
        %s2169 = sor.u32 %s2165, %s2168
        %s2170 = smul.addr 1, 3
        %s2171 = scalar_lea.vmem %s171, %s2170 [#allocation1]
        %v2172 = vld [vmem:[%s2171] sm:%s2169]
        %v2173 = vunpack.c.0.s8 %v2172
        %v2174 = vunpack.c.1.s8 %v2172
        %v2175 = vunpack.c.2.s8 %v2172
        %v2176 = vunpack.c.3.s8 %v2172
        %s2177 = scalar_lea.vmem [#allocation0], 24
        %2178 = vst [vmem:[%s2177] sm:%s178] %v2173
        %s2179 = sand.u32 %s178, 15
        %p2180 = scmp.ne.s32.totalorder %s2179, 0
        %s2181 = scalar_select %p2180, 1, 0
        %s2182 = sand.u32 %s178, 240
        %p2183 = scmp.ne.s32.totalorder %s2182, 0
        %s2184 = scalar_select %p2183, 2, 0
        %s2185 = sor.u32 %s2181, %s2184
        %s2186 = smul.addr 1, 2
        %s2187 = scalar_lea.vmem %s171, %s2186 [#allocation1]
        %v2188 = vld [vmem:[%s2187] sm:%s2185]
        %v2189 = vunpack.c.0.s8 %v2188
        %v2190 = vunpack.c.1.s8 %v2188
        %v2191 = vunpack.c.2.s8 %v2188
        %v2192 = vunpack.c.3.s8 %v2188
        %s2193 = scalar_lea.vmem [#allocation0], 16
        %2194 = vst [vmem:[%s2193] sm:%s178] %v2189
        %s2195 = sand.u32 %s178, 15
        %p2196 = scmp.ne.s32.totalorder %s2195, 0
        %s2197 = scalar_select %p2196, 1, 0
        %s2198 = sand.u32 %s178, 240
        %p2199 = scmp.ne.s32.totalorder %s2198, 0
        %s2200 = scalar_select %p2199, 2, 0
        %s2201 = sor.u32 %s2197, %s2200
        %s2202 = scalar_lea.vmem %s171, 1 [#allocation1]
        %v2203 = vld [vmem:[%s2202] sm:%s2201]
        %v2204 = vunpack.c.0.s8 %v2203
        %v2205 = vunpack.c.1.s8 %v2203
        %v2206 = vunpack.c.2.s8 %v2203
        %v2207 = vunpack.c.3.s8 %v2203
        %s2208 = scalar_lea.vmem [#allocation0], 8
        %2209 = vst [vmem:[%s2208] sm:%s178] %v2204
        %s2210 = sand.u32 %s178, 15
        %p2211 = scmp.ne.s32.totalorder %s2210, 0
        %s2212 = scalar_select %p2211, 1, 0
        %s2213 = sand.u32 %s178, 240
        %p2214 = scmp.ne.s32.totalorder %s2213, 0
        %s2215 = scalar_select %p2214, 2, 0
        %s2216 = sor.u32 %s2212, %s2215
        %v2217 = vld [vmem:[%s171] sm:%s2216]
        %v2218 = vunpack.c.0.s8 %v2217
        %v2219 = vunpack.c.1.s8 %v2217
        %v2220 = vunpack.c.2.s8 %v2217
        %v2221 = vunpack.c.3.s8 %v2217
        %2222 = vst [vmem:[#allocation0] sm:%s178] %v2218
        %s2223 = ssub.s32 0, %s17
        %s2224 = ssub.s32 1, %s18
        %s2225 = ssub.s32 0, %s20
        %s2226 = smul.u32 16, %s2223
        %s2227 = smul.u32 8, %s2224
        %s2228 = smul.u32 16, %s17
        %s2229 = smul.u32 8, %s18
        %s2230 = scalar_lea.vmem [#allocation0], 1016
        %v2231 = vld [vmem:[%s2230] sm:$0xff]
        %2232 = vperm.xlu0 %4, %v2231
        %v2233 = vpop.permute.xlu0 %2232
        %2234 = vst [vmem:[#allocation2] sm:$0xff] %v2233
        %s2235 = scalar_lea.vmem [#allocation2], 8
        %s2236 = scalar_lea.vmem [#allocation0], 1008
        %v2237 = vld [vmem:[%s2236] sm:$0xff]
        %2238 = vperm.xlu0 %4, %v2237
        %v2239 = vpop.permute.xlu0 %2238
        %2240 = vst [vmem:[%s2235] sm:$0xff] %v2239
        %s2241 = scalar_lea.vmem [#allocation2], 16
        %s2242 = scalar_lea.vmem [#allocation0], 1000
        %v2243 = vld [vmem:[%s2242] sm:$0xff]
        %2244 = vperm.xlu0 %4, %v2243
        %v2245 = vpop.permute.xlu0 %2244
        %2246 = vst [vmem:[%s2241] sm:$0xff] %v2245
        %s2247 = scalar_lea.vmem [#allocation2], 24
        %s2248 = scalar_lea.vmem [#allocation0], 992
        %v2249 = vld [vmem:[%s2248] sm:$0xff]
        %2250 = vperm.xlu0 %4, %v2249
        %v2251 = vpop.permute.xlu0 %2250
        %2252 = vst [vmem:[%s2247] sm:$0xff] %v2251
        %s2253 = scalar_lea.vmem [#allocation2], 32
        %s2254 = scalar_lea.vmem [#allocation0], 984
        %v2255 = vld [vmem:[%s2254] sm:$0xff]
        %2256 = vperm.xlu0 %4, %v2255
        %v2257 = vpop.permute.xlu0 %2256
        %2258 = vst [vmem:[%s2253] sm:$0xff] %v2257
        %s2259 = scalar_lea.vmem [#allocation2], 40
        %s2260 = scalar_lea.vmem [#allocation0], 976
        %v2261 = vld [vmem:[%s2260] sm:$0xff]
        %2262 = vperm.xlu0 %4, %v2261
        %v2263 = vpop.permute.xlu0 %2262
        %2264 = vst [vmem:[%s2259] sm:$0xff] %v2263
        %s2265 = scalar_lea.vmem [#allocation2], 48
        %s2266 = scalar_lea.vmem [#allocation0], 968
        %v2267 = vld [vmem:[%s2266] sm:$0xff]
        %2268 = vperm.xlu0 %4, %v2267
        %v2269 = vpop.permute.xlu0 %2268
        %2270 = vst [vmem:[%s2265] sm:$0xff] %v2269
        %s2271 = scalar_lea.vmem [#allocation2], 56
        %s2272 = scalar_lea.vmem [#allocation0], 960
        %v2273 = vld [vmem:[%s2272] sm:$0xff]
        %2274 = vperm.xlu0 %4, %v2273
        %v2275 = vpop.permute.xlu0 %2274
        %2276 = vst [vmem:[%s2271] sm:$0xff] %v2275
        %s2277 = scalar_lea.vmem [#allocation2], 64
        %s2278 = scalar_lea.vmem [#allocation0], 952
        %v2279 = vld [vmem:[%s2278] sm:$0xff]
        %2280 = vperm.xlu0 %4, %v2279
        %v2281 = vpop.permute.xlu0 %2280
        %2282 = vst [vmem:[%s2277] sm:$0xff] %v2281
        %s2283 = scalar_lea.vmem [#allocation2], 72
        %s2284 = scalar_lea.vmem [#allocation0], 944
        %v2285 = vld [vmem:[%s2284] sm:$0xff]
        %2286 = vperm.xlu0 %4, %v2285
        %v2287 = vpop.permute.xlu0 %2286
        %2288 = vst [vmem:[%s2283] sm:$0xff] %v2287
        %s2289 = scalar_lea.vmem [#allocation2], 80
        %s2290 = scalar_lea.vmem [#allocation0], 936
        %v2291 = vld [vmem:[%s2290] sm:$0xff]
        %2292 = vperm.xlu0 %4, %v2291
        %v2293 = vpop.permute.xlu0 %2292
        %2294 = vst [vmem:[%s2289] sm:$0xff] %v2293
        %s2295 = scalar_lea.vmem [#allocation2], 88
        %s2296 = scalar_lea.vmem [#allocation0], 928
        %v2297 = vld [vmem:[%s2296] sm:$0xff]
        %2298 = vperm.xlu0 %4, %v2297
        %v2299 = vpop.permute.xlu0 %2298
        %2300 = vst [vmem:[%s2295] sm:$0xff] %v2299
        %s2301 = scalar_lea.vmem [#allocation2], 96
        %s2302 = scalar_lea.vmem [#allocation0], 920
        %v2303 = vld [vmem:[%s2302] sm:$0xff]
        %2304 = vperm.xlu0 %4, %v2303
        %v2305 = vpop.permute.xlu0 %2304
        %2306 = vst [vmem:[%s2301] sm:$0xff] %v2305
        %s2307 = scalar_lea.vmem [#allocation2], 104
        %s2308 = scalar_lea.vmem [#allocation0], 912
        %v2309 = vld [vmem:[%s2308] sm:$0xff]
        %2310 = vperm.xlu0 %4, %v2309
        %v2311 = vpop.permute.xlu0 %2310
        %2312 = vst [vmem:[%s2307] sm:$0xff] %v2311
        %s2313 = scalar_lea.vmem [#allocation2], 112
        %s2314 = scalar_lea.vmem [#allocation0], 904
        %v2315 = vld [vmem:[%s2314] sm:$0xff]
        %2316 = vperm.xlu0 %4, %v2315
        %v2317 = vpop.permute.xlu0 %2316
        %2318 = vst [vmem:[%s2313] sm:$0xff] %v2317
        %s2319 = scalar_lea.vmem [#allocation2], 120
        %s2320 = scalar_lea.vmem [#allocation0], 896
        %v2321 = vld [vmem:[%s2320] sm:$0xff]
        %2322 = vperm.xlu0 %4, %v2321
        %v2323 = vpop.permute.xlu0 %2322
        %2324 = vst [vmem:[%s2319] sm:$0xff] %v2323
        %s2325 = scalar_lea.vmem [#allocation2], 128
        %s2326 = scalar_lea.vmem [#allocation0], 888
        %v2327 = vld [vmem:[%s2326] sm:$0xff]
        %2328 = vperm.xlu0 %4, %v2327
        %v2329 = vpop.permute.xlu0 %2328
        %2330 = vst [vmem:[%s2325] sm:$0xff] %v2329
        %s2331 = scalar_lea.vmem [#allocation2], 136
        %s2332 = scalar_lea.vmem [#allocation0], 880
        %v2333 = vld [vmem:[%s2332] sm:$0xff]
        %2334 = vperm.xlu0 %4, %v2333
        %v2335 = vpop.permute.xlu0 %2334
        %2336 = vst [vmem:[%s2331] sm:$0xff] %v2335
        %s2337 = scalar_lea.vmem [#allocation2], 144
        %s2338 = scalar_lea.vmem [#allocation0], 872
        %v2339 = vld [vmem:[%s2338] sm:$0xff]
        %2340 = vperm.xlu0 %4, %v2339
        %v2341 = vpop.permute.xlu0 %2340
        %2342 = vst [vmem:[%s2337] sm:$0xff] %v2341
        %s2343 = scalar_lea.vmem [#allocation2], 152
        %s2344 = scalar_lea.vmem [#allocation0], 864
        %v2345 = vld [vmem:[%s2344] sm:$0xff]
        %2346 = vperm.xlu0 %4, %v2345
        %v2347 = vpop.permute.xlu0 %2346
        %2348 = vst [vmem:[%s2343] sm:$0xff] %v2347
        %s2349 = scalar_lea.vmem [#allocation2], 160
        %s2350 = scalar_lea.vmem [#allocation0], 856
        %v2351 = vld [vmem:[%s2350] sm:$0xff]
        %2352 = vperm.xlu0 %4, %v2351
        %v2353 = vpop.permute.xlu0 %2352
        %2354 = vst [vmem:[%s2349] sm:$0xff] %v2353
        %s2355 = scalar_lea.vmem [#allocation2], 168
        %s2356 = scalar_lea.vmem [#allocation0], 848
        %v2357 = vld [vmem:[%s2356] sm:$0xff]
        %2358 = vperm.xlu0 %4, %v2357
        %v2359 = vpop.permute.xlu0 %2358
        %2360 = vst [vmem:[%s2355] sm:$0xff] %v2359
        %s2361 = scalar_lea.vmem [#allocation2], 176
        %s2362 = scalar_lea.vmem [#allocation0], 840
        %v2363 = vld [vmem:[%s2362] sm:$0xff]
        %2364 = vperm.xlu0 %4, %v2363
        %v2365 = vpop.permute.xlu0 %2364
        %2366 = vst [vmem:[%s2361] sm:$0xff] %v2365
        %s2367 = scalar_lea.vmem [#allocation2], 184
        %s2368 = scalar_lea.vmem [#allocation0], 832
        %v2369 = vld [vmem:[%s2368] sm:$0xff]
        %2370 = vperm.xlu0 %4, %v2369
        %v2371 = vpop.permute.xlu0 %2370
        %2372 = vst [vmem:[%s2367] sm:$0xff] %v2371
        %s2373 = scalar_lea.vmem [#allocation2], 192
        %s2374 = scalar_lea.vmem [#allocation0], 824
        %v2375 = vld [vmem:[%s2374] sm:$0xff]
        %2376 = vperm.xlu0 %4, %v2375
        %v2377 = vpop.permute.xlu0 %2376
        %2378 = vst [vmem:[%s2373] sm:$0xff] %v2377
        %s2379 = scalar_lea.vmem [#allocation2], 200
        %s2380 = scalar_lea.vmem [#allocation0], 816
        %v2381 = vld [vmem:[%s2380] sm:$0xff]
        %2382 = vperm.xlu0 %4, %v2381
        %v2383 = vpop.permute.xlu0 %2382
        %2384 = vst [vmem:[%s2379] sm:$0xff] %v2383
        %s2385 = scalar_lea.vmem [#allocation2], 208
        %s2386 = scalar_lea.vmem [#allocation0], 808
        %v2387 = vld [vmem:[%s2386] sm:$0xff]
        %2388 = vperm.xlu0 %4, %v2387
        %v2389 = vpop.permute.xlu0 %2388
        %2390 = vst [vmem:[%s2385] sm:$0xff] %v2389
        %s2391 = scalar_lea.vmem [#allocation2], 216
        %s2392 = scalar_lea.vmem [#allocation0], 800
        %v2393 = vld [vmem:[%s2392] sm:$0xff]
        %2394 = vperm.xlu0 %4, %v2393
        %v2395 = vpop.permute.xlu0 %2394
        %2396 = vst [vmem:[%s2391] sm:$0xff] %v2395
        %s2397 = scalar_lea.vmem [#allocation2], 224
        %s2398 = scalar_lea.vmem [#allocation0], 792
        %v2399 = vld [vmem:[%s2398] sm:$0xff]
        %2400 = vperm.xlu0 %4, %v2399
        %v2401 = vpop.permute.xlu0 %2400
        %2402 = vst [vmem:[%s2397] sm:$0xff] %v2401
        %s2403 = scalar_lea.vmem [#allocation2], 232
        %s2404 = scalar_lea.vmem [#allocation0], 784
        %v2405 = vld [vmem:[%s2404] sm:$0xff]
        %2406 = vperm.xlu0 %4, %v2405
        %v2407 = vpop.permute.xlu0 %2406
        %2408 = vst [vmem:[%s2403] sm:$0xff] %v2407
        %s2409 = scalar_lea.vmem [#allocation2], 240
        %s2410 = scalar_lea.vmem [#allocation0], 776
        %v2411 = vld [vmem:[%s2410] sm:$0xff]
        %2412 = vperm.xlu0 %4, %v2411
        %v2413 = vpop.permute.xlu0 %2412
        %2414 = vst [vmem:[%s2409] sm:$0xff] %v2413
        %s2415 = scalar_lea.vmem [#allocation2], 248
        %s2416 = scalar_lea.vmem [#allocation0], 768
        %v2417 = vld [vmem:[%s2416] sm:$0xff]
        %2418 = vperm.xlu0 %4, %v2417
        %v2419 = vpop.permute.xlu0 %2418
        %2420 = vst [vmem:[%s2415] sm:$0xff] %v2419
        %s2421 = scalar_lea.vmem [#allocation2], 256
        %s2422 = scalar_lea.vmem [#allocation0], 760
        %v2423 = vld [vmem:[%s2422] sm:$0xff]
        %2424 = vperm.xlu0 %4, %v2423
        %v2425 = vpop.permute.xlu0 %2424
        %2426 = vst [vmem:[%s2421] sm:$0xff] %v2425
        %s2427 = scalar_lea.vmem [#allocation2], 264
        %s2428 = scalar_lea.vmem [#allocation0], 752
        %v2429 = vld [vmem:[%s2428] sm:$0xff]
        %2430 = vperm.xlu0 %4, %v2429
        %v2431 = vpop.permute.xlu0 %2430
        %2432 = vst [vmem:[%s2427] sm:$0xff] %v2431
        %s2433 = scalar_lea.vmem [#allocation2], 272
        %s2434 = scalar_lea.vmem [#allocation0], 744
        %v2435 = vld [vmem:[%s2434] sm:$0xff]
        %2436 = vperm.xlu0 %4, %v2435
        %v2437 = vpop.permute.xlu0 %2436
        %2438 = vst [vmem:[%s2433] sm:$0xff] %v2437
        %s2439 = scalar_lea.vmem [#allocation2], 280
        %s2440 = scalar_lea.vmem [#allocation0], 736
        %v2441 = vld [vmem:[%s2440] sm:$0xff]
        %2442 = vperm.xlu0 %4, %v2441
        %v2443 = vpop.permute.xlu0 %2442
        %2444 = vst [vmem:[%s2439] sm:$0xff] %v2443
        %s2445 = scalar_lea.vmem [#allocation2], 288
        %s2446 = scalar_lea.vmem [#allocation0], 728
        %v2447 = vld [vmem:[%s2446] sm:$0xff]
        %2448 = vperm.xlu0 %4, %v2447
        %v2449 = vpop.permute.xlu0 %2448
        %2450 = vst [vmem:[%s2445] sm:$0xff] %v2449
        %s2451 = scalar_lea.vmem [#allocation2], 296
        %s2452 = scalar_lea.vmem [#allocation0], 720
        %v2453 = vld [vmem:[%s2452] sm:$0xff]
        %2454 = vperm.xlu0 %4, %v2453
        %v2455 = vpop.permute.xlu0 %2454
        %2456 = vst [vmem:[%s2451] sm:$0xff] %v2455
        %s2457 = scalar_lea.vmem [#allocation2], 304
        %s2458 = scalar_lea.vmem [#allocation0], 712
        %v2459 = vld [vmem:[%s2458] sm:$0xff]
        %2460 = vperm.xlu0 %4, %v2459
        %v2461 = vpop.permute.xlu0 %2460
        %2462 = vst [vmem:[%s2457] sm:$0xff] %v2461
        %s2463 = scalar_lea.vmem [#allocation2], 312
        %s2464 = scalar_lea.vmem [#allocation0], 704
        %v2465 = vld [vmem:[%s2464] sm:$0xff]
        %2466 = vperm.xlu0 %4, %v2465
        %v2467 = vpop.permute.xlu0 %2466
        %2468 = vst [vmem:[%s2463] sm:$0xff] %v2467
        %s2469 = scalar_lea.vmem [#allocation2], 320
        %s2470 = scalar_lea.vmem [#allocation0], 696
        %v2471 = vld [vmem:[%s2470] sm:$0xff]
        %2472 = vperm.xlu0 %4, %v2471
        %v2473 = vpop.permute.xlu0 %2472
        %2474 = vst [vmem:[%s2469] sm:$0xff] %v2473
        %s2475 = scalar_lea.vmem [#allocation2], 328
        %s2476 = scalar_lea.vmem [#allocation0], 688
        %v2477 = vld [vmem:[%s2476] sm:$0xff]
        %2478 = vperm.xlu0 %4, %v2477
        %v2479 = vpop.permute.xlu0 %2478
        %2480 = vst [vmem:[%s2475] sm:$0xff] %v2479
        %s2481 = scalar_lea.vmem [#allocation2], 336
        %s2482 = scalar_lea.vmem [#allocation0], 680
        %v2483 = vld [vmem:[%s2482] sm:$0xff]
        %2484 = vperm.xlu0 %4, %v2483
        %v2485 = vpop.permute.xlu0 %2484
        %2486 = vst [vmem:[%s2481] sm:$0xff] %v2485
        %s2487 = scalar_lea.vmem [#allocation2], 344
        %s2488 = scalar_lea.vmem [#allocation0], 672
        %v2489 = vld [vmem:[%s2488] sm:$0xff]
        %2490 = vperm.xlu0 %4, %v2489
        %v2491 = vpop.permute.xlu0 %2490
        %2492 = vst [vmem:[%s2487] sm:$0xff] %v2491
        %s2493 = scalar_lea.vmem [#allocation2], 352
        %s2494 = scalar_lea.vmem [#allocation0], 664
        %v2495 = vld [vmem:[%s2494] sm:$0xff]
        %2496 = vperm.xlu0 %4, %v2495
        %v2497 = vpop.permute.xlu0 %2496
        %2498 = vst [vmem:[%s2493] sm:$0xff] %v2497
        %s2499 = scalar_lea.vmem [#allocation2], 360
        %s2500 = scalar_lea.vmem [#allocation0], 656
        %v2501 = vld [vmem:[%s2500] sm:$0xff]
        %2502 = vperm.xlu0 %4, %v2501
        %v2503 = vpop.permute.xlu0 %2502
        %2504 = vst [vmem:[%s2499] sm:$0xff] %v2503
        %s2505 = scalar_lea.vmem [#allocation2], 368
        %s2506 = scalar_lea.vmem [#allocation0], 648
        %v2507 = vld [vmem:[%s2506] sm:$0xff]
        %2508 = vperm.xlu0 %4, %v2507
        %v2509 = vpop.permute.xlu0 %2508
        %2510 = vst [vmem:[%s2505] sm:$0xff] %v2509
        %s2511 = scalar_lea.vmem [#allocation2], 376
        %s2512 = scalar_lea.vmem [#allocation0], 640
        %v2513 = vld [vmem:[%s2512] sm:$0xff]
        %2514 = vperm.xlu0 %4, %v2513
        %v2515 = vpop.permute.xlu0 %2514
        %2516 = vst [vmem:[%s2511] sm:$0xff] %v2515
        %s2517 = scalar_lea.vmem [#allocation2], 384
        %s2518 = scalar_lea.vmem [#allocation0], 632
        %v2519 = vld [vmem:[%s2518] sm:$0xff]
        %2520 = vperm.xlu0 %4, %v2519
        %v2521 = vpop.permute.xlu0 %2520
        %2522 = vst [vmem:[%s2517] sm:$0xff] %v2521
        %s2523 = scalar_lea.vmem [#allocation2], 392
        %s2524 = scalar_lea.vmem [#allocation0], 624
        %v2525 = vld [vmem:[%s2524] sm:$0xff]
        %2526 = vperm.xlu0 %4, %v2525
        %v2527 = vpop.permute.xlu0 %2526
        %2528 = vst [vmem:[%s2523] sm:$0xff] %v2527
        %s2529 = scalar_lea.vmem [#allocation2], 400
        %s2530 = scalar_lea.vmem [#allocation0], 616
        %v2531 = vld [vmem:[%s2530] sm:$0xff]
        %2532 = vperm.xlu0 %4, %v2531
        %v2533 = vpop.permute.xlu0 %2532
        %2534 = vst [vmem:[%s2529] sm:$0xff] %v2533
        %s2535 = scalar_lea.vmem [#allocation2], 408
        %s2536 = scalar_lea.vmem [#allocation0], 608
        %v2537 = vld [vmem:[%s2536] sm:$0xff]
        %2538 = vperm.xlu0 %4, %v2537
        %v2539 = vpop.permute.xlu0 %2538
        %2540 = vst [vmem:[%s2535] sm:$0xff] %v2539
        %s2541 = scalar_lea.vmem [#allocation2], 416
        %s2542 = scalar_lea.vmem [#allocation0], 600
        %v2543 = vld [vmem:[%s2542] sm:$0xff]
        %2544 = vperm.xlu0 %4, %v2543
        %v2545 = vpop.permute.xlu0 %2544
        %2546 = vst [vmem:[%s2541] sm:$0xff] %v2545
        %s2547 = scalar_lea.vmem [#allocation2], 424
        %s2548 = scalar_lea.vmem [#allocation0], 592
        %v2549 = vld [vmem:[%s2548] sm:$0xff]
        %2550 = vperm.xlu0 %4, %v2549
        %v2551 = vpop.permute.xlu0 %2550
        %2552 = vst [vmem:[%s2547] sm:$0xff] %v2551
        %s2553 = scalar_lea.vmem [#allocation2], 432
        %s2554 = scalar_lea.vmem [#allocation0], 584
        %v2555 = vld [vmem:[%s2554] sm:$0xff]
        %2556 = vperm.xlu0 %4, %v2555
        %v2557 = vpop.permute.xlu0 %2556
        %2558 = vst [vmem:[%s2553] sm:$0xff] %v2557
        %s2559 = scalar_lea.vmem [#allocation2], 440
        %s2560 = scalar_lea.vmem [#allocation0], 576
        %v2561 = vld [vmem:[%s2560] sm:$0xff]
        %2562 = vperm.xlu0 %4, %v2561
        %v2563 = vpop.permute.xlu0 %2562
        %2564 = vst [vmem:[%s2559] sm:$0xff] %v2563
        %s2565 = scalar_lea.vmem [#allocation2], 448
        %s2566 = scalar_lea.vmem [#allocation0], 568
        %v2567 = vld [vmem:[%s2566] sm:$0xff]
        %2568 = vperm.xlu0 %4, %v2567
        %v2569 = vpop.permute.xlu0 %2568
        %2570 = vst [vmem:[%s2565] sm:$0xff] %v2569
        %s2571 = scalar_lea.vmem [#allocation2], 456
        %s2572 = scalar_lea.vmem [#allocation0], 560
        %v2573 = vld [vmem:[%s2572] sm:$0xff]
        %2574 = vperm.xlu0 %4, %v2573
        %v2575 = vpop.permute.xlu0 %2574
        %2576 = vst [vmem:[%s2571] sm:$0xff] %v2575
        %s2577 = scalar_lea.vmem [#allocation2], 464
        %s2578 = scalar_lea.vmem [#allocation0], 552
        %v2579 = vld [vmem:[%s2578] sm:$0xff]
        %2580 = vperm.xlu0 %4, %v2579
        %v2581 = vpop.permute.xlu0 %2580
        %2582 = vst [vmem:[%s2577] sm:$0xff] %v2581
        %s2583 = scalar_lea.vmem [#allocation2], 472
        %s2584 = scalar_lea.vmem [#allocation0], 544
        %v2585 = vld [vmem:[%s2584] sm:$0xff]
        %2586 = vperm.xlu0 %4, %v2585
        %v2587 = vpop.permute.xlu0 %2586
        %2588 = vst [vmem:[%s2583] sm:$0xff] %v2587
        %s2589 = scalar_lea.vmem [#allocation2], 480
        %s2590 = scalar_lea.vmem [#allocation0], 536
        %v2591 = vld [vmem:[%s2590] sm:$0xff]
        %2592 = vperm.xlu0 %4, %v2591
        %v2593 = vpop.permute.xlu0 %2592
        %2594 = vst [vmem:[%s2589] sm:$0xff] %v2593
        %s2595 = scalar_lea.vmem [#allocation2], 488
        %s2596 = scalar_lea.vmem [#allocation0], 528
        %v2597 = vld [vmem:[%s2596] sm:$0xff]
        %2598 = vperm.xlu0 %4, %v2597
        %v2599 = vpop.permute.xlu0 %2598
        %2600 = vst [vmem:[%s2595] sm:$0xff] %v2599
        %s2601 = scalar_lea.vmem [#allocation2], 496
        %s2602 = scalar_lea.vmem [#allocation0], 520
        %v2603 = vld [vmem:[%s2602] sm:$0xff]
        %2604 = vperm.xlu0 %4, %v2603
        %v2605 = vpop.permute.xlu0 %2604
        %2606 = vst [vmem:[%s2601] sm:$0xff] %v2605
        %s2607 = scalar_lea.vmem [#allocation2], 504
        %s2608 = scalar_lea.vmem [#allocation0], 512
        %v2609 = vld [vmem:[%s2608] sm:$0xff]
        %2610 = vperm.xlu0 %4, %v2609
        %v2611 = vpop.permute.xlu0 %2610
        %2612 = vst [vmem:[%s2607] sm:$0xff] %v2611
        %s2613 = scalar_lea.vmem [#allocation2], 512
        %s2614 = scalar_lea.vmem [#allocation0], 504
        %v2615 = vld [vmem:[%s2614] sm:$0xff]
        %2616 = vperm.xlu0 %4, %v2615
        %v2617 = vpop.permute.xlu0 %2616
        %2618 = vst [vmem:[%s2613] sm:$0xff] %v2617
        %s2619 = scalar_lea.vmem [#allocation2], 520
        %s2620 = scalar_lea.vmem [#allocation0], 496
        %v2621 = vld [vmem:[%s2620] sm:$0xff]
        %2622 = vperm.xlu0 %4, %v2621
        %v2623 = vpop.permute.xlu0 %2622
        %2624 = vst [vmem:[%s2619] sm:$0xff] %v2623
        %s2625 = scalar_lea.vmem [#allocation2], 528
        %s2626 = scalar_lea.vmem [#allocation0], 488
        %v2627 = vld [vmem:[%s2626] sm:$0xff]
        %2628 = vperm.xlu0 %4, %v2627
        %v2629 = vpop.permute.xlu0 %2628
        %2630 = vst [vmem:[%s2625] sm:$0xff] %v2629
        %s2631 = scalar_lea.vmem [#allocation2], 536
        %s2632 = scalar_lea.vmem [#allocation0], 480
        %v2633 = vld [vmem:[%s2632] sm:$0xff]
        %2634 = vperm.xlu0 %4, %v2633
        %v2635 = vpop.permute.xlu0 %2634
        %2636 = vst [vmem:[%s2631] sm:$0xff] %v2635
        %s2637 = scalar_lea.vmem [#allocation2], 544
        %s2638 = scalar_lea.vmem [#allocation0], 472
        %v2639 = vld [vmem:[%s2638] sm:$0xff]
        %2640 = vperm.xlu0 %4, %v2639
        %v2641 = vpop.permute.xlu0 %2640
        %2642 = vst [vmem:[%s2637] sm:$0xff] %v2641
        %s2643 = scalar_lea.vmem [#allocation2], 552
        %s2644 = scalar_lea.vmem [#allocation0], 464
        %v2645 = vld [vmem:[%s2644] sm:$0xff]
        %2646 = vperm.xlu0 %4, %v2645
        %v2647 = vpop.permute.xlu0 %2646
        %2648 = vst [vmem:[%s2643] sm:$0xff] %v2647
        %s2649 = scalar_lea.vmem [#allocation2], 560
        %s2650 = scalar_lea.vmem [#allocation0], 456
        %v2651 = vld [vmem:[%s2650] sm:$0xff]
        %2652 = vperm.xlu0 %4, %v2651
        %v2653 = vpop.permute.xlu0 %2652
        %2654 = vst [vmem:[%s2649] sm:$0xff] %v2653
        %s2655 = scalar_lea.vmem [#allocation2], 568
        %s2656 = scalar_lea.vmem [#allocation0], 448
        %v2657 = vld [vmem:[%s2656] sm:$0xff]
        %2658 = vperm.xlu0 %4, %v2657
        %v2659 = vpop.permute.xlu0 %2658
        %2660 = vst [vmem:[%s2655] sm:$0xff] %v2659
        %s2661 = scalar_lea.vmem [#allocation2], 576
        %s2662 = scalar_lea.vmem [#allocation0], 440
        %v2663 = vld [vmem:[%s2662] sm:$0xff]
        %2664 = vperm.xlu0 %4, %v2663
        %v2665 = vpop.permute.xlu0 %2664
        %2666 = vst [vmem:[%s2661] sm:$0xff] %v2665
        %s2667 = scalar_lea.vmem [#allocation2], 584
        %s2668 = scalar_lea.vmem [#allocation0], 432
        %v2669 = vld [vmem:[%s2668] sm:$0xff]
        %2670 = vperm.xlu0 %4, %v2669
        %v2671 = vpop.permute.xlu0 %2670
        %2672 = vst [vmem:[%s2667] sm:$0xff] %v2671
        %s2673 = scalar_lea.vmem [#allocation2], 592
        %s2674 = scalar_lea.vmem [#allocation0], 424
        %v2675 = vld [vmem:[%s2674] sm:$0xff]
        %2676 = vperm.xlu0 %4, %v2675
        %v2677 = vpop.permute.xlu0 %2676
        %2678 = vst [vmem:[%s2673] sm:$0xff] %v2677
        %s2679 = scalar_lea.vmem [#allocation2], 600
        %s2680 = scalar_lea.vmem [#allocation0], 416
        %v2681 = vld [vmem:[%s2680] sm:$0xff]
        %2682 = vperm.xlu0 %4, %v2681
        %v2683 = vpop.permute.xlu0 %2682
        %2684 = vst [vmem:[%s2679] sm:$0xff] %v2683
        %s2685 = scalar_lea.vmem [#allocation2], 608
        %s2686 = scalar_lea.vmem [#allocation0], 408
        %v2687 = vld [vmem:[%s2686] sm:$0xff]
        %2688 = vperm.xlu0 %4, %v2687
        %v2689 = vpop.permute.xlu0 %2688
        %2690 = vst [vmem:[%s2685] sm:$0xff] %v2689
        %s2691 = scalar_lea.vmem [#allocation2], 616
        %s2692 = scalar_lea.vmem [#allocation0], 400
        %v2693 = vld [vmem:[%s2692] sm:$0xff]
        %2694 = vperm.xlu0 %4, %v2693
        %v2695 = vpop.permute.xlu0 %2694
        %2696 = vst [vmem:[%s2691] sm:$0xff] %v2695
        %s2697 = scalar_lea.vmem [#allocation2], 624
        %s2698 = scalar_lea.vmem [#allocation0], 392
        %v2699 = vld [vmem:[%s2698] sm:$0xff]
        %2700 = vperm.xlu0 %4, %v2699
        %v2701 = vpop.permute.xlu0 %2700
        %2702 = vst [vmem:[%s2697] sm:$0xff] %v2701
        %s2703 = scalar_lea.vmem [#allocation2], 632
        %s2704 = scalar_lea.vmem [#allocation0], 384
        %v2705 = vld [vmem:[%s2704] sm:$0xff]
        %2706 = vperm.xlu0 %4, %v2705
        %v2707 = vpop.permute.xlu0 %2706
        %2708 = vst [vmem:[%s2703] sm:$0xff] %v2707
        %s2709 = scalar_lea.vmem [#allocation2], 640
        %s2710 = scalar_lea.vmem [#allocation0], 376
        %v2711 = vld [vmem:[%s2710] sm:$0xff]
        %2712 = vperm.xlu0 %4, %v2711
        %v2713 = vpop.permute.xlu0 %2712
        %2714 = vst [vmem:[%s2709] sm:$0xff] %v2713
        %s2715 = scalar_lea.vmem [#allocation2], 648
        %s2716 = scalar_lea.vmem [#allocation0], 368
        %v2717 = vld [vmem:[%s2716] sm:$0xff]
        %2718 = vperm.xlu0 %4, %v2717
        %v2719 = vpop.permute.xlu0 %2718
        %2720 = vst [vmem:[%s2715] sm:$0xff] %v2719
        %s2721 = scalar_lea.vmem [#allocation2], 656
        %s2722 = scalar_lea.vmem [#allocation0], 360
        %v2723 = vld [vmem:[%s2722] sm:$0xff]
        %2724 = vperm.xlu0 %4, %v2723
        %v2725 = vpop.permute.xlu0 %2724
        %2726 = vst [vmem:[%s2721] sm:$0xff] %v2725
        %s2727 = scalar_lea.vmem [#allocation2], 664
        %s2728 = scalar_lea.vmem [#allocation0], 352
        %v2729 = vld [vmem:[%s2728] sm:$0xff]
        %2730 = vperm.xlu0 %4, %v2729
        %v2731 = vpop.permute.xlu0 %2730
        %2732 = vst [vmem:[%s2727] sm:$0xff] %v2731
        %s2733 = scalar_lea.vmem [#allocation2], 672
        %s2734 = scalar_lea.vmem [#allocation0], 344
        %v2735 = vld [vmem:[%s2734] sm:$0xff]
        %2736 = vperm.xlu0 %4, %v2735
        %v2737 = vpop.permute.xlu0 %2736
        %2738 = vst [vmem:[%s2733] sm:$0xff] %v2737
        %s2739 = scalar_lea.vmem [#allocation2], 680
        %s2740 = scalar_lea.vmem [#allocation0], 336
        %v2741 = vld [vmem:[%s2740] sm:$0xff]
        %2742 = vperm.xlu0 %4, %v2741
        %v2743 = vpop.permute.xlu0 %2742
        %2744 = vst [vmem:[%s2739] sm:$0xff] %v2743
        %s2745 = scalar_lea.vmem [#allocation2], 688
        %s2746 = scalar_lea.vmem [#allocation0], 328
        %v2747 = vld [vmem:[%s2746] sm:$0xff]
        %2748 = vperm.xlu0 %4, %v2747
        %v2749 = vpop.permute.xlu0 %2748
        %2750 = vst [vmem:[%s2745] sm:$0xff] %v2749
        %s2751 = scalar_lea.vmem [#allocation2], 696
        %s2752 = scalar_lea.vmem [#allocation0], 320
        %v2753 = vld [vmem:[%s2752] sm:$0xff]
        %2754 = vperm.xlu0 %4, %v2753
        %v2755 = vpop.permute.xlu0 %2754
        %2756 = vst [vmem:[%s2751] sm:$0xff] %v2755
        %s2757 = scalar_lea.vmem [#allocation2], 704
        %s2758 = scalar_lea.vmem [#allocation0], 312
        %v2759 = vld [vmem:[%s2758] sm:$0xff]
        %2760 = vperm.xlu0 %4, %v2759
        %v2761 = vpop.permute.xlu0 %2760
        %2762 = vst [vmem:[%s2757] sm:$0xff] %v2761
        %s2763 = scalar_lea.vmem [#allocation2], 712
        %s2764 = scalar_lea.vmem [#allocation0], 304
        %v2765 = vld [vmem:[%s2764] sm:$0xff]
        %2766 = vperm.xlu0 %4, %v2765
        %v2767 = vpop.permute.xlu0 %2766
        %2768 = vst [vmem:[%s2763] sm:$0xff] %v2767
        %s2769 = scalar_lea.vmem [#allocation2], 720
        %s2770 = scalar_lea.vmem [#allocation0], 296
        %v2771 = vld [vmem:[%s2770] sm:$0xff]
        %2772 = vperm.xlu0 %4, %v2771
        %v2773 = vpop.permute.xlu0 %2772
        %2774 = vst [vmem:[%s2769] sm:$0xff] %v2773
        %s2775 = scalar_lea.vmem [#allocation2], 728
        %s2776 = scalar_lea.vmem [#allocation0], 288
        %v2777 = vld [vmem:[%s2776] sm:$0xff]
        %2778 = vperm.xlu0 %4, %v2777
        %v2779 = vpop.permute.xlu0 %2778
        %2780 = vst [vmem:[%s2775] sm:$0xff] %v2779
        %s2781 = scalar_lea.vmem [#allocation2], 736
        %s2782 = scalar_lea.vmem [#allocation0], 280
        %v2783 = vld [vmem:[%s2782] sm:$0xff]
        %2784 = vperm.xlu0 %4, %v2783
        %v2785 = vpop.permute.xlu0 %2784
        %2786 = vst [vmem:[%s2781] sm:$0xff] %v2785
        %s2787 = scalar_lea.vmem [#allocation2], 744
        %s2788 = scalar_lea.vmem [#allocation0], 272
        %v2789 = vld [vmem:[%s2788] sm:$0xff]
        %2790 = vperm.xlu0 %4, %v2789
        %v2791 = vpop.permute.xlu0 %2790
        %2792 = vst [vmem:[%s2787] sm:$0xff] %v2791
        %s2793 = scalar_lea.vmem [#allocation2], 752
        %s2794 = scalar_lea.vmem [#allocation0], 264
        %v2795 = vld [vmem:[%s2794] sm:$0xff]
        %2796 = vperm.xlu0 %4, %v2795
        %v2797 = vpop.permute.xlu0 %2796
        %2798 = vst [vmem:[%s2793] sm:$0xff] %v2797
        %s2799 = scalar_lea.vmem [#allocation2], 760
        %s2800 = scalar_lea.vmem [#allocation0], 256
        %v2801 = vld [vmem:[%s2800] sm:$0xff]
        %2802 = vperm.xlu0 %4, %v2801
        %v2803 = vpop.permute.xlu0 %2802
        %2804 = vst [vmem:[%s2799] sm:$0xff] %v2803
        %s2805 = scalar_lea.vmem [#allocation2], 768
        %s2806 = scalar_lea.vmem [#allocation0], 248
        %v2807 = vld [vmem:[%s2806] sm:$0xff]
        %2808 = vperm.xlu0 %4, %v2807
        %v2809 = vpop.permute.xlu0 %2808
        %2810 = vst [vmem:[%s2805] sm:$0xff] %v2809
        %s2811 = scalar_lea.vmem [#allocation2], 776
        %s2812 = scalar_lea.vmem [#allocation0], 240
        %v2813 = vld [vmem:[%s2812] sm:$0xff]
        %2814 = vperm.xlu0 %4, %v2813
        %v2815 = vpop.permute.xlu0 %2814
        %2816 = vst [vmem:[%s2811] sm:$0xff] %v2815
        %s2817 = scalar_lea.vmem [#allocation2], 784
        %s2818 = scalar_lea.vmem [#allocation0], 232
        %v2819 = vld [vmem:[%s2818] sm:$0xff]
        %2820 = vperm.xlu0 %4, %v2819
        %v2821 = vpop.permute.xlu0 %2820
        %2822 = vst [vmem:[%s2817] sm:$0xff] %v2821
        %s2823 = scalar_lea.vmem [#allocation2], 792
        %s2824 = scalar_lea.vmem [#allocation0], 224
        %v2825 = vld [vmem:[%s2824] sm:$0xff]
        %2826 = vperm.xlu0 %4, %v2825
        %v2827 = vpop.permute.xlu0 %2826
        %2828 = vst [vmem:[%s2823] sm:$0xff] %v2827
        %s2829 = scalar_lea.vmem [#allocation2], 800
        %s2830 = scalar_lea.vmem [#allocation0], 216
        %v2831 = vld [vmem:[%s2830] sm:$0xff]
        %2832 = vperm.xlu0 %4, %v2831
        %v2833 = vpop.permute.xlu0 %2832
        %2834 = vst [vmem:[%s2829] sm:$0xff] %v2833
        %s2835 = scalar_lea.vmem [#allocation2], 808
        %s2836 = scalar_lea.vmem [#allocation0], 208
        %v2837 = vld [vmem:[%s2836] sm:$0xff]
        %2838 = vperm.xlu0 %4, %v2837
        %v2839 = vpop.permute.xlu0 %2838
        %2840 = vst [vmem:[%s2835] sm:$0xff] %v2839
        %s2841 = scalar_lea.vmem [#allocation2], 816
        %s2842 = scalar_lea.vmem [#allocation0], 200
        %v2843 = vld [vmem:[%s2842] sm:$0xff]
        %2844 = vperm.xlu0 %4, %v2843
        %v2845 = vpop.permute.xlu0 %2844
        %2846 = vst [vmem:[%s2841] sm:$0xff] %v2845
        %s2847 = scalar_lea.vmem [#allocation2], 824
        %s2848 = scalar_lea.vmem [#allocation0], 192
        %v2849 = vld [vmem:[%s2848] sm:$0xff]
        %2850 = vperm.xlu0 %4, %v2849
        %v2851 = vpop.permute.xlu0 %2850
        %2852 = vst [vmem:[%s2847] sm:$0xff] %v2851
        %s2853 = scalar_lea.vmem [#allocation2], 832
        %s2854 = scalar_lea.vmem [#allocation0], 184
        %v2855 = vld [vmem:[%s2854] sm:$0xff]
        %2856 = vperm.xlu0 %4, %v2855
        %v2857 = vpop.permute.xlu0 %2856
        %2858 = vst [vmem:[%s2853] sm:$0xff] %v2857
        %s2859 = scalar_lea.vmem [#allocation2], 840
        %s2860 = scalar_lea.vmem [#allocation0], 176
        %v2861 = vld [vmem:[%s2860] sm:$0xff]
        %2862 = vperm.xlu0 %4, %v2861
        %v2863 = vpop.permute.xlu0 %2862
        %2864 = vst [vmem:[%s2859] sm:$0xff] %v2863
        %s2865 = scalar_lea.vmem [#allocation2], 848
        %s2866 = scalar_lea.vmem [#allocation0], 168
        %v2867 = vld [vmem:[%s2866] sm:$0xff]
        %2868 = vperm.xlu0 %4, %v2867
        %v2869 = vpop.permute.xlu0 %2868
        %2870 = vst [vmem:[%s2865] sm:$0xff] %v2869
        %s2871 = scalar_lea.vmem [#allocation2], 856
        %s2872 = scalar_lea.vmem [#allocation0], 160
        %v2873 = vld [vmem:[%s2872] sm:$0xff]
        %2874 = vperm.xlu0 %4, %v2873
        %v2875 = vpop.permute.xlu0 %2874
        %2876 = vst [vmem:[%s2871] sm:$0xff] %v2875
        %s2877 = scalar_lea.vmem [#allocation2], 864
        %s2878 = scalar_lea.vmem [#allocation0], 152
        %v2879 = vld [vmem:[%s2878] sm:$0xff]
        %2880 = vperm.xlu0 %4, %v2879
        %v2881 = vpop.permute.xlu0 %2880
        %2882 = vst [vmem:[%s2877] sm:$0xff] %v2881
        %s2883 = scalar_lea.vmem [#allocation2], 872
        %s2884 = scalar_lea.vmem [#allocation0], 144
        %v2885 = vld [vmem:[%s2884] sm:$0xff]
        %2886 = vperm.xlu0 %4, %v2885
        %v2887 = vpop.permute.xlu0 %2886
        %2888 = vst [vmem:[%s2883] sm:$0xff] %v2887
        %s2889 = scalar_lea.vmem [#allocation2], 880
        %s2890 = scalar_lea.vmem [#allocation0], 136
        %v2891 = vld [vmem:[%s2890] sm:$0xff]
        %2892 = vperm.xlu0 %4, %v2891
        %v2893 = vpop.permute.xlu0 %2892
        %2894 = vst [vmem:[%s2889] sm:$0xff] %v2893
        %s2895 = scalar_lea.vmem [#allocation2], 888
        %s2896 = scalar_lea.vmem [#allocation0], 128
        %v2897 = vld [vmem:[%s2896] sm:$0xff]
        %2898 = vperm.xlu0 %4, %v2897
        %v2899 = vpop.permute.xlu0 %2898
        %2900 = vst [vmem:[%s2895] sm:$0xff] %v2899
        %s2901 = scalar_lea.vmem [#allocation2], 896
        %s2902 = scalar_lea.vmem [#allocation0], 120
        %v2903 = vld [vmem:[%s2902] sm:$0xff]
        %2904 = vperm.xlu0 %4, %v2903
        %v2905 = vpop.permute.xlu0 %2904
        %2906 = vst [vmem:[%s2901] sm:$0xff] %v2905
        %s2907 = scalar_lea.vmem [#allocation2], 904
        %s2908 = scalar_lea.vmem [#allocation0], 112
        %v2909 = vld [vmem:[%s2908] sm:$0xff]
        %2910 = vperm.xlu0 %4, %v2909
        %v2911 = vpop.permute.xlu0 %2910
        %2912 = vst [vmem:[%s2907] sm:$0xff] %v2911
        %s2913 = scalar_lea.vmem [#allocation2], 912
        %s2914 = scalar_lea.vmem [#allocation0], 104
        %v2915 = vld [vmem:[%s2914] sm:$0xff]
        %2916 = vperm.xlu0 %4, %v2915
        %v2917 = vpop.permute.xlu0 %2916
        %2918 = vst [vmem:[%s2913] sm:$0xff] %v2917
        %s2919 = scalar_lea.vmem [#allocation2], 920
        %s2920 = scalar_lea.vmem [#allocation0], 96
        %v2921 = vld [vmem:[%s2920] sm:$0xff]
        %2922 = vperm.xlu0 %4, %v2921
        %v2923 = vpop.permute.xlu0 %2922
        %2924 = vst [vmem:[%s2919] sm:$0xff] %v2923
        %s2925 = scalar_lea.vmem [#allocation2], 928
        %s2926 = scalar_lea.vmem [#allocation0], 88
        %v2927 = vld [vmem:[%s2926] sm:$0xff]
        %2928 = vperm.xlu0 %4, %v2927
        %v2929 = vpop.permute.xlu0 %2928
        %2930 = vst [vmem:[%s2925] sm:$0xff] %v2929
        %s2931 = scalar_lea.vmem [#allocation2], 936
        %s2932 = scalar_lea.vmem [#allocation0], 80
        %v2933 = vld [vmem:[%s2932] sm:$0xff]
        %2934 = vperm.xlu0 %4, %v2933
        %v2935 = vpop.permute.xlu0 %2934
        %2936 = vst [vmem:[%s2931] sm:$0xff] %v2935
        %s2937 = scalar_lea.vmem [#allocation2], 944
        %s2938 = scalar_lea.vmem [#allocation0], 72
        %v2939 = vld [vmem:[%s2938] sm:$0xff]
        %2940 = vperm.xlu0 %4, %v2939
        %v2941 = vpop.permute.xlu0 %2940
        %2942 = vst [vmem:[%s2937] sm:$0xff] %v2941
        %s2943 = scalar_lea.vmem [#allocation2], 952
        %s2944 = scalar_lea.vmem [#allocation0], 64
        %v2945 = vld [vmem:[%s2944] sm:$0xff]
        %2946 = vperm.xlu0 %4, %v2945
        %v2947 = vpop.permute.xlu0 %2946
        %2948 = vst [vmem:[%s2943] sm:$0xff] %v2947
        %s2949 = scalar_lea.vmem [#allocation2], 960
        %s2950 = scalar_lea.vmem [#allocation0], 56
        %v2951 = vld [vmem:[%s2950] sm:$0xff]
        %2952 = vperm.xlu0 %4, %v2951
        %v2953 = vpop.permute.xlu0 %2952
        %2954 = vst [vmem:[%s2949] sm:$0xff] %v2953
        %s2955 = scalar_lea.vmem [#allocation2], 968
        %s2956 = scalar_lea.vmem [#allocation0], 48
        %v2957 = vld [vmem:[%s2956] sm:$0xff]
        %2958 = vperm.xlu0 %4, %v2957
        %v2959 = vpop.permute.xlu0 %2958
        %2960 = vst [vmem:[%s2955] sm:$0xff] %v2959
        %s2961 = scalar_lea.vmem [#allocation2], 976
        %s2962 = scalar_lea.vmem [#allocation0], 40
        %v2963 = vld [vmem:[%s2962] sm:$0xff]
        %2964 = vperm.xlu0 %4, %v2963
        %v2965 = vpop.permute.xlu0 %2964
        %2966 = vst [vmem:[%s2961] sm:$0xff] %v2965
        %s2967 = scalar_lea.vmem [#allocation2], 984
        %s2968 = scalar_lea.vmem [#allocation0], 32
        %v2969 = vld [vmem:[%s2968] sm:$0xff]
        %2970 = vperm.xlu0 %4, %v2969
        %v2971 = vpop.permute.xlu0 %2970
        %2972 = vst [vmem:[%s2967] sm:$0xff] %v2971
        %s2973 = scalar_lea.vmem [#allocation2], 992
        %s2974 = scalar_lea.vmem [#allocation0], 24
        %v2975 = vld [vmem:[%s2974] sm:$0xff]
        %2976 = vperm.xlu0 %4, %v2975
        %v2977 = vpop.permute.xlu0 %2976
        %2978 = vst [vmem:[%s2973] sm:$0xff] %v2977
        %s2979 = scalar_lea.vmem [#allocation2], 1000
        %s2980 = scalar_lea.vmem [#allocation0], 16
        %v2981 = vld [vmem:[%s2980] sm:$0xff]
        %2982 = vperm.xlu0 %4, %v2981
        %v2983 = vpop.permute.xlu0 %2982
        %2984 = vst [vmem:[%s2979] sm:$0xff] %v2983
        %s2985 = scalar_lea.vmem [#allocation2], 1008
        %s2986 = scalar_lea.vmem [#allocation0], 8
        %v2987 = vld [vmem:[%s2986] sm:$0xff]
        %2988 = vperm.xlu0 %4, %v2987
        %v2989 = vpop.permute.xlu0 %2988
        %2990 = vst [vmem:[%s2985] sm:$0xff] %v2989
        %s2991 = scalar_lea.vmem [#allocation2], 1016
        %v2992 = vld [vmem:[#allocation0] sm:$0xff]
        %2993 = vperm.xlu0 %4, %v2992
        %v2994 = vpop.permute.xlu0 %2993
        %2995 = vst [vmem:[%s2991] sm:$0xff] %v2994
        %s2997 = smul.u32 1, 4
        %s2998 = sshllo.u32 0, %s2997
        %s2999 = sshrl.u32 %s2997, 2
        %v3000 = vld [vmem:[#allocation2] sm:%s2998]
        %s3001 = sshllo.u32 0, %s2999
        %v3002 = vpack.c.b16 0, %v3000
        %v3003 = vpack.c.b8 0, %v3002
        %3004 = vst [vmem:[%s175] sm:%s3001] %v3003
        %s3005 = scalar_lea.vmem [#allocation2], 8
        %v3006 = vld [vmem:[%s3005] sm:%s2998]
        %s3007 = sshllo.u32 0, %s2999
        %s3008 = scalar_lea.vmem %s175, 1 [#allocation3]
        %v3009 = vpack.c.b16 0, %v3006
        %v3010 = vpack.c.b8 0, %v3009
        %3011 = vst [vmem:[%s3008] sm:%s3007] %v3010
        %s3012 = scalar_lea.vmem [#allocation2], 16
        %v3013 = vld [vmem:[%s3012] sm:%s2998]
        %s3014 = sshllo.u32 0, %s2999
        %s3015 = smul.addr 1, 2
        %s3016 = scalar_lea.vmem %s175, %s3015 [#allocation3]
        %v3017 = vpack.c.b16 0, %v3013
        %v3018 = vpack.c.b8 0, %v3017
        %3019 = vst [vmem:[%s3016] sm:%s3014] %v3018
        %s3020 = scalar_lea.vmem [#allocation2], 24
        %v3021 = vld [vmem:[%s3020] sm:%s2998]
        %s3022 = sshllo.u32 0, %s2999
        %s3023 = smul.addr 1, 3
        %s3024 = scalar_lea.vmem %s175, %s3023 [#allocation3]
        %v3025 = vpack.c.b16 0, %v3021
        %v3026 = vpack.c.b8 0, %v3025
        %3027 = vst [vmem:[%s3024] sm:%s3022] %v3026
        %s3028 = scalar_lea.vmem [#allocation2], 32
        %v3029 = vld [vmem:[%s3028] sm:%s2998]
        %s3030 = sshllo.u32 0, %s2999
        %s3031 = smul.addr 1, 4
        %s3032 = scalar_lea.vmem %s175, %s3031 [#allocation3]
        %v3033 = vpack.c.b16 0, %v3029
        %v3034 = vpack.c.b8 0, %v3033
        %3035 = vst [vmem:[%s3032] sm:%s3030] %v3034
        %s3036 = scalar_lea.vmem [#allocation2], 40
        %v3037 = vld [vmem:[%s3036] sm:%s2998]
        %s3038 = sshllo.u32 0, %s2999
        %s3039 = smul.addr 1, 5
        %s3040 = scalar_lea.vmem %s175, %s3039 [#allocation3]
        %v3041 = vpack.c.b16 0, %v3037
        %v3042 = vpack.c.b8 0, %v3041
        %3043 = vst [vmem:[%s3040] sm:%s3038] %v3042
        %s3044 = scalar_lea.vmem [#allocation2], 48
        %v3045 = vld [vmem:[%s3044] sm:%s2998]
        %s3046 = sshllo.u32 0, %s2999
        %s3047 = smul.addr 1, 6
        %s3048 = scalar_lea.vmem %s175, %s3047 [#allocation3]
        %v3049 = vpack.c.b16 0, %v3045
        %v3050 = vpack.c.b8 0, %v3049
        %3051 = vst [vmem:[%s3048] sm:%s3046] %v3050
        %s3052 = scalar_lea.vmem [#allocation2], 56
        %v3053 = vld [vmem:[%s3052] sm:%s2998]
        %s3054 = sshllo.u32 0, %s2999
        %s3055 = smul.addr 1, 7
        %s3056 = scalar_lea.vmem %s175, %s3055 [#allocation3]
        %v3057 = vpack.c.b16 0, %v3053
        %v3058 = vpack.c.b8 0, %v3057
        %3059 = vst [vmem:[%s3056] sm:%s3054] %v3058
        %s3060 = scalar_lea.vmem [#allocation2], 64
        %v3061 = vld [vmem:[%s3060] sm:%s2998]
        %s3062 = sshllo.u32 0, %s2999
        %s3063 = smul.addr 1, 8
        %s3064 = scalar_lea.vmem %s175, %s3063 [#allocation3]
        %v3065 = vpack.c.b16 0, %v3061
        %v3066 = vpack.c.b8 0, %v3065
        %3067 = vst [vmem:[%s3064] sm:%s3062] %v3066
        %s3068 = scalar_lea.vmem [#allocation2], 72
        %v3069 = vld [vmem:[%s3068] sm:%s2998]
        %s3070 = sshllo.u32 0, %s2999
        %s3071 = smul.addr 1, 9
        %s3072 = scalar_lea.vmem %s175, %s3071 [#allocation3]
        %v3073 = vpack.c.b16 0, %v3069
        %v3074 = vpack.c.b8 0, %v3073
        %3075 = vst [vmem:[%s3072] sm:%s3070] %v3074
        %s3076 = scalar_lea.vmem [#allocation2], 80
        %v3077 = vld [vmem:[%s3076] sm:%s2998]
        %s3078 = sshllo.u32 0, %s2999
        %s3079 = smul.addr 1, 10
        %s3080 = scalar_lea.vmem %s175, %s3079 [#allocation3]
        %v3081 = vpack.c.b16 0, %v3077
        %v3082 = vpack.c.b8 0, %v3081
        %3083 = vst [vmem:[%s3080] sm:%s3078] %v3082
        %s3084 = scalar_lea.vmem [#allocation2], 88
        %v3085 = vld [vmem:[%s3084] sm:%s2998]
        %s3086 = sshllo.u32 0, %s2999
        %s3087 = smul.addr 1, 11
        %s3088 = scalar_lea.vmem %s175, %s3087 [#allocation3]
        %v3089 = vpack.c.b16 0, %v3085
        %v3090 = vpack.c.b8 0, %v3089
        %3091 = vst [vmem:[%s3088] sm:%s3086] %v3090
        %s3092 = scalar_lea.vmem [#allocation2], 96
        %v3093 = vld [vmem:[%s3092] sm:%s2998]
        %s3094 = sshllo.u32 0, %s2999
        %s3095 = smul.addr 1, 12
        %s3096 = scalar_lea.vmem %s175, %s3095 [#allocation3]
        %v3097 = vpack.c.b16 0, %v3093
        %v3098 = vpack.c.b8 0, %v3097
        %3099 = vst [vmem:[%s3096] sm:%s3094] %v3098
        %s3100 = scalar_lea.vmem [#allocation2], 104
        %v3101 = vld [vmem:[%s3100] sm:%s2998]
        %s3102 = sshllo.u32 0, %s2999
        %s3103 = smul.addr 1, 13
        %s3104 = scalar_lea.vmem %s175, %s3103 [#allocation3]
        %v3105 = vpack.c.b16 0, %v3101
        %v3106 = vpack.c.b8 0, %v3105
        %3107 = vst [vmem:[%s3104] sm:%s3102] %v3106
        %s3108 = scalar_lea.vmem [#allocation2], 112
        %v3109 = vld [vmem:[%s3108] sm:%s2998]
        %s3110 = sshllo.u32 0, %s2999
        %s3111 = smul.addr 1, 14
        %s3112 = scalar_lea.vmem %s175, %s3111 [#allocation3]
        %v3113 = vpack.c.b16 0, %v3109
        %v3114 = vpack.c.b8 0, %v3113
        %3115 = vst [vmem:[%s3112] sm:%s3110] %v3114
        %s3116 = scalar_lea.vmem [#allocation2], 120
        %v3117 = vld [vmem:[%s3116] sm:%s2998]
        %s3118 = sshllo.u32 0, %s2999
        %s3119 = smul.addr 1, 15
        %s3120 = scalar_lea.vmem %s175, %s3119 [#allocation3]
        %v3121 = vpack.c.b16 0, %v3117
        %v3122 = vpack.c.b8 0, %v3121
        %3123 = vst [vmem:[%s3120] sm:%s3118] %v3122
        %s3124 = scalar_lea.vmem [#allocation2], 128
        %v3125 = vld [vmem:[%s3124] sm:%s2998]
        %s3126 = sshllo.u32 0, %s2999
        %s3127 = smul.addr 1, 16
        %s3128 = scalar_lea.vmem %s175, %s3127 [#allocation3]
        %v3129 = vpack.c.b16 0, %v3125
        %v3130 = vpack.c.b8 0, %v3129
        %3131 = vst [vmem:[%s3128] sm:%s3126] %v3130
        %s3132 = scalar_lea.vmem [#allocation2], 136
        %v3133 = vld [vmem:[%s3132] sm:%s2998]
        %s3134 = sshllo.u32 0, %s2999
        %s3135 = smul.addr 1, 17
        %s3136 = scalar_lea.vmem %s175, %s3135 [#allocation3]
        %v3137 = vpack.c.b16 0, %v3133
        %v3138 = vpack.c.b8 0, %v3137
        %3139 = vst [vmem:[%s3136] sm:%s3134] %v3138
        %s3140 = scalar_lea.vmem [#allocation2], 144
        %v3141 = vld [vmem:[%s3140] sm:%s2998]
        %s3142 = sshllo.u32 0, %s2999
        %s3143 = smul.addr 1, 18
        %s3144 = scalar_lea.vmem %s175, %s3143 [#allocation3]
        %v3145 = vpack.c.b16 0, %v3141
        %v3146 = vpack.c.b8 0, %v3145
        %3147 = vst [vmem:[%s3144] sm:%s3142] %v3146
        %s3148 = scalar_lea.vmem [#allocation2], 152
        %v3149 = vld [vmem:[%s3148] sm:%s2998]
        %s3150 = sshllo.u32 0, %s2999
        %s3151 = smul.addr 1, 19
        %s3152 = scalar_lea.vmem %s175, %s3151 [#allocation3]
        %v3153 = vpack.c.b16 0, %v3149
        %v3154 = vpack.c.b8 0, %v3153
        %3155 = vst [vmem:[%s3152] sm:%s3150] %v3154
        %s3156 = scalar_lea.vmem [#allocation2], 160
        %v3157 = vld [vmem:[%s3156] sm:%s2998]
        %s3158 = sshllo.u32 0, %s2999
        %s3159 = smul.addr 1, 20
        %s3160 = scalar_lea.vmem %s175, %s3159 [#allocation3]
        %v3161 = vpack.c.b16 0, %v3157
        %v3162 = vpack.c.b8 0, %v3161
        %3163 = vst [vmem:[%s3160] sm:%s3158] %v3162
        %s3164 = scalar_lea.vmem [#allocation2], 168
        %v3165 = vld [vmem:[%s3164] sm:%s2998]
        %s3166 = sshllo.u32 0, %s2999
        %s3167 = smul.addr 1, 21
        %s3168 = scalar_lea.vmem %s175, %s3167 [#allocation3]
        %v3169 = vpack.c.b16 0, %v3165
        %v3170 = vpack.c.b8 0, %v3169
        %3171 = vst [vmem:[%s3168] sm:%s3166] %v3170
        %s3172 = scalar_lea.vmem [#allocation2], 176
        %v3173 = vld [vmem:[%s3172] sm:%s2998]
        %s3174 = sshllo.u32 0, %s2999
        %s3175 = smul.addr 1, 22
        %s3176 = scalar_lea.vmem %s175, %s3175 [#allocation3]
        %v3177 = vpack.c.b16 0, %v3173
        %v3178 = vpack.c.b8 0, %v3177
        %3179 = vst [vmem:[%s3176] sm:%s3174] %v3178
        %s3180 = scalar_lea.vmem [#allocation2], 184
        %v3181 = vld [vmem:[%s3180] sm:%s2998]
        %s3182 = sshllo.u32 0, %s2999
        %s3183 = smul.addr 1, 23
        %s3184 = scalar_lea.vmem %s175, %s3183 [#allocation3]
        %v3185 = vpack.c.b16 0, %v3181
        %v3186 = vpack.c.b8 0, %v3185
        %3187 = vst [vmem:[%s3184] sm:%s3182] %v3186
        %s3188 = scalar_lea.vmem [#allocation2], 192
        %v3189 = vld [vmem:[%s3188] sm:%s2998]
        %s3190 = sshllo.u32 0, %s2999
        %s3191 = smul.addr 1, 24
        %s3192 = scalar_lea.vmem %s175, %s3191 [#allocation3]
        %v3193 = vpack.c.b16 0, %v3189
        %v3194 = vpack.c.b8 0, %v3193
        %3195 = vst [vmem:[%s3192] sm:%s3190] %v3194
        %s3196 = scalar_lea.vmem [#allocation2], 200
        %v3197 = vld [vmem:[%s3196] sm:%s2998]
        %s3198 = sshllo.u32 0, %s2999
        %s3199 = smul.addr 1, 25
        %s3200 = scalar_lea.vmem %s175, %s3199 [#allocation3]
        %v3201 = vpack.c.b16 0, %v3197
        %v3202 = vpack.c.b8 0, %v3201
        %3203 = vst [vmem:[%s3200] sm:%s3198] %v3202
        %s3204 = scalar_lea.vmem [#allocation2], 208
        %v3205 = vld [vmem:[%s3204] sm:%s2998]
        %s3206 = sshllo.u32 0, %s2999
        %s3207 = smul.addr 1, 26
        %s3208 = scalar_lea.vmem %s175, %s3207 [#allocation3]
        %v3209 = vpack.c.b16 0, %v3205
        %v3210 = vpack.c.b8 0, %v3209
        %3211 = vst [vmem:[%s3208] sm:%s3206] %v3210
        %s3212 = scalar_lea.vmem [#allocation2], 216
        %v3213 = vld [vmem:[%s3212] sm:%s2998]
        %s3214 = sshllo.u32 0, %s2999
        %s3215 = smul.addr 1, 27
        %s3216 = scalar_lea.vmem %s175, %s3215 [#allocation3]
        %v3217 = vpack.c.b16 0, %v3213
        %v3218 = vpack.c.b8 0, %v3217
        %3219 = vst [vmem:[%s3216] sm:%s3214] %v3218
        %s3220 = scalar_lea.vmem [#allocation2], 224
        %v3221 = vld [vmem:[%s3220] sm:%s2998]
        %s3222 = sshllo.u32 0, %s2999
        %s3223 = smul.addr 1, 28
        %s3224 = scalar_lea.vmem %s175, %s3223 [#allocation3]
        %v3225 = vpack.c.b16 0, %v3221
        %v3226 = vpack.c.b8 0, %v3225
        %3227 = vst [vmem:[%s3224] sm:%s3222] %v3226
        %s3228 = scalar_lea.vmem [#allocation2], 232
        %v3229 = vld [vmem:[%s3228] sm:%s2998]
        %s3230 = sshllo.u32 0, %s2999
        %s3231 = smul.addr 1, 29
        %s3232 = scalar_lea.vmem %s175, %s3231 [#allocation3]
        %v3233 = vpack.c.b16 0, %v3229
        %v3234 = vpack.c.b8 0, %v3233
        %3235 = vst [vmem:[%s3232] sm:%s3230] %v3234
        %s3236 = scalar_lea.vmem [#allocation2], 240
        %v3237 = vld [vmem:[%s3236] sm:%s2998]
        %s3238 = sshllo.u32 0, %s2999
        %s3239 = smul.addr 1, 30
        %s3240 = scalar_lea.vmem %s175, %s3239 [#allocation3]
        %v3241 = vpack.c.b16 0, %v3237
        %v3242 = vpack.c.b8 0, %v3241
        %3243 = vst [vmem:[%s3240] sm:%s3238] %v3242
        %s3244 = scalar_lea.vmem [#allocation2], 248
        %v3245 = vld [vmem:[%s3244] sm:%s2998]
        %s3246 = sshllo.u32 0, %s2999
        %s3247 = smul.addr 1, 31
        %s3248 = scalar_lea.vmem %s175, %s3247 [#allocation3]
        %v3249 = vpack.c.b16 0, %v3245
        %v3250 = vpack.c.b8 0, %v3249
        %3251 = vst [vmem:[%s3248] sm:%s3246] %v3250
        %s3252 = scalar_lea.vmem [#allocation2], 256
        %v3253 = vld [vmem:[%s3252] sm:%s2998]
        %s3254 = sshllo.u32 0, %s2999
        %s3255 = smul.addr 1, 32
        %s3256 = scalar_lea.vmem %s175, %s3255 [#allocation3]
        %v3257 = vpack.c.b16 0, %v3253
        %v3258 = vpack.c.b8 0, %v3257
        %3259 = vst [vmem:[%s3256] sm:%s3254] %v3258
        %s3260 = scalar_lea.vmem [#allocation2], 264
        %v3261 = vld [vmem:[%s3260] sm:%s2998]
        %s3262 = sshllo.u32 0, %s2999
        %s3263 = smul.addr 1, 33
        %s3264 = scalar_lea.vmem %s175, %s3263 [#allocation3]
        %v3265 = vpack.c.b16 0, %v3261
        %v3266 = vpack.c.b8 0, %v3265
        %3267 = vst [vmem:[%s3264] sm:%s3262] %v3266
        %s3268 = scalar_lea.vmem [#allocation2], 272
        %v3269 = vld [vmem:[%s3268] sm:%s2998]
        %s3270 = sshllo.u32 0, %s2999
        %s3271 = smul.addr 1, 34
        %s3272 = scalar_lea.vmem %s175, %s3271 [#allocation3]
        %v3273 = vpack.c.b16 0, %v3269
        %v3274 = vpack.c.b8 0, %v3273
        %3275 = vst [vmem:[%s3272] sm:%s3270] %v3274
        %s3276 = scalar_lea.vmem [#allocation2], 280
        %v3277 = vld [vmem:[%s3276] sm:%s2998]
        %s3278 = sshllo.u32 0, %s2999
        %s3279 = smul.addr 1, 35
        %s3280 = scalar_lea.vmem %s175, %s3279 [#allocation3]
        %v3281 = vpack.c.b16 0, %v3277
        %v3282 = vpack.c.b8 0, %v3281
        %3283 = vst [vmem:[%s3280] sm:%s3278] %v3282
        %s3284 = scalar_lea.vmem [#allocation2], 288
        %v3285 = vld [vmem:[%s3284] sm:%s2998]
        %s3286 = sshllo.u32 0, %s2999
        %s3287 = smul.addr 1, 36
        %s3288 = scalar_lea.vmem %s175, %s3287 [#allocation3]
        %v3289 = vpack.c.b16 0, %v3285
        %v3290 = vpack.c.b8 0, %v3289
        %3291 = vst [vmem:[%s3288] sm:%s3286] %v3290
        %s3292 = scalar_lea.vmem [#allocation2], 296
        %v3293 = vld [vmem:[%s3292] sm:%s2998]
        %s3294 = sshllo.u32 0, %s2999
        %s3295 = smul.addr 1, 37
        %s3296 = scalar_lea.vmem %s175, %s3295 [#allocation3]
        %v3297 = vpack.c.b16 0, %v3293
        %v3298 = vpack.c.b8 0, %v3297
        %3299 = vst [vmem:[%s3296] sm:%s3294] %v3298
        %s3300 = scalar_lea.vmem [#allocation2], 304
        %v3301 = vld [vmem:[%s3300] sm:%s2998]
        %s3302 = sshllo.u32 0, %s2999
        %s3303 = smul.addr 1, 38
        %s3304 = scalar_lea.vmem %s175, %s3303 [#allocation3]
        %v3305 = vpack.c.b16 0, %v3301
        %v3306 = vpack.c.b8 0, %v3305
        %3307 = vst [vmem:[%s3304] sm:%s3302] %v3306
        %s3308 = scalar_lea.vmem [#allocation2], 312
        %v3309 = vld [vmem:[%s3308] sm:%s2998]
        %s3310 = sshllo.u32 0, %s2999
        %s3311 = smul.addr 1, 39
        %s3312 = scalar_lea.vmem %s175, %s3311 [#allocation3]
        %v3313 = vpack.c.b16 0, %v3309
        %v3314 = vpack.c.b8 0, %v3313
        %3315 = vst [vmem:[%s3312] sm:%s3310] %v3314
        %s3316 = scalar_lea.vmem [#allocation2], 320
        %v3317 = vld [vmem:[%s3316] sm:%s2998]
        %s3318 = sshllo.u32 0, %s2999
        %s3319 = smul.addr 1, 40
        %s3320 = scalar_lea.vmem %s175, %s3319 [#allocation3]
        %v3321 = vpack.c.b16 0, %v3317
        %v3322 = vpack.c.b8 0, %v3321
        %3323 = vst [vmem:[%s3320] sm:%s3318] %v3322
        %s3324 = scalar_lea.vmem [#allocation2], 328
        %v3325 = vld [vmem:[%s3324] sm:%s2998]
        %s3326 = sshllo.u32 0, %s2999
        %s3327 = smul.addr 1, 41
        %s3328 = scalar_lea.vmem %s175, %s3327 [#allocation3]
        %v3329 = vpack.c.b16 0, %v3325
        %v3330 = vpack.c.b8 0, %v3329
        %3331 = vst [vmem:[%s3328] sm:%s3326] %v3330
        %s3332 = scalar_lea.vmem [#allocation2], 336
        %v3333 = vld [vmem:[%s3332] sm:%s2998]
        %s3334 = sshllo.u32 0, %s2999
        %s3335 = smul.addr 1, 42
        %s3336 = scalar_lea.vmem %s175, %s3335 [#allocation3]
        %v3337 = vpack.c.b16 0, %v3333
        %v3338 = vpack.c.b8 0, %v3337
        %3339 = vst [vmem:[%s3336] sm:%s3334] %v3338
        %s3340 = scalar_lea.vmem [#allocation2], 344
        %v3341 = vld [vmem:[%s3340] sm:%s2998]
        %s3342 = sshllo.u32 0, %s2999
        %s3343 = smul.addr 1, 43
        %s3344 = scalar_lea.vmem %s175, %s3343 [#allocation3]
        %v3345 = vpack.c.b16 0, %v3341
        %v3346 = vpack.c.b8 0, %v3345
        %3347 = vst [vmem:[%s3344] sm:%s3342] %v3346
        %s3348 = scalar_lea.vmem [#allocation2], 352
        %v3349 = vld [vmem:[%s3348] sm:%s2998]
        %s3350 = sshllo.u32 0, %s2999
        %s3351 = smul.addr 1, 44
        %s3352 = scalar_lea.vmem %s175, %s3351 [#allocation3]
        %v3353 = vpack.c.b16 0, %v3349
        %v3354 = vpack.c.b8 0, %v3353
        %3355 = vst [vmem:[%s3352] sm:%s3350] %v3354
        %s3356 = scalar_lea.vmem [#allocation2], 360
        %v3357 = vld [vmem:[%s3356] sm:%s2998]
        %s3358 = sshllo.u32 0, %s2999
        %s3359 = smul.addr 1, 45
        %s3360 = scalar_lea.vmem %s175, %s3359 [#allocation3]
        %v3361 = vpack.c.b16 0, %v3357
        %v3362 = vpack.c.b8 0, %v3361
        %3363 = vst [vmem:[%s3360] sm:%s3358] %v3362
        %s3364 = scalar_lea.vmem [#allocation2], 368
        %v3365 = vld [vmem:[%s3364] sm:%s2998]
        %s3366 = sshllo.u32 0, %s2999
        %s3367 = smul.addr 1, 46
        %s3368 = scalar_lea.vmem %s175, %s3367 [#allocation3]
        %v3369 = vpack.c.b16 0, %v3365
        %v3370 = vpack.c.b8 0, %v3369
        %3371 = vst [vmem:[%s3368] sm:%s3366] %v3370
        %s3372 = scalar_lea.vmem [#allocation2], 376
        %v3373 = vld [vmem:[%s3372] sm:%s2998]
        %s3374 = sshllo.u32 0, %s2999
        %s3375 = smul.addr 1, 47
        %s3376 = scalar_lea.vmem %s175, %s3375 [#allocation3]
        %v3377 = vpack.c.b16 0, %v3373
        %v3378 = vpack.c.b8 0, %v3377
        %3379 = vst [vmem:[%s3376] sm:%s3374] %v3378
        %s3380 = scalar_lea.vmem [#allocation2], 384
        %v3381 = vld [vmem:[%s3380] sm:%s2998]
        %s3382 = sshllo.u32 0, %s2999
        %s3383 = smul.addr 1, 48
        %s3384 = scalar_lea.vmem %s175, %s3383 [#allocation3]
        %v3385 = vpack.c.b16 0, %v3381
        %v3386 = vpack.c.b8 0, %v3385
        %3387 = vst [vmem:[%s3384] sm:%s3382] %v3386
        %s3388 = scalar_lea.vmem [#allocation2], 392
        %v3389 = vld [vmem:[%s3388] sm:%s2998]
        %s3390 = sshllo.u32 0, %s2999
        %s3391 = smul.addr 1, 49
        %s3392 = scalar_lea.vmem %s175, %s3391 [#allocation3]
        %v3393 = vpack.c.b16 0, %v3389
        %v3394 = vpack.c.b8 0, %v3393
        %3395 = vst [vmem:[%s3392] sm:%s3390] %v3394
        %s3396 = scalar_lea.vmem [#allocation2], 400
        %v3397 = vld [vmem:[%s3396] sm:%s2998]
        %s3398 = sshllo.u32 0, %s2999
        %s3399 = smul.addr 1, 50
        %s3400 = scalar_lea.vmem %s175, %s3399 [#allocation3]
        %v3401 = vpack.c.b16 0, %v3397
        %v3402 = vpack.c.b8 0, %v3401
        %3403 = vst [vmem:[%s3400] sm:%s3398] %v3402
        %s3404 = scalar_lea.vmem [#allocation2], 408
        %v3405 = vld [vmem:[%s3404] sm:%s2998]
        %s3406 = sshllo.u32 0, %s2999
        %s3407 = smul.addr 1, 51
        %s3408 = scalar_lea.vmem %s175, %s3407 [#allocation3]
        %v3409 = vpack.c.b16 0, %v3405
        %v3410 = vpack.c.b8 0, %v3409
        %3411 = vst [vmem:[%s3408] sm:%s3406] %v3410
        %s3412 = scalar_lea.vmem [#allocation2], 416
        %v3413 = vld [vmem:[%s3412] sm:%s2998]
        %s3414 = sshllo.u32 0, %s2999
        %s3415 = smul.addr 1, 52
        %s3416 = scalar_lea.vmem %s175, %s3415 [#allocation3]
        %v3417 = vpack.c.b16 0, %v3413
        %v3418 = vpack.c.b8 0, %v3417
        %3419 = vst [vmem:[%s3416] sm:%s3414] %v3418
        %s3420 = scalar_lea.vmem [#allocation2], 424
        %v3421 = vld [vmem:[%s3420] sm:%s2998]
        %s3422 = sshllo.u32 0, %s2999
        %s3423 = smul.addr 1, 53
        %s3424 = scalar_lea.vmem %s175, %s3423 [#allocation3]
        %v3425 = vpack.c.b16 0, %v3421
        %v3426 = vpack.c.b8 0, %v3425
        %3427 = vst [vmem:[%s3424] sm:%s3422] %v3426
        %s3428 = scalar_lea.vmem [#allocation2], 432
        %v3429 = vld [vmem:[%s3428] sm:%s2998]
        %s3430 = sshllo.u32 0, %s2999
        %s3431 = smul.addr 1, 54
        %s3432 = scalar_lea.vmem %s175, %s3431 [#allocation3]
        %v3433 = vpack.c.b16 0, %v3429
        %v3434 = vpack.c.b8 0, %v3433
        %3435 = vst [vmem:[%s3432] sm:%s3430] %v3434
        %s3436 = scalar_lea.vmem [#allocation2], 440
        %v3437 = vld [vmem:[%s3436] sm:%s2998]
        %s3438 = sshllo.u32 0, %s2999
        %s3439 = smul.addr 1, 55
        %s3440 = scalar_lea.vmem %s175, %s3439 [#allocation3]
        %v3441 = vpack.c.b16 0, %v3437
        %v3442 = vpack.c.b8 0, %v3441
        %3443 = vst [vmem:[%s3440] sm:%s3438] %v3442
        %s3444 = scalar_lea.vmem [#allocation2], 448
        %v3445 = vld [vmem:[%s3444] sm:%s2998]
        %s3446 = sshllo.u32 0, %s2999
        %s3447 = smul.addr 1, 56
        %s3448 = scalar_lea.vmem %s175, %s3447 [#allocation3]
        %v3449 = vpack.c.b16 0, %v3445
        %v3450 = vpack.c.b8 0, %v3449
        %3451 = vst [vmem:[%s3448] sm:%s3446] %v3450
        %s3452 = scalar_lea.vmem [#allocation2], 456
        %v3453 = vld [vmem:[%s3452] sm:%s2998]
        %s3454 = sshllo.u32 0, %s2999
        %s3455 = smul.addr 1, 57
        %s3456 = scalar_lea.vmem %s175, %s3455 [#allocation3]
        %v3457 = vpack.c.b16 0, %v3453
        %v3458 = vpack.c.b8 0, %v3457
        %3459 = vst [vmem:[%s3456] sm:%s3454] %v3458
        %s3460 = scalar_lea.vmem [#allocation2], 464
        %v3461 = vld [vmem:[%s3460] sm:%s2998]
        %s3462 = sshllo.u32 0, %s2999
        %s3463 = smul.addr 1, 58
        %s3464 = scalar_lea.vmem %s175, %s3463 [#allocation3]
        %v3465 = vpack.c.b16 0, %v3461
        %v3466 = vpack.c.b8 0, %v3465
        %3467 = vst [vmem:[%s3464] sm:%s3462] %v3466
        %s3468 = scalar_lea.vmem [#allocation2], 472
        %v3469 = vld [vmem:[%s3468] sm:%s2998]
        %s3470 = sshllo.u32 0, %s2999
        %s3471 = smul.addr 1, 59
        %s3472 = scalar_lea.vmem %s175, %s3471 [#allocation3]
        %v3473 = vpack.c.b16 0, %v3469
        %v3474 = vpack.c.b8 0, %v3473
        %3475 = vst [vmem:[%s3472] sm:%s3470] %v3474
        %s3476 = scalar_lea.vmem [#allocation2], 480
        %v3477 = vld [vmem:[%s3476] sm:%s2998]
        %s3478 = sshllo.u32 0, %s2999
        %s3479 = smul.addr 1, 60
        %s3480 = scalar_lea.vmem %s175, %s3479 [#allocation3]
        %v3481 = vpack.c.b16 0, %v3477
        %v3482 = vpack.c.b8 0, %v3481
        %3483 = vst [vmem:[%s3480] sm:%s3478] %v3482
        %s3484 = scalar_lea.vmem [#allocation2], 488
        %v3485 = vld [vmem:[%s3484] sm:%s2998]
        %s3486 = sshllo.u32 0, %s2999
        %s3487 = smul.addr 1, 61
        %s3488 = scalar_lea.vmem %s175, %s3487 [#allocation3]
        %v3489 = vpack.c.b16 0, %v3485
        %v3490 = vpack.c.b8 0, %v3489
        %3491 = vst [vmem:[%s3488] sm:%s3486] %v3490
        %s3492 = scalar_lea.vmem [#allocation2], 496
        %v3493 = vld [vmem:[%s3492] sm:%s2998]
        %s3494 = sshllo.u32 0, %s2999
        %s3495 = smul.addr 1, 62
        %s3496 = scalar_lea.vmem %s175, %s3495 [#allocation3]
        %v3497 = vpack.c.b16 0, %v3493
        %v3498 = vpack.c.b8 0, %v3497
        %3499 = vst [vmem:[%s3496] sm:%s3494] %v3498
        %s3500 = scalar_lea.vmem [#allocation2], 504
        %v3501 = vld [vmem:[%s3500] sm:%s2998]
        %s3502 = sshllo.u32 0, %s2999
        %s3503 = smul.addr 1, 63
        %s3504 = scalar_lea.vmem %s175, %s3503 [#allocation3]
        %v3505 = vpack.c.b16 0, %v3501
        %v3506 = vpack.c.b8 0, %v3505
        %3507 = vst [vmem:[%s3504] sm:%s3502] %v3506
        %s3508 = scalar_lea.vmem [#allocation2], 512
        %v3509 = vld [vmem:[%s3508] sm:%s2998]
        %s3510 = sshllo.u32 0, %s2999
        %s3511 = smul.addr 1, 64
        %s3512 = scalar_lea.vmem %s175, %s3511 [#allocation3]
        %v3513 = vpack.c.b16 0, %v3509
        %v3514 = vpack.c.b8 0, %v3513
        %3515 = vst [vmem:[%s3512] sm:%s3510] %v3514
        %s3516 = scalar_lea.vmem [#allocation2], 520
        %v3517 = vld [vmem:[%s3516] sm:%s2998]
        %s3518 = sshllo.u32 0, %s2999
        %s3519 = smul.addr 1, 65
        %s3520 = scalar_lea.vmem %s175, %s3519 [#allocation3]
        %v3521 = vpack.c.b16 0, %v3517
        %v3522 = vpack.c.b8 0, %v3521
        %3523 = vst [vmem:[%s3520] sm:%s3518] %v3522
        %s3524 = scalar_lea.vmem [#allocation2], 528
        %v3525 = vld [vmem:[%s3524] sm:%s2998]
        %s3526 = sshllo.u32 0, %s2999
        %s3527 = smul.addr 1, 66
        %s3528 = scalar_lea.vmem %s175, %s3527 [#allocation3]
        %v3529 = vpack.c.b16 0, %v3525
        %v3530 = vpack.c.b8 0, %v3529
        %3531 = vst [vmem:[%s3528] sm:%s3526] %v3530
        %s3532 = scalar_lea.vmem [#allocation2], 536
        %v3533 = vld [vmem:[%s3532] sm:%s2998]
        %s3534 = sshllo.u32 0, %s2999
        %s3535 = smul.addr 1, 67
        %s3536 = scalar_lea.vmem %s175, %s3535 [#allocation3]
        %v3537 = vpack.c.b16 0, %v3533
        %v3538 = vpack.c.b8 0, %v3537
        %3539 = vst [vmem:[%s3536] sm:%s3534] %v3538
        %s3540 = scalar_lea.vmem [#allocation2], 544
        %v3541 = vld [vmem:[%s3540] sm:%s2998]
        %s3542 = sshllo.u32 0, %s2999
        %s3543 = smul.addr 1, 68
        %s3544 = scalar_lea.vmem %s175, %s3543 [#allocation3]
        %v3545 = vpack.c.b16 0, %v3541
        %v3546 = vpack.c.b8 0, %v3545
        %3547 = vst [vmem:[%s3544] sm:%s3542] %v3546
        %s3548 = scalar_lea.vmem [#allocation2], 552
        %v3549 = vld [vmem:[%s3548] sm:%s2998]
        %s3550 = sshllo.u32 0, %s2999
        %s3551 = smul.addr 1, 69
        %s3552 = scalar_lea.vmem %s175, %s3551 [#allocation3]
        %v3553 = vpack.c.b16 0, %v3549
        %v3554 = vpack.c.b8 0, %v3553
        %3555 = vst [vmem:[%s3552] sm:%s3550] %v3554
        %s3556 = scalar_lea.vmem [#allocation2], 560
        %v3557 = vld [vmem:[%s3556] sm:%s2998]
        %s3558 = sshllo.u32 0, %s2999
        %s3559 = smul.addr 1, 70
        %s3560 = scalar_lea.vmem %s175, %s3559 [#allocation3]
        %v3561 = vpack.c.b16 0, %v3557
        %v3562 = vpack.c.b8 0, %v3561
        %3563 = vst [vmem:[%s3560] sm:%s3558] %v3562
        %s3564 = scalar_lea.vmem [#allocation2], 568
        %v3565 = vld [vmem:[%s3564] sm:%s2998]
        %s3566 = sshllo.u32 0, %s2999
        %s3567 = smul.addr 1, 71
        %s3568 = scalar_lea.vmem %s175, %s3567 [#allocation3]
        %v3569 = vpack.c.b16 0, %v3565
        %v3570 = vpack.c.b8 0, %v3569
        %3571 = vst [vmem:[%s3568] sm:%s3566] %v3570
        %s3572 = scalar_lea.vmem [#allocation2], 576
        %v3573 = vld [vmem:[%s3572] sm:%s2998]
        %s3574 = sshllo.u32 0, %s2999
        %s3575 = smul.addr 1, 72
        %s3576 = scalar_lea.vmem %s175, %s3575 [#allocation3]
        %v3577 = vpack.c.b16 0, %v3573
        %v3578 = vpack.c.b8 0, %v3577
        %3579 = vst [vmem:[%s3576] sm:%s3574] %v3578
        %s3580 = scalar_lea.vmem [#allocation2], 584
        %v3581 = vld [vmem:[%s3580] sm:%s2998]
        %s3582 = sshllo.u32 0, %s2999
        %s3583 = smul.addr 1, 73
        %s3584 = scalar_lea.vmem %s175, %s3583 [#allocation3]
        %v3585 = vpack.c.b16 0, %v3581
        %v3586 = vpack.c.b8 0, %v3585
        %3587 = vst [vmem:[%s3584] sm:%s3582] %v3586
        %s3588 = scalar_lea.vmem [#allocation2], 592
        %v3589 = vld [vmem:[%s3588] sm:%s2998]
        %s3590 = sshllo.u32 0, %s2999
        %s3591 = smul.addr 1, 74
        %s3592 = scalar_lea.vmem %s175, %s3591 [#allocation3]
        %v3593 = vpack.c.b16 0, %v3589
        %v3594 = vpack.c.b8 0, %v3593
        %3595 = vst [vmem:[%s3592] sm:%s3590] %v3594
        %s3596 = scalar_lea.vmem [#allocation2], 600
        %v3597 = vld [vmem:[%s3596] sm:%s2998]
        %s3598 = sshllo.u32 0, %s2999
        %s3599 = smul.addr 1, 75
        %s3600 = scalar_lea.vmem %s175, %s3599 [#allocation3]
        %v3601 = vpack.c.b16 0, %v3597
        %v3602 = vpack.c.b8 0, %v3601
        %3603 = vst [vmem:[%s3600] sm:%s3598] %v3602
        %s3604 = scalar_lea.vmem [#allocation2], 608
        %v3605 = vld [vmem:[%s3604] sm:%s2998]
        %s3606 = sshllo.u32 0, %s2999
        %s3607 = smul.addr 1, 76
        %s3608 = scalar_lea.vmem %s175, %s3607 [#allocation3]
        %v3609 = vpack.c.b16 0, %v3605
        %v3610 = vpack.c.b8 0, %v3609
        %3611 = vst [vmem:[%s3608] sm:%s3606] %v3610
        %s3612 = scalar_lea.vmem [#allocation2], 616
        %v3613 = vld [vmem:[%s3612] sm:%s2998]
        %s3614 = sshllo.u32 0, %s2999
        %s3615 = smul.addr 1, 77
        %s3616 = scalar_lea.vmem %s175, %s3615 [#allocation3]
        %v3617 = vpack.c.b16 0, %v3613
        %v3618 = vpack.c.b8 0, %v3617
        %3619 = vst [vmem:[%s3616] sm:%s3614] %v3618
        %s3620 = scalar_lea.vmem [#allocation2], 624
        %v3621 = vld [vmem:[%s3620] sm:%s2998]
        %s3622 = sshllo.u32 0, %s2999
        %s3623 = smul.addr 1, 78
        %s3624 = scalar_lea.vmem %s175, %s3623 [#allocation3]
        %v3625 = vpack.c.b16 0, %v3621
        %v3626 = vpack.c.b8 0, %v3625
        %3627 = vst [vmem:[%s3624] sm:%s3622] %v3626
        %s3628 = scalar_lea.vmem [#allocation2], 632
        %v3629 = vld [vmem:[%s3628] sm:%s2998]
        %s3630 = sshllo.u32 0, %s2999
        %s3631 = smul.addr 1, 79
        %s3632 = scalar_lea.vmem %s175, %s3631 [#allocation3]
        %v3633 = vpack.c.b16 0, %v3629
        %v3634 = vpack.c.b8 0, %v3633
        %3635 = vst [vmem:[%s3632] sm:%s3630] %v3634
        %s3636 = scalar_lea.vmem [#allocation2], 640
        %v3637 = vld [vmem:[%s3636] sm:%s2998]
        %s3638 = sshllo.u32 0, %s2999
        %s3639 = smul.addr 1, 80
        %s3640 = scalar_lea.vmem %s175, %s3639 [#allocation3]
        %v3641 = vpack.c.b16 0, %v3637
        %v3642 = vpack.c.b8 0, %v3641
        %3643 = vst [vmem:[%s3640] sm:%s3638] %v3642
        %s3644 = scalar_lea.vmem [#allocation2], 648
        %v3645 = vld [vmem:[%s3644] sm:%s2998]
        %s3646 = sshllo.u32 0, %s2999
        %s3647 = smul.addr 1, 81
        %s3648 = scalar_lea.vmem %s175, %s3647 [#allocation3]
        %v3649 = vpack.c.b16 0, %v3645
        %v3650 = vpack.c.b8 0, %v3649
        %3651 = vst [vmem:[%s3648] sm:%s3646] %v3650
        %s3652 = scalar_lea.vmem [#allocation2], 656
        %v3653 = vld [vmem:[%s3652] sm:%s2998]
        %s3654 = sshllo.u32 0, %s2999
        %s3655 = smul.addr 1, 82
        %s3656 = scalar_lea.vmem %s175, %s3655 [#allocation3]
        %v3657 = vpack.c.b16 0, %v3653
        %v3658 = vpack.c.b8 0, %v3657
        %3659 = vst [vmem:[%s3656] sm:%s3654] %v3658
        %s3660 = scalar_lea.vmem [#allocation2], 664
        %v3661 = vld [vmem:[%s3660] sm:%s2998]
        %s3662 = sshllo.u32 0, %s2999
        %s3663 = smul.addr 1, 83
        %s3664 = scalar_lea.vmem %s175, %s3663 [#allocation3]
        %v3665 = vpack.c.b16 0, %v3661
        %v3666 = vpack.c.b8 0, %v3665
        %3667 = vst [vmem:[%s3664] sm:%s3662] %v3666
        %s3668 = scalar_lea.vmem [#allocation2], 672
        %v3669 = vld [vmem:[%s3668] sm:%s2998]
        %s3670 = sshllo.u32 0, %s2999
        %s3671 = smul.addr 1, 84
        %s3672 = scalar_lea.vmem %s175, %s3671 [#allocation3]
        %v3673 = vpack.c.b16 0, %v3669
        %v3674 = vpack.c.b8 0, %v3673
        %3675 = vst [vmem:[%s3672] sm:%s3670] %v3674
        %s3676 = scalar_lea.vmem [#allocation2], 680
        %v3677 = vld [vmem:[%s3676] sm:%s2998]
        %s3678 = sshllo.u32 0, %s2999
        %s3679 = smul.addr 1, 85
        %s3680 = scalar_lea.vmem %s175, %s3679 [#allocation3]
        %v3681 = vpack.c.b16 0, %v3677
        %v3682 = vpack.c.b8 0, %v3681
        %3683 = vst [vmem:[%s3680] sm:%s3678] %v3682
        %s3684 = scalar_lea.vmem [#allocation2], 688
        %v3685 = vld [vmem:[%s3684] sm:%s2998]
        %s3686 = sshllo.u32 0, %s2999
        %s3687 = smul.addr 1, 86
        %s3688 = scalar_lea.vmem %s175, %s3687 [#allocation3]
        %v3689 = vpack.c.b16 0, %v3685
        %v3690 = vpack.c.b8 0, %v3689
        %3691 = vst [vmem:[%s3688] sm:%s3686] %v3690
        %s3692 = scalar_lea.vmem [#allocation2], 696
        %v3693 = vld [vmem:[%s3692] sm:%s2998]
        %s3694 = sshllo.u32 0, %s2999
        %s3695 = smul.addr 1, 87
        %s3696 = scalar_lea.vmem %s175, %s3695 [#allocation3]
        %v3697 = vpack.c.b16 0, %v3693
        %v3698 = vpack.c.b8 0, %v3697
        %3699 = vst [vmem:[%s3696] sm:%s3694] %v3698
        %s3700 = scalar_lea.vmem [#allocation2], 704
        %v3701 = vld [vmem:[%s3700] sm:%s2998]
        %s3702 = sshllo.u32 0, %s2999
        %s3703 = smul.addr 1, 88
        %s3704 = scalar_lea.vmem %s175, %s3703 [#allocation3]
        %v3705 = vpack.c.b16 0, %v3701
        %v3706 = vpack.c.b8 0, %v3705
        %3707 = vst [vmem:[%s3704] sm:%s3702] %v3706
        %s3708 = scalar_lea.vmem [#allocation2], 712
        %v3709 = vld [vmem:[%s3708] sm:%s2998]
        %s3710 = sshllo.u32 0, %s2999
        %s3711 = smul.addr 1, 89
        %s3712 = scalar_lea.vmem %s175, %s3711 [#allocation3]
        %v3713 = vpack.c.b16 0, %v3709
        %v3714 = vpack.c.b8 0, %v3713
        %3715 = vst [vmem:[%s3712] sm:%s3710] %v3714
        %s3716 = scalar_lea.vmem [#allocation2], 720
        %v3717 = vld [vmem:[%s3716] sm:%s2998]
        %s3718 = sshllo.u32 0, %s2999
        %s3719 = smul.addr 1, 90
        %s3720 = scalar_lea.vmem %s175, %s3719 [#allocation3]
        %v3721 = vpack.c.b16 0, %v3717
        %v3722 = vpack.c.b8 0, %v3721
        %3723 = vst [vmem:[%s3720] sm:%s3718] %v3722
        %s3724 = scalar_lea.vmem [#allocation2], 728
        %v3725 = vld [vmem:[%s3724] sm:%s2998]
        %s3726 = sshllo.u32 0, %s2999
        %s3727 = smul.addr 1, 91
        %s3728 = scalar_lea.vmem %s175, %s3727 [#allocation3]
        %v3729 = vpack.c.b16 0, %v3725
        %v3730 = vpack.c.b8 0, %v3729
        %3731 = vst [vmem:[%s3728] sm:%s3726] %v3730
        %s3732 = scalar_lea.vmem [#allocation2], 736
        %v3733 = vld [vmem:[%s3732] sm:%s2998]
        %s3734 = sshllo.u32 0, %s2999
        %s3735 = smul.addr 1, 92
        %s3736 = scalar_lea.vmem %s175, %s3735 [#allocation3]
        %v3737 = vpack.c.b16 0, %v3733
        %v3738 = vpack.c.b8 0, %v3737
        %3739 = vst [vmem:[%s3736] sm:%s3734] %v3738
        %s3740 = scalar_lea.vmem [#allocation2], 744
        %v3741 = vld [vmem:[%s3740] sm:%s2998]
        %s3742 = sshllo.u32 0, %s2999
        %s3743 = smul.addr 1, 93
        %s3744 = scalar_lea.vmem %s175, %s3743 [#allocation3]
        %v3745 = vpack.c.b16 0, %v3741
        %v3746 = vpack.c.b8 0, %v3745
        %3747 = vst [vmem:[%s3744] sm:%s3742] %v3746
        %s3748 = scalar_lea.vmem [#allocation2], 752
        %v3749 = vld [vmem:[%s3748] sm:%s2998]
        %s3750 = sshllo.u32 0, %s2999
        %s3751 = smul.addr 1, 94
        %s3752 = scalar_lea.vmem %s175, %s3751 [#allocation3]
        %v3753 = vpack.c.b16 0, %v3749
        %v3754 = vpack.c.b8 0, %v3753
        %3755 = vst [vmem:[%s3752] sm:%s3750] %v3754
        %s3756 = scalar_lea.vmem [#allocation2], 760
        %v3757 = vld [vmem:[%s3756] sm:%s2998]
        %s3758 = sshllo.u32 0, %s2999
        %s3759 = smul.addr 1, 95
        %s3760 = scalar_lea.vmem %s175, %s3759 [#allocation3]
        %v3761 = vpack.c.b16 0, %v3757
        %v3762 = vpack.c.b8 0, %v3761
        %3763 = vst [vmem:[%s3760] sm:%s3758] %v3762
        %s3764 = scalar_lea.vmem [#allocation2], 768
        %v3765 = vld [vmem:[%s3764] sm:%s2998]
        %s3766 = sshllo.u32 0, %s2999
        %s3767 = smul.addr 1, 96
        %s3768 = scalar_lea.vmem %s175, %s3767 [#allocation3]
        %v3769 = vpack.c.b16 0, %v3765
        %v3770 = vpack.c.b8 0, %v3769
        %3771 = vst [vmem:[%s3768] sm:%s3766] %v3770
        %s3772 = scalar_lea.vmem [#allocation2], 776
        %v3773 = vld [vmem:[%s3772] sm:%s2998]
        %s3774 = sshllo.u32 0, %s2999
        %s3775 = smul.addr 1, 97
        %s3776 = scalar_lea.vmem %s175, %s3775 [#allocation3]
        %v3777 = vpack.c.b16 0, %v3773
        %v3778 = vpack.c.b8 0, %v3777
        %3779 = vst [vmem:[%s3776] sm:%s3774] %v3778
        %s3780 = scalar_lea.vmem [#allocation2], 784
        %v3781 = vld [vmem:[%s3780] sm:%s2998]
        %s3782 = sshllo.u32 0, %s2999
        %s3783 = smul.addr 1, 98
        %s3784 = scalar_lea.vmem %s175, %s3783 [#allocation3]
        %v3785 = vpack.c.b16 0, %v3781
        %v3786 = vpack.c.b8 0, %v3785
        %3787 = vst [vmem:[%s3784] sm:%s3782] %v3786
        %s3788 = scalar_lea.vmem [#allocation2], 792
        %v3789 = vld [vmem:[%s3788] sm:%s2998]
        %s3790 = sshllo.u32 0, %s2999
        %s3791 = smul.addr 1, 99
        %s3792 = scalar_lea.vmem %s175, %s3791 [#allocation3]
        %v3793 = vpack.c.b16 0, %v3789
        %v3794 = vpack.c.b8 0, %v3793
        %3795 = vst [vmem:[%s3792] sm:%s3790] %v3794
        %s3796 = scalar_lea.vmem [#allocation2], 800
        %v3797 = vld [vmem:[%s3796] sm:%s2998]
        %s3798 = sshllo.u32 0, %s2999
        %s3799 = smul.addr 1, 100
        %s3800 = scalar_lea.vmem %s175, %s3799 [#allocation3]
        %v3801 = vpack.c.b16 0, %v3797
        %v3802 = vpack.c.b8 0, %v3801
        %3803 = vst [vmem:[%s3800] sm:%s3798] %v3802
        %s3804 = scalar_lea.vmem [#allocation2], 808
        %v3805 = vld [vmem:[%s3804] sm:%s2998]
        %s3806 = sshllo.u32 0, %s2999
        %s3807 = smul.addr 1, 101
        %s3808 = scalar_lea.vmem %s175, %s3807 [#allocation3]
        %v3809 = vpack.c.b16 0, %v3805
        %v3810 = vpack.c.b8 0, %v3809
        %3811 = vst [vmem:[%s3808] sm:%s3806] %v3810
        %s3812 = scalar_lea.vmem [#allocation2], 816
        %v3813 = vld [vmem:[%s3812] sm:%s2998]
        %s3814 = sshllo.u32 0, %s2999
        %s3815 = smul.addr 1, 102
        %s3816 = scalar_lea.vmem %s175, %s3815 [#allocation3]
        %v3817 = vpack.c.b16 0, %v3813
        %v3818 = vpack.c.b8 0, %v3817
        %3819 = vst [vmem:[%s3816] sm:%s3814] %v3818
        %s3820 = scalar_lea.vmem [#allocation2], 824
        %v3821 = vld [vmem:[%s3820] sm:%s2998]
        %s3822 = sshllo.u32 0, %s2999
        %s3823 = smul.addr 1, 103
        %s3824 = scalar_lea.vmem %s175, %s3823 [#allocation3]
        %v3825 = vpack.c.b16 0, %v3821
        %v3826 = vpack.c.b8 0, %v3825
        %3827 = vst [vmem:[%s3824] sm:%s3822] %v3826
        %s3828 = scalar_lea.vmem [#allocation2], 832
        %v3829 = vld [vmem:[%s3828] sm:%s2998]
        %s3830 = sshllo.u32 0, %s2999
        %s3831 = smul.addr 1, 104
        %s3832 = scalar_lea.vmem %s175, %s3831 [#allocation3]
        %v3833 = vpack.c.b16 0, %v3829
        %v3834 = vpack.c.b8 0, %v3833
        %3835 = vst [vmem:[%s3832] sm:%s3830] %v3834
        %s3836 = scalar_lea.vmem [#allocation2], 840
        %v3837 = vld [vmem:[%s3836] sm:%s2998]
        %s3838 = sshllo.u32 0, %s2999
        %s3839 = smul.addr 1, 105
        %s3840 = scalar_lea.vmem %s175, %s3839 [#allocation3]
        %v3841 = vpack.c.b16 0, %v3837
        %v3842 = vpack.c.b8 0, %v3841
        %3843 = vst [vmem:[%s3840] sm:%s3838] %v3842
        %s3844 = scalar_lea.vmem [#allocation2], 848
        %v3845 = vld [vmem:[%s3844] sm:%s2998]
        %s3846 = sshllo.u32 0, %s2999
        %s3847 = smul.addr 1, 106
        %s3848 = scalar_lea.vmem %s175, %s3847 [#allocation3]
        %v3849 = vpack.c.b16 0, %v3845
        %v3850 = vpack.c.b8 0, %v3849
        %3851 = vst [vmem:[%s3848] sm:%s3846] %v3850
        %s3852 = scalar_lea.vmem [#allocation2], 856
        %v3853 = vld [vmem:[%s3852] sm:%s2998]
        %s3854 = sshllo.u32 0, %s2999
        %s3855 = smul.addr 1, 107
        %s3856 = scalar_lea.vmem %s175, %s3855 [#allocation3]
        %v3857 = vpack.c.b16 0, %v3853
        %v3858 = vpack.c.b8 0, %v3857
        %3859 = vst [vmem:[%s3856] sm:%s3854] %v3858
        %s3860 = scalar_lea.vmem [#allocation2], 864
        %v3861 = vld [vmem:[%s3860] sm:%s2998]
        %s3862 = sshllo.u32 0, %s2999
        %s3863 = smul.addr 1, 108
        %s3864 = scalar_lea.vmem %s175, %s3863 [#allocation3]
        %v3865 = vpack.c.b16 0, %v3861
        %v3866 = vpack.c.b8 0, %v3865
        %3867 = vst [vmem:[%s3864] sm:%s3862] %v3866
        %s3868 = scalar_lea.vmem [#allocation2], 872
        %v3869 = vld [vmem:[%s3868] sm:%s2998]
        %s3870 = sshllo.u32 0, %s2999
        %s3871 = smul.addr 1, 109
        %s3872 = scalar_lea.vmem %s175, %s3871 [#allocation3]
        %v3873 = vpack.c.b16 0, %v3869
        %v3874 = vpack.c.b8 0, %v3873
        %3875 = vst [vmem:[%s3872] sm:%s3870] %v3874
        %s3876 = scalar_lea.vmem [#allocation2], 880
        %v3877 = vld [vmem:[%s3876] sm:%s2998]
        %s3878 = sshllo.u32 0, %s2999
        %s3879 = smul.addr 1, 110
        %s3880 = scalar_lea.vmem %s175, %s3879 [#allocation3]
        %v3881 = vpack.c.b16 0, %v3877
        %v3882 = vpack.c.b8 0, %v3881
        %3883 = vst [vmem:[%s3880] sm:%s3878] %v3882
        %s3884 = scalar_lea.vmem [#allocation2], 888
        %v3885 = vld [vmem:[%s3884] sm:%s2998]
        %s3886 = sshllo.u32 0, %s2999
        %s3887 = smul.addr 1, 111
        %s3888 = scalar_lea.vmem %s175, %s3887 [#allocation3]
        %v3889 = vpack.c.b16 0, %v3885
        %v3890 = vpack.c.b8 0, %v3889
        %3891 = vst [vmem:[%s3888] sm:%s3886] %v3890
        %s3892 = scalar_lea.vmem [#allocation2], 896
        %v3893 = vld [vmem:[%s3892] sm:%s2998]
        %s3894 = sshllo.u32 0, %s2999
        %s3895 = smul.addr 1, 112
        %s3896 = scalar_lea.vmem %s175, %s3895 [#allocation3]
        %v3897 = vpack.c.b16 0, %v3893
        %v3898 = vpack.c.b8 0, %v3897
        %3899 = vst [vmem:[%s3896] sm:%s3894] %v3898
        %s3900 = scalar_lea.vmem [#allocation2], 904
        %v3901 = vld [vmem:[%s3900] sm:%s2998]
        %s3902 = sshllo.u32 0, %s2999
        %s3903 = smul.addr 1, 113
        %s3904 = scalar_lea.vmem %s175, %s3903 [#allocation3]
        %v3905 = vpack.c.b16 0, %v3901
        %v3906 = vpack.c.b8 0, %v3905
        %3907 = vst [vmem:[%s3904] sm:%s3902] %v3906
        %s3908 = scalar_lea.vmem [#allocation2], 912
        %v3909 = vld [vmem:[%s3908] sm:%s2998]
        %s3910 = sshllo.u32 0, %s2999
        %s3911 = smul.addr 1, 114
        %s3912 = scalar_lea.vmem %s175, %s3911 [#allocation3]
        %v3913 = vpack.c.b16 0, %v3909
        %v3914 = vpack.c.b8 0, %v3913
        %3915 = vst [vmem:[%s3912] sm:%s3910] %v3914
        %s3916 = scalar_lea.vmem [#allocation2], 920
        %v3917 = vld [vmem:[%s3916] sm:%s2998]
        %s3918 = sshllo.u32 0, %s2999
        %s3919 = smul.addr 1, 115
        %s3920 = scalar_lea.vmem %s175, %s3919 [#allocation3]
        %v3921 = vpack.c.b16 0, %v3917
        %v3922 = vpack.c.b8 0, %v3921
        %3923 = vst [vmem:[%s3920] sm:%s3918] %v3922
        %s3924 = scalar_lea.vmem [#allocation2], 928
        %v3925 = vld [vmem:[%s3924] sm:%s2998]
        %s3926 = sshllo.u32 0, %s2999
        %s3927 = smul.addr 1, 116
        %s3928 = scalar_lea.vmem %s175, %s3927 [#allocation3]
        %v3929 = vpack.c.b16 0, %v3925
        %v3930 = vpack.c.b8 0, %v3929
        %3931 = vst [vmem:[%s3928] sm:%s3926] %v3930
        %s3932 = scalar_lea.vmem [#allocation2], 936
        %v3933 = vld [vmem:[%s3932] sm:%s2998]
        %s3934 = sshllo.u32 0, %s2999
        %s3935 = smul.addr 1, 117
        %s3936 = scalar_lea.vmem %s175, %s3935 [#allocation3]
        %v3937 = vpack.c.b16 0, %v3933
        %v3938 = vpack.c.b8 0, %v3937
        %3939 = vst [vmem:[%s3936] sm:%s3934] %v3938
        %s3940 = scalar_lea.vmem [#allocation2], 944
        %v3941 = vld [vmem:[%s3940] sm:%s2998]
        %s3942 = sshllo.u32 0, %s2999
        %s3943 = smul.addr 1, 118
        %s3944 = scalar_lea.vmem %s175, %s3943 [#allocation3]
        %v3945 = vpack.c.b16 0, %v3941
        %v3946 = vpack.c.b8 0, %v3945
        %3947 = vst [vmem:[%s3944] sm:%s3942] %v3946
        %s3948 = scalar_lea.vmem [#allocation2], 952
        %v3949 = vld [vmem:[%s3948] sm:%s2998]
        %s3950 = sshllo.u32 0, %s2999
        %s3951 = smul.addr 1, 119
        %s3952 = scalar_lea.vmem %s175, %s3951 [#allocation3]
        %v3953 = vpack.c.b16 0, %v3949
        %v3954 = vpack.c.b8 0, %v3953
        %3955 = vst [vmem:[%s3952] sm:%s3950] %v3954
        %s3956 = scalar_lea.vmem [#allocation2], 960
        %v3957 = vld [vmem:[%s3956] sm:%s2998]
        %s3958 = sshllo.u32 0, %s2999
        %s3959 = smul.addr 1, 120
        %s3960 = scalar_lea.vmem %s175, %s3959 [#allocation3]
        %v3961 = vpack.c.b16 0, %v3957
        %v3962 = vpack.c.b8 0, %v3961
        %3963 = vst [vmem:[%s3960] sm:%s3958] %v3962
        %s3964 = scalar_lea.vmem [#allocation2], 968
        %v3965 = vld [vmem:[%s3964] sm:%s2998]
        %s3966 = sshllo.u32 0, %s2999
        %s3967 = smul.addr 1, 121
        %s3968 = scalar_lea.vmem %s175, %s3967 [#allocation3]
        %v3969 = vpack.c.b16 0, %v3965
        %v3970 = vpack.c.b8 0, %v3969
        %3971 = vst [vmem:[%s3968] sm:%s3966] %v3970
        %s3972 = scalar_lea.vmem [#allocation2], 976
        %v3973 = vld [vmem:[%s3972] sm:%s2998]
        %s3974 = sshllo.u32 0, %s2999
        %s3975 = smul.addr 1, 122
        %s3976 = scalar_lea.vmem %s175, %s3975 [#allocation3]
        %v3977 = vpack.c.b16 0, %v3973
        %v3978 = vpack.c.b8 0, %v3977
        %3979 = vst [vmem:[%s3976] sm:%s3974] %v3978
        %s3980 = scalar_lea.vmem [#allocation2], 984
        %v3981 = vld [vmem:[%s3980] sm:%s2998]
        %s3982 = sshllo.u32 0, %s2999
        %s3983 = smul.addr 1, 123
        %s3984 = scalar_lea.vmem %s175, %s3983 [#allocation3]
        %v3985 = vpack.c.b16 0, %v3981
        %v3986 = vpack.c.b8 0, %v3985
        %3987 = vst [vmem:[%s3984] sm:%s3982] %v3986
        %s3988 = scalar_lea.vmem [#allocation2], 992
        %v3989 = vld [vmem:[%s3988] sm:%s2998]
        %s3990 = sshllo.u32 0, %s2999
        %s3991 = smul.addr 1, 124
        %s3992 = scalar_lea.vmem %s175, %s3991 [#allocation3]
        %v3993 = vpack.c.b16 0, %v3989
        %v3994 = vpack.c.b8 0, %v3993
        %3995 = vst [vmem:[%s3992] sm:%s3990] %v3994
        %s3996 = scalar_lea.vmem [#allocation2], 1000
        %v3997 = vld [vmem:[%s3996] sm:%s2998]
        %s3998 = sshllo.u32 0, %s2999
        %s3999 = smul.addr 1, 125
        %s4000 = scalar_lea.vmem %s175, %s3999 [#allocation3]
        %v4001 = vpack.c.b16 0, %v3997
        %v4002 = vpack.c.b8 0, %v4001
        %4003 = vst [vmem:[%s4000] sm:%s3998] %v4002
        %s4004 = scalar_lea.vmem [#allocation2], 1008
        %v4005 = vld [vmem:[%s4004] sm:%s2998]
        %s4006 = sshllo.u32 0, %s2999
        %s4007 = smul.addr 1, 126
        %s4008 = scalar_lea.vmem %s175, %s4007 [#allocation3]
        %v4009 = vpack.c.b16 0, %v4005
        %v4010 = vpack.c.b8 0, %v4009
        %4011 = vst [vmem:[%s4008] sm:%s4006] %v4010
        %s4012 = scalar_lea.vmem [#allocation2], 1016
        %v4013 = vld [vmem:[%s4012] sm:%s2998]
        %s4014 = sshllo.u32 0, %s2999
        %s4015 = smul.addr 1, 127
        %s4016 = scalar_lea.vmem %s175, %s4015 [#allocation3]
        %v4017 = vpack.c.b16 0, %v4013
        %v4018 = vpack.c.b8 0, %v4017
        %4019 = vst [vmem:[%s4016] sm:%s4014] %v4018
        %s4020 = sand.u32 %s11, 1
        %s4021 = sand.u32 %s11, 1
        %s4022 = smul.addr %s4021, 128
        %s4023 = scalar_lea.vmem [#allocation3], %s4022
        %s4024 = smul.u32 16, %s17
        %s4025 = smul.u32 8, %s18
        %s4026 = sadd.s32 %s20, %s19
        %s4027 = sadd.s32 %s4026, %s4025
        %s4028 = smul.addr %s4024, 16
        %s4029 = sadd.s32 %s4027, %s4028
        %s4030 = scalar_lea.vmem %s1, %s4029
        // Predicated region
        $region55: #{reverse.1} parent=53 // pred_check
          _
        $region56: #{reverse.1} parent=53 // pred_check_branch
          %4032 = sbr.rel (0) target = $region58
        $region57: #{reverse.1} parent=53 // pred_region
          // Predicated region
          $region59: #{reverse.1} parent=57 // pred_check
            _
          $region60: #{reverse.1} parent=57 // pred_check_branch
            %4034 = sbr.rel (0) target = $region62
          $region61: #{reverse.1} parent=57 // pred_region
            // Predicated region
            $region74: #{reverse.1} parent=61 // pred_check
              _
            $region75: #{reverse.1} parent=61 // pred_check_branch
              %4079 = sbr.rel (0) target = $region77
            $region76: #{reverse.1} parent=61 // pred_region
              loop: start=0, step=1, limit=1
              $region78: #{reverse.1} parent=76 // loop_pre_header
                _
              $region79: #{reverse.1} parent=76 // loop_header
                %s4081 = sphi 0, %s4085
                %p4082 = scmp.ge.s32.totalorder %s4081, 1
                %s4086 = sphi %s4023, %s4023
                %s4087 = sphi %s4030, %s4030
              $region80: #{reverse.1} parent=76 // loop_header_branch
                %4084 = sbr.rel (%p4082) target = $region84
              $region81: #{reverse.1} parent=76 // loop_body
                %v4088 = vld [vmem:[%s4086] sm:$0xff]
                %4089 = vst [vmem:[%s4087] sm:$0xff] %v4088
                %v4090 = vld [vmem:[%s4086 + $0x8] sm:$0xff]
                %4091 = vst [vmem:[%s4087 + $0x10] sm:$0xff] %v4090
                %v4092 = vld [vmem:[%s4086 + $0x10] sm:$0xff]
                %4093 = vst [vmem:[%s4087 + $0x20] sm:$0xff] %v4092
                %v4094 = vld [vmem:[%s4086 + $0x18] sm:$0xff]
                %4095 = vst [vmem:[%s4087 + $0x30] sm:$0xff] %v4094
                %v4096 = vld [vmem:[%s4086 + $0x20] sm:$0xff]
                %4097 = vst [vmem:[%s4087 + $0x40] sm:$0xff] %v4096
                %v4098 = vld [vmem:[%s4086 + $0x28] sm:$0xff]
                %4099 = vst [vmem:[%s4087 + $0x50] sm:$0xff] %v4098
                %v4100 = vld [vmem:[%s4086 + $0x30] sm:$0xff]
                %4101 = vst [vmem:[%s4087 + $0x60] sm:$0xff] %v4100
                %v4102 = vld [vmem:[%s4086 + $0x38] sm:$0xff]
                %4103 = vst [vmem:[%s4087 + $0x70] sm:$0xff] %v4102
                %v4104 = vld [vmem:[%s4086 + $0x40] sm:$0xff]
                %4105 = vst [vmem:[%s4087 + $0x80] sm:$0xff] %v4104
                %v4106 = vld [vmem:[%s4086 + $0x48] sm:$0xff]
                %4107 = vst [vmem:[%s4087 + $0x90] sm:$0xff] %v4106
                %v4108 = vld [vmem:[%s4086 + $0x50] sm:$0xff]
                %4109 = vst [vmem:[%s4087 + $0xa0] sm:$0xff] %v4108
                %v4110 = vld [vmem:[%s4086 + $0x58] sm:$0xff]
                %4111 = vst [vmem:[%s4087 + $0xb0] sm:$0xff] %v4110
                %v4112 = vld [vmem:[%s4086 + $0x60] sm:$0xff]
                %4113 = vst [vmem:[%s4087 + $0xc0] sm:$0xff] %v4112
                %v4114 = vld [vmem:[%s4086 + $0x68] sm:$0xff]
                %4115 = vst [vmem:[%s4087 + $0xd0] sm:$0xff] %v4114
                %v4116 = vld [vmem:[%s4086 + $0x70] sm:$0xff]
                %4117 = vst [vmem:[%s4087 + $0xe0] sm:$0xff] %v4116
                %v4118 = vld [vmem:[%s4086 + $0x78] sm:$0xff]
                %4119 = vst [vmem:[%s4087 + $0xf0] sm:$0xff] %v4118
              $region82: #{reverse.1} parent=76 // loop_footer
                %s4085 = sadd.s32 1, %s4081
              $region83: #{reverse.1} parent=76 // loop_footer_branch
                %4080 = sbr.rel target = $region79
              $region84: #{reverse.1} parent=76 // loop_exit
                _
            $region77: #{reverse.1} parent=61 // pred_fallthru
              _
            // Predicated region
            $region85: #{reverse.1} parent=61 // pred_check
              _
            $region86: #{reverse.1} parent=61 // pred_check_branch
              %4121 = sbr.rel target = $region88
            $region87: #{reverse.1} parent=61 // pred_region
              _
            $region88: #{reverse.1} parent=61 // pred_fallthru
              _
          $region62: #{reverse.1} parent=57 // pred_fallthru
            _
          // Predicated region
          $region63: #{reverse.1} parent=57 // pred_check
            _
          $region64: #{reverse.1} parent=57 // pred_check_branch
            %4036 = sbr.rel target = $region66
          $region65: #{reverse.1} parent=57 // pred_region
            loop: start=0, step=1, limit=1
            $region67: #{reverse.1} parent=65 // loop_pre_header
              _
            $region68: #{reverse.1} parent=65 // loop_header
              %s4039 = sphi 0, %s4043
              %p4040 = scmp.ge.s32.totalorder %s4039, 1
              %s4044 = sphi %s4023, %s4023
              %s4045 = sphi %s4030, %s4030
            $region69: #{reverse.1} parent=65 // loop_header_branch
              %4042 = sbr.rel (%p4040) target = $region73
            $region70: #{reverse.1} parent=65 // loop_body
              %v4046 = vld [vmem:[%s4044] sm:$0xff]
              %4047 = vst [vmem:[%s4045] sm:$0xff] %v4046
              %v4048 = vld [vmem:[%s4044 + $0x8] sm:$0xff]
              %4049 = vst [vmem:[%s4045 + $0x10] sm:$0xff] %v4048
              %v4050 = vld [vmem:[%s4044 + $0x10] sm:$0xff]
              %4051 = vst [vmem:[%s4045 + $0x20] sm:$0xff] %v4050
              %v4052 = vld [vmem:[%s4044 + $0x18] sm:$0xff]
              %4053 = vst [vmem:[%s4045 + $0x30] sm:$0xff] %v4052
              %v4054 = vld [vmem:[%s4044 + $0x20] sm:$0xff]
              %4055 = vst [vmem:[%s4045 + $0x40] sm:$0xff] %v4054
              %v4056 = vld [vmem:[%s4044 + $0x28] sm:$0xff]
              %4057 = vst [vmem:[%s4045 + $0x50] sm:$0xff] %v4056
              %v4058 = vld [vmem:[%s4044 + $0x30] sm:$0xff]
              %4059 = vst [vmem:[%s4045 + $0x60] sm:$0xff] %v4058
              %v4060 = vld [vmem:[%s4044 + $0x38] sm:$0xff]
              %4061 = vst [vmem:[%s4045 + $0x70] sm:$0xff] %v4060
              %v4062 = vld [vmem:[%s4044 + $0x40] sm:$0xff]
              %4063 = vst [vmem:[%s4045 + $0x80] sm:$0xff] %v4062
              %v4064 = vld [vmem:[%s4044 + $0x48] sm:$0xff]
              %4065 = vst [vmem:[%s4045 + $0x90] sm:$0xff] %v4064
              %v4066 = vld [vmem:[%s4044 + $0x50] sm:$0xff]
              %4067 = vst [vmem:[%s4045 + $0xa0] sm:$0xff] %v4066
              %v4068 = vld [vmem:[%s4044 + $0x58] sm:$0xff]
              %4069 = vst [vmem:[%s4045 + $0xb0] sm:$0xff] %v4068
              %v4070 = vld [vmem:[%s4044 + $0x60] sm:$0xff]
              %4071 = vst [vmem:[%s4045 + $0xc0] sm:$0xff] %v4070
              %v4072 = vld [vmem:[%s4044 + $0x68] sm:$0xff]
              %4073 = vst [vmem:[%s4045 + $0xd0] sm:$0xff] %v4072
              %v4074 = vld [vmem:[%s4044 + $0x70] sm:$0xff]
              %4075 = vst [vmem:[%s4045 + $0xe0] sm:$0xff] %v4074
              %v4076 = vld [vmem:[%s4044 + $0x78] sm:$0xff]
              %4077 = vst [vmem:[%s4045 + $0xf0] sm:$0xff] %v4076
            $region71: #{reverse.1} parent=65 // loop_footer
              %s4043 = sadd.s32 1, %s4039
            $region72: #{reverse.1} parent=65 // loop_footer_branch
              %4038 = sbr.rel target = $region68
            $region73: #{reverse.1} parent=65 // loop_exit
              _
          $region66: #{reverse.1} parent=57 // pred_fallthru
            _
        $region58: #{reverse.1} parent=53 // pred_fallthru
          _
        %4122 = vnop
      $region54: #{reverse.1} parent=5 // pred_fallthru
        _
      %p4123 = scmp.le.s32.totalorder 2, %s6
      // Predicated region
      $region89: #{reverse.1} parent=5 // pred_check
        %p4124 = pneg %p4123
      $region90: #{reverse.1} parent=5 // pred_check_branch
        %4126 = sbr.rel (%p4124) target = $region92
      $region91: #{reverse.1} parent=5 // pred_region
        %s4127 = ssub.s32 %s6, 2
        %s4128 = sand.u32 %s12, 1
        %s4129 = sand.u32 %s12, 1
        %s4130 = smul.addr %s4129, 128
        %s4131 = scalar_lea.vmem [#allocation3], %s4130
      $region92: #{reverse.1} parent=5 // pred_fallthru
        _
    $region6: #{reverse.1} parent=1 // loop_footer
      %s10 = sadd.s32 1, %s6
    $region7: #{reverse.1} parent=1 // loop_footer_branch
      %5 = sbr.rel target = $region3
    $region8: #{reverse.1} parent=1 // loop_exit
      _

</llo_original>
